<compile_context>
chip_gen: v7x
topology: tpu7x:2x2x1
jax: 0.10.0
libtpu: 0.0.40
codegen_flags: <defaults>
</compile_context>

<pallas_src>
import functools
import math

import numpy as np

import jax
import jax.numpy as jnp
from jax.experimental import pallas as pl
from jax.experimental.pallas import tpu as pltpu

_BN_EPS = 1e-5
_ACT_DTYPE = jnp.bfloat16   # MXU operands / inter-layer activations
_ACC_DTYPE = jnp.float32    # accumulator / epilogue math


def _const_index_map(ndim):
    idx = (0,) * ndim
    return lambda i: idx


# ---------------------------------------------------------------------------
# Single fused kernel: whole network per image (grid step = one image).
# ---------------------------------------------------------------------------
def _resnet_kernel(x_ref, *refs, plan):
    param_refs = refs[:-1]
    o_ref = refs[-1]
    pos = [0]

    def take(n):
        r = param_refs[pos[0]:pos[0] + n]
        pos[0] += n
        return r

    def conv_bn(val, kh, s_ref, w_ref, sc_ref, b_ref):
        # val: (H, W*Cin) bf16 -> (OH, OW*Cout) f32 (BN folded, no activation)
        acc = None
        for i in range(kh):
            sel = jnp.dot(s_ref[i], val,
                          preferred_element_type=_ACC_DTYPE).astype(_ACT_DTYPE)
            part = jnp.dot(sel, w_ref[i], preferred_element_type=_ACC_DTYPE)
            acc = part if acc is None else acc + part
        return acc * sc_ref[...] + b_ref[...]

    x = x_ref[0]                                     # (H, W*3) bf16

    # ---- stem: conv 7x7 / s2 / p3 + BN + ReLU ------------------------------
    s, w, sc, b = take(4)
    y = jnp.maximum(conv_bn(x, plan["stem_kh"], s, w, sc, b), 0.0)
    y = y.astype(_ACT_DTYPE)                         # (H/2, (W/2)*C), >= 0

    # ---- maxpool 3x3 / s2 / p1 (fused, selection matmuls + max) ------------
    r_ref, p_ref = take(2)
    row_max = None
    for i in range(plan["pool_k"]):
        t = jnp.dot(r_ref[i], y, preferred_element_type=_ACC_DTYPE)
        row_max = t if row_max is None else jnp.maximum(row_max, t)
    row_max = row_max.astype(_ACT_DTYPE)
    pooled = None
    for j in range(plan["pool_k"]):
        t = jnp.dot(row_max, p_ref[j], preferred_element_type=_ACC_DTYPE)
        pooled = t if pooled is None else jnp.maximum(pooled, t)
    x = pooled.astype(_ACT_DTYPE)                    # (H/4, (W/4)*C)

    # ---- residual BasicBlocks (conv1+conv2+ds+add+ReLU all in VMEM) --------
    for has_ds in plan["blocks"]:
        s1, w1, sc1, b1 = take(4)
        s2, w2, sc2, b2 = take(4)
        y = jnp.maximum(conv_bn(x, 3, s1, w1, sc1, b1), 0.0).astype(_ACT_DTYPE)
        z = conv_bn(y, 3, s2, w2, sc2, b2)           # f32, no activation
        if has_ds:
            sd, wd, scd, bd = take(4)
            ident = conv_bn(x, 1, sd, wd, scd, bd)   # f32, no activation
        else:
            ident = x.astype(_ACC_DTYPE)
        x = jnp.maximum(z + ident, 0.0).astype(_ACT_DTYPE)

    # ---- global avg pool (folded into FC weight) + FC ----------------------
    wfc_ref, bfc_ref = take(2)
    acc = x[0:1, :].astype(_ACC_DTYPE)
    for h in range(1, plan["h_final"]):
        acc = acc + x[h:h + 1, :].astype(_ACC_DTYPE)
    logits = jnp.dot(acc, wfc_ref[...],
                     preferred_element_type=_ACC_DTYPE) + bfc_ref[...]
    o_ref[0] = logits


def resnet_forward(params, x_nchw):
    n, c, h, w = x_nchw.shape
    x2d = jnp.transpose(x_nchw, (0, 2, 3, 1)).reshape(n, h, w * c)
    x2d = x2d.astype(_ACT_DTYPE)

    flat = params["flat"]
    plan = params["plan"]
    nc = params["num_classes"]

    in_specs = [pl.BlockSpec((1, h, w * c), lambda i: (i, 0, 0))]
    for a in flat:
        in_specs.append(pl.BlockSpec(a.shape, _const_index_map(a.ndim)))

    kernel = functools.partial(_resnet_kernel, plan=plan)
    out = pl.pallas_call(
        kernel,
        out_shape=jax.ShapeDtypeStruct((n, 1, nc), jnp.float32),
        grid=(n,),
        in_specs=in_specs,
        out_specs=pl.BlockSpec((1, 1, nc), lambda i: (i, 0, 0)),
        compiler_params=pltpu.CompilerParams(
            dimension_semantics=("parallel",)),
    )(x2d, *flat)
    return out.reshape(n, nc)


# ---------------------------------------------------------------------------
# Host-side parameter preparation: PyTorch-style init, then pre-packing of
# selection matrices / width-packed weights / folded BN (done once, off the
# forward path).
# ---------------------------------------------------------------------------
def _conv_stage(key, cin, cout, ksize, stride, pad, h, w):
    oh = (h + 2 * pad - ksize) // stride + 1
    ow = (w + 2 * pad - ksize) // stride + 1

    # kaiming_normal_(mode='fan_out', nonlinearity='relu')
    fan_out = ksize * ksize * cout
    std = math.sqrt(2.0 / fan_out)
    wconv = np.asarray(jax.random.normal(key, (ksize, ksize, cin, cout),
                                         jnp.float32)) * std

    # BN eval-mode fold: gamma=1, beta=0, running_mean=0, running_var=1
    scale = np.ones((cout,), np.float32) / np.sqrt(1.0 + _BN_EPS)
    bias = np.zeros((cout,), np.float32)

    # 0/1 row-selection matrices (fold row stride + zero row padding).
    sel = np.zeros((ksize, oh, h), np.float32)
    for i in range(ksize):
        for o in range(oh):
            r = stride * o + i - pad
            if 0 <= r < h:
                sel[i, o, r] = 1.0

    # Width-packed sparse weights (fold kw taps + width stride + width pad).
    wrow = np.zeros((ksize, w * cin, ow * cout), np.float32)
    for i in range(ksize):
        for o in range(ow):
            for j in range(ksize):
                q = stride * o + j - pad
                if 0 <= q < w:
                    wrow[i, q * cin:(q + 1) * cin,
                         o * cout:(o + 1) * cout] = wconv[i, j]

    stage = {
        "S": jnp.asarray(sel, _ACT_DTYPE),
        "W": jnp.asarray(wrow, _ACT_DTYPE),
        "scale": jnp.asarray(np.tile(scale, ow)[None, :], jnp.float32),
        "bias": jnp.asarray(np.tile(bias, ow)[None, :], jnp.float32),
    }
    return stage, oh, ow


def _maxpool_stage(h, w, c, ksize=3, stride=2, pad=1):
    oh = (h + 2 * pad - ksize) // stride + 1
    ow = (w + 2 * pad - ksize) // stride + 1
    rsel = np.zeros((ksize, oh, h), np.float32)
    for i in range(ksize):
        for o in range(oh):
            r = stride * o + i - pad
            if 0 <= r < h:
                rsel[i, o, r] = 1.0
    wsel = np.zeros((ksize, w * c, ow * c), np.float32)
    for j in range(ksize):
        for o in range(ow):
            q = stride * o + j - pad
            if 0 <= q < w:
                for cc in range(c):
                    wsel[j, q * c + cc, o * c + cc] = 1.0
    stage = {"R": jnp.asarray(rsel, _ACT_DTYPE),
             "P": jnp.asarray(wsel, _ACT_DTYPE)}
    return stage, oh, ow


def make_resnet_params(key, *, input_hw=(64, 64), inplanes=8,
                       layer_nums=(1, 1, 1, 1), num_classes=10):
    h, w = input_hw
    planes = [inplanes, inplanes * 2, inplanes * 4, inplanes * 8]
    keys = iter(jax.random.split(key, 256))

    flat = []
    plan = {"stem_kh": 7, "pool_k": 3}

    # stem conv 7x7 / s2 / p3 (3 -> inplanes)
    stage, h, w = _conv_stage(next(keys), 3, inplanes, 7, 2, 3, h, w)
    flat += [stage["S"], stage["W"], stage["scale"], stage["bias"]]
    cin = inplanes

    # maxpool 3x3 / s2 / p1
    pool, h, w = _maxpool_stage(h, w, cin)
    flat += [pool["R"], pool["P"]]

    # residual BasicBlocks (expansion = 1)
    blocks = []
    for li, (p, n_blocks) in enumerate(zip(planes, layer_nums)):
        for bi in range(n_blocks):
            stride = (1 if li == 0 else 2) if bi == 0 else 1
            has_ds = (stride != 1) or (cin != p)
            c1, oh, ow = _conv_stage(next(keys), cin, p, 3, stride, 1, h, w)
            c2, _, _ = _conv_stage(next(keys), p, p, 3, 1, 1, oh, ow)
            flat += [c1["S"], c1["W"], c1["scale"], c1["bias"],
                     c2["S"], c2["W"], c2["scale"], c2["bias"]]
            if has_ds:
                d, _, _ = _conv_stage(next(keys), cin, p, 1, stride, 0, h, w)
                flat += [d["S"], d["W"], d["scale"], d["bias"]]
            blocks.append(has_ds)
            h, w, cin = oh, ow, p
    plan["blocks"] = tuple(blocks)
    plan["h_final"] = h

    # Head: nn.Linear default init U(-1/sqrt(fan_in), +1/sqrt(fan_in));
    # global avg pool folded into the tiled, pre-scaled FC weight (f32).
    fan_in = planes[3]
    bound = 1.0 / math.sqrt(fan_in)
    wfc = np.asarray(jax.random.uniform(next(keys), (fan_in, num_classes),
                                        jnp.float32, -bound, bound))
    bfc = np.asarray(jax.random.uniform(next(keys), (1, num_classes),
                                        jnp.float32, -bound, bound))
    whead = np.tile(wfc, (w, 1)) / float(h * w)
    flat += [jnp.asarray(whead, jnp.float32), jnp.asarray(bfc, jnp.float32)]

    return {"flat": flat, "plan": plan, "num_classes": num_classes}


# ---------------------------------------------------------------------------
if __name__ == "__main__":
    key = jax.random.PRNGKey(0)
    k_param, k_input = jax.random.split(key)

    # Small ResNet: BasicBlock, layer_nums=(1,1,1,1), inplanes=8, 10 classes.
    params = make_resnet_params(k_param, input_hw=(64, 64), inplanes=8,
                                layer_nums=(1, 1, 1, 1), num_classes=10)

    # PyTorch-convention NCHW input.
    x = jax.random.normal(k_input, (2, 3, 64, 64), jnp.float32)

    fwd = jax.jit(functools.partial(resnet_forward, params))
    out = jax.block_until_ready(fwd(x))
    assert out.shape == (2, 10), out.shape
    assert bool(jnp.all(jnp.isfinite(out)))
    print("KERNEL_OK")
</pallas_src>

<mosaic_0001>
module attributes {stable_mosaic.version = 11 : i64} {
  func.func @_resnet_kernel(%arg0: i32, %arg1: memref<1x64x192xbf16, #tpu.memory_space<vmem>>, %arg2: memref<7x32x64xbf16, #tpu.memory_space<vmem>>, %arg3: memref<7x192x256xbf16, #tpu.memory_space<vmem>>, %arg4: memref<1x256xf32, #tpu.memory_space<vmem>>, %arg5: memref<1x256xf32, #tpu.memory_space<vmem>>, %arg6: memref<3x16x32xbf16, #tpu.memory_space<vmem>>, %arg7: memref<3x256x128xbf16, #tpu.memory_space<vmem>>, %arg8: memref<3x16x16xbf16, #tpu.memory_space<vmem>>, %arg9: memref<3x128x128xbf16, #tpu.memory_space<vmem>>, %arg10: memref<1x128xf32, #tpu.memory_space<vmem>>, %arg11: memref<1x128xf32, #tpu.memory_space<vmem>>, %arg12: memref<3x16x16xbf16, #tpu.memory_space<vmem>>, %arg13: memref<3x128x128xbf16, #tpu.memory_space<vmem>>, %arg14: memref<1x128xf32, #tpu.memory_space<vmem>>, %arg15: memref<1x128xf32, #tpu.memory_space<vmem>>, %arg16: memref<3x8x16xbf16, #tpu.memory_space<vmem>>, %arg17: memref<3x128x128xbf16, #tpu.memory_space<vmem>>, %arg18: memref<1x128xf32, #tpu.memory_space<vmem>>, %arg19: memref<1x128xf32, #tpu.memory_space<vmem>>, %arg20: memref<3x8x8xbf16, #tpu.memory_space<vmem>>, %arg21: memref<3x128x128xbf16, #tpu.memory_space<vmem>>, %arg22: memref<1x128xf32, #tpu.memory_space<vmem>>, %arg23: memref<1x128xf32, #tpu.memory_space<vmem>>, %arg24: memref<1x8x16xbf16, #tpu.memory_space<vmem>>, %arg25: memref<1x128x128xbf16, #tpu.memory_space<vmem>>, %arg26: memref<1x128xf32, #tpu.memory_space<vmem>>, %arg27: memref<1x128xf32, #tpu.memory_space<vmem>>, %arg28: memref<3x4x8xbf16, #tpu.memory_space<vmem>>, %arg29: memref<3x128x128xbf16, #tpu.memory_space<vmem>>, %arg30: memref<1x128xf32, #tpu.memory_space<vmem>>, %arg31: memref<1x128xf32, #tpu.memory_space<vmem>>, %arg32: memref<3x4x4xbf16, #tpu.memory_space<vmem>>, %arg33: memref<3x128x128xbf16, #tpu.memory_space<vmem>>, %arg34: memref<1x128xf32, #tpu.memory_space<vmem>>, %arg35: memref<1x128xf32, #tpu.memory_space<vmem>>, %arg36: memref<1x4x8xbf16, #tpu.memory_space<vmem>>, %arg37: memref<1x128x128xbf16, #tpu.memory_space<vmem>>, %arg38: memref<1x128xf32, #tpu.memory_space<vmem>>, %arg39: memref<1x128xf32, #tpu.memory_space<vmem>>, %arg40: memref<3x2x4xbf16, #tpu.memory_space<vmem>>, %arg41: memref<3x128x128xbf16, #tpu.memory_space<vmem>>, %arg42: memref<1x128xf32, #tpu.memory_space<vmem>>, %arg43: memref<1x128xf32, #tpu.memory_space<vmem>>, %arg44: memref<3x2x2xbf16, #tpu.memory_space<vmem>>, %arg45: memref<3x128x128xbf16, #tpu.memory_space<vmem>>, %arg46: memref<1x128xf32, #tpu.memory_space<vmem>>, %arg47: memref<1x128xf32, #tpu.memory_space<vmem>>, %arg48: memref<1x2x4xbf16, #tpu.memory_space<vmem>>, %arg49: memref<1x128x128xbf16, #tpu.memory_space<vmem>>, %arg50: memref<1x128xf32, #tpu.memory_space<vmem>>, %arg51: memref<1x128xf32, #tpu.memory_space<vmem>>, %arg52: memref<128x10xf32, #tpu.memory_space<vmem>>, %arg53: memref<1x10xf32, #tpu.memory_space<vmem>>, %arg54: memref<1x1x10xf32, #tpu.memory_space<vmem>>) attributes {dimension_semantics = [#tpu.dimension_semantics<parallel>], iteration_bounds = array<i64: 2>, scalar_prefetch = 0 : i64, scratch_operands = 0 : i64, tpu.core_type = #tpu.core_type<tc>, window_params = [{transform_indices = @transform_0, window_bounds = array<i64: 1, 64, 192>}, {pipeline_mode = #tpu.pipeline_mode<synchronous>, transform_indices = @transform_1, window_bounds = array<i64: 7, 32, 64>}, {pipeline_mode = #tpu.pipeline_mode<synchronous>, transform_indices = @transform_2, window_bounds = array<i64: 7, 192, 256>}, {pipeline_mode = #tpu.pipeline_mode<synchronous>, transform_indices = @transform_3, window_bounds = array<i64: 1, 256>}, {pipeline_mode = #tpu.pipeline_mode<synchronous>, transform_indices = @transform_4, window_bounds = array<i64: 1, 256>}, {pipeline_mode = #tpu.pipeline_mode<synchronous>, transform_indices = @transform_5, window_bounds = array<i64: 3, 16, 32>}, {pipeline_mode = #tpu.pipeline_mode<synchronous>, transform_indices = @transform_6, window_bounds = array<i64: 3, 256, 128>}, {pipeline_mode = #tpu.pipeline_mode<synchronous>, transform_indices = @transform_7, window_bounds = array<i64: 3, 16, 16>}, {pipeline_mode = #tpu.pipeline_mode<synchronous>, transform_indices = @transform_8, window_bounds = array<i64: 3, 128, 128>}, {pipeline_mode = #tpu.pipeline_mode<synchronous>, transform_indices = @transform_9, window_bounds = array<i64: 1, 128>}, {pipeline_mode = #tpu.pipeline_mode<synchronous>, transform_indices = @transform_10, window_bounds = array<i64: 1, 128>}, {pipeline_mode = #tpu.pipeline_mode<synchronous>, transform_indices = @transform_11, window_bounds = array<i64: 3, 16, 16>}, {pipeline_mode = #tpu.pipeline_mode<synchronous>, transform_indices = @transform_12, window_bounds = array<i64: 3, 128, 128>}, {pipeline_mode = #tpu.pipeline_mode<synchronous>, transform_indices = @transform_13, window_bounds = array<i64: 1, 128>}, {pipeline_mode = #tpu.pipeline_mode<synchronous>, transform_indices = @transform_14, window_bounds = array<i64: 1, 128>}, {pipeline_mode = #tpu.pipeline_mode<synchronous>, transform_indices = @transform_15, window_bounds = array<i64: 3, 8, 16>}, {pipeline_mode = #tpu.pipeline_mode<synchronous>, transform_indices = @transform_16, window_bounds = array<i64: 3, 128, 128>}, {pipeline_mode = #tpu.pipeline_mode<synchronous>, transform_indices = @transform_17, window_bounds = array<i64: 1, 128>}, {pipeline_mode = #tpu.pipeline_mode<synchronous>, transform_indices = @transform_18, window_bounds = array<i64: 1, 128>}, {pipeline_mode = #tpu.pipeline_mode<synchronous>, transform_indices = @transform_19, window_bounds = array<i64: 3, 8, 8>}, {pipeline_mode = #tpu.pipeline_mode<synchronous>, transform_indices = @transform_20, window_bounds = array<i64: 3, 128, 128>}, {pipeline_mode = #tpu.pipeline_mode<synchronous>, transform_indices = @transform_21, window_bounds = array<i64: 1, 128>}, {pipeline_mode = #tpu.pipeline_mode<synchronous>, transform_indices = @transform_22, window_bounds = array<i64: 1, 128>}, {pipeline_mode = #tpu.pipeline_mode<synchronous>, transform_indices = @transform_23, window_bounds = array<i64: 1, 8, 16>}, {pipeline_mode = #tpu.pipeline_mode<synchronous>, transform_indices = @transform_24, window_bounds = array<i64: 1, 128, 128>}, {pipeline_mode = #tpu.pipeline_mode<synchronous>, transform_indices = @transform_25, window_bounds = array<i64: 1, 128>}, {pipeline_mode = #tpu.pipeline_mode<synchronous>, transform_indices = @transform_26, window_bounds = array<i64: 1, 128>}, {pipeline_mode = #tpu.pipeline_mode<synchronous>, transform_indices = @transform_27, window_bounds = array<i64: 3, 4, 8>}, {pipeline_mode = #tpu.pipeline_mode<synchronous>, transform_indices = @transform_28, window_bounds = array<i64: 3, 128, 128>}, {pipeline_mode = #tpu.pipeline_mode<synchronous>, transform_indices = @transform_29, window_bounds = array<i64: 1, 128>}, {pipeline_mode = #tpu.pipeline_mode<synchronous>, transform_indices = @transform_30, window_bounds = array<i64: 1, 128>}, {pipeline_mode = #tpu.pipeline_mode<synchronous>, transform_indices = @transform_31, window_bounds = array<i64: 3, 4, 4>}, {pipeline_mode = #tpu.pipeline_mode<synchronous>, transform_indices = @transform_32, window_bounds = array<i64: 3, 128, 128>}, {pipeline_mode = #tpu.pipeline_mode<synchronous>, transform_indices = @transform_33, window_bounds = array<i64: 1, 128>}, {pipeline_mode = #tpu.pipeline_mode<synchronous>, transform_indices = @transform_34, window_bounds = array<i64: 1, 128>}, {pipeline_mode = #tpu.pipeline_mode<synchronous>, transform_indices = @transform_35, window_bounds = array<i64: 1, 4, 8>}, {pipeline_mode = #tpu.pipeline_mode<synchronous>, transform_indices = @transform_36, window_bounds = array<i64: 1, 128, 128>}, {pipeline_mode = #tpu.pipeline_mode<synchronous>, transform_indices = @transform_37, window_bounds = array<i64: 1, 128>}, {pipeline_mode = #tpu.pipeline_mode<synchronous>, transform_indices = @transform_38, window_bounds = array<i64: 1, 128>}, {pipeline_mode = #tpu.pipeline_mode<synchronous>, transform_indices = @transform_39, window_bounds = array<i64: 3, 2, 4>}, {pipeline_mode = #tpu.pipeline_mode<synchronous>, transform_indices = @transform_40, window_bounds = array<i64: 3, 128, 128>}, {pipeline_mode = #tpu.pipeline_mode<synchronous>, transform_indices = @transform_41, window_bounds = array<i64: 1, 128>}, {pipeline_mode = #tpu.pipeline_mode<synchronous>, transform_indices = @transform_42, window_bounds = array<i64: 1, 128>}, {pipeline_mode = #tpu.pipeline_mode<synchronous>, transform_indices = @transform_43, window_bounds = array<i64: 3, 2, 2>}, {pipeline_mode = #tpu.pipeline_mode<synchronous>, transform_indices = @transform_44, window_bounds = array<i64: 3, 128, 128>}, {pipeline_mode = #tpu.pipeline_mode<synchronous>, transform_indices = @transform_45, window_bounds = array<i64: 1, 128>}, {pipeline_mode = #tpu.pipeline_mode<synchronous>, transform_indices = @transform_46, window_bounds = array<i64: 1, 128>}, {pipeline_mode = #tpu.pipeline_mode<synchronous>, transform_indices = @transform_47, window_bounds = array<i64: 1, 2, 4>}, {pipeline_mode = #tpu.pipeline_mode<synchronous>, transform_indices = @transform_48, window_bounds = array<i64: 1, 128, 128>}, {pipeline_mode = #tpu.pipeline_mode<synchronous>, transform_indices = @transform_49, window_bounds = array<i64: 1, 128>}, {pipeline_mode = #tpu.pipeline_mode<synchronous>, transform_indices = @transform_50, window_bounds = array<i64: 1, 128>}, {pipeline_mode = #tpu.pipeline_mode<synchronous>, transform_indices = @transform_51, window_bounds = array<i64: 128, 10>}, {pipeline_mode = #tpu.pipeline_mode<synchronous>, transform_indices = @transform_52, window_bounds = array<i64: 1, 10>}, {transform_indices = @transform_53, window_bounds = array<i64: 1, 1, 10>}]} {
    %c0 = arith.constant 0 : index
    %c0_0 = arith.constant 0 : index
    %c0_1 = arith.constant 0 : index
    %0 = vector.load %arg1[%c0, %c0_0, %c0_1] : memref<1x64x192xbf16, #tpu.memory_space<vmem>>, vector<1x64x192xbf16>
    %1 = vector.shape_cast %0 : vector<1x64x192xbf16> to vector<64x192xbf16>
    %c0_2 = arith.constant 0 : index
    %c0_3 = arith.constant 0 : index
    %c0_4 = arith.constant 0 : index
    %2 = vector.load %arg2[%c0_2, %c0_3, %c0_4] : memref<7x32x64xbf16, #tpu.memory_space<vmem>>, vector<1x32x64xbf16>
    %3 = vector.shape_cast %2 : vector<1x32x64xbf16> to vector<32x64xbf16>
    %cst = arith.constant dense<0.000000e+00> : vector<32x192xf32>
    %4 = tpu.matmul %3, %1, %cst {dimension_numbers = #tpu.dot_dimension_numbers<[1], [0], [0], [1], [0, 0, 1, 1], [], []>} : vector<32x64xbf16>, vector<64x192xbf16>, vector<32x192xf32> -> vector<32x192xf32>
    %5 = arith.truncf %4 : vector<32x192xf32> to vector<32x192xbf16>
    %c0_5 = arith.constant 0 : index
    %c0_6 = arith.constant 0 : index
    %c0_7 = arith.constant 0 : index
    %6 = vector.load %arg3[%c0_5, %c0_6, %c0_7] : memref<7x192x256xbf16, #tpu.memory_space<vmem>>, vector<1x192x256xbf16>
    %7 = vector.shape_cast %6 : vector<1x192x256xbf16> to vector<192x256xbf16>
    %cst_8 = arith.constant dense<0.000000e+00> : vector<32x256xf32>
    %8 = tpu.matmul %5, %7, %cst_8 {dimension_numbers = #tpu.dot_dimension_numbers<[1], [0], [0], [1], [0, 0, 1, 1], [], []>} : vector<32x192xbf16>, vector<192x256xbf16>, vector<32x256xf32> -> vector<32x256xf32>
    %c1 = arith.constant 1 : index
    %c0_9 = arith.constant 0 : index
    %c0_10 = arith.constant 0 : index
    %9 = vector.load %arg2[%c1, %c0_9, %c0_10] : memref<7x32x64xbf16, #tpu.memory_space<vmem>>, vector<1x32x64xbf16>
    %10 = vector.shape_cast %9 : vector<1x32x64xbf16> to vector<32x64xbf16>
    %cst_11 = arith.constant dense<0.000000e+00> : vector<32x192xf32>
    %11 = tpu.matmul %10, %1, %cst_11 {dimension_numbers = #tpu.dot_dimension_numbers<[1], [0], [0], [1], [0, 0, 1, 1], [], []>} : vector<32x64xbf16>, vector<64x192xbf16>, vector<32x192xf32> -> vector<32x192xf32>
    %12 = arith.truncf %11 : vector<32x192xf32> to vector<32x192xbf16>
    %c1_12 = arith.constant 1 : index
    %c0_13 = arith.constant 0 : index
    %c0_14 = arith.constant 0 : index
    %13 = vector.load %arg3[%c1_12, %c0_13, %c0_14] : memref<7x192x256xbf16, #tpu.memory_space<vmem>>, vector<1x192x256xbf16>
    %14 = vector.shape_cast %13 : vector<1x192x256xbf16> to vector<192x256xbf16>
    %cst_15 = arith.constant dense<0.000000e+00> : vector<32x256xf32>
    %15 = tpu.matmul %12, %14, %cst_15 {dimension_numbers = #tpu.dot_dimension_numbers<[1], [0], [0], [1], [0, 0, 1, 1], [], []>} : vector<32x192xbf16>, vector<192x256xbf16>, vector<32x256xf32> -> vector<32x256xf32>
    %16 = arith.addf %8, %15 : vector<32x256xf32>
    %c2 = arith.constant 2 : index
    %c0_16 = arith.constant 0 : index
    %c0_17 = arith.constant 0 : index
    %17 = vector.load %arg2[%c2, %c0_16, %c0_17] : memref<7x32x64xbf16, #tpu.memory_space<vmem>>, vector<1x32x64xbf16>
    %18 = vector.shape_cast %17 : vector<1x32x64xbf16> to vector<32x64xbf16>
    %cst_18 = arith.constant dense<0.000000e+00> : vector<32x192xf32>
    %19 = tpu.matmul %18, %1, %cst_18 {dimension_numbers = #tpu.dot_dimension_numbers<[1], [0], [0], [1], [0, 0, 1, 1], [], []>} : vector<32x64xbf16>, vector<64x192xbf16>, vector<32x192xf32> -> vector<32x192xf32>
    %20 = arith.truncf %19 : vector<32x192xf32> to vector<32x192xbf16>
    %c2_19 = arith.constant 2 : index
    %c0_20 = arith.constant 0 : index
    %c0_21 = arith.constant 0 : index
    %21 = vector.load %arg3[%c2_19, %c0_20, %c0_21] : memref<7x192x256xbf16, #tpu.memory_space<vmem>>, vector<1x192x256xbf16>
    %22 = vector.shape_cast %21 : vector<1x192x256xbf16> to vector<192x256xbf16>
    %cst_22 = arith.constant dense<0.000000e+00> : vector<32x256xf32>
    %23 = tpu.matmul %20, %22, %cst_22 {dimension_numbers = #tpu.dot_dimension_numbers<[1], [0], [0], [1], [0, 0, 1, 1], [], []>} : vector<32x192xbf16>, vector<192x256xbf16>, vector<32x256xf32> -> vector<32x256xf32>
    %24 = arith.addf %16, %23 : vector<32x256xf32>
    %c3 = arith.constant 3 : index
    %c0_23 = arith.constant 0 : index
    %c0_24 = arith.constant 0 : index
    %25 = vector.load %arg2[%c3, %c0_23, %c0_24] : memref<7x32x64xbf16, #tpu.memory_space<vmem>>, vector<1x32x64xbf16>
    %26 = vector.shape_cast %25 : vector<1x32x64xbf16> to vector<32x64xbf16>
    %cst_25 = arith.constant dense<0.000000e+00> : vector<32x192xf32>
    %27 = tpu.matmul %26, %1, %cst_25 {dimension_numbers = #tpu.dot_dimension_numbers<[1], [0], [0], [1], [0, 0, 1, 1], [], []>} : vector<32x64xbf16>, vector<64x192xbf16>, vector<32x192xf32> -> vector<32x192xf32>
    %28 = arith.truncf %27 : vector<32x192xf32> to vector<32x192xbf16>
    %c3_26 = arith.constant 3 : index
    %c0_27 = arith.constant 0 : index
    %c0_28 = arith.constant 0 : index
    %29 = vector.load %arg3[%c3_26, %c0_27, %c0_28] : memref<7x192x256xbf16, #tpu.memory_space<vmem>>, vector<1x192x256xbf16>
    %30 = vector.shape_cast %29 : vector<1x192x256xbf16> to vector<192x256xbf16>
    %cst_29 = arith.constant dense<0.000000e+00> : vector<32x256xf32>
    %31 = tpu.matmul %28, %30, %cst_29 {dimension_numbers = #tpu.dot_dimension_numbers<[1], [0], [0], [1], [0, 0, 1, 1], [], []>} : vector<32x192xbf16>, vector<192x256xbf16>, vector<32x256xf32> -> vector<32x256xf32>
    %32 = arith.addf %24, %31 : vector<32x256xf32>
    %c4 = arith.constant 4 : index
    %c0_30 = arith.constant 0 : index
    %c0_31 = arith.constant 0 : index
    %33 = vector.load %arg2[%c4, %c0_30, %c0_31] : memref<7x32x64xbf16, #tpu.memory_space<vmem>>, vector<1x32x64xbf16>
    %34 = vector.shape_cast %33 : vector<1x32x64xbf16> to vector<32x64xbf16>
    %cst_32 = arith.constant dense<0.000000e+00> : vector<32x192xf32>
    %35 = tpu.matmul %34, %1, %cst_32 {dimension_numbers = #tpu.dot_dimension_numbers<[1], [0], [0], [1], [0, 0, 1, 1], [], []>} : vector<32x64xbf16>, vector<64x192xbf16>, vector<32x192xf32> -> vector<32x192xf32>
    %36 = arith.truncf %35 : vector<32x192xf32> to vector<32x192xbf16>
    %c4_33 = arith.constant 4 : index
    %c0_34 = arith.constant 0 : index
    %c0_35 = arith.constant 0 : index
    %37 = vector.load %arg3[%c4_33, %c0_34, %c0_35] : memref<7x192x256xbf16, #tpu.memory_space<vmem>>, vector<1x192x256xbf16>
    %38 = vector.shape_cast %37 : vector<1x192x256xbf16> to vector<192x256xbf16>
    %cst_36 = arith.constant dense<0.000000e+00> : vector<32x256xf32>
    %39 = tpu.matmul %36, %38, %cst_36 {dimension_numbers = #tpu.dot_dimension_numbers<[1], [0], [0], [1], [0, 0, 1, 1], [], []>} : vector<32x192xbf16>, vector<192x256xbf16>, vector<32x256xf32> -> vector<32x256xf32>
    %40 = arith.addf %32, %39 : vector<32x256xf32>
    %c5 = arith.constant 5 : index
    %c0_37 = arith.constant 0 : index
    %c0_38 = arith.constant 0 : index
    %41 = vector.load %arg2[%c5, %c0_37, %c0_38] : memref<7x32x64xbf16, #tpu.memory_space<vmem>>, vector<1x32x64xbf16>
    %42 = vector.shape_cast %41 : vector<1x32x64xbf16> to vector<32x64xbf16>
    %cst_39 = arith.constant dense<0.000000e+00> : vector<32x192xf32>
    %43 = tpu.matmul %42, %1, %cst_39 {dimension_numbers = #tpu.dot_dimension_numbers<[1], [0], [0], [1], [0, 0, 1, 1], [], []>} : vector<32x64xbf16>, vector<64x192xbf16>, vector<32x192xf32> -> vector<32x192xf32>
    %44 = arith.truncf %43 : vector<32x192xf32> to vector<32x192xbf16>
    %c5_40 = arith.constant 5 : index
    %c0_41 = arith.constant 0 : index
    %c0_42 = arith.constant 0 : index
    %45 = vector.load %arg3[%c5_40, %c0_41, %c0_42] : memref<7x192x256xbf16, #tpu.memory_space<vmem>>, vector<1x192x256xbf16>
    %46 = vector.shape_cast %45 : vector<1x192x256xbf16> to vector<192x256xbf16>
    %cst_43 = arith.constant dense<0.000000e+00> : vector<32x256xf32>
    %47 = tpu.matmul %44, %46, %cst_43 {dimension_numbers = #tpu.dot_dimension_numbers<[1], [0], [0], [1], [0, 0, 1, 1], [], []>} : vector<32x192xbf16>, vector<192x256xbf16>, vector<32x256xf32> -> vector<32x256xf32>
    %48 = arith.addf %40, %47 : vector<32x256xf32>
    %c6 = arith.constant 6 : index
    %c0_44 = arith.constant 0 : index
    %c0_45 = arith.constant 0 : index
    %49 = vector.load %arg2[%c6, %c0_44, %c0_45] : memref<7x32x64xbf16, #tpu.memory_space<vmem>>, vector<1x32x64xbf16>
    %50 = vector.shape_cast %49 : vector<1x32x64xbf16> to vector<32x64xbf16>
    %cst_46 = arith.constant dense<0.000000e+00> : vector<32x192xf32>
    %51 = tpu.matmul %50, %1, %cst_46 {dimension_numbers = #tpu.dot_dimension_numbers<[1], [0], [0], [1], [0, 0, 1, 1], [], []>} : vector<32x64xbf16>, vector<64x192xbf16>, vector<32x192xf32> -> vector<32x192xf32>
    %52 = arith.truncf %51 : vector<32x192xf32> to vector<32x192xbf16>
    %c6_47 = arith.constant 6 : index
    %c0_48 = arith.constant 0 : index
    %c0_49 = arith.constant 0 : index
    %53 = vector.load %arg3[%c6_47, %c0_48, %c0_49] : memref<7x192x256xbf16, #tpu.memory_space<vmem>>, vector<1x192x256xbf16>
    %54 = vector.shape_cast %53 : vector<1x192x256xbf16> to vector<192x256xbf16>
    %cst_50 = arith.constant dense<0.000000e+00> : vector<32x256xf32>
    %55 = tpu.matmul %52, %54, %cst_50 {dimension_numbers = #tpu.dot_dimension_numbers<[1], [0], [0], [1], [0, 0, 1, 1], [], []>} : vector<32x192xbf16>, vector<192x256xbf16>, vector<32x256xf32> -> vector<32x256xf32>
    %56 = arith.addf %48, %55 : vector<32x256xf32>
    %c0_51 = arith.constant 0 : index
    %c0_52 = arith.constant 0 : index
    %57 = vector.load %arg4[%c0_51, %c0_52] : memref<1x256xf32, #tpu.memory_space<vmem>>, vector<1x256xf32>
    %58 = vector.broadcast %57 : vector<1x256xf32> to vector<32x256xf32>
    %59 = arith.mulf %56, %58 : vector<32x256xf32>
    %c0_53 = arith.constant 0 : index
    %c0_54 = arith.constant 0 : index
    %60 = vector.load %arg5[%c0_53, %c0_54] : memref<1x256xf32, #tpu.memory_space<vmem>>, vector<1x256xf32>
    %61 = vector.broadcast %60 : vector<1x256xf32> to vector<32x256xf32>
    %62 = arith.addf %59, %61 : vector<32x256xf32>
    %cst_55 = arith.constant 0.000000e+00 : f32
    %63 = vector.broadcast %cst_55 : f32 to vector<32x256xf32>
    %64 = arith.maximumf %62, %63 : vector<32x256xf32>
    %65 = arith.truncf %64 : vector<32x256xf32> to vector<32x256xbf16>
    %c0_56 = arith.constant 0 : index
    %c0_57 = arith.constant 0 : index
    %c0_58 = arith.constant 0 : index
    %66 = vector.load %arg6[%c0_56, %c0_57, %c0_58] : memref<3x16x32xbf16, #tpu.memory_space<vmem>>, vector<1x16x32xbf16>
    %67 = vector.shape_cast %66 : vector<1x16x32xbf16> to vector<16x32xbf16>
    %cst_59 = arith.constant dense<0.000000e+00> : vector<16x256xf32>
    %68 = tpu.matmul %67, %65, %cst_59 {dimension_numbers = #tpu.dot_dimension_numbers<[1], [0], [0], [1], [0, 0, 1, 1], [], []>} : vector<16x32xbf16>, vector<32x256xbf16>, vector<16x256xf32> -> vector<16x256xf32>
    %c1_60 = arith.constant 1 : index
    %c0_61 = arith.constant 0 : index
    %c0_62 = arith.constant 0 : index
    %69 = vector.load %arg6[%c1_60, %c0_61, %c0_62] : memref<3x16x32xbf16, #tpu.memory_space<vmem>>, vector<1x16x32xbf16>
    %70 = vector.shape_cast %69 : vector<1x16x32xbf16> to vector<16x32xbf16>
    %cst_63 = arith.constant dense<0.000000e+00> : vector<16x256xf32>
    %71 = tpu.matmul %70, %65, %cst_63 {dimension_numbers = #tpu.dot_dimension_numbers<[1], [0], [0], [1], [0, 0, 1, 1], [], []>} : vector<16x32xbf16>, vector<32x256xbf16>, vector<16x256xf32> -> vector<16x256xf32>
    %72 = arith.maximumf %68, %71 : vector<16x256xf32>
    %c2_64 = arith.constant 2 : index
    %c0_65 = arith.constant 0 : index
    %c0_66 = arith.constant 0 : index
    %73 = vector.load %arg6[%c2_64, %c0_65, %c0_66] : memref<3x16x32xbf16, #tpu.memory_space<vmem>>, vector<1x16x32xbf16>
    %74 = vector.shape_cast %73 : vector<1x16x32xbf16> to vector<16x32xbf16>
    %cst_67 = arith.constant dense<0.000000e+00> : vector<16x256xf32>
    %75 = tpu.matmul %74, %65, %cst_67 {dimension_numbers = #tpu.dot_dimension_numbers<[1], [0], [0], [1], [0, 0, 1, 1], [], []>} : vector<16x32xbf16>, vector<32x256xbf16>, vector<16x256xf32> -> vector<16x256xf32>
    %76 = arith.maximumf %72, %75 : vector<16x256xf32>
    %77 = arith.truncf %76 : vector<16x256xf32> to vector<16x256xbf16>
    %c0_68 = arith.constant 0 : index
    %c0_69 = arith.constant 0 : index
    %c0_70 = arith.constant 0 : index
    %78 = vector.load %arg7[%c0_68, %c0_69, %c0_70] : memref<3x256x128xbf16, #tpu.memory_space<vmem>>, vector<1x256x128xbf16>
    %79 = vector.shape_cast %78 : vector<1x256x128xbf16> to vector<256x128xbf16>
    %cst_71 = arith.constant dense<0.000000e+00> : vector<16x128xf32>
    %80 = tpu.matmul %77, %79, %cst_71 {dimension_numbers = #tpu.dot_dimension_numbers<[1], [0], [0], [1], [0, 0, 1, 1], [], []>} : vector<16x256xbf16>, vector<256x128xbf16>, vector<16x128xf32> -> vector<16x128xf32>
    %c1_72 = arith.constant 1 : index
    %c0_73 = arith.constant 0 : index
    %c0_74 = arith.constant 0 : index
    %81 = vector.load %arg7[%c1_72, %c0_73, %c0_74] : memref<3x256x128xbf16, #tpu.memory_space<vmem>>, vector<1x256x128xbf16>
    %82 = vector.shape_cast %81 : vector<1x256x128xbf16> to vector<256x128xbf16>
    %cst_75 = arith.constant dense<0.000000e+00> : vector<16x128xf32>
    %83 = tpu.matmul %77, %82, %cst_75 {dimension_numbers = #tpu.dot_dimension_numbers<[1], [0], [0], [1], [0, 0, 1, 1], [], []>} : vector<16x256xbf16>, vector<256x128xbf16>, vector<16x128xf32> -> vector<16x128xf32>
    %84 = arith.maximumf %80, %83 : vector<16x128xf32>
    %c2_76 = arith.constant 2 : index
    %c0_77 = arith.constant 0 : index
    %c0_78 = arith.constant 0 : index
    %85 = vector.load %arg7[%c2_76, %c0_77, %c0_78] : memref<3x256x128xbf16, #tpu.memory_space<vmem>>, vector<1x256x128xbf16>
    %86 = vector.shape_cast %85 : vector<1x256x128xbf16> to vector<256x128xbf16>
    %cst_79 = arith.constant dense<0.000000e+00> : vector<16x128xf32>
    %87 = tpu.matmul %77, %86, %cst_79 {dimension_numbers = #tpu.dot_dimension_numbers<[1], [0], [0], [1], [0, 0, 1, 1], [], []>} : vector<16x256xbf16>, vector<256x128xbf16>, vector<16x128xf32> -> vector<16x128xf32>
    %88 = arith.maximumf %84, %87 : vector<16x128xf32>
    %89 = arith.truncf %88 : vector<16x128xf32> to vector<16x128xbf16>
    %c0_80 = arith.constant 0 : index
    %c0_81 = arith.constant 0 : index
    %c0_82 = arith.constant 0 : index
    %90 = vector.load %arg8[%c0_80, %c0_81, %c0_82] : memref<3x16x16xbf16, #tpu.memory_space<vmem>>, vector<1x16x16xbf16>
    %91 = vector.shape_cast %90 : vector<1x16x16xbf16> to vector<16x16xbf16>
    %cst_83 = arith.constant dense<0.000000e+00> : vector<16x128xf32>
    %92 = tpu.matmul %91, %89, %cst_83 {dimension_numbers = #tpu.dot_dimension_numbers<[1], [0], [0], [1], [0, 0, 1, 1], [], []>} : vector<16x16xbf16>, vector<16x128xbf16>, vector<16x128xf32> -> vector<16x128xf32>
    %93 = arith.truncf %92 : vector<16x128xf32> to vector<16x128xbf16>
    %c0_84 = arith.constant 0 : index
    %c0_85 = arith.constant 0 : index
    %c0_86 = arith.constant 0 : index
    %94 = vector.load %arg9[%c0_84, %c0_85, %c0_86] : memref<3x128x128xbf16, #tpu.memory_space<vmem>>, vector<1x128x128xbf16>
    %95 = vector.shape_cast %94 : vector<1x128x128xbf16> to vector<128x128xbf16>
    %cst_87 = arith.constant dense<0.000000e+00> : vector<16x128xf32>
    %96 = tpu.matmul %93, %95, %cst_87 {dimension_numbers = #tpu.dot_dimension_numbers<[1], [0], [0], [1], [0, 0, 1, 1], [], []>} : vector<16x128xbf16>, vector<128x128xbf16>, vector<16x128xf32> -> vector<16x128xf32>
    %c1_88 = arith.constant 1 : index
    %c0_89 = arith.constant 0 : index
    %c0_90 = arith.constant 0 : index
    %97 = vector.load %arg8[%c1_88, %c0_89, %c0_90] : memref<3x16x16xbf16, #tpu.memory_space<vmem>>, vector<1x16x16xbf16>
    %98 = vector.shape_cast %97 : vector<1x16x16xbf16> to vector<16x16xbf16>
    %cst_91 = arith.constant dense<0.000000e+00> : vector<16x128xf32>
    %99 = tpu.matmul %98, %89, %cst_91 {dimension_numbers = #tpu.dot_dimension_numbers<[1], [0], [0], [1], [0, 0, 1, 1], [], []>} : vector<16x16xbf16>, vector<16x128xbf16>, vector<16x128xf32> -> vector<16x128xf32>
    %100 = arith.truncf %99 : vector<16x128xf32> to vector<16x128xbf16>
    %c1_92 = arith.constant 1 : index
    %c0_93 = arith.constant 0 : index
    %c0_94 = arith.constant 0 : index
    %101 = vector.load %arg9[%c1_92, %c0_93, %c0_94] : memref<3x128x128xbf16, #tpu.memory_space<vmem>>, vector<1x128x128xbf16>
    %102 = vector.shape_cast %101 : vector<1x128x128xbf16> to vector<128x128xbf16>
    %cst_95 = arith.constant dense<0.000000e+00> : vector<16x128xf32>
    %103 = tpu.matmul %100, %102, %cst_95 {dimension_numbers = #tpu.dot_dimension_numbers<[1], [0], [0], [1], [0, 0, 1, 1], [], []>} : vector<16x128xbf16>, vector<128x128xbf16>, vector<16x128xf32> -> vector<16x128xf32>
    %104 = arith.addf %96, %103 : vector<16x128xf32>
    %c2_96 = arith.constant 2 : index
    %c0_97 = arith.constant 0 : index
    %c0_98 = arith.constant 0 : index
    %105 = vector.load %arg8[%c2_96, %c0_97, %c0_98] : memref<3x16x16xbf16, #tpu.memory_space<vmem>>, vector<1x16x16xbf16>
    %106 = vector.shape_cast %105 : vector<1x16x16xbf16> to vector<16x16xbf16>
    %cst_99 = arith.constant dense<0.000000e+00> : vector<16x128xf32>
    %107 = tpu.matmul %106, %89, %cst_99 {dimension_numbers = #tpu.dot_dimension_numbers<[1], [0], [0], [1], [0, 0, 1, 1], [], []>} : vector<16x16xbf16>, vector<16x128xbf16>, vector<16x128xf32> -> vector<16x128xf32>
    %108 = arith.truncf %107 : vector<16x128xf32> to vector<16x128xbf16>
    %c2_100 = arith.constant 2 : index
    %c0_101 = arith.constant 0 : index
    %c0_102 = arith.constant 0 : index
    %109 = vector.load %arg9[%c2_100, %c0_101, %c0_102] : memref<3x128x128xbf16, #tpu.memory_space<vmem>>, vector<1x128x128xbf16>
    %110 = vector.shape_cast %109 : vector<1x128x128xbf16> to vector<128x128xbf16>
    %cst_103 = arith.constant dense<0.000000e+00> : vector<16x128xf32>
    %111 = tpu.matmul %108, %110, %cst_103 {dimension_numbers = #tpu.dot_dimension_numbers<[1], [0], [0], [1], [0, 0, 1, 1], [], []>} : vector<16x128xbf16>, vector<128x128xbf16>, vector<16x128xf32> -> vector<16x128xf32>
    %112 = arith.addf %104, %111 : vector<16x128xf32>
    %c0_104 = arith.constant 0 : index
    %c0_105 = arith.constant 0 : index
    %113 = vector.load %arg10[%c0_104, %c0_105] : memref<1x128xf32, #tpu.memory_space<vmem>>, vector<1x128xf32>
    %114 = vector.broadcast %113 : vector<1x128xf32> to vector<16x128xf32>
    %115 = arith.mulf %112, %114 : vector<16x128xf32>
    %c0_106 = arith.constant 0 : index
    %c0_107 = arith.constant 0 : index
    %116 = vector.load %arg11[%c0_106, %c0_107] : memref<1x128xf32, #tpu.memory_space<vmem>>, vector<1x128xf32>
    %117 = vector.broadcast %116 : vector<1x128xf32> to vector<16x128xf32>
    %118 = arith.addf %115, %117 : vector<16x128xf32>
    %cst_108 = arith.constant 0.000000e+00 : f32
    %119 = vector.broadcast %cst_108 : f32 to vector<16x128xf32>
    %120 = arith.maximumf %118, %119 : vector<16x128xf32>
    %121 = arith.truncf %120 : vector<16x128xf32> to vector<16x128xbf16>
    %c0_109 = arith.constant 0 : index
    %c0_110 = arith.constant 0 : index
    %c0_111 = arith.constant 0 : index
    %122 = vector.load %arg12[%c0_109, %c0_110, %c0_111] : memref<3x16x16xbf16, #tpu.memory_space<vmem>>, vector<1x16x16xbf16>
    %123 = vector.shape_cast %122 : vector<1x16x16xbf16> to vector<16x16xbf16>
    %cst_112 = arith.constant dense<0.000000e+00> : vector<16x128xf32>
    %124 = tpu.matmul %123, %121, %cst_112 {dimension_numbers = #tpu.dot_dimension_numbers<[1], [0], [0], [1], [0, 0, 1, 1], [], []>} : vector<16x16xbf16>, vector<16x128xbf16>, vector<16x128xf32> -> vector<16x128xf32>
    %125 = arith.truncf %124 : vector<16x128xf32> to vector<16x128xbf16>
    %c0_113 = arith.constant 0 : index
    %c0_114 = arith.constant 0 : index
    %c0_115 = arith.constant 0 : index
    %126 = vector.load %arg13[%c0_113, %c0_114, %c0_115] : memref<3x128x128xbf16, #tpu.memory_space<vmem>>, vector<1x128x128xbf16>
    %127 = vector.shape_cast %126 : vector<1x128x128xbf16> to vector<128x128xbf16>
    %cst_116 = arith.constant dense<0.000000e+00> : vector<16x128xf32>
    %128 = tpu.matmul %125, %127, %cst_116 {dimension_numbers = #tpu.dot_dimension_numbers<[1], [0], [0], [1], [0, 0, 1, 1], [], []>} : vector<16x128xbf16>, vector<128x128xbf16>, vector<16x128xf32> -> vector<16x128xf32>
    %c1_117 = arith.constant 1 : index
    %c0_118 = arith.constant 0 : index
    %c0_119 = arith.constant 0 : index
    %129 = vector.load %arg12[%c1_117, %c0_118, %c0_119] : memref<3x16x16xbf16, #tpu.memory_space<vmem>>, vector<1x16x16xbf16>
    %130 = vector.shape_cast %129 : vector<1x16x16xbf16> to vector<16x16xbf16>
    %cst_120 = arith.constant dense<0.000000e+00> : vector<16x128xf32>
    %131 = tpu.matmul %130, %121, %cst_120 {dimension_numbers = #tpu.dot_dimension_numbers<[1], [0], [0], [1], [0, 0, 1, 1], [], []>} : vector<16x16xbf16>, vector<16x128xbf16>, vector<16x128xf32> -> vector<16x128xf32>
    %132 = arith.truncf %131 : vector<16x128xf32> to vector<16x128xbf16>
    %c1_121 = arith.constant 1 : index
    %c0_122 = arith.constant 0 : index
    %c0_123 = arith.constant 0 : index
    %133 = vector.load %arg13[%c1_121, %c0_122, %c0_123] : memref<3x128x128xbf16, #tpu.memory_space<vmem>>, vector<1x128x128xbf16>
    %134 = vector.shape_cast %133 : vector<1x128x128xbf16> to vector<128x128xbf16>
    %cst_124 = arith.constant dense<0.000000e+00> : vector<16x128xf32>
    %135 = tpu.matmul %132, %134, %cst_124 {dimension_numbers = #tpu.dot_dimension_numbers<[1], [0], [0], [1], [0, 0, 1, 1], [], []>} : vector<16x128xbf16>, vector<128x128xbf16>, vector<16x128xf32> -> vector<16x128xf32>
    %136 = arith.addf %128, %135 : vector<16x128xf32>
    %c2_125 = arith.constant 2 : index
    %c0_126 = arith.constant 0 : index
    %c0_127 = arith.constant 0 : index
    %137 = vector.load %arg12[%c2_125, %c0_126, %c0_127] : memref<3x16x16xbf16, #tpu.memory_space<vmem>>, vector<1x16x16xbf16>
    %138 = vector.shape_cast %137 : vector<1x16x16xbf16> to vector<16x16xbf16>
    %cst_128 = arith.constant dense<0.000000e+00> : vector<16x128xf32>
    %139 = tpu.matmul %138, %121, %cst_128 {dimension_numbers = #tpu.dot_dimension_numbers<[1], [0], [0], [1], [0, 0, 1, 1], [], []>} : vector<16x16xbf16>, vector<16x128xbf16>, vector<16x128xf32> -> vector<16x128xf32>
    %140 = arith.truncf %139 : vector<16x128xf32> to vector<16x128xbf16>
    %c2_129 = arith.constant 2 : index
    %c0_130 = arith.constant 0 : index
    %c0_131 = arith.constant 0 : index
    %141 = vector.load %arg13[%c2_129, %c0_130, %c0_131] : memref<3x128x128xbf16, #tpu.memory_space<vmem>>, vector<1x128x128xbf16>
    %142 = vector.shape_cast %141 : vector<1x128x128xbf16> to vector<128x128xbf16>
    %cst_132 = arith.constant dense<0.000000e+00> : vector<16x128xf32>
    %143 = tpu.matmul %140, %142, %cst_132 {dimension_numbers = #tpu.dot_dimension_numbers<[1], [0], [0], [1], [0, 0, 1, 1], [], []>} : vector<16x128xbf16>, vector<128x128xbf16>, vector<16x128xf32> -> vector<16x128xf32>
    %144 = arith.addf %136, %143 : vector<16x128xf32>
    %c0_133 = arith.constant 0 : index
    %c0_134 = arith.constant 0 : index
    %145 = vector.load %arg14[%c0_133, %c0_134] : memref<1x128xf32, #tpu.memory_space<vmem>>, vector<1x128xf32>
    %146 = vector.broadcast %145 : vector<1x128xf32> to vector<16x128xf32>
    %147 = arith.mulf %144, %146 : vector<16x128xf32>
    %c0_135 = arith.constant 0 : index
    %c0_136 = arith.constant 0 : index
    %148 = vector.load %arg15[%c0_135, %c0_136] : memref<1x128xf32, #tpu.memory_space<vmem>>, vector<1x128xf32>
    %149 = vector.broadcast %148 : vector<1x128xf32> to vector<16x128xf32>
    %150 = arith.addf %147, %149 : vector<16x128xf32>
    %151 = arith.extf %89 : vector<16x128xbf16> to vector<16x128xf32>
    %152 = arith.addf %150, %151 : vector<16x128xf32>
    %cst_137 = arith.constant 0.000000e+00 : f32
    %153 = vector.broadcast %cst_137 : f32 to vector<16x128xf32>
    %154 = arith.maximumf %152, %153 : vector<16x128xf32>
    %155 = arith.truncf %154 : vector<16x128xf32> to vector<16x128xbf16>
    %c0_138 = arith.constant 0 : index
    %c0_139 = arith.constant 0 : index
    %c0_140 = arith.constant 0 : index
    %156 = vector.load %arg16[%c0_138, %c0_139, %c0_140] : memref<3x8x16xbf16, #tpu.memory_space<vmem>>, vector<1x8x16xbf16>
    %157 = vector.shape_cast %156 : vector<1x8x16xbf16> to vector<8x16xbf16>
    %cst_141 = arith.constant dense<0.000000e+00> : vector<8x128xf32>
    %158 = tpu.matmul %157, %155, %cst_141 {dimension_numbers = #tpu.dot_dimension_numbers<[1], [0], [0], [1], [0, 0, 1, 1], [], []>} : vector<8x16xbf16>, vector<16x128xbf16>, vector<8x128xf32> -> vector<8x128xf32>
    %159 = arith.truncf %158 : vector<8x128xf32> to vector<8x128xbf16>
    %c0_142 = arith.constant 0 : index
    %c0_143 = arith.constant 0 : index
    %c0_144 = arith.constant 0 : index
    %160 = vector.load %arg17[%c0_142, %c0_143, %c0_144] : memref<3x128x128xbf16, #tpu.memory_space<vmem>>, vector<1x128x128xbf16>
    %161 = vector.shape_cast %160 : vector<1x128x128xbf16> to vector<128x128xbf16>
    %cst_145 = arith.constant dense<0.000000e+00> : vector<8x128xf32>
    %162 = tpu.matmul %159, %161, %cst_145 {dimension_numbers = #tpu.dot_dimension_numbers<[1], [0], [0], [1], [0, 0, 1, 1], [], []>} : vector<8x128xbf16>, vector<128x128xbf16>, vector<8x128xf32> -> vector<8x128xf32>
    %c1_146 = arith.constant 1 : index
    %c0_147 = arith.constant 0 : index
    %c0_148 = arith.constant 0 : index
    %163 = vector.load %arg16[%c1_146, %c0_147, %c0_148] : memref<3x8x16xbf16, #tpu.memory_space<vmem>>, vector<1x8x16xbf16>
    %164 = vector.shape_cast %163 : vector<1x8x16xbf16> to vector<8x16xbf16>
    %cst_149 = arith.constant dense<0.000000e+00> : vector<8x128xf32>
    %165 = tpu.matmul %164, %155, %cst_149 {dimension_numbers = #tpu.dot_dimension_numbers<[1], [0], [0], [1], [0, 0, 1, 1], [], []>} : vector<8x16xbf16>, vector<16x128xbf16>, vector<8x128xf32> -> vector<8x128xf32>
    %166 = arith.truncf %165 : vector<8x128xf32> to vector<8x128xbf16>
    %c1_150 = arith.constant 1 : index
    %c0_151 = arith.constant 0 : index
    %c0_152 = arith.constant 0 : index
    %167 = vector.load %arg17[%c1_150, %c0_151, %c0_152] : memref<3x128x128xbf16, #tpu.memory_space<vmem>>, vector<1x128x128xbf16>
    %168 = vector.shape_cast %167 : vector<1x128x128xbf16> to vector<128x128xbf16>
    %cst_153 = arith.constant dense<0.000000e+00> : vector<8x128xf32>
    %169 = tpu.matmul %166, %168, %cst_153 {dimension_numbers = #tpu.dot_dimension_numbers<[1], [0], [0], [1], [0, 0, 1, 1], [], []>} : vector<8x128xbf16>, vector<128x128xbf16>, vector<8x128xf32> -> vector<8x128xf32>
    %170 = arith.addf %162, %169 : vector<8x128xf32>
    %c2_154 = arith.constant 2 : index
    %c0_155 = arith.constant 0 : index
    %c0_156 = arith.constant 0 : index
    %171 = vector.load %arg16[%c2_154, %c0_155, %c0_156] : memref<3x8x16xbf16, #tpu.memory_space<vmem>>, vector<1x8x16xbf16>
    %172 = vector.shape_cast %171 : vector<1x8x16xbf16> to vector<8x16xbf16>
    %cst_157 = arith.constant dense<0.000000e+00> : vector<8x128xf32>
    %173 = tpu.matmul %172, %155, %cst_157 {dimension_numbers = #tpu.dot_dimension_numbers<[1], [0], [0], [1], [0, 0, 1, 1], [], []>} : vector<8x16xbf16>, vector<16x128xbf16>, vector<8x128xf32> -> vector<8x128xf32>
    %174 = arith.truncf %173 : vector<8x128xf32> to vector<8x128xbf16>
    %c2_158 = arith.constant 2 : index
    %c0_159 = arith.constant 0 : index
    %c0_160 = arith.constant 0 : index
    %175 = vector.load %arg17[%c2_158, %c0_159, %c0_160] : memref<3x128x128xbf16, #tpu.memory_space<vmem>>, vector<1x128x128xbf16>
    %176 = vector.shape_cast %175 : vector<1x128x128xbf16> to vector<128x128xbf16>
    %cst_161 = arith.constant dense<0.000000e+00> : vector<8x128xf32>
    %177 = tpu.matmul %174, %176, %cst_161 {dimension_numbers = #tpu.dot_dimension_numbers<[1], [0], [0], [1], [0, 0, 1, 1], [], []>} : vector<8x128xbf16>, vector<128x128xbf16>, vector<8x128xf32> -> vector<8x128xf32>
    %178 = arith.addf %170, %177 : vector<8x128xf32>
    %c0_162 = arith.constant 0 : index
    %c0_163 = arith.constant 0 : index
    %179 = vector.load %arg18[%c0_162, %c0_163] : memref<1x128xf32, #tpu.memory_space<vmem>>, vector<1x128xf32>
    %180 = vector.broadcast %179 : vector<1x128xf32> to vector<8x128xf32>
    %181 = arith.mulf %178, %180 : vector<8x128xf32>
    %c0_164 = arith.constant 0 : index
    %c0_165 = arith.constant 0 : index
    %182 = vector.load %arg19[%c0_164, %c0_165] : memref<1x128xf32, #tpu.memory_space<vmem>>, vector<1x128xf32>
    %183 = vector.broadcast %182 : vector<1x128xf32> to vector<8x128xf32>
    %184 = arith.addf %181, %183 : vector<8x128xf32>
    %cst_166 = arith.constant 0.000000e+00 : f32
    %185 = vector.broadcast %cst_166 : f32 to vector<8x128xf32>
    %186 = arith.maximumf %184, %185 : vector<8x128xf32>
    %187 = arith.truncf %186 : vector<8x128xf32> to vector<8x128xbf16>
    %c0_167 = arith.constant 0 : index
    %c0_168 = arith.constant 0 : index
    %c0_169 = arith.constant 0 : index
    %188 = vector.load %arg20[%c0_167, %c0_168, %c0_169] : memref<3x8x8xbf16, #tpu.memory_space<vmem>>, vector<1x8x8xbf16>
    %189 = vector.shape_cast %188 : vector<1x8x8xbf16> to vector<8x8xbf16>
    %cst_170 = arith.constant dense<0.000000e+00> : vector<8x128xf32>
    %190 = tpu.matmul %189, %187, %cst_170 {dimension_numbers = #tpu.dot_dimension_numbers<[1], [0], [0], [1], [0, 0, 1, 1], [], []>} : vector<8x8xbf16>, vector<8x128xbf16>, vector<8x128xf32> -> vector<8x128xf32>
    %191 = arith.truncf %190 : vector<8x128xf32> to vector<8x128xbf16>
    %c0_171 = arith.constant 0 : index
    %c0_172 = arith.constant 0 : index
    %c0_173 = arith.constant 0 : index
    %192 = vector.load %arg21[%c0_171, %c0_172, %c0_173] : memref<3x128x128xbf16, #tpu.memory_space<vmem>>, vector<1x128x128xbf16>
    %193 = vector.shape_cast %192 : vector<1x128x128xbf16> to vector<128x128xbf16>
    %cst_174 = arith.constant dense<0.000000e+00> : vector<8x128xf32>
    %194 = tpu.matmul %191, %193, %cst_174 {dimension_numbers = #tpu.dot_dimension_numbers<[1], [0], [0], [1], [0, 0, 1, 1], [], []>} : vector<8x128xbf16>, vector<128x128xbf16>, vector<8x128xf32> -> vector<8x128xf32>
    %c1_175 = arith.constant 1 : index
    %c0_176 = arith.constant 0 : index
    %c0_177 = arith.constant 0 : index
    %195 = vector.load %arg20[%c1_175, %c0_176, %c0_177] : memref<3x8x8xbf16, #tpu.memory_space<vmem>>, vector<1x8x8xbf16>
    %196 = vector.shape_cast %195 : vector<1x8x8xbf16> to vector<8x8xbf16>
    %cst_178 = arith.constant dense<0.000000e+00> : vector<8x128xf32>
    %197 = tpu.matmul %196, %187, %cst_178 {dimension_numbers = #tpu.dot_dimension_numbers<[1], [0], [0], [1], [0, 0, 1, 1], [], []>} : vector<8x8xbf16>, vector<8x128xbf16>, vector<8x128xf32> -> vector<8x128xf32>
    %198 = arith.truncf %197 : vector<8x128xf32> to vector<8x128xbf16>
    %c1_179 = arith.constant 1 : index
    %c0_180 = arith.constant 0 : index
    %c0_181 = arith.constant 0 : index
    %199 = vector.load %arg21[%c1_179, %c0_180, %c0_181] : memref<3x128x128xbf16, #tpu.memory_space<vmem>>, vector<1x128x128xbf16>
    %200 = vector.shape_cast %199 : vector<1x128x128xbf16> to vector<128x128xbf16>
    %cst_182 = arith.constant dense<0.000000e+00> : vector<8x128xf32>
    %201 = tpu.matmul %198, %200, %cst_182 {dimension_numbers = #tpu.dot_dimension_numbers<[1], [0], [0], [1], [0, 0, 1, 1], [], []>} : vector<8x128xbf16>, vector<128x128xbf16>, vector<8x128xf32> -> vector<8x128xf32>
    %202 = arith.addf %194, %201 : vector<8x128xf32>
    %c2_183 = arith.constant 2 : index
    %c0_184 = arith.constant 0 : index
    %c0_185 = arith.constant 0 : index
    %203 = vector.load %arg20[%c2_183, %c0_184, %c0_185] : memref<3x8x8xbf16, #tpu.memory_space<vmem>>, vector<1x8x8xbf16>
    %204 = vector.shape_cast %203 : vector<1x8x8xbf16> to vector<8x8xbf16>
    %cst_186 = arith.constant dense<0.000000e+00> : vector<8x128xf32>
    %205 = tpu.matmul %204, %187, %cst_186 {dimension_numbers = #tpu.dot_dimension_numbers<[1], [0], [0], [1], [0, 0, 1, 1], [], []>} : vector<8x8xbf16>, vector<8x128xbf16>, vector<8x128xf32> -> vector<8x128xf32>
    %206 = arith.truncf %205 : vector<8x128xf32> to vector<8x128xbf16>
    %c2_187 = arith.constant 2 : index
    %c0_188 = arith.constant 0 : index
    %c0_189 = arith.constant 0 : index
    %207 = vector.load %arg21[%c2_187, %c0_188, %c0_189] : memref<3x128x128xbf16, #tpu.memory_space<vmem>>, vector<1x128x128xbf16>
    %208 = vector.shape_cast %207 : vector<1x128x128xbf16> to vector<128x128xbf16>
    %cst_190 = arith.constant dense<0.000000e+00> : vector<8x128xf32>
    %209 = tpu.matmul %206, %208, %cst_190 {dimension_numbers = #tpu.dot_dimension_numbers<[1], [0], [0], [1], [0, 0, 1, 1], [], []>} : vector<8x128xbf16>, vector<128x128xbf16>, vector<8x128xf32> -> vector<8x128xf32>
    %210 = arith.addf %202, %209 : vector<8x128xf32>
    %c0_191 = arith.constant 0 : index
    %c0_192 = arith.constant 0 : index
    %211 = vector.load %arg22[%c0_191, %c0_192] : memref<1x128xf32, #tpu.memory_space<vmem>>, vector<1x128xf32>
    %212 = vector.broadcast %211 : vector<1x128xf32> to vector<8x128xf32>
    %213 = arith.mulf %210, %212 : vector<8x128xf32>
    %c0_193 = arith.constant 0 : index
    %c0_194 = arith.constant 0 : index
    %214 = vector.load %arg23[%c0_193, %c0_194] : memref<1x128xf32, #tpu.memory_space<vmem>>, vector<1x128xf32>
    %215 = vector.broadcast %214 : vector<1x128xf32> to vector<8x128xf32>
    %216 = arith.addf %213, %215 : vector<8x128xf32>
    %c0_195 = arith.constant 0 : index
    %c0_196 = arith.constant 0 : index
    %c0_197 = arith.constant 0 : index
    %217 = vector.load %arg24[%c0_195, %c0_196, %c0_197] : memref<1x8x16xbf16, #tpu.memory_space<vmem>>, vector<1x8x16xbf16>
    %218 = vector.shape_cast %217 : vector<1x8x16xbf16> to vector<8x16xbf16>
    %cst_198 = arith.constant dense<0.000000e+00> : vector<8x128xf32>
    %219 = tpu.matmul %218, %155, %cst_198 {dimension_numbers = #tpu.dot_dimension_numbers<[1], [0], [0], [1], [0, 0, 1, 1], [], []>} : vector<8x16xbf16>, vector<16x128xbf16>, vector<8x128xf32> -> vector<8x128xf32>
    %220 = arith.truncf %219 : vector<8x128xf32> to vector<8x128xbf16>
    %c0_199 = arith.constant 0 : index
    %c0_200 = arith.constant 0 : index
    %c0_201 = arith.constant 0 : index
    %221 = vector.load %arg25[%c0_199, %c0_200, %c0_201] : memref<1x128x128xbf16, #tpu.memory_space<vmem>>, vector<1x128x128xbf16>
    %222 = vector.shape_cast %221 : vector<1x128x128xbf16> to vector<128x128xbf16>
    %cst_202 = arith.constant dense<0.000000e+00> : vector<8x128xf32>
    %223 = tpu.matmul %220, %222, %cst_202 {dimension_numbers = #tpu.dot_dimension_numbers<[1], [0], [0], [1], [0, 0, 1, 1], [], []>} : vector<8x128xbf16>, vector<128x128xbf16>, vector<8x128xf32> -> vector<8x128xf32>
    %c0_203 = arith.constant 0 : index
    %c0_204 = arith.constant 0 : index
    %224 = vector.load %arg26[%c0_203, %c0_204] : memref<1x128xf32, #tpu.memory_space<vmem>>, vector<1x128xf32>
    %225 = vector.broadcast %224 : vector<1x128xf32> to vector<8x128xf32>
    %226 = arith.mulf %223, %225 : vector<8x128xf32>
    %c0_205 = arith.constant 0 : index
    %c0_206 = arith.constant 0 : index
    %227 = vector.load %arg27[%c0_205, %c0_206] : memref<1x128xf32, #tpu.memory_space<vmem>>, vector<1x128xf32>
    %228 = vector.broadcast %227 : vector<1x128xf32> to vector<8x128xf32>
    %229 = arith.addf %226, %228 : vector<8x128xf32>
    %230 = arith.addf %216, %229 : vector<8x128xf32>
    %cst_207 = arith.constant 0.000000e+00 : f32
    %231 = vector.broadcast %cst_207 : f32 to vector<8x128xf32>
    %232 = arith.maximumf %230, %231 : vector<8x128xf32>
    %233 = arith.truncf %232 : vector<8x128xf32> to vector<8x128xbf16>
    %c0_208 = arith.constant 0 : index
    %c0_209 = arith.constant 0 : index
    %c0_210 = arith.constant 0 : index
    %234 = vector.load %arg28[%c0_208, %c0_209, %c0_210] : memref<3x4x8xbf16, #tpu.memory_space<vmem>>, vector<1x4x8xbf16>
    %235 = vector.shape_cast %234 : vector<1x4x8xbf16> to vector<4x8xbf16>
    %cst_211 = arith.constant dense<0.000000e+00> : vector<4x128xf32>
    %236 = tpu.matmul %235, %233, %cst_211 {dimension_numbers = #tpu.dot_dimension_numbers<[1], [0], [0], [1], [0, 0, 1, 1], [], []>} : vector<4x8xbf16>, vector<8x128xbf16>, vector<4x128xf32> -> vector<4x128xf32>
    %237 = arith.truncf %236 : vector<4x128xf32> to vector<4x128xbf16>
    %c0_212 = arith.constant 0 : index
    %c0_213 = arith.constant 0 : index
    %c0_214 = arith.constant 0 : index
    %238 = vector.load %arg29[%c0_212, %c0_213, %c0_214] : memref<3x128x128xbf16, #tpu.memory_space<vmem>>, vector<1x128x128xbf16>
    %239 = vector.shape_cast %238 : vector<1x128x128xbf16> to vector<128x128xbf16>
    %cst_215 = arith.constant dense<0.000000e+00> : vector<4x128xf32>
    %240 = tpu.matmul %237, %239, %cst_215 {dimension_numbers = #tpu.dot_dimension_numbers<[1], [0], [0], [1], [0, 0, 1, 1], [], []>} : vector<4x128xbf16>, vector<128x128xbf16>, vector<4x128xf32> -> vector<4x128xf32>
    %c1_216 = arith.constant 1 : index
    %c0_217 = arith.constant 0 : index
    %c0_218 = arith.constant 0 : index
    %241 = vector.load %arg28[%c1_216, %c0_217, %c0_218] : memref<3x4x8xbf16, #tpu.memory_space<vmem>>, vector<1x4x8xbf16>
    %242 = vector.shape_cast %241 : vector<1x4x8xbf16> to vector<4x8xbf16>
    %cst_219 = arith.constant dense<0.000000e+00> : vector<4x128xf32>
    %243 = tpu.matmul %242, %233, %cst_219 {dimension_numbers = #tpu.dot_dimension_numbers<[1], [0], [0], [1], [0, 0, 1, 1], [], []>} : vector<4x8xbf16>, vector<8x128xbf16>, vector<4x128xf32> -> vector<4x128xf32>
    %244 = arith.truncf %243 : vector<4x128xf32> to vector<4x128xbf16>
    %c1_220 = arith.constant 1 : index
    %c0_221 = arith.constant 0 : index
    %c0_222 = arith.constant 0 : index
    %245 = vector.load %arg29[%c1_220, %c0_221, %c0_222] : memref<3x128x128xbf16, #tpu.memory_space<vmem>>, vector<1x128x128xbf16>
    %246 = vector.shape_cast %245 : vector<1x128x128xbf16> to vector<128x128xbf16>
    %cst_223 = arith.constant dense<0.000000e+00> : vector<4x128xf32>
    %247 = tpu.matmul %244, %246, %cst_223 {dimension_numbers = #tpu.dot_dimension_numbers<[1], [0], [0], [1], [0, 0, 1, 1], [], []>} : vector<4x128xbf16>, vector<128x128xbf16>, vector<4x128xf32> -> vector<4x128xf32>
    %248 = arith.addf %240, %247 : vector<4x128xf32>
    %c2_224 = arith.constant 2 : index
    %c0_225 = arith.constant 0 : index
    %c0_226 = arith.constant 0 : index
    %249 = vector.load %arg28[%c2_224, %c0_225, %c0_226] : memref<3x4x8xbf16, #tpu.memory_space<vmem>>, vector<1x4x8xbf16>
    %250 = vector.shape_cast %249 : vector<1x4x8xbf16> to vector<4x8xbf16>
    %cst_227 = arith.constant dense<0.000000e+00> : vector<4x128xf32>
    %251 = tpu.matmul %250, %233, %cst_227 {dimension_numbers = #tpu.dot_dimension_numbers<[1], [0], [0], [1], [0, 0, 1, 1], [], []>} : vector<4x8xbf16>, vector<8x128xbf16>, vector<4x128xf32> -> vector<4x128xf32>
    %252 = arith.truncf %251 : vector<4x128xf32> to vector<4x128xbf16>
    %c2_228 = arith.constant 2 : index
    %c0_229 = arith.constant 0 : index
    %c0_230 = arith.constant 0 : index
    %253 = vector.load %arg29[%c2_228, %c0_229, %c0_230] : memref<3x128x128xbf16, #tpu.memory_space<vmem>>, vector<1x128x128xbf16>
    %254 = vector.shape_cast %253 : vector<1x128x128xbf16> to vector<128x128xbf16>
    %cst_231 = arith.constant dense<0.000000e+00> : vector<4x128xf32>
    %255 = tpu.matmul %252, %254, %cst_231 {dimension_numbers = #tpu.dot_dimension_numbers<[1], [0], [0], [1], [0, 0, 1, 1], [], []>} : vector<4x128xbf16>, vector<128x128xbf16>, vector<4x128xf32> -> vector<4x128xf32>
    %256 = arith.addf %248, %255 : vector<4x128xf32>
    %c0_232 = arith.constant 0 : index
    %c0_233 = arith.constant 0 : index
    %257 = vector.load %arg30[%c0_232, %c0_233] : memref<1x128xf32, #tpu.memory_space<vmem>>, vector<1x128xf32>
    %258 = vector.broadcast %257 : vector<1x128xf32> to vector<4x128xf32>
    %259 = arith.mulf %256, %258 : vector<4x128xf32>
    %c0_234 = arith.constant 0 : index
    %c0_235 = arith.constant 0 : index
    %260 = vector.load %arg31[%c0_234, %c0_235] : memref<1x128xf32, #tpu.memory_space<vmem>>, vector<1x128xf32>
    %261 = vector.broadcast %260 : vector<1x128xf32> to vector<4x128xf32>
    %262 = arith.addf %259, %261 : vector<4x128xf32>
    %cst_236 = arith.constant 0.000000e+00 : f32
    %263 = vector.broadcast %cst_236 : f32 to vector<4x128xf32>
    %264 = arith.maximumf %262, %263 : vector<4x128xf32>
    %265 = arith.truncf %264 : vector<4x128xf32> to vector<4x128xbf16>
    %c0_237 = arith.constant 0 : index
    %c0_238 = arith.constant 0 : index
    %c0_239 = arith.constant 0 : index
    %266 = vector.load %arg32[%c0_237, %c0_238, %c0_239] : memref<3x4x4xbf16, #tpu.memory_space<vmem>>, vector<1x4x4xbf16>
    %267 = vector.shape_cast %266 : vector<1x4x4xbf16> to vector<4x4xbf16>
    %cst_240 = arith.constant dense<0.000000e+00> : vector<4x128xf32>
    %268 = tpu.matmul %267, %265, %cst_240 {dimension_numbers = #tpu.dot_dimension_numbers<[1], [0], [0], [1], [0, 0, 1, 1], [], []>} : vector<4x4xbf16>, vector<4x128xbf16>, vector<4x128xf32> -> vector<4x128xf32>
    %269 = arith.truncf %268 : vector<4x128xf32> to vector<4x128xbf16>
    %c0_241 = arith.constant 0 : index
    %c0_242 = arith.constant 0 : index
    %c0_243 = arith.constant 0 : index
    %270 = vector.load %arg33[%c0_241, %c0_242, %c0_243] : memref<3x128x128xbf16, #tpu.memory_space<vmem>>, vector<1x128x128xbf16>
    %271 = vector.shape_cast %270 : vector<1x128x128xbf16> to vector<128x128xbf16>
    %cst_244 = arith.constant dense<0.000000e+00> : vector<4x128xf32>
    %272 = tpu.matmul %269, %271, %cst_244 {dimension_numbers = #tpu.dot_dimension_numbers<[1], [0], [0], [1], [0, 0, 1, 1], [], []>} : vector<4x128xbf16>, vector<128x128xbf16>, vector<4x128xf32> -> vector<4x128xf32>
    %c1_245 = arith.constant 1 : index
    %c0_246 = arith.constant 0 : index
    %c0_247 = arith.constant 0 : index
    %273 = vector.load %arg32[%c1_245, %c0_246, %c0_247] : memref<3x4x4xbf16, #tpu.memory_space<vmem>>, vector<1x4x4xbf16>
    %274 = vector.shape_cast %273 : vector<1x4x4xbf16> to vector<4x4xbf16>
    %cst_248 = arith.constant dense<0.000000e+00> : vector<4x128xf32>
    %275 = tpu.matmul %274, %265, %cst_248 {dimension_numbers = #tpu.dot_dimension_numbers<[1], [0], [0], [1], [0, 0, 1, 1], [], []>} : vector<4x4xbf16>, vector<4x128xbf16>, vector<4x128xf32> -> vector<4x128xf32>
    %276 = arith.truncf %275 : vector<4x128xf32> to vector<4x128xbf16>
    %c1_249 = arith.constant 1 : index
    %c0_250 = arith.constant 0 : index
    %c0_251 = arith.constant 0 : index
    %277 = vector.load %arg33[%c1_249, %c0_250, %c0_251] : memref<3x128x128xbf16, #tpu.memory_space<vmem>>, vector<1x128x128xbf16>
    %278 = vector.shape_cast %277 : vector<1x128x128xbf16> to vector<128x128xbf16>
    %cst_252 = arith.constant dense<0.000000e+00> : vector<4x128xf32>
    %279 = tpu.matmul %276, %278, %cst_252 {dimension_numbers = #tpu.dot_dimension_numbers<[1], [0], [0], [1], [0, 0, 1, 1], [], []>} : vector<4x128xbf16>, vector<128x128xbf16>, vector<4x128xf32> -> vector<4x128xf32>
    %280 = arith.addf %272, %279 : vector<4x128xf32>
    %c2_253 = arith.constant 2 : index
    %c0_254 = arith.constant 0 : index
    %c0_255 = arith.constant 0 : index
    %281 = vector.load %arg32[%c2_253, %c0_254, %c0_255] : memref<3x4x4xbf16, #tpu.memory_space<vmem>>, vector<1x4x4xbf16>
    %282 = vector.shape_cast %281 : vector<1x4x4xbf16> to vector<4x4xbf16>
    %cst_256 = arith.constant dense<0.000000e+00> : vector<4x128xf32>
    %283 = tpu.matmul %282, %265, %cst_256 {dimension_numbers = #tpu.dot_dimension_numbers<[1], [0], [0], [1], [0, 0, 1, 1], [], []>} : vector<4x4xbf16>, vector<4x128xbf16>, vector<4x128xf32> -> vector<4x128xf32>
    %284 = arith.truncf %283 : vector<4x128xf32> to vector<4x128xbf16>
    %c2_257 = arith.constant 2 : index
    %c0_258 = arith.constant 0 : index
    %c0_259 = arith.constant 0 : index
    %285 = vector.load %arg33[%c2_257, %c0_258, %c0_259] : memref<3x128x128xbf16, #tpu.memory_space<vmem>>, vector<1x128x128xbf16>
    %286 = vector.shape_cast %285 : vector<1x128x128xbf16> to vector<128x128xbf16>
    %cst_260 = arith.constant dense<0.000000e+00> : vector<4x128xf32>
    %287 = tpu.matmul %284, %286, %cst_260 {dimension_numbers = #tpu.dot_dimension_numbers<[1], [0], [0], [1], [0, 0, 1, 1], [], []>} : vector<4x128xbf16>, vector<128x128xbf16>, vector<4x128xf32> -> vector<4x128xf32>
    %288 = arith.addf %280, %287 : vector<4x128xf32>
    %c0_261 = arith.constant 0 : index
    %c0_262 = arith.constant 0 : index
    %289 = vector.load %arg34[%c0_261, %c0_262] : memref<1x128xf32, #tpu.memory_space<vmem>>, vector<1x128xf32>
    %290 = vector.broadcast %289 : vector<1x128xf32> to vector<4x128xf32>
    %291 = arith.mulf %288, %290 : vector<4x128xf32>
    %c0_263 = arith.constant 0 : index
    %c0_264 = arith.constant 0 : index
    %292 = vector.load %arg35[%c0_263, %c0_264] : memref<1x128xf32, #tpu.memory_space<vmem>>, vector<1x128xf32>
    %293 = vector.broadcast %292 : vector<1x128xf32> to vector<4x128xf32>
    %294 = arith.addf %291, %293 : vector<4x128xf32>
    %c0_265 = arith.constant 0 : index
    %c0_266 = arith.constant 0 : index
    %c0_267 = arith.constant 0 : index
    %295 = vector.load %arg36[%c0_265, %c0_266, %c0_267] : memref<1x4x8xbf16, #tpu.memory_space<vmem>>, vector<1x4x8xbf16>
    %296 = vector.shape_cast %295 : vector<1x4x8xbf16> to vector<4x8xbf16>
    %cst_268 = arith.constant dense<0.000000e+00> : vector<4x128xf32>
    %297 = tpu.matmul %296, %233, %cst_268 {dimension_numbers = #tpu.dot_dimension_numbers<[1], [0], [0], [1], [0, 0, 1, 1], [], []>} : vector<4x8xbf16>, vector<8x128xbf16>, vector<4x128xf32> -> vector<4x128xf32>
    %298 = arith.truncf %297 : vector<4x128xf32> to vector<4x128xbf16>
    %c0_269 = arith.constant 0 : index
    %c0_270 = arith.constant 0 : index
    %c0_271 = arith.constant 0 : index
    %299 = vector.load %arg37[%c0_269, %c0_270, %c0_271] : memref<1x128x128xbf16, #tpu.memory_space<vmem>>, vector<1x128x128xbf16>
    %300 = vector.shape_cast %299 : vector<1x128x128xbf16> to vector<128x128xbf16>
    %cst_272 = arith.constant dense<0.000000e+00> : vector<4x128xf32>
    %301 = tpu.matmul %298, %300, %cst_272 {dimension_numbers = #tpu.dot_dimension_numbers<[1], [0], [0], [1], [0, 0, 1, 1], [], []>} : vector<4x128xbf16>, vector<128x128xbf16>, vector<4x128xf32> -> vector<4x128xf32>
    %c0_273 = arith.constant 0 : index
    %c0_274 = arith.constant 0 : index
    %302 = vector.load %arg38[%c0_273, %c0_274] : memref<1x128xf32, #tpu.memory_space<vmem>>, vector<1x128xf32>
    %303 = vector.broadcast %302 : vector<1x128xf32> to vector<4x128xf32>
    %304 = arith.mulf %301, %303 : vector<4x128xf32>
    %c0_275 = arith.constant 0 : index
    %c0_276 = arith.constant 0 : index
    %305 = vector.load %arg39[%c0_275, %c0_276] : memref<1x128xf32, #tpu.memory_space<vmem>>, vector<1x128xf32>
    %306 = vector.broadcast %305 : vector<1x128xf32> to vector<4x128xf32>
    %307 = arith.addf %304, %306 : vector<4x128xf32>
    %308 = arith.addf %294, %307 : vector<4x128xf32>
    %cst_277 = arith.constant 0.000000e+00 : f32
    %309 = vector.broadcast %cst_277 : f32 to vector<4x128xf32>
    %310 = arith.maximumf %308, %309 : vector<4x128xf32>
    %311 = arith.truncf %310 : vector<4x128xf32> to vector<4x128xbf16>
    %c0_278 = arith.constant 0 : index
    %c0_279 = arith.constant 0 : index
    %c0_280 = arith.constant 0 : index
    %312 = vector.load %arg40[%c0_278, %c0_279, %c0_280] : memref<3x2x4xbf16, #tpu.memory_space<vmem>>, vector<1x2x4xbf16>
    %313 = vector.shape_cast %312 : vector<1x2x4xbf16> to vector<2x4xbf16>
    %cst_281 = arith.constant dense<0.000000e+00> : vector<2x128xf32>
    %314 = tpu.matmul %313, %311, %cst_281 {dimension_numbers = #tpu.dot_dimension_numbers<[1], [0], [0], [1], [0, 0, 1, 1], [], []>} : vector<2x4xbf16>, vector<4x128xbf16>, vector<2x128xf32> -> vector<2x128xf32>
    %315 = arith.truncf %314 : vector<2x128xf32> to vector<2x128xbf16>
    %c0_282 = arith.constant 0 : index
    %c0_283 = arith.constant 0 : index
    %c0_284 = arith.constant 0 : index
    %316 = vector.load %arg41[%c0_282, %c0_283, %c0_284] : memref<3x128x128xbf16, #tpu.memory_space<vmem>>, vector<1x128x128xbf16>
    %317 = vector.shape_cast %316 : vector<1x128x128xbf16> to vector<128x128xbf16>
    %cst_285 = arith.constant dense<0.000000e+00> : vector<2x128xf32>
    %318 = tpu.matmul %315, %317, %cst_285 {dimension_numbers = #tpu.dot_dimension_numbers<[1], [0], [0], [1], [0, 0, 1, 1], [], []>} : vector<2x128xbf16>, vector<128x128xbf16>, vector<2x128xf32> -> vector<2x128xf32>
    %c1_286 = arith.constant 1 : index
    %c0_287 = arith.constant 0 : index
    %c0_288 = arith.constant 0 : index
    %319 = vector.load %arg40[%c1_286, %c0_287, %c0_288] : memref<3x2x4xbf16, #tpu.memory_space<vmem>>, vector<1x2x4xbf16>
    %320 = vector.shape_cast %319 : vector<1x2x4xbf16> to vector<2x4xbf16>
    %cst_289 = arith.constant dense<0.000000e+00> : vector<2x128xf32>
    %321 = tpu.matmul %320, %311, %cst_289 {dimension_numbers = #tpu.dot_dimension_numbers<[1], [0], [0], [1], [0, 0, 1, 1], [], []>} : vector<2x4xbf16>, vector<4x128xbf16>, vector<2x128xf32> -> vector<2x128xf32>
    %322 = arith.truncf %321 : vector<2x128xf32> to vector<2x128xbf16>
    %c1_290 = arith.constant 1 : index
    %c0_291 = arith.constant 0 : index
    %c0_292 = arith.constant 0 : index
    %323 = vector.load %arg41[%c1_290, %c0_291, %c0_292] : memref<3x128x128xbf16, #tpu.memory_space<vmem>>, vector<1x128x128xbf16>
    %324 = vector.shape_cast %323 : vector<1x128x128xbf16> to vector<128x128xbf16>
    %cst_293 = arith.constant dense<0.000000e+00> : vector<2x128xf32>
    %325 = tpu.matmul %322, %324, %cst_293 {dimension_numbers = #tpu.dot_dimension_numbers<[1], [0], [0], [1], [0, 0, 1, 1], [], []>} : vector<2x128xbf16>, vector<128x128xbf16>, vector<2x128xf32> -> vector<2x128xf32>
    %326 = arith.addf %318, %325 : vector<2x128xf32>
    %c2_294 = arith.constant 2 : index
    %c0_295 = arith.constant 0 : index
    %c0_296 = arith.constant 0 : index
    %327 = vector.load %arg40[%c2_294, %c0_295, %c0_296] : memref<3x2x4xbf16, #tpu.memory_space<vmem>>, vector<1x2x4xbf16>
    %328 = vector.shape_cast %327 : vector<1x2x4xbf16> to vector<2x4xbf16>
    %cst_297 = arith.constant dense<0.000000e+00> : vector<2x128xf32>
    %329 = tpu.matmul %328, %311, %cst_297 {dimension_numbers = #tpu.dot_dimension_numbers<[1], [0], [0], [1], [0, 0, 1, 1], [], []>} : vector<2x4xbf16>, vector<4x128xbf16>, vector<2x128xf32> -> vector<2x128xf32>
    %330 = arith.truncf %329 : vector<2x128xf32> to vector<2x128xbf16>
    %c2_298 = arith.constant 2 : index
    %c0_299 = arith.constant 0 : index
    %c0_300 = arith.constant 0 : index
    %331 = vector.load %arg41[%c2_298, %c0_299, %c0_300] : memref<3x128x128xbf16, #tpu.memory_space<vmem>>, vector<1x128x128xbf16>
    %332 = vector.shape_cast %331 : vector<1x128x128xbf16> to vector<128x128xbf16>
    %cst_301 = arith.constant dense<0.000000e+00> : vector<2x128xf32>
    %333 = tpu.matmul %330, %332, %cst_301 {dimension_numbers = #tpu.dot_dimension_numbers<[1], [0], [0], [1], [0, 0, 1, 1], [], []>} : vector<2x128xbf16>, vector<128x128xbf16>, vector<2x128xf32> -> vector<2x128xf32>
    %334 = arith.addf %326, %333 : vector<2x128xf32>
    %c0_302 = arith.constant 0 : index
    %c0_303 = arith.constant 0 : index
    %335 = vector.load %arg42[%c0_302, %c0_303] : memref<1x128xf32, #tpu.memory_space<vmem>>, vector<1x128xf32>
    %336 = vector.broadcast %335 : vector<1x128xf32> to vector<2x128xf32>
    %337 = arith.mulf %334, %336 : vector<2x128xf32>
    %c0_304 = arith.constant 0 : index
    %c0_305 = arith.constant 0 : index
    %338 = vector.load %arg43[%c0_304, %c0_305] : memref<1x128xf32, #tpu.memory_space<vmem>>, vector<1x128xf32>
    %339 = vector.broadcast %338 : vector<1x128xf32> to vector<2x128xf32>
    %340 = arith.addf %337, %339 : vector<2x128xf32>
    %cst_306 = arith.constant 0.000000e+00 : f32
    %341 = vector.broadcast %cst_306 : f32 to vector<2x128xf32>
    %342 = arith.maximumf %340, %341 : vector<2x128xf32>
    %343 = arith.truncf %342 : vector<2x128xf32> to vector<2x128xbf16>
    %c0_307 = arith.constant 0 : index
    %c0_308 = arith.constant 0 : index
    %c0_309 = arith.constant 0 : index
    %344 = vector.load %arg44[%c0_307, %c0_308, %c0_309] : memref<3x2x2xbf16, #tpu.memory_space<vmem>>, vector<1x2x2xbf16>
    %345 = vector.shape_cast %344 : vector<1x2x2xbf16> to vector<2x2xbf16>
    %cst_310 = arith.constant dense<0.000000e+00> : vector<2x128xf32>
    %346 = tpu.matmul %345, %343, %cst_310 {dimension_numbers = #tpu.dot_dimension_numbers<[1], [0], [0], [1], [0, 0, 1, 1], [], []>} : vector<2x2xbf16>, vector<2x128xbf16>, vector<2x128xf32> -> vector<2x128xf32>
    %347 = arith.truncf %346 : vector<2x128xf32> to vector<2x128xbf16>
    %c0_311 = arith.constant 0 : index
    %c0_312 = arith.constant 0 : index
    %c0_313 = arith.constant 0 : index
    %348 = vector.load %arg45[%c0_311, %c0_312, %c0_313] : memref<3x128x128xbf16, #tpu.memory_space<vmem>>, vector<1x128x128xbf16>
    %349 = vector.shape_cast %348 : vector<1x128x128xbf16> to vector<128x128xbf16>
    %cst_314 = arith.constant dense<0.000000e+00> : vector<2x128xf32>
    %350 = tpu.matmul %347, %349, %cst_314 {dimension_numbers = #tpu.dot_dimension_numbers<[1], [0], [0], [1], [0, 0, 1, 1], [], []>} : vector<2x128xbf16>, vector<128x128xbf16>, vector<2x128xf32> -> vector<2x128xf32>
    %c1_315 = arith.constant 1 : index
    %c0_316 = arith.constant 0 : index
    %c0_317 = arith.constant 0 : index
    %351 = vector.load %arg44[%c1_315, %c0_316, %c0_317] : memref<3x2x2xbf16, #tpu.memory_space<vmem>>, vector<1x2x2xbf16>
    %352 = vector.shape_cast %351 : vector<1x2x2xbf16> to vector<2x2xbf16>
    %cst_318 = arith.constant dense<0.000000e+00> : vector<2x128xf32>
    %353 = tpu.matmul %352, %343, %cst_318 {dimension_numbers = #tpu.dot_dimension_numbers<[1], [0], [0], [1], [0, 0, 1, 1], [], []>} : vector<2x2xbf16>, vector<2x128xbf16>, vector<2x128xf32> -> vector<2x128xf32>
    %354 = arith.truncf %353 : vector<2x128xf32> to vector<2x128xbf16>
    %c1_319 = arith.constant 1 : index
    %c0_320 = arith.constant 0 : index
    %c0_321 = arith.constant 0 : index
    %355 = vector.load %arg45[%c1_319, %c0_320, %c0_321] : memref<3x128x128xbf16, #tpu.memory_space<vmem>>, vector<1x128x128xbf16>
    %356 = vector.shape_cast %355 : vector<1x128x128xbf16> to vector<128x128xbf16>
    %cst_322 = arith.constant dense<0.000000e+00> : vector<2x128xf32>
    %357 = tpu.matmul %354, %356, %cst_322 {dimension_numbers = #tpu.dot_dimension_numbers<[1], [0], [0], [1], [0, 0, 1, 1], [], []>} : vector<2x128xbf16>, vector<128x128xbf16>, vector<2x128xf32> -> vector<2x128xf32>
    %358 = arith.addf %350, %357 : vector<2x128xf32>
    %c2_323 = arith.constant 2 : index
    %c0_324 = arith.constant 0 : index
    %c0_325 = arith.constant 0 : index
    %359 = vector.load %arg44[%c2_323, %c0_324, %c0_325] : memref<3x2x2xbf16, #tpu.memory_space<vmem>>, vector<1x2x2xbf16>
    %360 = vector.shape_cast %359 : vector<1x2x2xbf16> to vector<2x2xbf16>
    %cst_326 = arith.constant dense<0.000000e+00> : vector<2x128xf32>
    %361 = tpu.matmul %360, %343, %cst_326 {dimension_numbers = #tpu.dot_dimension_numbers<[1], [0], [0], [1], [0, 0, 1, 1], [], []>} : vector<2x2xbf16>, vector<2x128xbf16>, vector<2x128xf32> -> vector<2x128xf32>
    %362 = arith.truncf %361 : vector<2x128xf32> to vector<2x128xbf16>
    %c2_327 = arith.constant 2 : index
    %c0_328 = arith.constant 0 : index
    %c0_329 = arith.constant 0 : index
    %363 = vector.load %arg45[%c2_327, %c0_328, %c0_329] : memref<3x128x128xbf16, #tpu.memory_space<vmem>>, vector<1x128x128xbf16>
    %364 = vector.shape_cast %363 : vector<1x128x128xbf16> to vector<128x128xbf16>
    %cst_330 = arith.constant dense<0.000000e+00> : vector<2x128xf32>
    %365 = tpu.matmul %362, %364, %cst_330 {dimension_numbers = #tpu.dot_dimension_numbers<[1], [0], [0], [1], [0, 0, 1, 1], [], []>} : vector<2x128xbf16>, vector<128x128xbf16>, vector<2x128xf32> -> vector<2x128xf32>
    %366 = arith.addf %358, %365 : vector<2x128xf32>
    %c0_331 = arith.constant 0 : index
    %c0_332 = arith.constant 0 : index
    %367 = vector.load %arg46[%c0_331, %c0_332] : memref<1x128xf32, #tpu.memory_space<vmem>>, vector<1x128xf32>
    %368 = vector.broadcast %367 : vector<1x128xf32> to vector<2x128xf32>
    %369 = arith.mulf %366, %368 : vector<2x128xf32>
    %c0_333 = arith.constant 0 : index
    %c0_334 = arith.constant 0 : index
    %370 = vector.load %arg47[%c0_333, %c0_334] : memref<1x128xf32, #tpu.memory_space<vmem>>, vector<1x128xf32>
    %371 = vector.broadcast %370 : vector<1x128xf32> to vector<2x128xf32>
    %372 = arith.addf %369, %371 : vector<2x128xf32>
    %c0_335 = arith.constant 0 : index
    %c0_336 = arith.constant 0 : index
    %c0_337 = arith.constant 0 : index
    %373 = vector.load %arg48[%c0_335, %c0_336, %c0_337] : memref<1x2x4xbf16, #tpu.memory_space<vmem>>, vector<1x2x4xbf16>
    %374 = vector.shape_cast %373 : vector<1x2x4xbf16> to vector<2x4xbf16>
    %cst_338 = arith.constant dense<0.000000e+00> : vector<2x128xf32>
    %375 = tpu.matmul %374, %311, %cst_338 {dimension_numbers = #tpu.dot_dimension_numbers<[1], [0], [0], [1], [0, 0, 1, 1], [], []>} : vector<2x4xbf16>, vector<4x128xbf16>, vector<2x128xf32> -> vector<2x128xf32>
    %376 = arith.truncf %375 : vector<2x128xf32> to vector<2x128xbf16>
    %c0_339 = arith.constant 0 : index
    %c0_340 = arith.constant 0 : index
    %c0_341 = arith.constant 0 : index
    %377 = vector.load %arg49[%c0_339, %c0_340, %c0_341] : memref<1x128x128xbf16, #tpu.memory_space<vmem>>, vector<1x128x128xbf16>
    %378 = vector.shape_cast %377 : vector<1x128x128xbf16> to vector<128x128xbf16>
    %cst_342 = arith.constant dense<0.000000e+00> : vector<2x128xf32>
    %379 = tpu.matmul %376, %378, %cst_342 {dimension_numbers = #tpu.dot_dimension_numbers<[1], [0], [0], [1], [0, 0, 1, 1], [], []>} : vector<2x128xbf16>, vector<128x128xbf16>, vector<2x128xf32> -> vector<2x128xf32>
    %c0_343 = arith.constant 0 : index
    %c0_344 = arith.constant 0 : index
    %380 = vector.load %arg50[%c0_343, %c0_344] : memref<1x128xf32, #tpu.memory_space<vmem>>, vector<1x128xf32>
    %381 = vector.broadcast %380 : vector<1x128xf32> to vector<2x128xf32>
    %382 = arith.mulf %379, %381 : vector<2x128xf32>
    %c0_345 = arith.constant 0 : index
    %c0_346 = arith.constant 0 : index
    %383 = vector.load %arg51[%c0_345, %c0_346] : memref<1x128xf32, #tpu.memory_space<vmem>>, vector<1x128xf32>
    %384 = vector.broadcast %383 : vector<1x128xf32> to vector<2x128xf32>
    %385 = arith.addf %382, %384 : vector<2x128xf32>
    %386 = arith.addf %372, %385 : vector<2x128xf32>
    %cst_347 = arith.constant 0.000000e+00 : f32
    %387 = vector.broadcast %cst_347 : f32 to vector<2x128xf32>
    %388 = arith.maximumf %386, %387 : vector<2x128xf32>
    %389 = arith.truncf %388 : vector<2x128xf32> to vector<2x128xbf16>
    %390 = vector.extract_strided_slice %389 {offsets = [0, 0], sizes = [1, 128], strides = [1, 1]} : vector<2x128xbf16> to vector<1x128xbf16>
    %391 = arith.extf %390 : vector<1x128xbf16> to vector<1x128xf32>
    %392 = vector.extract_strided_slice %389 {offsets = [1, 0], sizes = [1, 128], strides = [1, 1]} : vector<2x128xbf16> to vector<1x128xbf16>
    %393 = arith.extf %392 : vector<1x128xbf16> to vector<1x128xf32>
    %394 = arith.addf %391, %393 : vector<1x128xf32>
    %c0_348 = arith.constant 0 : index
    %c0_349 = arith.constant 0 : index
    %395 = vector.load %arg52[%c0_348, %c0_349] : memref<128x10xf32, #tpu.memory_space<vmem>>, vector<128x10xf32>
    %cst_350 = arith.constant dense<0.000000e+00> : vector<1x10xf32>
    %396 = tpu.matmul %394, %395, %cst_350 {dimension_numbers = #tpu.dot_dimension_numbers<[1], [0], [0], [1], [0, 0, 1, 1], [], []>} : vector<1x128xf32>, vector<128x10xf32>, vector<1x10xf32> -> vector<1x10xf32>
    %c0_351 = arith.constant 0 : index
    %c0_352 = arith.constant 0 : index
    %397 = vector.load %arg53[%c0_351, %c0_352] : memref<1x10xf32, #tpu.memory_space<vmem>>, vector<1x10xf32>
    %398 = arith.addf %396, %397 : vector<1x10xf32>
    %c0_353 = arith.constant 0 : index
    %c0_354 = arith.constant 0 : index
    %c0_355 = arith.constant 0 : index
    %399 = vector.load %arg54[%c0_353, %c0_354, %c0_355] : memref<1x1x10xf32, #tpu.memory_space<vmem>>, vector<1x1x10xf32>
    %400 = vector.shape_cast %399 : vector<1x1x10xf32> to vector<1x10xf32>
    %401 = vector.shape_cast %398 : vector<1x10xf32> to vector<1x1x10xf32>
    tpu.vector_store %arg54[%c0_353, %c0_354, %c0_355], %401 {strides = array<i32>} : memref<1x1x10xf32, #tpu.memory_space<vmem>>, vector<1x1x10xf32>,
    return
  }
  func.func @transform_0(%arg0: i32) -> (i32, i32, i32) {
    %c0_i32 = arith.constant 0 : i32
    %c0_i32_0 = arith.constant 0 : i32
    %c0_i32_1 = arith.constant 0 : i32
    return %arg0, %c0_i32, %c0_i32_0 : i32, i32, i32
  }
  func.func @transform_1(%arg0: i32) -> (i32, i32, i32) {
    %c0_i32 = arith.constant 0 : i32
    %c0_i32_0 = arith.constant 0 : i32
    %c0_i32_1 = arith.constant 0 : i32
    %c0_i32_2 = arith.constant 0 : i32
    return %c0_i32, %c0_i32_0, %c0_i32_1 : i32, i32, i32
  }
  func.func @transform_2(%arg0: i32) -> (i32, i32, i32) {
    %c0_i32 = arith.constant 0 : i32
    %c0_i32_0 = arith.constant 0 : i32
    %c0_i32_1 = arith.constant 0 : i32
    %c0_i32_2 = arith.constant 0 : i32
    return %c0_i32, %c0_i32_0, %c0_i32_1 : i32, i32, i32
  }
  func.func @transform_3(%arg0: i32) -> (i32, i32) {
    %c0_i32 = arith.constant 0 : i32
    %c0_i32_0 = arith.constant 0 : i32
    %c0_i32_1 = arith.constant 0 : i32
    return %c0_i32, %c0_i32_0 : i32, i32
  }
  func.func @transform_4(%arg0: i32) -> (i32, i32) {
    %c0_i32 = arith.constant 0 : i32
    %c0_i32_0 = arith.constant 0 : i32
    %c0_i32_1 = arith.constant 0 : i32
    return %c0_i32, %c0_i32_0 : i32, i32
  }
  func.func @transform_5(%arg0: i32) -> (i32, i32, i32) {
    %c0_i32 = arith.constant 0 : i32
    %c0_i32_0 = arith.constant 0 : i32
    %c0_i32_1 = arith.constant 0 : i32
    %c0_i32_2 = arith.constant 0 : i32
    return %c0_i32, %c0_i32_0, %c0_i32_1 : i32, i32, i32
  }
  func.func @transform_6(%arg0: i32) -> (i32, i32, i32) {
    %c0_i32 = arith.constant 0 : i32
    %c0_i32_0 = arith.constant 0 : i32
    %c0_i32_1 = arith.constant 0 : i32
    %c0_i32_2 = arith.constant 0 : i32
    return %c0_i32, %c0_i32_0, %c0_i32_1 : i32, i32, i32
  }
  func.func @transform_7(%arg0: i32) -> (i32, i32, i32) {
    %c0_i32 = arith.constant 0 : i32
    %c0_i32_0 = arith.constant 0 : i32
    %c0_i32_1 = arith.constant 0 : i32
    %c0_i32_2 = arith.constant 0 : i32
    return %c0_i32, %c0_i32_0, %c0_i32_1 : i32, i32, i32
  }
  func.func @transform_8(%arg0: i32) -> (i32, i32, i32) {
    %c0_i32 = arith.constant 0 : i32
    %c0_i32_0 = arith.constant 0 : i32
    %c0_i32_1 = arith.constant 0 : i32
    %c0_i32_2 = arith.constant 0 : i32
    return %c0_i32, %c0_i32_0, %c0_i32_1 : i32, i32, i32
  }
  func.func @transform_9(%arg0: i32) -> (i32, i32) {
    %c0_i32 = arith.constant 0 : i32
    %c0_i32_0 = arith.constant 0 : i32
    %c0_i32_1 = arith.constant 0 : i32
    return %c0_i32, %c0_i32_0 : i32, i32
  }
  func.func @transform_10(%arg0: i32) -> (i32, i32) {
    %c0_i32 = arith.constant 0 : i32
    %c0_i32_0 = arith.constant 0 : i32
    %c0_i32_1 = arith.constant 0 : i32
    return %c0_i32, %c0_i32_0 : i32, i32
  }
  func.func @transform_11(%arg0: i32) -> (i32, i32, i32) {
    %c0_i32 = arith.constant 0 : i32
    %c0_i32_0 = arith.constant 0 : i32
    %c0_i32_1 = arith.constant 0 : i32
    %c0_i32_2 = arith.constant 0 : i32
    return %c0_i32, %c0_i32_0, %c0_i32_1 : i32, i32, i32
  }
  func.func @transform_12(%arg0: i32) -> (i32, i32, i32) {
    %c0_i32 = arith.constant 0 : i32
    %c0_i32_0 = arith.constant 0 : i32
    %c0_i32_1 = arith.constant 0 : i32
    %c0_i32_2 = arith.constant 0 : i32
    return %c0_i32, %c0_i32_0, %c0_i32_1 : i32, i32, i32
  }
  func.func @transform_13(%arg0: i32) -> (i32, i32) {
    %c0_i32 = arith.constant 0 : i32
    %c0_i32_0 = arith.constant 0 : i32
    %c0_i32_1 = arith.constant 0 : i32
    return %c0_i32, %c0_i32_0 : i32, i32
  }
  func.func @transform_14(%arg0: i32) -> (i32, i32) {
    %c0_i32 = arith.constant 0 : i32
    %c0_i32_0 = arith.constant 0 : i32
    %c0_i32_1 = arith.constant 0 : i32
    return %c0_i32, %c0_i32_0 : i32, i32
  }
  func.func @transform_15(%arg0: i32) -> (i32, i32, i32) {
    %c0_i32 = arith.constant 0 : i32
    %c0_i32_0 = arith.constant 0 : i32
    %c0_i32_1 = arith.constant 0 : i32
    %c0_i32_2 = arith.constant 0 : i32
    return %c0_i32, %c0_i32_0, %c0_i32_1 : i32, i32, i32
  }
  func.func @transform_16(%arg0: i32) -> (i32, i32, i32) {
    %c0_i32 = arith.constant 0 : i32
    %c0_i32_0 = arith.constant 0 : i32
    %c0_i32_1 = arith.constant 0 : i32
    %c0_i32_2 = arith.constant 0 : i32
    return %c0_i32, %c0_i32_0, %c0_i32_1 : i32, i32, i32
  }
  func.func @transform_17(%arg0: i32) -> (i32, i32) {
    %c0_i32 = arith.constant 0 : i32
    %c0_i32_0 = arith.constant 0 : i32
    %c0_i32_1 = arith.constant 0 : i32
    return %c0_i32, %c0_i32_0 : i32, i32
  }
  func.func @transform_18(%arg0: i32) -> (i32, i32) {
    %c0_i32 = arith.constant 0 : i32
    %c0_i32_0 = arith.constant 0 : i32
    %c0_i32_1 = arith.constant 0 : i32
    return %c0_i32, %c0_i32_0 : i32, i32
  }
  func.func @transform_19(%arg0: i32) -> (i32, i32, i32) {
    %c0_i32 = arith.constant 0 : i32
    %c0_i32_0 = arith.constant 0 : i32
    %c0_i32_1 = arith.constant 0 : i32
    %c0_i32_2 = arith.constant 0 : i32
    return %c0_i32, %c0_i32_0, %c0_i32_1 : i32, i32, i32
  }
  func.func @transform_20(%arg0: i32) -> (i32, i32, i32) {
    %c0_i32 = arith.constant 0 : i32
    %c0_i32_0 = arith.constant 0 : i32
    %c0_i32_1 = arith.constant 0 : i32
    %c0_i32_2 = arith.constant 0 : i32
    return %c0_i32, %c0_i32_0, %c0_i32_1 : i32, i32, i32
  }
  func.func @transform_21(%arg0: i32) -> (i32, i32) {
    %c0_i32 = arith.constant 0 : i32
    %c0_i32_0 = arith.constant 0 : i32
    %c0_i32_1 = arith.constant 0 : i32
    return %c0_i32, %c0_i32_0 : i32, i32
  }
  func.func @transform_22(%arg0: i32) -> (i32, i32) {
    %c0_i32 = arith.constant 0 : i32
    %c0_i32_0 = arith.constant 0 : i32
    %c0_i32_1 = arith.constant 0 : i32
    return %c0_i32, %c0_i32_0 : i32, i32
  }
  func.func @transform_23(%arg0: i32) -> (i32, i32, i32) {
    %c0_i32 = arith.constant 0 : i32
    %c0_i32_0 = arith.constant 0 : i32
    %c0_i32_1 = arith.constant 0 : i32
    %c0_i32_2 = arith.constant 0 : i32
    return %c0_i32, %c0_i32_0, %c0_i32_1 : i32, i32, i32
  }
  func.func @transform_24(%arg0: i32) -> (i32, i32, i32) {
    %c0_i32 = arith.constant 0 : i32
    %c0_i32_0 = arith.constant 0 : i32
    %c0_i32_1 = arith.constant 0 : i32
    %c0_i32_2 = arith.constant 0 : i32
    return %c0_i32, %c0_i32_0, %c0_i32_1 : i32, i32, i32
  }
  func.func @transform_25(%arg0: i32) -> (i32, i32) {
    %c0_i32 = arith.constant 0 : i32
    %c0_i32_0 = arith.constant 0 : i32
    %c0_i32_1 = arith.constant 0 : i32
    return %c0_i32, %c0_i32_0 : i32, i32
  }
  func.func @transform_26(%arg0: i32) -> (i32, i32) {
    %c0_i32 = arith.constant 0 : i32
    %c0_i32_0 = arith.constant 0 : i32
    %c0_i32_1 = arith.constant 0 : i32
    return %c0_i32, %c0_i32_0 : i32, i32
  }
  func.func @transform_27(%arg0: i32) -> (i32, i32, i32) {
    %c0_i32 = arith.constant 0 : i32
    %c0_i32_0 = arith.constant 0 : i32
    %c0_i32_1 = arith.constant 0 : i32
    %c0_i32_2 = arith.constant 0 : i32
    return %c0_i32, %c0_i32_0, %c0_i32_1 : i32, i32, i32
  }
  func.func @transform_28(%arg0: i32) -> (i32, i32, i32) {
    %c0_i32 = arith.constant 0 : i32
    %c0_i32_0 = arith.constant 0 : i32
    %c0_i32_1 = arith.constant 0 : i32
    %c0_i32_2 = arith.constant 0 : i32
    return %c0_i32, %c0_i32_0, %c0_i32_1 : i32, i32, i32
  }
  func.func @transform_29(%arg0: i32) -> (i32, i32) {
    %c0_i32 = arith.constant 0 : i32
    %c0_i32_0 = arith.constant 0 : i32
    %c0_i32_1 = arith.constant 0 : i32
    return %c0_i32, %c0_i32_0 : i32, i32
  }
  func.func @transform_30(%arg0: i32) -> (i32, i32) {
    %c0_i32 = arith.constant 0 : i32
    %c0_i32_0 = arith.constant 0 : i32
    %c0_i32_1 = arith.constant 0 : i32
    return %c0_i32, %c0_i32_0 : i32, i32
  }
  func.func @transform_31(%arg0: i32) -> (i32, i32, i32) {
    %c0_i32 = arith.constant 0 : i32
    %c0_i32_0 = arith.constant 0 : i32
    %c0_i32_1 = arith.constant 0 : i32
    %c0_i32_2 = arith.constant 0 : i32
    return %c0_i32, %c0_i32_0, %c0_i32_1 : i32, i32, i32
  }
  func.func @transform_32(%arg0: i32) -> (i32, i32, i32) {
    %c0_i32 = arith.constant 0 : i32
    %c0_i32_0 = arith.constant 0 : i32
    %c0_i32_1 = arith.constant 0 : i32
    %c0_i32_2 = arith.constant 0 : i32
    return %c0_i32, %c0_i32_0, %c0_i32_1 : i32, i32, i32
  }
  func.func @transform_33(%arg0: i32) -> (i32, i32) {
    %c0_i32 = arith.constant 0 : i32
    %c0_i32_0 = arith.constant 0 : i32
    %c0_i32_1 = arith.constant 0 : i32
    return %c0_i32, %c0_i32_0 : i32, i32
  }
  func.func @transform_34(%arg0: i32) -> (i32, i32) {
    %c0_i32 = arith.constant 0 : i32
    %c0_i32_0 = arith.constant 0 : i32
    %c0_i32_1 = arith.constant 0 : i32
    return %c0_i32, %c0_i32_0 : i32, i32
  }
  func.func @transform_35(%arg0: i32) -> (i32, i32, i32) {
    %c0_i32 = arith.constant 0 : i32
    %c0_i32_0 = arith.constant 0 : i32
    %c0_i32_1 = arith.constant 0 : i32
    %c0_i32_2 = arith.constant 0 : i32
    return %c0_i32, %c0_i32_0, %c0_i32_1 : i32, i32, i32
  }
  func.func @transform_36(%arg0: i32) -> (i32, i32, i32) {
    %c0_i32 = arith.constant 0 : i32
    %c0_i32_0 = arith.constant 0 : i32
    %c0_i32_1 = arith.constant 0 : i32
    %c0_i32_2 = arith.constant 0 : i32
    return %c0_i32, %c0_i32_0, %c0_i32_1 : i32, i32, i32
  }
  func.func @transform_37(%arg0: i32) -> (i32, i32) {
    %c0_i32 = arith.constant 0 : i32
    %c0_i32_0 = arith.constant 0 : i32
    %c0_i32_1 = arith.constant 0 : i32
    return %c0_i32, %c0_i32_0 : i32, i32
  }
  func.func @transform_38(%arg0: i32) -> (i32, i32) {
    %c0_i32 = arith.constant 0 : i32
    %c0_i32_0 = arith.constant 0 : i32
    %c0_i32_1 = arith.constant 0 : i32
    return %c0_i32, %c0_i32_0 : i32, i32
  }
  func.func @transform_39(%arg0: i32) -> (i32, i32, i32) {
    %c0_i32 = arith.constant 0 : i32
    %c0_i32_0 = arith.constant 0 : i32
    %c0_i32_1 = arith.constant 0 : i32
    %c0_i32_2 = arith.constant 0 : i32
    return %c0_i32, %c0_i32_0, %c0_i32_1 : i32, i32, i32
  }
  func.func @transform_40(%arg0: i32) -> (i32, i32, i32) {
    %c0_i32 = arith.constant 0 : i32
    %c0_i32_0 = arith.constant 0 : i32
    %c0_i32_1 = arith.constant 0 : i32
    %c0_i32_2 = arith.constant 0 : i32
    return %c0_i32, %c0_i32_0, %c0_i32_1 : i32, i32, i32
  }
  func.func @transform_41(%arg0: i32) -> (i32, i32) {
    %c0_i32 = arith.constant 0 : i32
    %c0_i32_0 = arith.constant 0 : i32
    %c0_i32_1 = arith.constant 0 : i32
    return %c0_i32, %c0_i32_0 : i32, i32
  }
  func.func @transform_42(%arg0: i32) -> (i32, i32) {
    %c0_i32 = arith.constant 0 : i32
    %c0_i32_0 = arith.constant 0 : i32
    %c0_i32_1 = arith.constant 0 : i32
    return %c0_i32, %c0_i32_0 : i32, i32
  }
  func.func @transform_43(%arg0: i32) -> (i32, i32, i32) {
    %c0_i32 = arith.constant 0 : i32
    %c0_i32_0 = arith.constant 0 : i32
    %c0_i32_1 = arith.constant 0 : i32
    %c0_i32_2 = arith.constant 0 : i32
    return %c0_i32, %c0_i32_0, %c0_i32_1 : i32, i32, i32
  }
  func.func @transform_44(%arg0: i32) -> (i32, i32, i32) {
    %c0_i32 = arith.constant 0 : i32
    %c0_i32_0 = arith.constant 0 : i32
    %c0_i32_1 = arith.constant 0 : i32
    %c0_i32_2 = arith.constant 0 : i32
    return %c0_i32, %c0_i32_0, %c0_i32_1 : i32, i32, i32
  }
  func.func @transform_45(%arg0: i32) -> (i32, i32) {
    %c0_i32 = arith.constant 0 : i32
    %c0_i32_0 = arith.constant 0 : i32
    %c0_i32_1 = arith.constant 0 : i32
    return %c0_i32, %c0_i32_0 : i32, i32
  }
  func.func @transform_46(%arg0: i32) -> (i32, i32) {
    %c0_i32 = arith.constant 0 : i32
    %c0_i32_0 = arith.constant 0 : i32
    %c0_i32_1 = arith.constant 0 : i32
    return %c0_i32, %c0_i32_0 : i32, i32
  }
  func.func @transform_47(%arg0: i32) -> (i32, i32, i32) {
    %c0_i32 = arith.constant 0 : i32
    %c0_i32_0 = arith.constant 0 : i32
    %c0_i32_1 = arith.constant 0 : i32
    %c0_i32_2 = arith.constant 0 : i32
    return %c0_i32, %c0_i32_0, %c0_i32_1 : i32, i32, i32
  }
  func.func @transform_48(%arg0: i32) -> (i32, i32, i32) {
    %c0_i32 = arith.constant 0 : i32
    %c0_i32_0 = arith.constant 0 : i32
    %c0_i32_1 = arith.constant 0 : i32
    %c0_i32_2 = arith.constant 0 : i32
    return %c0_i32, %c0_i32_0, %c0_i32_1 : i32, i32, i32
  }
  func.func @transform_49(%arg0: i32) -> (i32, i32) {
    %c0_i32 = arith.constant 0 : i32
    %c0_i32_0 = arith.constant 0 : i32
    %c0_i32_1 = arith.constant 0 : i32
    return %c0_i32, %c0_i32_0 : i32, i32
  }
  func.func @transform_50(%arg0: i32) -> (i32, i32) {
    %c0_i32 = arith.constant 0 : i32
    %c0_i32_0 = arith.constant 0 : i32
    %c0_i32_1 = arith.constant 0 : i32
    return %c0_i32, %c0_i32_0 : i32, i32
  }
  func.func @transform_51(%arg0: i32) -> (i32, i32) {
    %c0_i32 = arith.constant 0 : i32
    %c0_i32_0 = arith.constant 0 : i32
    %c0_i32_1 = arith.constant 0 : i32
    return %c0_i32, %c0_i32_0 : i32, i32
  }
  func.func @transform_52(%arg0: i32) -> (i32, i32) {
    %c0_i32 = arith.constant 0 : i32
    %c0_i32_0 = arith.constant 0 : i32
    %c0_i32_1 = arith.constant 0 : i32
    return %c0_i32, %c0_i32_0 : i32, i32
  }
  func.func @transform_53(%arg0: i32) -> (i32, i32, i32) {
    %c0_i32 = arith.constant 0 : i32
    %c0_i32_0 = arith.constant 0 : i32
    %c0_i32_1 = arith.constant 0 : i32
    return %arg0, %c0_i32, %c0_i32_0 : i32, i32, i32
  }
}

</mosaic_0001>

<llo_original>
// kernel: resnet_forward.1
$region0: #{resnet_forward.1}
  #allocation0 [shape = 'u32[]', space=smem, size = 0x4, offset = 0x4, fixed_abs, tag = 'smem constant byte address 0x4 - core index']
  #allocation1 [shape = 'u32[144,128]{1,0:T(1,128)}', space=vmem, size = 0x12000, scoped, tag = 'internal scratch']
  %s0 = inlined_call_operand.smem [shape: u32[54], index: -1, kind: input, shape index: {}]
  %s1 = sld [smem:[%s0]]
  %s2 = scalar_lea.smem %s0, 1
  %s3 = sld [smem:[%s2]]
  %s4 = scalar_lea.smem %s0, 2
  %s5 = sld [smem:[%s4]]
  %s6 = scalar_lea.smem %s0, 3
  %s7 = sld [smem:[%s6]]
  %s8 = scalar_lea.smem %s0, 4
  %s9 = sld [smem:[%s8]]
  %s10 = scalar_lea.smem %s0, 5
  %s11 = sld [smem:[%s10]]
  %s12 = scalar_lea.smem %s0, 6
  %s13 = sld [smem:[%s12]]
  %s14 = scalar_lea.smem %s0, 7
  %s15 = sld [smem:[%s14]]
  %s16 = scalar_lea.smem %s0, 8
  %s17 = sld [smem:[%s16]]
  %s18 = scalar_lea.smem %s0, 9
  %s19 = sld [smem:[%s18]]
  %s20 = scalar_lea.smem %s0, 10
  %s21 = sld [smem:[%s20]]
  %s22 = scalar_lea.smem %s0, 11
  %s23 = sld [smem:[%s22]]
  %s24 = scalar_lea.smem %s0, 12
  %s25 = sld [smem:[%s24]]
  %s26 = scalar_lea.smem %s0, 13
  %s27 = sld [smem:[%s26]]
  %s28 = scalar_lea.smem %s0, 14
  %s29 = sld [smem:[%s28]]
  %s30 = scalar_lea.smem %s0, 15
  %s31 = sld [smem:[%s30]]
  %s32 = scalar_lea.smem %s0, 16
  %s33 = sld [smem:[%s32]]
  %s34 = scalar_lea.smem %s0, 17
  %s35 = sld [smem:[%s34]]
  %s36 = scalar_lea.smem %s0, 18
  %s37 = sld [smem:[%s36]]
  %s38 = scalar_lea.smem %s0, 19
  %s39 = sld [smem:[%s38]]
  %s40 = scalar_lea.smem %s0, 20
  %s41 = sld [smem:[%s40]]
  %s42 = scalar_lea.smem %s0, 21
  %s43 = sld [smem:[%s42]]
  %s44 = scalar_lea.smem %s0, 22
  %s45 = sld [smem:[%s44]]
  %s46 = scalar_lea.smem %s0, 23
  %s47 = sld [smem:[%s46]]
  %s48 = scalar_lea.smem %s0, 24
  %s49 = sld [smem:[%s48]]
  %s50 = scalar_lea.smem %s0, 25
  %s51 = sld [smem:[%s50]]
  %s52 = scalar_lea.smem %s0, 26
  %s53 = sld [smem:[%s52]]
  %s54 = scalar_lea.smem %s0, 27
  %s55 = sld [smem:[%s54]]
  %s56 = scalar_lea.smem %s0, 28
  %s57 = sld [smem:[%s56]]
  %s58 = scalar_lea.smem %s0, 29
  %s59 = sld [smem:[%s58]]
  %s60 = scalar_lea.smem %s0, 30
  %s61 = sld [smem:[%s60]]
  %s62 = scalar_lea.smem %s0, 31
  %s63 = sld [smem:[%s62]]
  %s64 = scalar_lea.smem %s0, 32
  %s65 = sld [smem:[%s64]]
  %s66 = scalar_lea.smem %s0, 33
  %s67 = sld [smem:[%s66]]
  %s68 = scalar_lea.smem %s0, 34
  %s69 = sld [smem:[%s68]]
  %s70 = scalar_lea.smem %s0, 35
  %s71 = sld [smem:[%s70]]
  %s72 = scalar_lea.smem %s0, 36
  %s73 = sld [smem:[%s72]]
  %s74 = scalar_lea.smem %s0, 37
  %s75 = sld [smem:[%s74]]
  %s76 = scalar_lea.smem %s0, 38
  %s77 = sld [smem:[%s76]]
  %s78 = scalar_lea.smem %s0, 39
  %s79 = sld [smem:[%s78]]
  %s80 = scalar_lea.smem %s0, 40
  %s81 = sld [smem:[%s80]]
  %s82 = scalar_lea.smem %s0, 41
  %s83 = sld [smem:[%s82]]
  %s84 = scalar_lea.smem %s0, 42
  %s85 = sld [smem:[%s84]]
  %s86 = scalar_lea.smem %s0, 43
  %s87 = sld [smem:[%s86]]
  %s88 = scalar_lea.smem %s0, 44
  %s89 = sld [smem:[%s88]]
  %s90 = scalar_lea.smem %s0, 45
  %s91 = sld [smem:[%s90]]
  %s92 = scalar_lea.smem %s0, 46
  %s93 = sld [smem:[%s92]]
  %s94 = scalar_lea.smem %s0, 47
  %s95 = sld [smem:[%s94]]
  %s96 = scalar_lea.smem %s0, 48
  %s97 = sld [smem:[%s96]]
  %s98 = scalar_lea.smem %s0, 49
  %s99 = sld [smem:[%s98]]
  %s100 = scalar_lea.smem %s0, 50
  %s101 = sld [smem:[%s100]]
  %s102 = scalar_lea.smem %s0, 51
  %s103 = sld [smem:[%s102]]
  %s104 = scalar_lea.smem %s0, 52
  %s105 = sld [smem:[%s104]]
  %s106 = scalar_lea.smem %s0, 53
  %s107 = sld [smem:[%s106]]
  %s108 = sld [smem:[#allocation0]]
  $region245: #{resnet_forward.1} parent=0
    _
  %s110 = ssub.s32 1, %s108
  %s111 = scalar_select 0, %s110, %s108
  $region1: #{resnet_forward.1} parent=0
    #allocation2 [shape = 'u8[1024]{0}', space=vmem, size = 0x400, scoped, tag = 'output window, operand 0']
    #allocation3 [shape = 's32[2]{0}', space=sflag, size = 0x8, scoped, tag = 'scoped memory for resnet_forward.1']
    %112 = vsyncpa [#allocation3], 0
    %s113 = scalar_lea.sflag [#allocation3], 1
    %114 = vsyncpa %s113, 0
    loop: start=0, step=1, limit=4
    $region2: #{resnet_forward.1} parent=1 // loop_pre_header
      _
    $region3: #{resnet_forward.1} parent=1 // loop_header
      %s116 = sphi 0, %s120
      %p117 = scmp.ge.s32.totalorder %s116, 4
      %s126 = sphi 0, %s128
      %s129 = sphi 0, %s126
      %s130 = sphi 0, %s129
      %s146 = sphi 0, %s130
      %s150 = sphi 0, %s150
      %s152 = sphi 0, %s150
      %s153 = sphi 0, %s152
      %s167 = sphi 0, %s153
      %s171 = sphi 0, %s171
      %s173 = sphi 0, %s171
      %s174 = sphi 0, %s173
      %s188 = sphi 0, %s174
      %s192 = sphi 0, %s192
      %s194 = sphi 0, %s192
      %s195 = sphi 0, %s194
      %s209 = sphi 0, %s195
      %s213 = sphi 0, %s213
      %s215 = sphi 0, %s213
      %s216 = sphi 0, %s215
      %s230 = sphi 0, %s216
      %s234 = sphi 0, %s234
      %s236 = sphi 0, %s234
      %s237 = sphi 0, %s236
      %s251 = sphi 0, %s237
      %s255 = sphi 0, %s255
      %s257 = sphi 0, %s255
      %s258 = sphi 0, %s257
      %s272 = sphi 0, %s258
      %s276 = sphi 0, %s276
      %s278 = sphi 0, %s276
      %s279 = sphi 0, %s278
      %s293 = sphi 0, %s279
      %s297 = sphi 0, %s297
      %s299 = sphi 0, %s297
      %s300 = sphi 0, %s299
      %s314 = sphi 0, %s300
      %s318 = sphi 0, %s318
      %s320 = sphi 0, %s318
      %s321 = sphi 0, %s320
      %s335 = sphi 0, %s321
      %s339 = sphi 0, %s339
      %s341 = sphi 0, %s339
      %s342 = sphi 0, %s341
      %s356 = sphi 0, %s342
      %s360 = sphi 0, %s360
      %s362 = sphi 0, %s360
      %s363 = sphi 0, %s362
      %s377 = sphi 0, %s363
      %s381 = sphi 0, %s381
      %s383 = sphi 0, %s381
      %s384 = sphi 0, %s383
      %s398 = sphi 0, %s384
      %s402 = sphi 0, %s402
      %s404 = sphi 0, %s402
      %s405 = sphi 0, %s404
      %s419 = sphi 0, %s405
      %s423 = sphi 0, %s423
      %s425 = sphi 0, %s423
      %s426 = sphi 0, %s425
      %s440 = sphi 0, %s426
      %s444 = sphi 0, %s444
      %s446 = sphi 0, %s444
      %s447 = sphi 0, %s446
      %s461 = sphi 0, %s447
      %s465 = sphi 0, %s465
      %s467 = sphi 0, %s465
      %s468 = sphi 0, %s467
      %s482 = sphi 0, %s468
      %s486 = sphi 0, %s486
      %s488 = sphi 0, %s486
      %s489 = sphi 0, %s488
      %s503 = sphi 0, %s489
      %s507 = sphi 0, %s507
      %s509 = sphi 0, %s507
      %s510 = sphi 0, %s509
      %s524 = sphi 0, %s510
      %s528 = sphi 0, %s528
      %s530 = sphi 0, %s528
      %s531 = sphi 0, %s530
      %s545 = sphi 0, %s531
      %s549 = sphi 0, %s549
      %s551 = sphi 0, %s549
      %s552 = sphi 0, %s551
      %s566 = sphi 0, %s552
      %s570 = sphi 0, %s570
      %s572 = sphi 0, %s570
      %s573 = sphi 0, %s572
      %s587 = sphi 0, %s573
      %s591 = sphi 0, %s591
      %s593 = sphi 0, %s591
      %s594 = sphi 0, %s593
      %s608 = sphi 0, %s594
      %s612 = sphi 0, %s612
      %s614 = sphi 0, %s612
      %s615 = sphi 0, %s614
      %s629 = sphi 0, %s615
      %s633 = sphi 0, %s633
      %s635 = sphi 0, %s633
      %s636 = sphi 0, %s635
      %s650 = sphi 0, %s636
      %s654 = sphi 0, %s654
      %s656 = sphi 0, %s654
      %s657 = sphi 0, %s656
      %s671 = sphi 0, %s657
      %s675 = sphi 0, %s675
      %s677 = sphi 0, %s675
      %s678 = sphi 0, %s677
      %s692 = sphi 0, %s678
      %s696 = sphi 0, %s696
      %s698 = sphi 0, %s696
      %s699 = sphi 0, %s698
      %s713 = sphi 0, %s699
      %s717 = sphi 0, %s717
      %s719 = sphi 0, %s717
      %s720 = sphi 0, %s719
      %s734 = sphi 0, %s720
      %s738 = sphi 0, %s738
      %s740 = sphi 0, %s738
      %s741 = sphi 0, %s740
      %s755 = sphi 0, %s741
      %s759 = sphi 0, %s759
      %s761 = sphi 0, %s759
      %s762 = sphi 0, %s761
      %s776 = sphi 0, %s762
      %s780 = sphi 0, %s780
      %s782 = sphi 0, %s780
      %s783 = sphi 0, %s782
      %s797 = sphi 0, %s783
      %s801 = sphi 0, %s801
      %s803 = sphi 0, %s801
      %s804 = sphi 0, %s803
      %s818 = sphi 0, %s804
      %s822 = sphi 0, %s822
      %s824 = sphi 0, %s822
      %s825 = sphi 0, %s824
      %s839 = sphi 0, %s825
      %s843 = sphi 0, %s843
      %s845 = sphi 0, %s843
      %s846 = sphi 0, %s845
      %s860 = sphi 0, %s846
      %s864 = sphi 0, %s864
      %s866 = sphi 0, %s864
      %s867 = sphi 0, %s866
      %s881 = sphi 0, %s867
      %s885 = sphi 0, %s885
      %s887 = sphi 0, %s885
      %s888 = sphi 0, %s887
      %s902 = sphi 0, %s888
      %s906 = sphi 0, %s906
      %s908 = sphi 0, %s906
      %s909 = sphi 0, %s908
      %s923 = sphi 0, %s909
      %s927 = sphi 0, %s927
      %s929 = sphi 0, %s927
      %s930 = sphi 0, %s929
      %s944 = sphi 0, %s930
      %s948 = sphi 0, %s948
      %s950 = sphi 0, %s948
      %s951 = sphi 0, %s950
      %s965 = sphi 0, %s951
      %s969 = sphi 0, %s969
      %s971 = sphi 0, %s969
      %s972 = sphi 0, %s971
      %s986 = sphi 0, %s972
      %s990 = sphi 0, %s990
      %s992 = sphi 0, %s990
      %s993 = sphi 0, %s992
      %s1007 = sphi 0, %s993
      %s1011 = sphi 0, %s1011
      %s1013 = sphi 0, %s1011
      %s1014 = sphi 0, %s1013
      %s1028 = sphi 0, %s1014
      %s1032 = sphi 0, %s1032
      %s1034 = sphi 0, %s1032
      %s1035 = sphi 0, %s1034
      %s1049 = sphi 0, %s1035
      %s1053 = sphi 0, %s1053
      %s1055 = sphi 0, %s1053
      %s1056 = sphi 0, %s1055
      %s1070 = sphi 0, %s1056
      %s1074 = sphi 0, %s1074
      %s1076 = sphi 0, %s1074
      %s1077 = sphi 0, %s1076
      %s1091 = sphi 0, %s1077
      %s1095 = sphi 0, %s1095
      %s1097 = sphi 0, %s1095
      %s1098 = sphi 0, %s1097
      %s1112 = sphi 0, %s1098
      %s1116 = sphi 0, %s1116
      %s1118 = sphi 0, %s1116
      %s1119 = sphi 0, %s1118
      %s1133 = sphi 0, %s1119
      %s1137 = sphi 0, %s1137
      %s1139 = sphi 0, %s1137
      %s1140 = sphi 0, %s1139
      %s1154 = sphi 0, %s1140
      %s1158 = sphi 0, %s1158
      %s1160 = sphi 0, %s1158
      %s1161 = sphi 0, %s1160
      %s1175 = sphi 0, %s1161
      %s1179 = sphi 0, %s1179
      %s1181 = sphi 0, %s1179
      %s1182 = sphi 0, %s1181
      %s1196 = sphi 0, %s1182
      %s1200 = sphi 0, %s1200
      %s1202 = sphi 0, %s1200
      %s1203 = sphi 0, %s1202
      %s1217 = sphi 0, %s1203
      %s1221 = sphi 0, %s1221
      %s1223 = sphi 0, %s1221
      %s1224 = sphi 0, %s1223
      %s1238 = sphi 0, %s1224
      %s1244 = sphi 0, %s1246
      %s1247 = sphi 0, %s1244
      %s1248 = sphi 0, %s1247
      %s1264 = sphi 0, %s1248
    $region4: #{resnet_forward.1} parent=1 // loop_header_branch
      %119 = sbr.rel (%p117) target = $region8
    $region5: #{resnet_forward.1} parent=1 // loop_body
      %s121 = ssub.s32 %s116, 1
      %s122 = ssub.s32 %s116, 2
      %s123 = sadd.s32 %s116, 1
      %s124 = ssub.s32 %s116, %s123
      %p125 = scmp.eq.s32.totalorder %s124, 0
      %s127 = sadd.s32 %s126, 1
      %s128 = scalar_select %p125, %s126, %s127
      %p131 = pneg %p125
      %p132 = scmp.eq.s32.totalorder %s116, 1
      %p133 = por %p131, %p132
      %p134 = scmp.ne.s32.totalorder %s126, %s129
      %p135 = scmp.eq.s32.totalorder %s116, 0
      %p136 = por %p134, %p135
      %p137 = scmp.ne.s32.totalorder %s126, %s129
      %p138 = scmp.eq.s32.totalorder %s121, 1
      %p139 = por %p137, %p138
      %p140 = scmp.ne.s32.totalorder %s129, %s130
      %p141 = scmp.eq.s32.totalorder %s121, 0
      %p142 = por %p140, %p141
      %p143 = scmp.ne.s32.totalorder %s129, %s130
      %p144 = scmp.eq.s32.totalorder %s122, 1
      %p145 = por %p143, %p144
      %p147 = scmp.ne.s32.totalorder %s130, %s146
      %p148 = scmp.eq.s32.totalorder %s122, 0
      %p149 = por %p147, %p148
      %s151 = sadd.s32 %s150, 1
      %p154 = scmp.eq.s32.totalorder %s116, 1
      %p155 = scmp.ne.s32.totalorder %s150, %s152
      %p156 = scmp.eq.s32.totalorder %s116, 0
      %p157 = por %p155, %p156
      %p158 = scmp.ne.s32.totalorder %s150, %s152
      %p159 = scmp.eq.s32.totalorder %s121, 1
      %p160 = por %p158, %p159
      %p161 = scmp.ne.s32.totalorder %s152, %s153
      %p162 = scmp.eq.s32.totalorder %s121, 0
      %p163 = por %p161, %p162
      %p164 = scmp.ne.s32.totalorder %s152, %s153
      %p165 = scmp.eq.s32.totalorder %s122, 1
      %p166 = por %p164, %p165
      %p168 = scmp.ne.s32.totalorder %s153, %s167
      %p169 = scmp.eq.s32.totalorder %s122, 0
      %p170 = por %p168, %p169
      %s172 = sadd.s32 %s171, 1
      %p175 = scmp.eq.s32.totalorder %s116, 1
      %p176 = scmp.ne.s32.totalorder %s171, %s173
      %p177 = scmp.eq.s32.totalorder %s116, 0
      %p178 = por %p176, %p177
      %p179 = scmp.ne.s32.totalorder %s171, %s173
      %p180 = scmp.eq.s32.totalorder %s121, 1
      %p181 = por %p179, %p180
      %p182 = scmp.ne.s32.totalorder %s173, %s174
      %p183 = scmp.eq.s32.totalorder %s121, 0
      %p184 = por %p182, %p183
      %p185 = scmp.ne.s32.totalorder %s173, %s174
      %p186 = scmp.eq.s32.totalorder %s122, 1
      %p187 = por %p185, %p186
      %p189 = scmp.ne.s32.totalorder %s174, %s188
      %p190 = scmp.eq.s32.totalorder %s122, 0
      %p191 = por %p189, %p190
      %s193 = sadd.s32 %s192, 1
      %p196 = scmp.eq.s32.totalorder %s116, 1
      %p197 = scmp.ne.s32.totalorder %s192, %s194
      %p198 = scmp.eq.s32.totalorder %s116, 0
      %p199 = por %p197, %p198
      %p200 = scmp.ne.s32.totalorder %s192, %s194
      %p201 = scmp.eq.s32.totalorder %s121, 1
      %p202 = por %p200, %p201
      %p203 = scmp.ne.s32.totalorder %s194, %s195
      %p204 = scmp.eq.s32.totalorder %s121, 0
      %p205 = por %p203, %p204
      %p206 = scmp.ne.s32.totalorder %s194, %s195
      %p207 = scmp.eq.s32.totalorder %s122, 1
      %p208 = por %p206, %p207
      %p210 = scmp.ne.s32.totalorder %s195, %s209
      %p211 = scmp.eq.s32.totalorder %s122, 0
      %p212 = por %p210, %p211
      %s214 = sadd.s32 %s213, 1
      %p217 = scmp.eq.s32.totalorder %s116, 1
      %p218 = scmp.ne.s32.totalorder %s213, %s215
      %p219 = scmp.eq.s32.totalorder %s116, 0
      %p220 = por %p218, %p219
      %p221 = scmp.ne.s32.totalorder %s213, %s215
      %p222 = scmp.eq.s32.totalorder %s121, 1
      %p223 = por %p221, %p222
      %p224 = scmp.ne.s32.totalorder %s215, %s216
      %p225 = scmp.eq.s32.totalorder %s121, 0
      %p226 = por %p224, %p225
      %p227 = scmp.ne.s32.totalorder %s215, %s216
      %p228 = scmp.eq.s32.totalorder %s122, 1
      %p229 = por %p227, %p228
      %p231 = scmp.ne.s32.totalorder %s216, %s230
      %p232 = scmp.eq.s32.totalorder %s122, 0
      %p233 = por %p231, %p232
      %s235 = sadd.s32 %s234, 1
      %p238 = scmp.eq.s32.totalorder %s116, 1
      %p239 = scmp.ne.s32.totalorder %s234, %s236
      %p240 = scmp.eq.s32.totalorder %s116, 0
      %p241 = por %p239, %p240
      %p242 = scmp.ne.s32.totalorder %s234, %s236
      %p243 = scmp.eq.s32.totalorder %s121, 1
      %p244 = por %p242, %p243
      %p245 = scmp.ne.s32.totalorder %s236, %s237
      %p246 = scmp.eq.s32.totalorder %s121, 0
      %p247 = por %p245, %p246
      %p248 = scmp.ne.s32.totalorder %s236, %s237
      %p249 = scmp.eq.s32.totalorder %s122, 1
      %p250 = por %p248, %p249
      %p252 = scmp.ne.s32.totalorder %s237, %s251
      %p253 = scmp.eq.s32.totalorder %s122, 0
      %p254 = por %p252, %p253
      %s256 = sadd.s32 %s255, 1
      %p259 = scmp.eq.s32.totalorder %s116, 1
      %p260 = scmp.ne.s32.totalorder %s255, %s257
      %p261 = scmp.eq.s32.totalorder %s116, 0
      %p262 = por %p260, %p261
      %p263 = scmp.ne.s32.totalorder %s255, %s257
      %p264 = scmp.eq.s32.totalorder %s121, 1
      %p265 = por %p263, %p264
      %p266 = scmp.ne.s32.totalorder %s257, %s258
      %p267 = scmp.eq.s32.totalorder %s121, 0
      %p268 = por %p266, %p267
      %p269 = scmp.ne.s32.totalorder %s257, %s258
      %p270 = scmp.eq.s32.totalorder %s122, 1
      %p271 = por %p269, %p270
      %p273 = scmp.ne.s32.totalorder %s258, %s272
      %p274 = scmp.eq.s32.totalorder %s122, 0
      %p275 = por %p273, %p274
      %s277 = sadd.s32 %s276, 1
      %p280 = scmp.eq.s32.totalorder %s116, 1
      %p281 = scmp.ne.s32.totalorder %s276, %s278
      %p282 = scmp.eq.s32.totalorder %s116, 0
      %p283 = por %p281, %p282
      %p284 = scmp.ne.s32.totalorder %s276, %s278
      %p285 = scmp.eq.s32.totalorder %s121, 1
      %p286 = por %p284, %p285
      %p287 = scmp.ne.s32.totalorder %s278, %s279
      %p288 = scmp.eq.s32.totalorder %s121, 0
      %p289 = por %p287, %p288
      %p290 = scmp.ne.s32.totalorder %s278, %s279
      %p291 = scmp.eq.s32.totalorder %s122, 1
      %p292 = por %p290, %p291
      %p294 = scmp.ne.s32.totalorder %s279, %s293
      %p295 = scmp.eq.s32.totalorder %s122, 0
      %p296 = por %p294, %p295
      %s298 = sadd.s32 %s297, 1
      %p301 = scmp.eq.s32.totalorder %s116, 1
      %p302 = scmp.ne.s32.totalorder %s297, %s299
      %p303 = scmp.eq.s32.totalorder %s116, 0
      %p304 = por %p302, %p303
      %p305 = scmp.ne.s32.totalorder %s297, %s299
      %p306 = scmp.eq.s32.totalorder %s121, 1
      %p307 = por %p305, %p306
      %p308 = scmp.ne.s32.totalorder %s299, %s300
      %p309 = scmp.eq.s32.totalorder %s121, 0
      %p310 = por %p308, %p309
      %p311 = scmp.ne.s32.totalorder %s299, %s300
      %p312 = scmp.eq.s32.totalorder %s122, 1
      %p313 = por %p311, %p312
      %p315 = scmp.ne.s32.totalorder %s300, %s314
      %p316 = scmp.eq.s32.totalorder %s122, 0
      %p317 = por %p315, %p316
      %s319 = sadd.s32 %s318, 1
      %p322 = scmp.eq.s32.totalorder %s116, 1
      %p323 = scmp.ne.s32.totalorder %s318, %s320
      %p324 = scmp.eq.s32.totalorder %s116, 0
      %p325 = por %p323, %p324
      %p326 = scmp.ne.s32.totalorder %s318, %s320
      %p327 = scmp.eq.s32.totalorder %s121, 1
      %p328 = por %p326, %p327
      %p329 = scmp.ne.s32.totalorder %s320, %s321
      %p330 = scmp.eq.s32.totalorder %s121, 0
      %p331 = por %p329, %p330
      %p332 = scmp.ne.s32.totalorder %s320, %s321
      %p333 = scmp.eq.s32.totalorder %s122, 1
      %p334 = por %p332, %p333
      %p336 = scmp.ne.s32.totalorder %s321, %s335
      %p337 = scmp.eq.s32.totalorder %s122, 0
      %p338 = por %p336, %p337
      %s340 = sadd.s32 %s339, 1
      %p343 = scmp.eq.s32.totalorder %s116, 1
      %p344 = scmp.ne.s32.totalorder %s339, %s341
      %p345 = scmp.eq.s32.totalorder %s116, 0
      %p346 = por %p344, %p345
      %p347 = scmp.ne.s32.totalorder %s339, %s341
      %p348 = scmp.eq.s32.totalorder %s121, 1
      %p349 = por %p347, %p348
      %p350 = scmp.ne.s32.totalorder %s341, %s342
      %p351 = scmp.eq.s32.totalorder %s121, 0
      %p352 = por %p350, %p351
      %p353 = scmp.ne.s32.totalorder %s341, %s342
      %p354 = scmp.eq.s32.totalorder %s122, 1
      %p355 = por %p353, %p354
      %p357 = scmp.ne.s32.totalorder %s342, %s356
      %p358 = scmp.eq.s32.totalorder %s122, 0
      %p359 = por %p357, %p358
      %s361 = sadd.s32 %s360, 1
      %p364 = scmp.eq.s32.totalorder %s116, 1
      %p365 = scmp.ne.s32.totalorder %s360, %s362
      %p366 = scmp.eq.s32.totalorder %s116, 0
      %p367 = por %p365, %p366
      %p368 = scmp.ne.s32.totalorder %s360, %s362
      %p369 = scmp.eq.s32.totalorder %s121, 1
      %p370 = por %p368, %p369
      %p371 = scmp.ne.s32.totalorder %s362, %s363
      %p372 = scmp.eq.s32.totalorder %s121, 0
      %p373 = por %p371, %p372
      %p374 = scmp.ne.s32.totalorder %s362, %s363
      %p375 = scmp.eq.s32.totalorder %s122, 1
      %p376 = por %p374, %p375
      %p378 = scmp.ne.s32.totalorder %s363, %s377
      %p379 = scmp.eq.s32.totalorder %s122, 0
      %p380 = por %p378, %p379
      %s382 = sadd.s32 %s381, 1
      %p385 = scmp.eq.s32.totalorder %s116, 1
      %p386 = scmp.ne.s32.totalorder %s381, %s383
      %p387 = scmp.eq.s32.totalorder %s116, 0
      %p388 = por %p386, %p387
      %p389 = scmp.ne.s32.totalorder %s381, %s383
      %p390 = scmp.eq.s32.totalorder %s121, 1
      %p391 = por %p389, %p390
      %p392 = scmp.ne.s32.totalorder %s383, %s384
      %p393 = scmp.eq.s32.totalorder %s121, 0
      %p394 = por %p392, %p393
      %p395 = scmp.ne.s32.totalorder %s383, %s384
      %p396 = scmp.eq.s32.totalorder %s122, 1
      %p397 = por %p395, %p396
      %p399 = scmp.ne.s32.totalorder %s384, %s398
      %p400 = scmp.eq.s32.totalorder %s122, 0
      %p401 = por %p399, %p400
      %s403 = sadd.s32 %s402, 1
      %p406 = scmp.eq.s32.totalorder %s116, 1
      %p407 = scmp.ne.s32.totalorder %s402, %s404
      %p408 = scmp.eq.s32.totalorder %s116, 0
      %p409 = por %p407, %p408
      %p410 = scmp.ne.s32.totalorder %s402, %s404
      %p411 = scmp.eq.s32.totalorder %s121, 1
      %p412 = por %p410, %p411
      %p413 = scmp.ne.s32.totalorder %s404, %s405
      %p414 = scmp.eq.s32.totalorder %s121, 0
      %p415 = por %p413, %p414
      %p416 = scmp.ne.s32.totalorder %s404, %s405
      %p417 = scmp.eq.s32.totalorder %s122, 1
      %p418 = por %p416, %p417
      %p420 = scmp.ne.s32.totalorder %s405, %s419
      %p421 = scmp.eq.s32.totalorder %s122, 0
      %p422 = por %p420, %p421
      %s424 = sadd.s32 %s423, 1
      %p427 = scmp.eq.s32.totalorder %s116, 1
      %p428 = scmp.ne.s32.totalorder %s423, %s425
      %p429 = scmp.eq.s32.totalorder %s116, 0
      %p430 = por %p428, %p429
      %p431 = scmp.ne.s32.totalorder %s423, %s425
      %p432 = scmp.eq.s32.totalorder %s121, 1
      %p433 = por %p431, %p432
      %p434 = scmp.ne.s32.totalorder %s425, %s426
      %p435 = scmp.eq.s32.totalorder %s121, 0
      %p436 = por %p434, %p435
      %p437 = scmp.ne.s32.totalorder %s425, %s426
      %p438 = scmp.eq.s32.totalorder %s122, 1
      %p439 = por %p437, %p438
      %p441 = scmp.ne.s32.totalorder %s426, %s440
      %p442 = scmp.eq.s32.totalorder %s122, 0
      %p443 = por %p441, %p442
      %s445 = sadd.s32 %s444, 1
      %p448 = scmp.eq.s32.totalorder %s116, 1
      %p449 = scmp.ne.s32.totalorder %s444, %s446
      %p450 = scmp.eq.s32.totalorder %s116, 0
      %p451 = por %p449, %p450
      %p452 = scmp.ne.s32.totalorder %s444, %s446
      %p453 = scmp.eq.s32.totalorder %s121, 1
      %p454 = por %p452, %p453
      %p455 = scmp.ne.s32.totalorder %s446, %s447
      %p456 = scmp.eq.s32.totalorder %s121, 0
      %p457 = por %p455, %p456
      %p458 = scmp.ne.s32.totalorder %s446, %s447
      %p459 = scmp.eq.s32.totalorder %s122, 1
      %p460 = por %p458, %p459
      %p462 = scmp.ne.s32.totalorder %s447, %s461
      %p463 = scmp.eq.s32.totalorder %s122, 0
      %p464 = por %p462, %p463
      %s466 = sadd.s32 %s465, 1
      %p469 = scmp.eq.s32.totalorder %s116, 1
      %p470 = scmp.ne.s32.totalorder %s465, %s467
      %p471 = scmp.eq.s32.totalorder %s116, 0
      %p472 = por %p470, %p471
      %p473 = scmp.ne.s32.totalorder %s465, %s467
      %p474 = scmp.eq.s32.totalorder %s121, 1
      %p475 = por %p473, %p474
      %p476 = scmp.ne.s32.totalorder %s467, %s468
      %p477 = scmp.eq.s32.totalorder %s121, 0
      %p478 = por %p476, %p477
      %p479 = scmp.ne.s32.totalorder %s467, %s468
      %p480 = scmp.eq.s32.totalorder %s122, 1
      %p481 = por %p479, %p480
      %p483 = scmp.ne.s32.totalorder %s468, %s482
      %p484 = scmp.eq.s32.totalorder %s122, 0
      %p485 = por %p483, %p484
      %s487 = sadd.s32 %s486, 1
      %p490 = scmp.eq.s32.totalorder %s116, 1
      %p491 = scmp.ne.s32.totalorder %s486, %s488
      %p492 = scmp.eq.s32.totalorder %s116, 0
      %p493 = por %p491, %p492
      %p494 = scmp.ne.s32.totalorder %s486, %s488
      %p495 = scmp.eq.s32.totalorder %s121, 1
      %p496 = por %p494, %p495
      %p497 = scmp.ne.s32.totalorder %s488, %s489
      %p498 = scmp.eq.s32.totalorder %s121, 0
      %p499 = por %p497, %p498
      %p500 = scmp.ne.s32.totalorder %s488, %s489
      %p501 = scmp.eq.s32.totalorder %s122, 1
      %p502 = por %p500, %p501
      %p504 = scmp.ne.s32.totalorder %s489, %s503
      %p505 = scmp.eq.s32.totalorder %s122, 0
      %p506 = por %p504, %p505
      %s508 = sadd.s32 %s507, 1
      %p511 = scmp.eq.s32.totalorder %s116, 1
      %p512 = scmp.ne.s32.totalorder %s507, %s509
      %p513 = scmp.eq.s32.totalorder %s116, 0
      %p514 = por %p512, %p513
      %p515 = scmp.ne.s32.totalorder %s507, %s509
      %p516 = scmp.eq.s32.totalorder %s121, 1
      %p517 = por %p515, %p516
      %p518 = scmp.ne.s32.totalorder %s509, %s510
      %p519 = scmp.eq.s32.totalorder %s121, 0
      %p520 = por %p518, %p519
      %p521 = scmp.ne.s32.totalorder %s509, %s510
      %p522 = scmp.eq.s32.totalorder %s122, 1
      %p523 = por %p521, %p522
      %p525 = scmp.ne.s32.totalorder %s510, %s524
      %p526 = scmp.eq.s32.totalorder %s122, 0
      %p527 = por %p525, %p526
      %s529 = sadd.s32 %s528, 1
      %p532 = scmp.eq.s32.totalorder %s116, 1
      %p533 = scmp.ne.s32.totalorder %s528, %s530
      %p534 = scmp.eq.s32.totalorder %s116, 0
      %p535 = por %p533, %p534
      %p536 = scmp.ne.s32.totalorder %s528, %s530
      %p537 = scmp.eq.s32.totalorder %s121, 1
      %p538 = por %p536, %p537
      %p539 = scmp.ne.s32.totalorder %s530, %s531
      %p540 = scmp.eq.s32.totalorder %s121, 0
      %p541 = por %p539, %p540
      %p542 = scmp.ne.s32.totalorder %s530, %s531
      %p543 = scmp.eq.s32.totalorder %s122, 1
      %p544 = por %p542, %p543
      %p546 = scmp.ne.s32.totalorder %s531, %s545
      %p547 = scmp.eq.s32.totalorder %s122, 0
      %p548 = por %p546, %p547
      %s550 = sadd.s32 %s549, 1
      %p553 = scmp.eq.s32.totalorder %s116, 1
      %p554 = scmp.ne.s32.totalorder %s549, %s551
      %p555 = scmp.eq.s32.totalorder %s116, 0
      %p556 = por %p554, %p555
      %p557 = scmp.ne.s32.totalorder %s549, %s551
      %p558 = scmp.eq.s32.totalorder %s121, 1
      %p559 = por %p557, %p558
      %p560 = scmp.ne.s32.totalorder %s551, %s552
      %p561 = scmp.eq.s32.totalorder %s121, 0
      %p562 = por %p560, %p561
      %p563 = scmp.ne.s32.totalorder %s551, %s552
      %p564 = scmp.eq.s32.totalorder %s122, 1
      %p565 = por %p563, %p564
      %p567 = scmp.ne.s32.totalorder %s552, %s566
      %p568 = scmp.eq.s32.totalorder %s122, 0
      %p569 = por %p567, %p568
      %s571 = sadd.s32 %s570, 1
      %p574 = scmp.eq.s32.totalorder %s116, 1
      %p575 = scmp.ne.s32.totalorder %s570, %s572
      %p576 = scmp.eq.s32.totalorder %s116, 0
      %p577 = por %p575, %p576
      %p578 = scmp.ne.s32.totalorder %s570, %s572
      %p579 = scmp.eq.s32.totalorder %s121, 1
      %p580 = por %p578, %p579
      %p581 = scmp.ne.s32.totalorder %s572, %s573
      %p582 = scmp.eq.s32.totalorder %s121, 0
      %p583 = por %p581, %p582
      %p584 = scmp.ne.s32.totalorder %s572, %s573
      %p585 = scmp.eq.s32.totalorder %s122, 1
      %p586 = por %p584, %p585
      %p588 = scmp.ne.s32.totalorder %s573, %s587
      %p589 = scmp.eq.s32.totalorder %s122, 0
      %p590 = por %p588, %p589
      %s592 = sadd.s32 %s591, 1
      %p595 = scmp.eq.s32.totalorder %s116, 1
      %p596 = scmp.ne.s32.totalorder %s591, %s593
      %p597 = scmp.eq.s32.totalorder %s116, 0
      %p598 = por %p596, %p597
      %p599 = scmp.ne.s32.totalorder %s591, %s593
      %p600 = scmp.eq.s32.totalorder %s121, 1
      %p601 = por %p599, %p600
      %p602 = scmp.ne.s32.totalorder %s593, %s594
      %p603 = scmp.eq.s32.totalorder %s121, 0
      %p604 = por %p602, %p603
      %p605 = scmp.ne.s32.totalorder %s593, %s594
      %p606 = scmp.eq.s32.totalorder %s122, 1
      %p607 = por %p605, %p606
      %p609 = scmp.ne.s32.totalorder %s594, %s608
      %p610 = scmp.eq.s32.totalorder %s122, 0
      %p611 = por %p609, %p610
      %s613 = sadd.s32 %s612, 1
      %p616 = scmp.eq.s32.totalorder %s116, 1
      %p617 = scmp.ne.s32.totalorder %s612, %s614
      %p618 = scmp.eq.s32.totalorder %s116, 0
      %p619 = por %p617, %p618
      %p620 = scmp.ne.s32.totalorder %s612, %s614
      %p621 = scmp.eq.s32.totalorder %s121, 1
      %p622 = por %p620, %p621
      %p623 = scmp.ne.s32.totalorder %s614, %s615
      %p624 = scmp.eq.s32.totalorder %s121, 0
      %p625 = por %p623, %p624
      %p626 = scmp.ne.s32.totalorder %s614, %s615
      %p627 = scmp.eq.s32.totalorder %s122, 1
      %p628 = por %p626, %p627
      %p630 = scmp.ne.s32.totalorder %s615, %s629
      %p631 = scmp.eq.s32.totalorder %s122, 0
      %p632 = por %p630, %p631
      %s634 = sadd.s32 %s633, 1
      %p637 = scmp.eq.s32.totalorder %s116, 1
      %p638 = scmp.ne.s32.totalorder %s633, %s635
      %p639 = scmp.eq.s32.totalorder %s116, 0
      %p640 = por %p638, %p639
      %p641 = scmp.ne.s32.totalorder %s633, %s635
      %p642 = scmp.eq.s32.totalorder %s121, 1
      %p643 = por %p641, %p642
      %p644 = scmp.ne.s32.totalorder %s635, %s636
      %p645 = scmp.eq.s32.totalorder %s121, 0
      %p646 = por %p644, %p645
      %p647 = scmp.ne.s32.totalorder %s635, %s636
      %p648 = scmp.eq.s32.totalorder %s122, 1
      %p649 = por %p647, %p648
      %p651 = scmp.ne.s32.totalorder %s636, %s650
      %p652 = scmp.eq.s32.totalorder %s122, 0
      %p653 = por %p651, %p652
      %s655 = sadd.s32 %s654, 1
      %p658 = scmp.eq.s32.totalorder %s116, 1
      %p659 = scmp.ne.s32.totalorder %s654, %s656
      %p660 = scmp.eq.s32.totalorder %s116, 0
      %p661 = por %p659, %p660
      %p662 = scmp.ne.s32.totalorder %s654, %s656
      %p663 = scmp.eq.s32.totalorder %s121, 1
      %p664 = por %p662, %p663
      %p665 = scmp.ne.s32.totalorder %s656, %s657
      %p666 = scmp.eq.s32.totalorder %s121, 0
      %p667 = por %p665, %p666
      %p668 = scmp.ne.s32.totalorder %s656, %s657
      %p669 = scmp.eq.s32.totalorder %s122, 1
      %p670 = por %p668, %p669
      %p672 = scmp.ne.s32.totalorder %s657, %s671
      %p673 = scmp.eq.s32.totalorder %s122, 0
      %p674 = por %p672, %p673
      %s676 = sadd.s32 %s675, 1
      %p679 = scmp.eq.s32.totalorder %s116, 1
      %p680 = scmp.ne.s32.totalorder %s675, %s677
      %p681 = scmp.eq.s32.totalorder %s116, 0
      %p682 = por %p680, %p681
      %p683 = scmp.ne.s32.totalorder %s675, %s677
      %p684 = scmp.eq.s32.totalorder %s121, 1
      %p685 = por %p683, %p684
      %p686 = scmp.ne.s32.totalorder %s677, %s678
      %p687 = scmp.eq.s32.totalorder %s121, 0
      %p688 = por %p686, %p687
      %p689 = scmp.ne.s32.totalorder %s677, %s678
      %p690 = scmp.eq.s32.totalorder %s122, 1
      %p691 = por %p689, %p690
      %p693 = scmp.ne.s32.totalorder %s678, %s692
      %p694 = scmp.eq.s32.totalorder %s122, 0
      %p695 = por %p693, %p694
      %s697 = sadd.s32 %s696, 1
      %p700 = scmp.eq.s32.totalorder %s116, 1
      %p701 = scmp.ne.s32.totalorder %s696, %s698
      %p702 = scmp.eq.s32.totalorder %s116, 0
      %p703 = por %p701, %p702
      %p704 = scmp.ne.s32.totalorder %s696, %s698
      %p705 = scmp.eq.s32.totalorder %s121, 1
      %p706 = por %p704, %p705
      %p707 = scmp.ne.s32.totalorder %s698, %s699
      %p708 = scmp.eq.s32.totalorder %s121, 0
      %p709 = por %p707, %p708
      %p710 = scmp.ne.s32.totalorder %s698, %s699
      %p711 = scmp.eq.s32.totalorder %s122, 1
      %p712 = por %p710, %p711
      %p714 = scmp.ne.s32.totalorder %s699, %s713
      %p715 = scmp.eq.s32.totalorder %s122, 0
      %p716 = por %p714, %p715
      %s718 = sadd.s32 %s717, 1
      %p721 = scmp.eq.s32.totalorder %s116, 1
      %p722 = scmp.ne.s32.totalorder %s717, %s719
      %p723 = scmp.eq.s32.totalorder %s116, 0
      %p724 = por %p722, %p723
      %p725 = scmp.ne.s32.totalorder %s717, %s719
      %p726 = scmp.eq.s32.totalorder %s121, 1
      %p727 = por %p725, %p726
      %p728 = scmp.ne.s32.totalorder %s719, %s720
      %p729 = scmp.eq.s32.totalorder %s121, 0
      %p730 = por %p728, %p729
      %p731 = scmp.ne.s32.totalorder %s719, %s720
      %p732 = scmp.eq.s32.totalorder %s122, 1
      %p733 = por %p731, %p732
      %p735 = scmp.ne.s32.totalorder %s720, %s734
      %p736 = scmp.eq.s32.totalorder %s122, 0
      %p737 = por %p735, %p736
      %s739 = sadd.s32 %s738, 1
      %p742 = scmp.eq.s32.totalorder %s116, 1
      %p743 = scmp.ne.s32.totalorder %s738, %s740
      %p744 = scmp.eq.s32.totalorder %s116, 0
      %p745 = por %p743, %p744
      %p746 = scmp.ne.s32.totalorder %s738, %s740
      %p747 = scmp.eq.s32.totalorder %s121, 1
      %p748 = por %p746, %p747
      %p749 = scmp.ne.s32.totalorder %s740, %s741
      %p750 = scmp.eq.s32.totalorder %s121, 0
      %p751 = por %p749, %p750
      %p752 = scmp.ne.s32.totalorder %s740, %s741
      %p753 = scmp.eq.s32.totalorder %s122, 1
      %p754 = por %p752, %p753
      %p756 = scmp.ne.s32.totalorder %s741, %s755
      %p757 = scmp.eq.s32.totalorder %s122, 0
      %p758 = por %p756, %p757
      %s760 = sadd.s32 %s759, 1
      %p763 = scmp.eq.s32.totalorder %s116, 1
      %p764 = scmp.ne.s32.totalorder %s759, %s761
      %p765 = scmp.eq.s32.totalorder %s116, 0
      %p766 = por %p764, %p765
      %p767 = scmp.ne.s32.totalorder %s759, %s761
      %p768 = scmp.eq.s32.totalorder %s121, 1
      %p769 = por %p767, %p768
      %p770 = scmp.ne.s32.totalorder %s761, %s762
      %p771 = scmp.eq.s32.totalorder %s121, 0
      %p772 = por %p770, %p771
      %p773 = scmp.ne.s32.totalorder %s761, %s762
      %p774 = scmp.eq.s32.totalorder %s122, 1
      %p775 = por %p773, %p774
      %p777 = scmp.ne.s32.totalorder %s762, %s776
      %p778 = scmp.eq.s32.totalorder %s122, 0
      %p779 = por %p777, %p778
      %s781 = sadd.s32 %s780, 1
      %p784 = scmp.eq.s32.totalorder %s116, 1
      %p785 = scmp.ne.s32.totalorder %s780, %s782
      %p786 = scmp.eq.s32.totalorder %s116, 0
      %p787 = por %p785, %p786
      %p788 = scmp.ne.s32.totalorder %s780, %s782
      %p789 = scmp.eq.s32.totalorder %s121, 1
      %p790 = por %p788, %p789
      %p791 = scmp.ne.s32.totalorder %s782, %s783
      %p792 = scmp.eq.s32.totalorder %s121, 0
      %p793 = por %p791, %p792
      %p794 = scmp.ne.s32.totalorder %s782, %s783
      %p795 = scmp.eq.s32.totalorder %s122, 1
      %p796 = por %p794, %p795
      %p798 = scmp.ne.s32.totalorder %s783, %s797
      %p799 = scmp.eq.s32.totalorder %s122, 0
      %p800 = por %p798, %p799
      %s802 = sadd.s32 %s801, 1
      %p805 = scmp.eq.s32.totalorder %s116, 1
      %p806 = scmp.ne.s32.totalorder %s801, %s803
      %p807 = scmp.eq.s32.totalorder %s116, 0
      %p808 = por %p806, %p807
      %p809 = scmp.ne.s32.totalorder %s801, %s803
      %p810 = scmp.eq.s32.totalorder %s121, 1
      %p811 = por %p809, %p810
      %p812 = scmp.ne.s32.totalorder %s803, %s804
      %p813 = scmp.eq.s32.totalorder %s121, 0
      %p814 = por %p812, %p813
      %p815 = scmp.ne.s32.totalorder %s803, %s804
      %p816 = scmp.eq.s32.totalorder %s122, 1
      %p817 = por %p815, %p816
      %p819 = scmp.ne.s32.totalorder %s804, %s818
      %p820 = scmp.eq.s32.totalorder %s122, 0
      %p821 = por %p819, %p820
      %s823 = sadd.s32 %s822, 1
      %p826 = scmp.eq.s32.totalorder %s116, 1
      %p827 = scmp.ne.s32.totalorder %s822, %s824
      %p828 = scmp.eq.s32.totalorder %s116, 0
      %p829 = por %p827, %p828
      %p830 = scmp.ne.s32.totalorder %s822, %s824
      %p831 = scmp.eq.s32.totalorder %s121, 1
      %p832 = por %p830, %p831
      %p833 = scmp.ne.s32.totalorder %s824, %s825
      %p834 = scmp.eq.s32.totalorder %s121, 0
      %p835 = por %p833, %p834
      %p836 = scmp.ne.s32.totalorder %s824, %s825
      %p837 = scmp.eq.s32.totalorder %s122, 1
      %p838 = por %p836, %p837
      %p840 = scmp.ne.s32.totalorder %s825, %s839
      %p841 = scmp.eq.s32.totalorder %s122, 0
      %p842 = por %p840, %p841
      %s844 = sadd.s32 %s843, 1
      %p847 = scmp.eq.s32.totalorder %s116, 1
      %p848 = scmp.ne.s32.totalorder %s843, %s845
      %p849 = scmp.eq.s32.totalorder %s116, 0
      %p850 = por %p848, %p849
      %p851 = scmp.ne.s32.totalorder %s843, %s845
      %p852 = scmp.eq.s32.totalorder %s121, 1
      %p853 = por %p851, %p852
      %p854 = scmp.ne.s32.totalorder %s845, %s846
      %p855 = scmp.eq.s32.totalorder %s121, 0
      %p856 = por %p854, %p855
      %p857 = scmp.ne.s32.totalorder %s845, %s846
      %p858 = scmp.eq.s32.totalorder %s122, 1
      %p859 = por %p857, %p858
      %p861 = scmp.ne.s32.totalorder %s846, %s860
      %p862 = scmp.eq.s32.totalorder %s122, 0
      %p863 = por %p861, %p862
      %s865 = sadd.s32 %s864, 1
      %p868 = scmp.eq.s32.totalorder %s116, 1
      %p869 = scmp.ne.s32.totalorder %s864, %s866
      %p870 = scmp.eq.s32.totalorder %s116, 0
      %p871 = por %p869, %p870
      %p872 = scmp.ne.s32.totalorder %s864, %s866
      %p873 = scmp.eq.s32.totalorder %s121, 1
      %p874 = por %p872, %p873
      %p875 = scmp.ne.s32.totalorder %s866, %s867
      %p876 = scmp.eq.s32.totalorder %s121, 0
      %p877 = por %p875, %p876
      %p878 = scmp.ne.s32.totalorder %s866, %s867
      %p879 = scmp.eq.s32.totalorder %s122, 1
      %p880 = por %p878, %p879
      %p882 = scmp.ne.s32.totalorder %s867, %s881
      %p883 = scmp.eq.s32.totalorder %s122, 0
      %p884 = por %p882, %p883
      %s886 = sadd.s32 %s885, 1
      %p889 = scmp.eq.s32.totalorder %s116, 1
      %p890 = scmp.ne.s32.totalorder %s885, %s887
      %p891 = scmp.eq.s32.totalorder %s116, 0
      %p892 = por %p890, %p891
      %p893 = scmp.ne.s32.totalorder %s885, %s887
      %p894 = scmp.eq.s32.totalorder %s121, 1
      %p895 = por %p893, %p894
      %p896 = scmp.ne.s32.totalorder %s887, %s888
      %p897 = scmp.eq.s32.totalorder %s121, 0
      %p898 = por %p896, %p897
      %p899 = scmp.ne.s32.totalorder %s887, %s888
      %p900 = scmp.eq.s32.totalorder %s122, 1
      %p901 = por %p899, %p900
      %p903 = scmp.ne.s32.totalorder %s888, %s902
      %p904 = scmp.eq.s32.totalorder %s122, 0
      %p905 = por %p903, %p904
      %s907 = sadd.s32 %s906, 1
      %p910 = scmp.eq.s32.totalorder %s116, 1
      %p911 = scmp.ne.s32.totalorder %s906, %s908
      %p912 = scmp.eq.s32.totalorder %s116, 0
      %p913 = por %p911, %p912
      %p914 = scmp.ne.s32.totalorder %s906, %s908
      %p915 = scmp.eq.s32.totalorder %s121, 1
      %p916 = por %p914, %p915
      %p917 = scmp.ne.s32.totalorder %s908, %s909
      %p918 = scmp.eq.s32.totalorder %s121, 0
      %p919 = por %p917, %p918
      %p920 = scmp.ne.s32.totalorder %s908, %s909
      %p921 = scmp.eq.s32.totalorder %s122, 1
      %p922 = por %p920, %p921
      %p924 = scmp.ne.s32.totalorder %s909, %s923
      %p925 = scmp.eq.s32.totalorder %s122, 0
      %p926 = por %p924, %p925
      %s928 = sadd.s32 %s927, 1
      %p931 = scmp.eq.s32.totalorder %s116, 1
      %p932 = scmp.ne.s32.totalorder %s927, %s929
      %p933 = scmp.eq.s32.totalorder %s116, 0
      %p934 = por %p932, %p933
      %p935 = scmp.ne.s32.totalorder %s927, %s929
      %p936 = scmp.eq.s32.totalorder %s121, 1
      %p937 = por %p935, %p936
      %p938 = scmp.ne.s32.totalorder %s929, %s930
      %p939 = scmp.eq.s32.totalorder %s121, 0
      %p940 = por %p938, %p939
      %p941 = scmp.ne.s32.totalorder %s929, %s930
      %p942 = scmp.eq.s32.totalorder %s122, 1
      %p943 = por %p941, %p942
      %p945 = scmp.ne.s32.totalorder %s930, %s944
      %p946 = scmp.eq.s32.totalorder %s122, 0
      %p947 = por %p945, %p946
      %s949 = sadd.s32 %s948, 1
      %p952 = scmp.eq.s32.totalorder %s116, 1
      %p953 = scmp.ne.s32.totalorder %s948, %s950
      %p954 = scmp.eq.s32.totalorder %s116, 0
      %p955 = por %p953, %p954
      %p956 = scmp.ne.s32.totalorder %s948, %s950
      %p957 = scmp.eq.s32.totalorder %s121, 1
      %p958 = por %p956, %p957
      %p959 = scmp.ne.s32.totalorder %s950, %s951
      %p960 = scmp.eq.s32.totalorder %s121, 0
      %p961 = por %p959, %p960
      %p962 = scmp.ne.s32.totalorder %s950, %s951
      %p963 = scmp.eq.s32.totalorder %s122, 1
      %p964 = por %p962, %p963
      %p966 = scmp.ne.s32.totalorder %s951, %s965
      %p967 = scmp.eq.s32.totalorder %s122, 0
      %p968 = por %p966, %p967
      %s970 = sadd.s32 %s969, 1
      %p973 = scmp.eq.s32.totalorder %s116, 1
      %p974 = scmp.ne.s32.totalorder %s969, %s971
      %p975 = scmp.eq.s32.totalorder %s116, 0
      %p976 = por %p974, %p975
      %p977 = scmp.ne.s32.totalorder %s969, %s971
      %p978 = scmp.eq.s32.totalorder %s121, 1
      %p979 = por %p977, %p978
      %p980 = scmp.ne.s32.totalorder %s971, %s972
      %p981 = scmp.eq.s32.totalorder %s121, 0
      %p982 = por %p980, %p981
      %p983 = scmp.ne.s32.totalorder %s971, %s972
      %p984 = scmp.eq.s32.totalorder %s122, 1
      %p985 = por %p983, %p984
      %p987 = scmp.ne.s32.totalorder %s972, %s986
      %p988 = scmp.eq.s32.totalorder %s122, 0
      %p989 = por %p987, %p988
      %s991 = sadd.s32 %s990, 1
      %p994 = scmp.eq.s32.totalorder %s116, 1
      %p995 = scmp.ne.s32.totalorder %s990, %s992
      %p996 = scmp.eq.s32.totalorder %s116, 0
      %p997 = por %p995, %p996
      %p998 = scmp.ne.s32.totalorder %s990, %s992
      %p999 = scmp.eq.s32.totalorder %s121, 1
      %p1000 = por %p998, %p999
      %p1001 = scmp.ne.s32.totalorder %s992, %s993
      %p1002 = scmp.eq.s32.totalorder %s121, 0
      %p1003 = por %p1001, %p1002
      %p1004 = scmp.ne.s32.totalorder %s992, %s993
      %p1005 = scmp.eq.s32.totalorder %s122, 1
      %p1006 = por %p1004, %p1005
      %p1008 = scmp.ne.s32.totalorder %s993, %s1007
      %p1009 = scmp.eq.s32.totalorder %s122, 0
      %p1010 = por %p1008, %p1009
      %s1012 = sadd.s32 %s1011, 1
      %p1015 = scmp.eq.s32.totalorder %s116, 1
      %p1016 = scmp.ne.s32.totalorder %s1011, %s1013
      %p1017 = scmp.eq.s32.totalorder %s116, 0
      %p1018 = por %p1016, %p1017
      %p1019 = scmp.ne.s32.totalorder %s1011, %s1013
      %p1020 = scmp.eq.s32.totalorder %s121, 1
      %p1021 = por %p1019, %p1020
      %p1022 = scmp.ne.s32.totalorder %s1013, %s1014
      %p1023 = scmp.eq.s32.totalorder %s121, 0
      %p1024 = por %p1022, %p1023
      %p1025 = scmp.ne.s32.totalorder %s1013, %s1014
      %p1026 = scmp.eq.s32.totalorder %s122, 1
      %p1027 = por %p1025, %p1026
      %p1029 = scmp.ne.s32.totalorder %s1014, %s1028
      %p1030 = scmp.eq.s32.totalorder %s122, 0
      %p1031 = por %p1029, %p1030
      %s1033 = sadd.s32 %s1032, 1
      %p1036 = scmp.eq.s32.totalorder %s116, 1
      %p1037 = scmp.ne.s32.totalorder %s1032, %s1034
      %p1038 = scmp.eq.s32.totalorder %s116, 0
      %p1039 = por %p1037, %p1038
      %p1040 = scmp.ne.s32.totalorder %s1032, %s1034
      %p1041 = scmp.eq.s32.totalorder %s121, 1
      %p1042 = por %p1040, %p1041
      %p1043 = scmp.ne.s32.totalorder %s1034, %s1035
      %p1044 = scmp.eq.s32.totalorder %s121, 0
      %p1045 = por %p1043, %p1044
      %p1046 = scmp.ne.s32.totalorder %s1034, %s1035
      %p1047 = scmp.eq.s32.totalorder %s122, 1
      %p1048 = por %p1046, %p1047
      %p1050 = scmp.ne.s32.totalorder %s1035, %s1049
      %p1051 = scmp.eq.s32.totalorder %s122, 0
      %p1052 = por %p1050, %p1051
      %s1054 = sadd.s32 %s1053, 1
      %p1057 = scmp.eq.s32.totalorder %s116, 1
      %p1058 = scmp.ne.s32.totalorder %s1053, %s1055
      %p1059 = scmp.eq.s32.totalorder %s116, 0
      %p1060 = por %p1058, %p1059
      %p1061 = scmp.ne.s32.totalorder %s1053, %s1055
      %p1062 = scmp.eq.s32.totalorder %s121, 1
      %p1063 = por %p1061, %p1062
      %p1064 = scmp.ne.s32.totalorder %s1055, %s1056
      %p1065 = scmp.eq.s32.totalorder %s121, 0
      %p1066 = por %p1064, %p1065
      %p1067 = scmp.ne.s32.totalorder %s1055, %s1056
      %p1068 = scmp.eq.s32.totalorder %s122, 1
      %p1069 = por %p1067, %p1068
      %p1071 = scmp.ne.s32.totalorder %s1056, %s1070
      %p1072 = scmp.eq.s32.totalorder %s122, 0
      %p1073 = por %p1071, %p1072
      %s1075 = sadd.s32 %s1074, 1
      %p1078 = scmp.eq.s32.totalorder %s116, 1
      %p1079 = scmp.ne.s32.totalorder %s1074, %s1076
      %p1080 = scmp.eq.s32.totalorder %s116, 0
      %p1081 = por %p1079, %p1080
      %p1082 = scmp.ne.s32.totalorder %s1074, %s1076
      %p1083 = scmp.eq.s32.totalorder %s121, 1
      %p1084 = por %p1082, %p1083
      %p1085 = scmp.ne.s32.totalorder %s1076, %s1077
      %p1086 = scmp.eq.s32.totalorder %s121, 0
      %p1087 = por %p1085, %p1086
      %p1088 = scmp.ne.s32.totalorder %s1076, %s1077
      %p1089 = scmp.eq.s32.totalorder %s122, 1
      %p1090 = por %p1088, %p1089
      %p1092 = scmp.ne.s32.totalorder %s1077, %s1091
      %p1093 = scmp.eq.s32.totalorder %s122, 0
      %p1094 = por %p1092, %p1093
      %s1096 = sadd.s32 %s1095, 1
      %p1099 = scmp.eq.s32.totalorder %s116, 1
      %p1100 = scmp.ne.s32.totalorder %s1095, %s1097
      %p1101 = scmp.eq.s32.totalorder %s116, 0
      %p1102 = por %p1100, %p1101
      %p1103 = scmp.ne.s32.totalorder %s1095, %s1097
      %p1104 = scmp.eq.s32.totalorder %s121, 1
      %p1105 = por %p1103, %p1104
      %p1106 = scmp.ne.s32.totalorder %s1097, %s1098
      %p1107 = scmp.eq.s32.totalorder %s121, 0
      %p1108 = por %p1106, %p1107
      %p1109 = scmp.ne.s32.totalorder %s1097, %s1098
      %p1110 = scmp.eq.s32.totalorder %s122, 1
      %p1111 = por %p1109, %p1110
      %p1113 = scmp.ne.s32.totalorder %s1098, %s1112
      %p1114 = scmp.eq.s32.totalorder %s122, 0
      %p1115 = por %p1113, %p1114
      %s1117 = sadd.s32 %s1116, 1
      %p1120 = scmp.eq.s32.totalorder %s116, 1
      %p1121 = scmp.ne.s32.totalorder %s1116, %s1118
      %p1122 = scmp.eq.s32.totalorder %s116, 0
      %p1123 = por %p1121, %p1122
      %p1124 = scmp.ne.s32.totalorder %s1116, %s1118
      %p1125 = scmp.eq.s32.totalorder %s121, 1
      %p1126 = por %p1124, %p1125
      %p1127 = scmp.ne.s32.totalorder %s1118, %s1119
      %p1128 = scmp.eq.s32.totalorder %s121, 0
      %p1129 = por %p1127, %p1128
      %p1130 = scmp.ne.s32.totalorder %s1118, %s1119
      %p1131 = scmp.eq.s32.totalorder %s122, 1
      %p1132 = por %p1130, %p1131
      %p1134 = scmp.ne.s32.totalorder %s1119, %s1133
      %p1135 = scmp.eq.s32.totalorder %s122, 0
      %p1136 = por %p1134, %p1135
      %s1138 = sadd.s32 %s1137, 1
      %p1141 = scmp.eq.s32.totalorder %s116, 1
      %p1142 = scmp.ne.s32.totalorder %s1137, %s1139
      %p1143 = scmp.eq.s32.totalorder %s116, 0
      %p1144 = por %p1142, %p1143
      %p1145 = scmp.ne.s32.totalorder %s1137, %s1139
      %p1146 = scmp.eq.s32.totalorder %s121, 1
      %p1147 = por %p1145, %p1146
      %p1148 = scmp.ne.s32.totalorder %s1139, %s1140
      %p1149 = scmp.eq.s32.totalorder %s121, 0
      %p1150 = por %p1148, %p1149
      %p1151 = scmp.ne.s32.totalorder %s1139, %s1140
      %p1152 = scmp.eq.s32.totalorder %s122, 1
      %p1153 = por %p1151, %p1152
      %p1155 = scmp.ne.s32.totalorder %s1140, %s1154
      %p1156 = scmp.eq.s32.totalorder %s122, 0
      %p1157 = por %p1155, %p1156
      %s1159 = sadd.s32 %s1158, 1
      %p1162 = scmp.eq.s32.totalorder %s116, 1
      %p1163 = scmp.ne.s32.totalorder %s1158, %s1160
      %p1164 = scmp.eq.s32.totalorder %s116, 0
      %p1165 = por %p1163, %p1164
      %p1166 = scmp.ne.s32.totalorder %s1158, %s1160
      %p1167 = scmp.eq.s32.totalorder %s121, 1
      %p1168 = por %p1166, %p1167
      %p1169 = scmp.ne.s32.totalorder %s1160, %s1161
      %p1170 = scmp.eq.s32.totalorder %s121, 0
      %p1171 = por %p1169, %p1170
      %p1172 = scmp.ne.s32.totalorder %s1160, %s1161
      %p1173 = scmp.eq.s32.totalorder %s122, 1
      %p1174 = por %p1172, %p1173
      %p1176 = scmp.ne.s32.totalorder %s1161, %s1175
      %p1177 = scmp.eq.s32.totalorder %s122, 0
      %p1178 = por %p1176, %p1177
      %s1180 = sadd.s32 %s1179, 1
      %p1183 = scmp.eq.s32.totalorder %s116, 1
      %p1184 = scmp.ne.s32.totalorder %s1179, %s1181
      %p1185 = scmp.eq.s32.totalorder %s116, 0
      %p1186 = por %p1184, %p1185
      %p1187 = scmp.ne.s32.totalorder %s1179, %s1181
      %p1188 = scmp.eq.s32.totalorder %s121, 1
      %p1189 = por %p1187, %p1188
      %p1190 = scmp.ne.s32.totalorder %s1181, %s1182
      %p1191 = scmp.eq.s32.totalorder %s121, 0
      %p1192 = por %p1190, %p1191
      %p1193 = scmp.ne.s32.totalorder %s1181, %s1182
      %p1194 = scmp.eq.s32.totalorder %s122, 1
      %p1195 = por %p1193, %p1194
      %p1197 = scmp.ne.s32.totalorder %s1182, %s1196
      %p1198 = scmp.eq.s32.totalorder %s122, 0
      %p1199 = por %p1197, %p1198
      %s1201 = sadd.s32 %s1200, 1
      %p1204 = scmp.eq.s32.totalorder %s116, 1
      %p1205 = scmp.ne.s32.totalorder %s1200, %s1202
      %p1206 = scmp.eq.s32.totalorder %s116, 0
      %p1207 = por %p1205, %p1206
      %p1208 = scmp.ne.s32.totalorder %s1200, %s1202
      %p1209 = scmp.eq.s32.totalorder %s121, 1
      %p1210 = por %p1208, %p1209
      %p1211 = scmp.ne.s32.totalorder %s1202, %s1203
      %p1212 = scmp.eq.s32.totalorder %s121, 0
      %p1213 = por %p1211, %p1212
      %p1214 = scmp.ne.s32.totalorder %s1202, %s1203
      %p1215 = scmp.eq.s32.totalorder %s122, 1
      %p1216 = por %p1214, %p1215
      %p1218 = scmp.ne.s32.totalorder %s1203, %s1217
      %p1219 = scmp.eq.s32.totalorder %s122, 0
      %p1220 = por %p1218, %p1219
      %s1222 = sadd.s32 %s1221, 1
      %p1225 = scmp.eq.s32.totalorder %s116, 1
      %p1226 = scmp.ne.s32.totalorder %s1221, %s1223
      %p1227 = scmp.eq.s32.totalorder %s116, 0
      %p1228 = por %p1226, %p1227
      %p1229 = scmp.ne.s32.totalorder %s1221, %s1223
      %p1230 = scmp.eq.s32.totalorder %s121, 1
      %p1231 = por %p1229, %p1230
      %p1232 = scmp.ne.s32.totalorder %s1223, %s1224
      %p1233 = scmp.eq.s32.totalorder %s121, 0
      %p1234 = por %p1232, %p1233
      %p1235 = scmp.ne.s32.totalorder %s1223, %s1224
      %p1236 = scmp.eq.s32.totalorder %s122, 1
      %p1237 = por %p1235, %p1236
      %p1239 = scmp.ne.s32.totalorder %s1224, %s1238
      %p1240 = scmp.eq.s32.totalorder %s122, 0
      %p1241 = por %p1239, %p1240
      %s1242 = ssub.s32 %s116, %s123
      %p1243 = scmp.eq.s32.totalorder %s1242, 0
      %s1245 = sadd.s32 %s1244, 1
      %s1246 = scalar_select %p1243, %s1244, %s1245
      %p1249 = pneg %p1243
      %p1250 = scmp.eq.s32.totalorder %s116, 1
      %p1251 = por %p1249, %p1250
      %p1252 = scmp.ne.s32.totalorder %s1244, %s1247
      %p1253 = scmp.eq.s32.totalorder %s116, 0
      %p1254 = por %p1252, %p1253
      %p1255 = scmp.ne.s32.totalorder %s1244, %s1247
      %p1256 = scmp.eq.s32.totalorder %s121, 1
      %p1257 = por %p1255, %p1256
      %p1258 = scmp.ne.s32.totalorder %s1247, %s1248
      %p1259 = scmp.eq.s32.totalorder %s121, 0
      %p1260 = por %p1258, %p1259
      %p1261 = scmp.ne.s32.totalorder %s1247, %s1248
      %p1262 = scmp.eq.s32.totalorder %s122, 1
      %p1263 = por %p1261, %p1262
      %p1265 = scmp.ne.s32.totalorder %s1248, %s1264
      %p1266 = scmp.eq.s32.totalorder %s122, 0
      %p1267 = por %p1265, %p1266
      %p1268 = scmp.le.s32.totalorder 1, %s116
      %p1269 = scmp.lt.s32.totalorder %s116, 3
      %p1270 = pnand %p1268, %p1269
      %p1271 = pneg %p1270
      // Predicated region
      $region9: #{resnet_forward.1} parent=5 // pred_check
        _
      $region10: #{resnet_forward.1} parent=5 // pred_check_branch
        %1273 = sbr.rel (%p1270) target = $region12
      $region11: #{resnet_forward.1} parent=5 // pred_region
        %s1274 = ssub.s32 %s116, 1
        // Predicated region
        $region13: #{resnet_forward.1} parent=11 // pred_check
          %p1275 = pneg %p163
        $region14: #{resnet_forward.1} parent=11 // pred_check_branch
          %1277 = sbr.rel (%p1275) target = $region16
        $region15: #{resnet_forward.1} parent=11 // pred_region
          _
        $region16: #{resnet_forward.1} parent=11 // pred_fallthru
          _
        // Predicated region
        $region17: #{resnet_forward.1} parent=11 // pred_check
          %p1278 = pneg %p184
        $region18: #{resnet_forward.1} parent=11 // pred_check_branch
          %1280 = sbr.rel (%p1278) target = $region20
        $region19: #{resnet_forward.1} parent=11 // pred_region
          _
        $region20: #{resnet_forward.1} parent=11 // pred_fallthru
          _
        // Predicated region
        $region21: #{resnet_forward.1} parent=11 // pred_check
          %p1281 = pneg %p205
        $region22: #{resnet_forward.1} parent=11 // pred_check_branch
          %1283 = sbr.rel (%p1281) target = $region24
        $region23: #{resnet_forward.1} parent=11 // pred_region
          _
        $region24: #{resnet_forward.1} parent=11 // pred_fallthru
          _
        // Predicated region
        $region25: #{resnet_forward.1} parent=11 // pred_check
          %p1284 = pneg %p226
        $region26: #{resnet_forward.1} parent=11 // pred_check_branch
          %1286 = sbr.rel (%p1284) target = $region28
        $region27: #{resnet_forward.1} parent=11 // pred_region
          _
        $region28: #{resnet_forward.1} parent=11 // pred_fallthru
          _
        // Predicated region
        $region29: #{resnet_forward.1} parent=11 // pred_check
          %p1287 = pneg %p247
        $region30: #{resnet_forward.1} parent=11 // pred_check_branch
          %1289 = sbr.rel (%p1287) target = $region32
        $region31: #{resnet_forward.1} parent=11 // pred_region
          _
        $region32: #{resnet_forward.1} parent=11 // pred_fallthru
          _
        // Predicated region
        $region33: #{resnet_forward.1} parent=11 // pred_check
          %p1290 = pneg %p268
        $region34: #{resnet_forward.1} parent=11 // pred_check_branch
          %1292 = sbr.rel (%p1290) target = $region36
        $region35: #{resnet_forward.1} parent=11 // pred_region
          _
        $region36: #{resnet_forward.1} parent=11 // pred_fallthru
          _
        // Predicated region
        $region37: #{resnet_forward.1} parent=11 // pred_check
          %p1293 = pneg %p289
        $region38: #{resnet_forward.1} parent=11 // pred_check_branch
          %1295 = sbr.rel (%p1293) target = $region40
        $region39: #{resnet_forward.1} parent=11 // pred_region
          _
        $region40: #{resnet_forward.1} parent=11 // pred_fallthru
          _
        // Predicated region
        $region41: #{resnet_forward.1} parent=11 // pred_check
          %p1296 = pneg %p310
        $region42: #{resnet_forward.1} parent=11 // pred_check_branch
          %1298 = sbr.rel (%p1296) target = $region44
        $region43: #{resnet_forward.1} parent=11 // pred_region
          _
        $region44: #{resnet_forward.1} parent=11 // pred_fallthru
          _
        // Predicated region
        $region45: #{resnet_forward.1} parent=11 // pred_check
          %p1299 = pneg %p331
        $region46: #{resnet_forward.1} parent=11 // pred_check_branch
          %1301 = sbr.rel (%p1299) target = $region48
        $region47: #{resnet_forward.1} parent=11 // pred_region
          _
        $region48: #{resnet_forward.1} parent=11 // pred_fallthru
          _
        // Predicated region
        $region49: #{resnet_forward.1} parent=11 // pred_check
          %p1302 = pneg %p352
        $region50: #{resnet_forward.1} parent=11 // pred_check_branch
          %1304 = sbr.rel (%p1302) target = $region52
        $region51: #{resnet_forward.1} parent=11 // pred_region
          _
        $region52: #{resnet_forward.1} parent=11 // pred_fallthru
          _
        // Predicated region
        $region53: #{resnet_forward.1} parent=11 // pred_check
          %p1305 = pneg %p373
        $region54: #{resnet_forward.1} parent=11 // pred_check_branch
          %1307 = sbr.rel (%p1305) target = $region56
        $region55: #{resnet_forward.1} parent=11 // pred_region
          _
        $region56: #{resnet_forward.1} parent=11 // pred_fallthru
          _
        // Predicated region
        $region57: #{resnet_forward.1} parent=11 // pred_check
          %p1308 = pneg %p394
        $region58: #{resnet_forward.1} parent=11 // pred_check_branch
          %1310 = sbr.rel (%p1308) target = $region60
        $region59: #{resnet_forward.1} parent=11 // pred_region
          _
        $region60: #{resnet_forward.1} parent=11 // pred_fallthru
          _
        // Predicated region
        $region61: #{resnet_forward.1} parent=11 // pred_check
          %p1311 = pneg %p415
        $region62: #{resnet_forward.1} parent=11 // pred_check_branch
          %1313 = sbr.rel (%p1311) target = $region64
        $region63: #{resnet_forward.1} parent=11 // pred_region
          _
        $region64: #{resnet_forward.1} parent=11 // pred_fallthru
          _
        // Predicated region
        $region65: #{resnet_forward.1} parent=11 // pred_check
          %p1314 = pneg %p436
        $region66: #{resnet_forward.1} parent=11 // pred_check_branch
          %1316 = sbr.rel (%p1314) target = $region68
        $region67: #{resnet_forward.1} parent=11 // pred_region
          _
        $region68: #{resnet_forward.1} parent=11 // pred_fallthru
          _
        // Predicated region
        $region69: #{resnet_forward.1} parent=11 // pred_check
          %p1317 = pneg %p457
        $region70: #{resnet_forward.1} parent=11 // pred_check_branch
          %1319 = sbr.rel (%p1317) target = $region72
        $region71: #{resnet_forward.1} parent=11 // pred_region
          _
        $region72: #{resnet_forward.1} parent=11 // pred_fallthru
          _
        // Predicated region
        $region73: #{resnet_forward.1} parent=11 // pred_check
          %p1320 = pneg %p478
        $region74: #{resnet_forward.1} parent=11 // pred_check_branch
          %1322 = sbr.rel (%p1320) target = $region76
        $region75: #{resnet_forward.1} parent=11 // pred_region
          _
        $region76: #{resnet_forward.1} parent=11 // pred_fallthru
          _
        // Predicated region
        $region77: #{resnet_forward.1} parent=11 // pred_check
          %p1323 = pneg %p499
        $region78: #{resnet_forward.1} parent=11 // pred_check_branch
          %1325 = sbr.rel (%p1323) target = $region80
        $region79: #{resnet_forward.1} parent=11 // pred_region
          _
        $region80: #{resnet_forward.1} parent=11 // pred_fallthru
          _
        // Predicated region
        $region81: #{resnet_forward.1} parent=11 // pred_check
          %p1326 = pneg %p520
        $region82: #{resnet_forward.1} parent=11 // pred_check_branch
          %1328 = sbr.rel (%p1326) target = $region84
        $region83: #{resnet_forward.1} parent=11 // pred_region
          _
        $region84: #{resnet_forward.1} parent=11 // pred_fallthru
          _
        // Predicated region
        $region85: #{resnet_forward.1} parent=11 // pred_check
          %p1329 = pneg %p541
        $region86: #{resnet_forward.1} parent=11 // pred_check_branch
          %1331 = sbr.rel (%p1329) target = $region88
        $region87: #{resnet_forward.1} parent=11 // pred_region
          _
        $region88: #{resnet_forward.1} parent=11 // pred_fallthru
          _
        // Predicated region
        $region89: #{resnet_forward.1} parent=11 // pred_check
          %p1332 = pneg %p562
        $region90: #{resnet_forward.1} parent=11 // pred_check_branch
          %1334 = sbr.rel (%p1332) target = $region92
        $region91: #{resnet_forward.1} parent=11 // pred_region
          _
        $region92: #{resnet_forward.1} parent=11 // pred_fallthru
          _
        // Predicated region
        $region93: #{resnet_forward.1} parent=11 // pred_check
          %p1335 = pneg %p583
        $region94: #{resnet_forward.1} parent=11 // pred_check_branch
          %1337 = sbr.rel (%p1335) target = $region96
        $region95: #{resnet_forward.1} parent=11 // pred_region
          _
        $region96: #{resnet_forward.1} parent=11 // pred_fallthru
          _
        // Predicated region
        $region97: #{resnet_forward.1} parent=11 // pred_check
          %p1338 = pneg %p604
        $region98: #{resnet_forward.1} parent=11 // pred_check_branch
          %1340 = sbr.rel (%p1338) target = $region100
        $region99: #{resnet_forward.1} parent=11 // pred_region
          _
        $region100: #{resnet_forward.1} parent=11 // pred_fallthru
          _
        // Predicated region
        $region101: #{resnet_forward.1} parent=11 // pred_check
          %p1341 = pneg %p625
        $region102: #{resnet_forward.1} parent=11 // pred_check_branch
          %1343 = sbr.rel (%p1341) target = $region104
        $region103: #{resnet_forward.1} parent=11 // pred_region
          _
        $region104: #{resnet_forward.1} parent=11 // pred_fallthru
          _
        // Predicated region
        $region105: #{resnet_forward.1} parent=11 // pred_check
          %p1344 = pneg %p646
        $region106: #{resnet_forward.1} parent=11 // pred_check_branch
          %1346 = sbr.rel (%p1344) target = $region108
        $region107: #{resnet_forward.1} parent=11 // pred_region
          _
        $region108: #{resnet_forward.1} parent=11 // pred_fallthru
          _
        // Predicated region
        $region109: #{resnet_forward.1} parent=11 // pred_check
          %p1347 = pneg %p667
        $region110: #{resnet_forward.1} parent=11 // pred_check_branch
          %1349 = sbr.rel (%p1347) target = $region112
        $region111: #{resnet_forward.1} parent=11 // pred_region
          _
        $region112: #{resnet_forward.1} parent=11 // pred_fallthru
          _
        // Predicated region
        $region113: #{resnet_forward.1} parent=11 // pred_check
          %p1350 = pneg %p688
        $region114: #{resnet_forward.1} parent=11 // pred_check_branch
          %1352 = sbr.rel (%p1350) target = $region116
        $region115: #{resnet_forward.1} parent=11 // pred_region
          _
        $region116: #{resnet_forward.1} parent=11 // pred_fallthru
          _
        // Predicated region
        $region117: #{resnet_forward.1} parent=11 // pred_check
          %p1353 = pneg %p709
        $region118: #{resnet_forward.1} parent=11 // pred_check_branch
          %1355 = sbr.rel (%p1353) target = $region120
        $region119: #{resnet_forward.1} parent=11 // pred_region
          _
        $region120: #{resnet_forward.1} parent=11 // pred_fallthru
          _
        // Predicated region
        $region121: #{resnet_forward.1} parent=11 // pred_check
          %p1356 = pneg %p730
        $region122: #{resnet_forward.1} parent=11 // pred_check_branch
          %1358 = sbr.rel (%p1356) target = $region124
        $region123: #{resnet_forward.1} parent=11 // pred_region
          _
        $region124: #{resnet_forward.1} parent=11 // pred_fallthru
          _
        // Predicated region
        $region125: #{resnet_forward.1} parent=11 // pred_check
          %p1359 = pneg %p751
        $region126: #{resnet_forward.1} parent=11 // pred_check_branch
          %1361 = sbr.rel (%p1359) target = $region128
        $region127: #{resnet_forward.1} parent=11 // pred_region
          _
        $region128: #{resnet_forward.1} parent=11 // pred_fallthru
          _
        // Predicated region
        $region129: #{resnet_forward.1} parent=11 // pred_check
          %p1362 = pneg %p772
        $region130: #{resnet_forward.1} parent=11 // pred_check_branch
          %1364 = sbr.rel (%p1362) target = $region132
        $region131: #{resnet_forward.1} parent=11 // pred_region
          _
        $region132: #{resnet_forward.1} parent=11 // pred_fallthru
          _
        // Predicated region
        $region133: #{resnet_forward.1} parent=11 // pred_check
          %p1365 = pneg %p793
        $region134: #{resnet_forward.1} parent=11 // pred_check_branch
          %1367 = sbr.rel (%p1365) target = $region136
        $region135: #{resnet_forward.1} parent=11 // pred_region
          _
        $region136: #{resnet_forward.1} parent=11 // pred_fallthru
          _
        // Predicated region
        $region137: #{resnet_forward.1} parent=11 // pred_check
          %p1368 = pneg %p814
        $region138: #{resnet_forward.1} parent=11 // pred_check_branch
          %1370 = sbr.rel (%p1368) target = $region140
        $region139: #{resnet_forward.1} parent=11 // pred_region
          _
        $region140: #{resnet_forward.1} parent=11 // pred_fallthru
          _
        // Predicated region
        $region141: #{resnet_forward.1} parent=11 // pred_check
          %p1371 = pneg %p835
        $region142: #{resnet_forward.1} parent=11 // pred_check_branch
          %1373 = sbr.rel (%p1371) target = $region144
        $region143: #{resnet_forward.1} parent=11 // pred_region
          _
        $region144: #{resnet_forward.1} parent=11 // pred_fallthru
          _
        // Predicated region
        $region145: #{resnet_forward.1} parent=11 // pred_check
          %p1374 = pneg %p856
        $region146: #{resnet_forward.1} parent=11 // pred_check_branch
          %1376 = sbr.rel (%p1374) target = $region148
        $region147: #{resnet_forward.1} parent=11 // pred_region
          _
        $region148: #{resnet_forward.1} parent=11 // pred_fallthru
          _
        // Predicated region
        $region149: #{resnet_forward.1} parent=11 // pred_check
          %p1377 = pneg %p877
        $region150: #{resnet_forward.1} parent=11 // pred_check_branch
          %1379 = sbr.rel (%p1377) target = $region152
        $region151: #{resnet_forward.1} parent=11 // pred_region
          _
        $region152: #{resnet_forward.1} parent=11 // pred_fallthru
          _
        // Predicated region
        $region153: #{resnet_forward.1} parent=11 // pred_check
          %p1380 = pneg %p898
        $region154: #{resnet_forward.1} parent=11 // pred_check_branch
          %1382 = sbr.rel (%p1380) target = $region156
        $region155: #{resnet_forward.1} parent=11 // pred_region
          _
        $region156: #{resnet_forward.1} parent=11 // pred_fallthru
          _
        // Predicated region
        $region157: #{resnet_forward.1} parent=11 // pred_check
          %p1383 = pneg %p919
        $region158: #{resnet_forward.1} parent=11 // pred_check_branch
          %1385 = sbr.rel (%p1383) target = $region160
        $region159: #{resnet_forward.1} parent=11 // pred_region
          _
        $region160: #{resnet_forward.1} parent=11 // pred_fallthru
          _
        // Predicated region
        $region161: #{resnet_forward.1} parent=11 // pred_check
          %p1386 = pneg %p940
        $region162: #{resnet_forward.1} parent=11 // pred_check_branch
          %1388 = sbr.rel (%p1386) target = $region164
        $region163: #{resnet_forward.1} parent=11 // pred_region
          _
        $region164: #{resnet_forward.1} parent=11 // pred_fallthru
          _
        // Predicated region
        $region165: #{resnet_forward.1} parent=11 // pred_check
          %p1389 = pneg %p961
        $region166: #{resnet_forward.1} parent=11 // pred_check_branch
          %1391 = sbr.rel (%p1389) target = $region168
        $region167: #{resnet_forward.1} parent=11 // pred_region
          _
        $region168: #{resnet_forward.1} parent=11 // pred_fallthru
          _
        // Predicated region
        $region169: #{resnet_forward.1} parent=11 // pred_check
          %p1392 = pneg %p982
        $region170: #{resnet_forward.1} parent=11 // pred_check_branch
          %1394 = sbr.rel (%p1392) target = $region172
        $region171: #{resnet_forward.1} parent=11 // pred_region
          _
        $region172: #{resnet_forward.1} parent=11 // pred_fallthru
          _
        // Predicated region
        $region173: #{resnet_forward.1} parent=11 // pred_check
          %p1395 = pneg %p1003
        $region174: #{resnet_forward.1} parent=11 // pred_check_branch
          %1397 = sbr.rel (%p1395) target = $region176
        $region175: #{resnet_forward.1} parent=11 // pred_region
          _
        $region176: #{resnet_forward.1} parent=11 // pred_fallthru
          _
        // Predicated region
        $region177: #{resnet_forward.1} parent=11 // pred_check
          %p1398 = pneg %p1024
        $region178: #{resnet_forward.1} parent=11 // pred_check_branch
          %1400 = sbr.rel (%p1398) target = $region180
        $region179: #{resnet_forward.1} parent=11 // pred_region
          _
        $region180: #{resnet_forward.1} parent=11 // pred_fallthru
          _
        // Predicated region
        $region181: #{resnet_forward.1} parent=11 // pred_check
          %p1401 = pneg %p1045
        $region182: #{resnet_forward.1} parent=11 // pred_check_branch
          %1403 = sbr.rel (%p1401) target = $region184
        $region183: #{resnet_forward.1} parent=11 // pred_region
          _
        $region184: #{resnet_forward.1} parent=11 // pred_fallthru
          _
        // Predicated region
        $region185: #{resnet_forward.1} parent=11 // pred_check
          %p1404 = pneg %p1066
        $region186: #{resnet_forward.1} parent=11 // pred_check_branch
          %1406 = sbr.rel (%p1404) target = $region188
        $region187: #{resnet_forward.1} parent=11 // pred_region
          _
        $region188: #{resnet_forward.1} parent=11 // pred_fallthru
          _
        // Predicated region
        $region189: #{resnet_forward.1} parent=11 // pred_check
          %p1407 = pneg %p1087
        $region190: #{resnet_forward.1} parent=11 // pred_check_branch
          %1409 = sbr.rel (%p1407) target = $region192
        $region191: #{resnet_forward.1} parent=11 // pred_region
          _
        $region192: #{resnet_forward.1} parent=11 // pred_fallthru
          _
        // Predicated region
        $region193: #{resnet_forward.1} parent=11 // pred_check
          %p1410 = pneg %p1108
        $region194: #{resnet_forward.1} parent=11 // pred_check_branch
          %1412 = sbr.rel (%p1410) target = $region196
        $region195: #{resnet_forward.1} parent=11 // pred_region
          _
        $region196: #{resnet_forward.1} parent=11 // pred_fallthru
          _
        // Predicated region
        $region197: #{resnet_forward.1} parent=11 // pred_check
          %p1413 = pneg %p1129
        $region198: #{resnet_forward.1} parent=11 // pred_check_branch
          %1415 = sbr.rel (%p1413) target = $region200
        $region199: #{resnet_forward.1} parent=11 // pred_region
          _
        $region200: #{resnet_forward.1} parent=11 // pred_fallthru
          _
        // Predicated region
        $region201: #{resnet_forward.1} parent=11 // pred_check
          %p1416 = pneg %p1150
        $region202: #{resnet_forward.1} parent=11 // pred_check_branch
          %1418 = sbr.rel (%p1416) target = $region204
        $region203: #{resnet_forward.1} parent=11 // pred_region
          _
        $region204: #{resnet_forward.1} parent=11 // pred_fallthru
          _
        // Predicated region
        $region205: #{resnet_forward.1} parent=11 // pred_check
          %p1419 = pneg %p1171
        $region206: #{resnet_forward.1} parent=11 // pred_check_branch
          %1421 = sbr.rel (%p1419) target = $region208
        $region207: #{resnet_forward.1} parent=11 // pred_region
          _
        $region208: #{resnet_forward.1} parent=11 // pred_fallthru
          _
        // Predicated region
        $region209: #{resnet_forward.1} parent=11 // pred_check
          %p1422 = pneg %p1192
        $region210: #{resnet_forward.1} parent=11 // pred_check_branch
          %1424 = sbr.rel (%p1422) target = $region212
        $region211: #{resnet_forward.1} parent=11 // pred_region
          _
        $region212: #{resnet_forward.1} parent=11 // pred_fallthru
          _
        // Predicated region
        $region213: #{resnet_forward.1} parent=11 // pred_check
          %p1425 = pneg %p1213
        $region214: #{resnet_forward.1} parent=11 // pred_check_branch
          %1427 = sbr.rel (%p1425) target = $region216
        $region215: #{resnet_forward.1} parent=11 // pred_region
          _
        $region216: #{resnet_forward.1} parent=11 // pred_fallthru
          _
        // Predicated region
        $region217: #{resnet_forward.1} parent=11 // pred_check
          %p1428 = pneg %p1234
        $region218: #{resnet_forward.1} parent=11 // pred_check_branch
          %1430 = sbr.rel (%p1428) target = $region220
        $region219: #{resnet_forward.1} parent=11 // pred_region
          _
        $region220: #{resnet_forward.1} parent=11 // pred_fallthru
          _
      $region12: #{resnet_forward.1} parent=5 // pred_fallthru
        _
      %p1431 = scmp.lt.s32.totalorder %s116, 2
      // Predicated region
      $region221: #{resnet_forward.1} parent=5 // pred_check
        %p1432 = pneg %p1431
      $region222: #{resnet_forward.1} parent=5 // pred_check_branch
        %1434 = sbr.rel (%p1432) target = $region224
      $region223: #{resnet_forward.1} parent=5 // pred_region
        // Predicated region
        $region225: #{resnet_forward.1} parent=223 // pred_check
          %p1435 = pneg %p136
        $region226: #{resnet_forward.1} parent=223 // pred_check_branch
          %1437 = sbr.rel (%p1435) target = $region228
        $region227: #{resnet_forward.1} parent=223 // pred_region
          %p1438 = scmp.lt.s32.totalorder %s116, 1
          %s1439 = scalar_select %p1438, %s116, 1
          %s1440 = smul.addr %s1439, 16
          %s1441 = smul.addr %s1440, 4
          %s1442 = scalar_lea.vmem %s1, %s1441
        $region228: #{resnet_forward.1} parent=223 // pred_fallthru
          _
      $region224: #{resnet_forward.1} parent=5 // pred_fallthru
        _
      %p1443 = scmp.le.s32.totalorder 1, %s116
      %p1444 = scmp.lt.s32.totalorder %s116, 3
      %p1445 = pnand %p1443, %p1444
      %p1446 = pneg %p1445
      // Predicated region
      $region229: #{resnet_forward.1} parent=5 // pred_check
        _
      $region230: #{resnet_forward.1} parent=5 // pred_check_branch
        %1448 = sbr.rel (%p1445) target = $region232
      $region231: #{resnet_forward.1} parent=5 // pred_region
        %s1449 = ssub.s32 %s116, 1
        %p1450 = scmp.lt.s32.totalorder %s121, 1
        %s1451 = scalar_select %p1450, %s121, 1
        %s1452 = smul.addr %s1451, 16
        %s1453 = smul.addr %s1452, 4
        %s1454 = scalar_lea.vmem %s1, %s1453
        %p1455 = pneg %p142
        %p1456 = pneg %p139
        %p1457 = pneg %p163
        %p1458 = pneg %p160
        %p1459 = pneg %p184
        %p1460 = pneg %p181
        %p1461 = pneg %p205
        %p1462 = pneg %p202
        %p1463 = pneg %p226
        %p1464 = pneg %p223
        %p1465 = pneg %p247
        %p1466 = pneg %p244
        %p1467 = pneg %p268
        %p1468 = pneg %p265
        %p1469 = pneg %p289
        %p1470 = pneg %p286
        %p1471 = pneg %p310
        %p1472 = pneg %p307
        %p1473 = pneg %p331
        %p1474 = pneg %p328
        %p1475 = pneg %p352
        %p1476 = pneg %p349
        %p1477 = pneg %p373
        %p1478 = pneg %p370
        %p1479 = pneg %p394
        %p1480 = pneg %p391
        %p1481 = pneg %p415
        %p1482 = pneg %p412
        %p1483 = pneg %p436
        %p1484 = pneg %p433
        %p1485 = pneg %p457
        %p1486 = pneg %p454
        %p1487 = pneg %p478
        %p1488 = pneg %p475
        %p1489 = pneg %p499
        %p1490 = pneg %p496
        %p1491 = pneg %p520
        %p1492 = pneg %p517
        %p1493 = pneg %p541
        %p1494 = pneg %p538
        %p1495 = pneg %p562
        %p1496 = pneg %p559
        %p1497 = pneg %p583
        %p1498 = pneg %p580
        %p1499 = pneg %p604
        %p1500 = pneg %p601
        %p1501 = pneg %p625
        %p1502 = pneg %p622
        %p1503 = pneg %p646
        %p1504 = pneg %p643
        %p1505 = pneg %p667
        %p1506 = pneg %p664
        %p1507 = pneg %p688
        %p1508 = pneg %p685
        %p1509 = pneg %p709
        %p1510 = pneg %p706
        %p1511 = pneg %p730
        %p1512 = pneg %p727
        %p1513 = pneg %p751
        %p1514 = pneg %p748
        %p1515 = pneg %p772
        %p1516 = pneg %p769
        %p1517 = pneg %p793
        %p1518 = pneg %p790
        %p1519 = pneg %p814
        %p1520 = pneg %p811
        %p1521 = pneg %p835
        %p1522 = pneg %p832
        %p1523 = pneg %p856
        %p1524 = pneg %p853
        %p1525 = pneg %p877
        %p1526 = pneg %p874
        %p1527 = pneg %p898
        %p1528 = pneg %p895
        %p1529 = pneg %p919
        %p1530 = pneg %p916
        %p1531 = pneg %p940
        %p1532 = pneg %p937
        %p1533 = pneg %p961
        %p1534 = pneg %p958
        %p1535 = pneg %p982
        %p1536 = pneg %p979
        %p1537 = pneg %p1003
        %p1538 = pneg %p1000
        %p1539 = pneg %p1024
        %p1540 = pneg %p1021
        %p1541 = pneg %p1045
        %p1542 = pneg %p1042
        %p1543 = pneg %p1066
        %p1544 = pneg %p1063
        %p1545 = pneg %p1087
        %p1546 = pneg %p1084
        %p1547 = pneg %p1108
        %p1548 = pneg %p1105
        %p1549 = pneg %p1129
        %p1550 = pneg %p1126
        %p1551 = pneg %p1150
        %p1552 = pneg %p1147
        %p1553 = pneg %p1171
        %p1554 = pneg %p1168
        %p1555 = pneg %p1192
        %p1556 = pneg %p1189
        %p1557 = pneg %p1213
        %p1558 = pneg %p1210
        %p1559 = pneg %p1234
        %p1560 = pneg %p1231
        %p1561 = pneg %p1260
        %p1562 = pneg %p1257
        %s1563 = sand.u32 %s1247, 1
        %s1564 = scalar_lea.sflag [#allocation3], %s1563
        %s1565 = sand.u32 %s1247, 1
        %s1566 = scalar_lea.vmem [#allocation2], %s1565
        %p1567 = scmp.lt.s32.totalorder %s121, 1
        %s1568 = scalar_select %p1567, %s121, 1
        %s1569 = smul.addr %s1568, 16
        %s1570 = smul.addr %s1569, 4
        %s1571 = scalar_lea.vmem %s1, %s1570
        %v1573 = vld [vmem:[%s1571] sm:$0xff]
        %v1574 = vld [vmem:[%s1571 + $0x8] sm:$0xff]
        %v1575 = vld [vmem:[%s1571 + $0x10] sm:$0xff]
        %v1576 = vld [vmem:[%s1571 + $0x18] sm:$0xff]
        %v1577 = vld [vmem:[%s1571 + $0x20] sm:$0xff]
        %v1578 = vld [vmem:[%s1571 + $0x28] sm:$0xff]
        %v1579 = vld [vmem:[%s1571 + $0x30] sm:$0xff]
        %v1580 = vld [vmem:[%s1571 + $0x38] sm:$0xff]
        %v1581 = vld [vmem:[%s3] sm:$0xf]
        %v1582 = vld [vmem:[%s3 + $0x4] sm:$0xf]
        %v1583 = vld [vmem:[%s3 + $0x8] sm:$0xf]
        %v1584 = vld [vmem:[%s3 + $0xc] sm:$0xf]
        %v1589 = vunpack.c.l.b16 %v1581
        %v1590 = vunpack.c.l.b16 %v1582
        %v1591 = vunpack.c.l.b16 %v1583
        %v1592 = vunpack.c.l.b16 %v1584
        %v1593 = vpack.c.b16 %v1590, %v1589
        %v1594 = vpack.c.b16 %v1592, %v1591
        %v1603 = vunpack.c.l.b16 %v1573
        %v1604 = vunpack.c.h.b16 %v1573
        %v1605 = vunpack.c.l.b16 %v1574
        %v1606 = vunpack.c.h.b16 %v1574
        %v1607 = vunpack.c.l.b16 %v1575
        %v1608 = vunpack.c.h.b16 %v1575
        %v1609 = vunpack.c.l.b16 %v1576
        %v1610 = vunpack.c.h.b16 %v1576
        %v1611 = vunpack.c.l.b16 %v1577
        %v1612 = vunpack.c.h.b16 %v1577
        %v1613 = vunpack.c.l.b16 %v1578
        %v1614 = vunpack.c.h.b16 %v1578
        %v1615 = vunpack.c.l.b16 %v1579
        %v1616 = vunpack.c.h.b16 %v1579
        %v1617 = vunpack.c.l.b16 %v1580
        %v1618 = vunpack.c.h.b16 %v1580
        %v1619 = vpack.c.b16 %v1605, %v1603
        %v1620 = vpack.c.b16 %v1606, %v1604
        %v1621 = vpack.c.b16 %v1609, %v1607
        %v1622 = vpack.c.b16 %v1610, %v1608
        %v1623 = vpack.c.b16 %v1613, %v1611
        %v1624 = vpack.c.b16 %v1614, %v1612
        %v1625 = vpack.c.b16 %v1617, %v1615
        %v1626 = vpack.c.b16 %v1618, %v1616
        %vm1635 = vcmask 523264
        %v1637 = vsel %vm1635, %v1593, 0
        %v1640 = vsel %vm1635, %v1594, 0
        %1642 = vmatprep.subr.bf16.mxu0 %v1620
        %1643 = vmatpush1.bf16.msra.mxu0 %v1619
        %1644 = vmatprep.subr.bf16.mxu0 %v1622
        %1645 = vmatpush1.bf16.msra.mxu0 %v1621
        %1646 = vmatprep.subr.bf16.mxu0 %v1624
        %1647 = vmatpush1.bf16.msra.mxu0 %v1623
        %1648 = vmatprep.subr.bf16.mxu0 %v1626
        %1649 = vmatpush1.bf16.msra.mxu0 %v1625
        %1650 = vmatprep.subr.bf16.mxu0 0
        %1651 = vmatpush1.bf16.msra.mxu0 0
        %1652 = vmatprep.subr.bf16.mxu0 0
        %1653 = vmatpush1.bf16.msra.mxu0 0
        %1654 = vmatprep.subr.bf16.mxu0 0
        %1655 = vmatpush1.bf16.msra.mxu0 0
        %1656 = vmatprep.subr.bf16.mxu0 0
        %1657 = vmatpush1.bf16.msra.mxu0 0
        %1658 = vmatprep.subr.bf16.mxu0 0
        %1659 = vmatpush1.bf16.msra.mxu0 0
        %1660 = vmatprep.subr.bf16.mxu0 0
        %1661 = vmatpush1.bf16.msra.mxu0 0
        %1662 = vmatprep.subr.bf16.mxu0 0
        %1663 = vmatpush1.bf16.msra.mxu0 0
        %1664 = vmatprep.subr.bf16.mxu0 0
        %1665 = vmatpush1.bf16.msra.mxu0 0
        %1666 = vmatprep.subr.bf16.mxu0 0
        %1667 = vmatpush1.bf16.msra.mxu0 0
        %1668 = vmatprep.subr.bf16.mxu0 0
        %1669 = vmatpush1.bf16.msra.mxu0 0
        %1670 = vmatprep.subr.bf16.mxu0 0
        %1671 = vmatpush1.bf16.msra.mxu0 0
        %1672 = vmatprep.subr.bf16.mxu0 0
        %1673 = vmatpush1.bf16.msra.mxu0 0
        %1674 = vmatprep.mubr.bf16.mxu0 0
        %1675 = vmatmul.mubr.bf16.gmra.mrb[0].mxu0 %v1637
        %v1676 = vpop.f32.mrb[0].mxu0
        %v1677 = vadd.f32 0.0, %v1676
        %v1678 = vpop.f32.mrb[0].mxu0
        %v1679 = vadd.f32 0.0, %v1678
        %v1680 = vpop.f32.mrb[0].mxu0
        %v1681 = vadd.f32 0.0, %v1680
        %v1682 = vpop.f32.mrb[0].mxu0
        %v1683 = vadd.f32 0.0, %v1682
        %1684 = vmatprep.mubr.bf16.mxu0 0
        %1685 = vmatmul.mubr.bf16.gmra.mrb[0].mxu0 %v1640
        %v1686 = vpop.f32.mrb[0].mxu0
        %v1687 = vadd.f32 0.0, %v1686
        %v1688 = vpop.f32.mrb[0].mxu0
        %v1689 = vadd.f32 0.0, %v1688
        %v1690 = vpop.f32.mrb[0].mxu0
        %v1691 = vadd.f32 0.0, %v1690
        %v1692 = vpop.f32.mrb[0].mxu0
        %v1693 = vadd.f32 0.0, %v1692
        %1694 = vdwg.mxu0
        %v1695 = vpack.c.bf16 %v1681, %v1677
        %v1696 = vpack.c.bf16 %v1683, %v1679
        %v1697 = vpack.c.bf16 %v1691, %v1687
        %v1698 = vpack.c.bf16 %v1693, %v1689
        %v1699 = vld [vmem:[%s5] sm:$0xff]
        %v1700 = vld [vmem:[%s5 + $0x8] sm:$0xff]
        %v1701 = vld [vmem:[%s5 + $0x10] sm:$0xff]
        %v1702 = vld [vmem:[%s5 + $0x18] sm:$0xff]
        %v1703 = vld [vmem:[%s5 + $0x20] sm:$0xff]
        %v1704 = vld [vmem:[%s5 + $0x28] sm:$0xff]
        %v1705 = vld [vmem:[%s5 + $0x30] sm:$0xff]
        %v1706 = vld [vmem:[%s5 + $0x38] sm:$0xff]
        %v1707 = vld [vmem:[%s5 + $0x40] sm:$0xff]
        %v1708 = vld [vmem:[%s5 + $0x48] sm:$0xff]
        %v1709 = vld [vmem:[%s5 + $0x50] sm:$0xff]
        %v1710 = vld [vmem:[%s5 + $0x58] sm:$0xff]
        %v1711 = vld [vmem:[%s5 + $0x60] sm:$0xff]
        %v1712 = vld [vmem:[%s5 + $0x68] sm:$0xff]
        %v1713 = vld [vmem:[%s5 + $0x70] sm:$0xff]
        %v1714 = vld [vmem:[%s5 + $0x78] sm:$0xff]
        %v1715 = vld [vmem:[%s5 + $0x80] sm:$0xff]
        %v1716 = vld [vmem:[%s5 + $0x88] sm:$0xff]
        %v1717 = vld [vmem:[%s5 + $0x90] sm:$0xff]
        %v1718 = vld [vmem:[%s5 + $0x98] sm:$0xff]
        %v1719 = vld [vmem:[%s5 + $0xa0] sm:$0xff]
        %v1720 = vld [vmem:[%s5 + $0xa8] sm:$0xff]
        %v1721 = vld [vmem:[%s5 + $0xb0] sm:$0xff]
        %v1722 = vld [vmem:[%s5 + $0xb8] sm:$0xff]
        %s1723 = scalar_lea.vmem %s3, 16
        %v1724 = vld [vmem:[%s1723] sm:$0xf]
        %v1725 = vld [vmem:[%s1723 + $0x4] sm:$0xf]
        %v1726 = vld [vmem:[%s1723 + $0x8] sm:$0xf]
        %v1727 = vld [vmem:[%s1723 + $0xc] sm:$0xf]
        %v1732 = vunpack.c.l.b16 %v1724
        %v1733 = vunpack.c.l.b16 %v1725
        %v1734 = vunpack.c.l.b16 %v1726
        %v1735 = vunpack.c.l.b16 %v1727
        %v1736 = vpack.c.b16 %v1733, %v1732
        %v1737 = vpack.c.b16 %v1735, %v1734
        %v1739 = vsel %vm1635, %v1736, 0
        %v1742 = vsel %vm1635, %v1737, 0
        %1744 = vmatprep.subr.bf16.mxu0 %v1620
        %1745 = vmatpush1.bf16.msra.mxu0 %v1619
        %1746 = vmatprep.subr.bf16.mxu0 %v1622
        %1747 = vmatpush1.bf16.msra.mxu0 %v1621
        %1748 = vmatprep.subr.bf16.mxu0 %v1624
        %1749 = vmatpush1.bf16.msra.mxu0 %v1623
        %1750 = vmatprep.subr.bf16.mxu0 %v1626
        %1751 = vmatpush1.bf16.msra.mxu0 %v1625
        %1752 = vmatprep.subr.bf16.mxu0 0
        %1753 = vmatpush1.bf16.msra.mxu0 0
        %1754 = vmatprep.subr.bf16.mxu0 0
        %1755 = vmatpush1.bf16.msra.mxu0 0
        %1756 = vmatprep.subr.bf16.mxu0 0
        %1757 = vmatpush1.bf16.msra.mxu0 0
        %1758 = vmatprep.subr.bf16.mxu0 0
        %1759 = vmatpush1.bf16.msra.mxu0 0
        %1760 = vmatprep.subr.bf16.mxu0 0
        %1761 = vmatpush1.bf16.msra.mxu0 0
        %1762 = vmatprep.subr.bf16.mxu0 0
        %1763 = vmatpush1.bf16.msra.mxu0 0
        %1764 = vmatprep.subr.bf16.mxu0 0
        %1765 = vmatpush1.bf16.msra.mxu0 0
        %1766 = vmatprep.subr.bf16.mxu0 0
        %1767 = vmatpush1.bf16.msra.mxu0 0
        %1768 = vmatprep.subr.bf16.mxu0 0
        %1769 = vmatpush1.bf16.msra.mxu0 0
        %1770 = vmatprep.subr.bf16.mxu0 0
        %1771 = vmatpush1.bf16.msra.mxu0 0
        %1772 = vmatprep.subr.bf16.mxu0 0
        %1773 = vmatpush1.bf16.msra.mxu0 0
        %1774 = vmatprep.subr.bf16.mxu0 0
        %1775 = vmatpush1.bf16.msra.mxu0 0
        %1776 = vmatprep.mubr.bf16.mxu0 0
        %1777 = vmatmul.mubr.bf16.gmra.mrb[0].mxu0 %v1739
        %v1778 = vpop.f32.mrb[0].mxu0
        %v1779 = vadd.f32 0.0, %v1778
        %v1780 = vpop.f32.mrb[0].mxu0
        %v1781 = vadd.f32 0.0, %v1780
        %v1782 = vpop.f32.mrb[0].mxu0
        %v1783 = vadd.f32 0.0, %v1782
        %v1784 = vpop.f32.mrb[0].mxu0
        %v1785 = vadd.f32 0.0, %v1784
        %1786 = vmatprep.mubr.bf16.mxu0 0
        %1787 = vmatmul.mubr.bf16.gmra.mrb[0].mxu0 %v1742
        %v1788 = vpop.f32.mrb[0].mxu0
        %v1789 = vadd.f32 0.0, %v1788
        %v1790 = vpop.f32.mrb[0].mxu0
        %v1791 = vadd.f32 0.0, %v1790
        %v1792 = vpop.f32.mrb[0].mxu0
        %v1793 = vadd.f32 0.0, %v1792
        %v1794 = vpop.f32.mrb[0].mxu0
        %v1795 = vadd.f32 0.0, %v1794
        %1796 = vdwg.mxu0
        %v1797 = vpack.c.bf16 %v1783, %v1779
        %v1798 = vpack.c.bf16 %v1785, %v1781
        %v1799 = vpack.c.bf16 %v1793, %v1789
        %v1800 = vpack.c.bf16 %v1795, %v1791
        %s1801 = scalar_lea.vmem %s5, 192
        %v1802 = vld [vmem:[%s1801] sm:$0xff]
        %v1803 = vld [vmem:[%s1801 + $0x8] sm:$0xff]
        %v1804 = vld [vmem:[%s1801 + $0x10] sm:$0xff]
        %v1805 = vld [vmem:[%s1801 + $0x18] sm:$0xff]
        %v1806 = vld [vmem:[%s1801 + $0x20] sm:$0xff]
        %v1807 = vld [vmem:[%s1801 + $0x28] sm:$0xff]
        %v1808 = vld [vmem:[%s1801 + $0x30] sm:$0xff]
        %v1809 = vld [vmem:[%s1801 + $0x38] sm:$0xff]
        %v1810 = vld [vmem:[%s1801 + $0x40] sm:$0xff]
        %v1811 = vld [vmem:[%s1801 + $0x48] sm:$0xff]
        %v1812 = vld [vmem:[%s1801 + $0x50] sm:$0xff]
        %v1813 = vld [vmem:[%s1801 + $0x58] sm:$0xff]
        %v1814 = vld [vmem:[%s1801 + $0x60] sm:$0xff]
        %v1815 = vld [vmem:[%s1801 + $0x68] sm:$0xff]
        %v1816 = vld [vmem:[%s1801 + $0x70] sm:$0xff]
        %v1817 = vld [vmem:[%s1801 + $0x78] sm:$0xff]
        %v1818 = vld [vmem:[%s1801 + $0x80] sm:$0xff]
        %v1819 = vld [vmem:[%s1801 + $0x88] sm:$0xff]
        %v1820 = vld [vmem:[%s1801 + $0x90] sm:$0xff]
        %v1821 = vld [vmem:[%s1801 + $0x98] sm:$0xff]
        %v1822 = vld [vmem:[%s1801 + $0xa0] sm:$0xff]
        %v1823 = vld [vmem:[%s1801 + $0xa8] sm:$0xff]
        %v1824 = vld [vmem:[%s1801 + $0xb0] sm:$0xff]
        %v1825 = vld [vmem:[%s1801 + $0xb8] sm:$0xff]
        %v1850 = vunpack.c.l.b16 %v1802
        %v1851 = vunpack.c.h.b16 %v1802
        %v1852 = vunpack.c.l.b16 %v1803
        %v1853 = vunpack.c.h.b16 %v1803
        %v1854 = vunpack.c.l.b16 %v1804
        %v1855 = vunpack.c.h.b16 %v1804
        %v1856 = vunpack.c.l.b16 %v1805
        %v1857 = vunpack.c.h.b16 %v1805
        %v1858 = vunpack.c.l.b16 %v1806
        %v1859 = vunpack.c.h.b16 %v1806
        %v1860 = vunpack.c.l.b16 %v1807
        %v1861 = vunpack.c.h.b16 %v1807
        %v1862 = vunpack.c.l.b16 %v1808
        %v1863 = vunpack.c.h.b16 %v1808
        %v1864 = vunpack.c.l.b16 %v1809
        %v1865 = vunpack.c.h.b16 %v1809
        %v1866 = vunpack.c.l.b16 %v1810
        %v1867 = vunpack.c.h.b16 %v1810
        %v1868 = vunpack.c.l.b16 %v1811
        %v1869 = vunpack.c.h.b16 %v1811
        %v1870 = vunpack.c.l.b16 %v1812
        %v1871 = vunpack.c.h.b16 %v1812
        %v1872 = vunpack.c.l.b16 %v1813
        %v1873 = vunpack.c.h.b16 %v1813
        %v1874 = vunpack.c.l.b16 %v1814
        %v1875 = vunpack.c.h.b16 %v1814
        %v1876 = vunpack.c.l.b16 %v1815
        %v1877 = vunpack.c.h.b16 %v1815
        %v1878 = vunpack.c.l.b16 %v1816
        %v1879 = vunpack.c.h.b16 %v1816
        %v1880 = vunpack.c.l.b16 %v1817
        %v1881 = vunpack.c.h.b16 %v1817
        %v1882 = vunpack.c.l.b16 %v1818
        %v1883 = vunpack.c.h.b16 %v1818
        %v1884 = vunpack.c.l.b16 %v1819
        %v1885 = vunpack.c.h.b16 %v1819
        %v1886 = vunpack.c.l.b16 %v1820
        %v1887 = vunpack.c.h.b16 %v1820
        %v1888 = vunpack.c.l.b16 %v1821
        %v1889 = vunpack.c.h.b16 %v1821
        %v1890 = vunpack.c.l.b16 %v1822
        %v1891 = vunpack.c.h.b16 %v1822
        %v1892 = vunpack.c.l.b16 %v1823
        %v1893 = vunpack.c.h.b16 %v1823
        %v1894 = vunpack.c.l.b16 %v1824
        %v1895 = vunpack.c.h.b16 %v1824
        %v1896 = vunpack.c.l.b16 %v1825
        %v1897 = vunpack.c.h.b16 %v1825
        %v1898 = vpack.c.b16 %v1852, %v1850
        %v1899 = vpack.c.b16 %v1853, %v1851
        %v1900 = vpack.c.b16 %v1856, %v1854
        %v1901 = vpack.c.b16 %v1857, %v1855
        %v1902 = vpack.c.b16 %v1860, %v1858
        %v1903 = vpack.c.b16 %v1861, %v1859
        %v1904 = vpack.c.b16 %v1864, %v1862
        %v1905 = vpack.c.b16 %v1865, %v1863
        %v1906 = vpack.c.b16 %v1868, %v1866
        %v1907 = vpack.c.b16 %v1869, %v1867
        %v1908 = vpack.c.b16 %v1872, %v1870
        %v1909 = vpack.c.b16 %v1873, %v1871
        %v1910 = vpack.c.b16 %v1876, %v1874
        %v1911 = vpack.c.b16 %v1877, %v1875
        %v1912 = vpack.c.b16 %v1880, %v1878
        %v1913 = vpack.c.b16 %v1881, %v1879
        %v1914 = vpack.c.b16 %v1884, %v1882
        %v1915 = vpack.c.b16 %v1885, %v1883
        %v1916 = vpack.c.b16 %v1888, %v1886
        %v1917 = vpack.c.b16 %v1889, %v1887
        %v1918 = vpack.c.b16 %v1892, %v1890
        %v1919 = vpack.c.b16 %v1893, %v1891
        %v1920 = vpack.c.b16 %v1896, %v1894
        %v1921 = vpack.c.b16 %v1897, %v1895
        %v1947 = vsel %vm1635, %v1798, 0
        %v1950 = vsel %vm1635, %v1800, 0
        %1952 = vmatprep.subr.bf16.mxu0 %v1899
        %1953 = vmatpush1.bf16.msra.mxu0 %v1898
        %1954 = vmatprep.subr.bf16.mxu0 %v1901
        %1955 = vmatpush1.bf16.msra.mxu0 %v1900
        %1956 = vmatprep.subr.bf16.mxu0 %v1903
        %1957 = vmatpush1.bf16.msra.mxu0 %v1902
        %1958 = vmatprep.subr.bf16.mxu0 %v1905
        %1959 = vmatpush1.bf16.msra.mxu0 %v1904
        %1960 = vmatprep.subr.bf16.mxu0 %v1907
        %1961 = vmatpush1.bf16.msra.mxu0 %v1906
        %1962 = vmatprep.subr.bf16.mxu0 %v1909
        %1963 = vmatpush1.bf16.msra.mxu0 %v1908
        %1964 = vmatprep.subr.bf16.mxu0 %v1911
        %1965 = vmatpush1.bf16.msra.mxu0 %v1910
        %1966 = vmatprep.subr.bf16.mxu0 %v1913
        %1967 = vmatpush1.bf16.msra.mxu0 %v1912
        %1968 = vmatprep.subr.bf16.mxu0 %v1915
        %1969 = vmatpush1.bf16.msra.mxu0 %v1914
        %1970 = vmatprep.subr.bf16.mxu0 %v1917
        %1971 = vmatpush1.bf16.msra.mxu0 %v1916
        %1972 = vmatprep.subr.bf16.mxu0 %v1919
        %1973 = vmatpush1.bf16.msra.mxu0 %v1918
        %1974 = vmatprep.subr.bf16.mxu0 %v1921
        %1975 = vmatpush1.bf16.msra.mxu0 %v1920
        %1976 = vmatprep.subr.bf16.mxu0 0
        %1977 = vmatpush1.bf16.msra.mxu0 0
        %1978 = vmatprep.subr.bf16.mxu0 0
        %1979 = vmatpush1.bf16.msra.mxu0 0
        %1980 = vmatprep.subr.bf16.mxu0 0
        %1981 = vmatpush1.bf16.msra.mxu0 0
        %1982 = vmatprep.subr.bf16.mxu0 0
        %1983 = vmatpush1.bf16.msra.mxu0 0
        %1984 = vmatprep.mubr.bf16.mxu0 %v1947
        %1985 = vmatmul.mubr.bf16.gmra.mrb[0].mxu0 %v1797
        %v1986 = vpop.f32.mrb[0].mxu0
        %v1987 = vadd.f32 0.0, %v1986
        %v1988 = vpop.f32.mrb[0].mxu0
        %v1989 = vadd.f32 0.0, %v1988
        %v1990 = vpop.f32.mrb[0].mxu0
        %v1991 = vadd.f32 0.0, %v1990
        %v1992 = vpop.f32.mrb[0].mxu0
        %v1993 = vadd.f32 0.0, %v1992
        %1994 = vmatprep.mubr.bf16.mxu0 %v1950
        %1995 = vmatmul.mubr.bf16.gmra.mrb[0].mxu0 %v1799
        %v1996 = vpop.f32.mrb[0].mxu0
        %v1997 = vadd.f32 0.0, %v1996
        %v1998 = vpop.f32.mrb[0].mxu0
        %v1999 = vadd.f32 0.0, %v1998
        %v2000 = vpop.f32.mrb[0].mxu0
        %v2001 = vadd.f32 0.0, %v2000
        %v2002 = vpop.f32.mrb[0].mxu0
        %v2003 = vadd.f32 0.0, %v2002
        %2004 = vdwg.mxu0
        %v2029 = vunpack.c.l.b16 %v1699
        %v2030 = vunpack.c.h.b16 %v1699
        %v2031 = vunpack.c.l.b16 %v1700
        %v2032 = vunpack.c.h.b16 %v1700
        %v2033 = vunpack.c.l.b16 %v1701
        %v2034 = vunpack.c.h.b16 %v1701
        %v2035 = vunpack.c.l.b16 %v1702
        %v2036 = vunpack.c.h.b16 %v1702
        %v2037 = vunpack.c.l.b16 %v1703
        %v2038 = vunpack.c.h.b16 %v1703
        %v2039 = vunpack.c.l.b16 %v1704
        %v2040 = vunpack.c.h.b16 %v1704
        %v2041 = vunpack.c.l.b16 %v1705
        %v2042 = vunpack.c.h.b16 %v1705
        %v2043 = vunpack.c.l.b16 %v1706
        %v2044 = vunpack.c.h.b16 %v1706
        %v2045 = vunpack.c.l.b16 %v1707
        %v2046 = vunpack.c.h.b16 %v1707
        %v2047 = vunpack.c.l.b16 %v1708
        %v2048 = vunpack.c.h.b16 %v1708
        %v2049 = vunpack.c.l.b16 %v1709
        %v2050 = vunpack.c.h.b16 %v1709
        %v2051 = vunpack.c.l.b16 %v1710
        %v2052 = vunpack.c.h.b16 %v1710
        %v2053 = vunpack.c.l.b16 %v1711
        %v2054 = vunpack.c.h.b16 %v1711
        %v2055 = vunpack.c.l.b16 %v1712
        %v2056 = vunpack.c.h.b16 %v1712
        %v2057 = vunpack.c.l.b16 %v1713
        %v2058 = vunpack.c.h.b16 %v1713
        %v2059 = vunpack.c.l.b16 %v1714
        %v2060 = vunpack.c.h.b16 %v1714
        %v2061 = vunpack.c.l.b16 %v1715
        %v2062 = vunpack.c.h.b16 %v1715
        %v2063 = vunpack.c.l.b16 %v1716
        %v2064 = vunpack.c.h.b16 %v1716
        %v2065 = vunpack.c.l.b16 %v1717
        %v2066 = vunpack.c.h.b16 %v1717
        %v2067 = vunpack.c.l.b16 %v1718
        %v2068 = vunpack.c.h.b16 %v1718
        %v2069 = vunpack.c.l.b16 %v1719
        %v2070 = vunpack.c.h.b16 %v1719
        %v2071 = vunpack.c.l.b16 %v1720
        %v2072 = vunpack.c.h.b16 %v1720
        %v2073 = vunpack.c.l.b16 %v1721
        %v2074 = vunpack.c.h.b16 %v1721
        %v2075 = vunpack.c.l.b16 %v1722
        %v2076 = vunpack.c.h.b16 %v1722
        %v2077 = vpack.c.b16 %v2031, %v2029
        %v2078 = vpack.c.b16 %v2032, %v2030
        %v2079 = vpack.c.b16 %v2035, %v2033
        %v2080 = vpack.c.b16 %v2036, %v2034
        %v2081 = vpack.c.b16 %v2039, %v2037
        %v2082 = vpack.c.b16 %v2040, %v2038
        %v2083 = vpack.c.b16 %v2043, %v2041
        %v2084 = vpack.c.b16 %v2044, %v2042
        %v2085 = vpack.c.b16 %v2047, %v2045
        %v2086 = vpack.c.b16 %v2048, %v2046
        %v2087 = vpack.c.b16 %v2051, %v2049
        %v2088 = vpack.c.b16 %v2052, %v2050
        %v2089 = vpack.c.b16 %v2055, %v2053
        %v2090 = vpack.c.b16 %v2056, %v2054
        %v2091 = vpack.c.b16 %v2059, %v2057
        %v2092 = vpack.c.b16 %v2060, %v2058
        %v2093 = vpack.c.b16 %v2063, %v2061
        %v2094 = vpack.c.b16 %v2064, %v2062
        %v2095 = vpack.c.b16 %v2067, %v2065
        %v2096 = vpack.c.b16 %v2068, %v2066
        %v2097 = vpack.c.b16 %v2071, %v2069
        %v2098 = vpack.c.b16 %v2072, %v2070
        %v2099 = vpack.c.b16 %v2075, %v2073
        %v2100 = vpack.c.b16 %v2076, %v2074
        %v2126 = vsel %vm1635, %v1696, 0
        %v2129 = vsel %vm1635, %v1698, 0
        %2131 = vmatprep.subr.bf16.mxu0 %v2078
        %2132 = vmatpush1.bf16.msra.mxu0 %v2077
        %2133 = vmatprep.subr.bf16.mxu0 %v2080
        %2134 = vmatpush1.bf16.msra.mxu0 %v2079
        %2135 = vmatprep.subr.bf16.mxu0 %v2082
        %2136 = vmatpush1.bf16.msra.mxu0 %v2081
        %2137 = vmatprep.subr.bf16.mxu0 %v2084
        %2138 = vmatpush1.bf16.msra.mxu0 %v2083
        %2139 = vmatprep.subr.bf16.mxu0 %v2086
        %2140 = vmatpush1.bf16.msra.mxu0 %v2085
        %2141 = vmatprep.subr.bf16.mxu0 %v2088
        %2142 = vmatpush1.bf16.msra.mxu0 %v2087
        %2143 = vmatprep.subr.bf16.mxu0 %v2090
        %2144 = vmatpush1.bf16.msra.mxu0 %v2089
        %2145 = vmatprep.subr.bf16.mxu0 %v2092
        %2146 = vmatpush1.bf16.msra.mxu0 %v2091
        %2147 = vmatprep.subr.bf16.mxu0 %v2094
        %2148 = vmatpush1.bf16.msra.mxu0 %v2093
        %2149 = vmatprep.subr.bf16.mxu0 %v2096
        %2150 = vmatpush1.bf16.msra.mxu0 %v2095
        %2151 = vmatprep.subr.bf16.mxu0 %v2098
        %2152 = vmatpush1.bf16.msra.mxu0 %v2097
        %2153 = vmatprep.subr.bf16.mxu0 %v2100
        %2154 = vmatpush1.bf16.msra.mxu0 %v2099
        %2155 = vmatprep.subr.bf16.mxu0 0
        %2156 = vmatpush1.bf16.msra.mxu0 0
        %2157 = vmatprep.subr.bf16.mxu0 0
        %2158 = vmatpush1.bf16.msra.mxu0 0
        %2159 = vmatprep.subr.bf16.mxu0 0
        %2160 = vmatpush1.bf16.msra.mxu0 0
        %2161 = vmatprep.subr.bf16.mxu0 0
        %2162 = vmatpush1.bf16.msra.mxu0 0
        %2163 = vmatprep.mubr.bf16.mxu0 %v2126
        %2164 = vmatmul.mubr.bf16.gmra.mrb[0].mxu0 %v1695
        %v2165 = vpop.f32.mrb[0].mxu0
        %v2166 = vadd.f32 %v1987, %v2165
        %v2167 = vpop.f32.mrb[0].mxu0
        %v2168 = vadd.f32 %v1989, %v2167
        %v2169 = vpop.f32.mrb[0].mxu0
        %v2170 = vadd.f32 %v1991, %v2169
        %v2171 = vpop.f32.mrb[0].mxu0
        %v2172 = vadd.f32 %v1993, %v2171
        %2173 = vmatprep.mubr.bf16.mxu0 %v2129
        %2174 = vmatmul.mubr.bf16.gmra.mrb[0].mxu0 %v1697
        %v2175 = vpop.f32.mrb[0].mxu0
        %v2176 = vadd.f32 %v1997, %v2175
        %v2177 = vpop.f32.mrb[0].mxu0
        %v2178 = vadd.f32 %v1999, %v2177
        %v2179 = vpop.f32.mrb[0].mxu0
        %v2180 = vadd.f32 %v2001, %v2179
        %v2181 = vpop.f32.mrb[0].mxu0
        %v2182 = vadd.f32 %v2003, %v2181
        %2183 = vdwg.mxu0
        %s2184 = scalar_lea.vmem %s3, 32
        %v2185 = vld [vmem:[%s2184] sm:$0xf]
        %v2186 = vld [vmem:[%s2184 + $0x4] sm:$0xf]
        %v2187 = vld [vmem:[%s2184 + $0x8] sm:$0xf]
        %v2188 = vld [vmem:[%s2184 + $0xc] sm:$0xf]
        %v2193 = vunpack.c.l.b16 %v2185
        %v2194 = vunpack.c.l.b16 %v2186
        %v2195 = vunpack.c.l.b16 %v2187
        %v2196 = vunpack.c.l.b16 %v2188
        %v2197 = vpack.c.b16 %v2194, %v2193
        %v2198 = vpack.c.b16 %v2196, %v2195
        %v2200 = vsel %vm1635, %v2197, 0
        %v2203 = vsel %vm1635, %v2198, 0
        %2205 = vmatprep.subr.bf16.mxu0 %v1620
        %2206 = vmatpush1.bf16.msra.mxu0 %v1619
        %2207 = vmatprep.subr.bf16.mxu0 %v1622
        %2208 = vmatpush1.bf16.msra.mxu0 %v1621
        %2209 = vmatprep.subr.bf16.mxu0 %v1624
        %2210 = vmatpush1.bf16.msra.mxu0 %v1623
        %2211 = vmatprep.subr.bf16.mxu0 %v1626
        %2212 = vmatpush1.bf16.msra.mxu0 %v1625
        %2213 = vmatprep.subr.bf16.mxu0 0
        %2214 = vmatpush1.bf16.msra.mxu0 0
        %2215 = vmatprep.subr.bf16.mxu0 0
        %2216 = vmatpush1.bf16.msra.mxu0 0
        %2217 = vmatprep.subr.bf16.mxu0 0
        %2218 = vmatpush1.bf16.msra.mxu0 0
        %2219 = vmatprep.subr.bf16.mxu0 0
        %2220 = vmatpush1.bf16.msra.mxu0 0
        %2221 = vmatprep.subr.bf16.mxu0 0
        %2222 = vmatpush1.bf16.msra.mxu0 0
        %2223 = vmatprep.subr.bf16.mxu0 0
        %2224 = vmatpush1.bf16.msra.mxu0 0
        %2225 = vmatprep.subr.bf16.mxu0 0
        %2226 = vmatpush1.bf16.msra.mxu0 0
        %2227 = vmatprep.subr.bf16.mxu0 0
        %2228 = vmatpush1.bf16.msra.mxu0 0
        %2229 = vmatprep.subr.bf16.mxu0 0
        %2230 = vmatpush1.bf16.msra.mxu0 0
        %2231 = vmatprep.subr.bf16.mxu0 0
        %2232 = vmatpush1.bf16.msra.mxu0 0
        %2233 = vmatprep.subr.bf16.mxu0 0
        %2234 = vmatpush1.bf16.msra.mxu0 0
        %2235 = vmatprep.subr.bf16.mxu0 0
        %2236 = vmatpush1.bf16.msra.mxu0 0
        %2237 = vmatprep.mubr.bf16.mxu0 0
        %2238 = vmatmul.mubr.bf16.gmra.mrb[0].mxu0 %v2200
        %v2239 = vpop.f32.mrb[0].mxu0
        %v2240 = vadd.f32 0.0, %v2239
        %v2241 = vpop.f32.mrb[0].mxu0
        %v2242 = vadd.f32 0.0, %v2241
        %v2243 = vpop.f32.mrb[0].mxu0
        %v2244 = vadd.f32 0.0, %v2243
        %v2245 = vpop.f32.mrb[0].mxu0
        %v2246 = vadd.f32 0.0, %v2245
        %2247 = vmatprep.mubr.bf16.mxu0 0
        %2248 = vmatmul.mubr.bf16.gmra.mrb[0].mxu0 %v2203
        %v2249 = vpop.f32.mrb[0].mxu0
        %v2250 = vadd.f32 0.0, %v2249
        %v2251 = vpop.f32.mrb[0].mxu0
        %v2252 = vadd.f32 0.0, %v2251
        %v2253 = vpop.f32.mrb[0].mxu0
        %v2254 = vadd.f32 0.0, %v2253
        %v2255 = vpop.f32.mrb[0].mxu0
        %v2256 = vadd.f32 0.0, %v2255
        %2257 = vdwg.mxu0
        %v2258 = vpack.c.bf16 %v2244, %v2240
        %v2259 = vpack.c.bf16 %v2246, %v2242
        %v2260 = vpack.c.bf16 %v2254, %v2250
        %v2261 = vpack.c.bf16 %v2256, %v2252
        %s2262 = scalar_lea.vmem %s5, 384
        %v2263 = vld [vmem:[%s2262] sm:$0xff]
        %v2264 = vld [vmem:[%s2262 + $0x8] sm:$0xff]
        %v2265 = vld [vmem:[%s2262 + $0x10] sm:$0xff]
        %v2266 = vld [vmem:[%s2262 + $0x18] sm:$0xff]
        %v2267 = vld [vmem:[%s2262 + $0x20] sm:$0xff]
        %v2268 = vld [vmem:[%s2262 + $0x28] sm:$0xff]
        %v2269 = vld [vmem:[%s2262 + $0x30] sm:$0xff]
        %v2270 = vld [vmem:[%s2262 + $0x38] sm:$0xff]
        %v2271 = vld [vmem:[%s2262 + $0x40] sm:$0xff]
        %v2272 = vld [vmem:[%s2262 + $0x48] sm:$0xff]
        %v2273 = vld [vmem:[%s2262 + $0x50] sm:$0xff]
        %v2274 = vld [vmem:[%s2262 + $0x58] sm:$0xff]
        %v2275 = vld [vmem:[%s2262 + $0x60] sm:$0xff]
        %v2276 = vld [vmem:[%s2262 + $0x68] sm:$0xff]
        %v2277 = vld [vmem:[%s2262 + $0x70] sm:$0xff]
        %v2278 = vld [vmem:[%s2262 + $0x78] sm:$0xff]
        %v2279 = vld [vmem:[%s2262 + $0x80] sm:$0xff]
        %v2280 = vld [vmem:[%s2262 + $0x88] sm:$0xff]
        %v2281 = vld [vmem:[%s2262 + $0x90] sm:$0xff]
        %v2282 = vld [vmem:[%s2262 + $0x98] sm:$0xff]
        %v2283 = vld [vmem:[%s2262 + $0xa0] sm:$0xff]
        %v2284 = vld [vmem:[%s2262 + $0xa8] sm:$0xff]
        %v2285 = vld [vmem:[%s2262 + $0xb0] sm:$0xff]
        %v2286 = vld [vmem:[%s2262 + $0xb8] sm:$0xff]
        %v2311 = vunpack.c.l.b16 %v2263
        %v2312 = vunpack.c.h.b16 %v2263
        %v2313 = vunpack.c.l.b16 %v2264
        %v2314 = vunpack.c.h.b16 %v2264
        %v2315 = vunpack.c.l.b16 %v2265
        %v2316 = vunpack.c.h.b16 %v2265
        %v2317 = vunpack.c.l.b16 %v2266
        %v2318 = vunpack.c.h.b16 %v2266
        %v2319 = vunpack.c.l.b16 %v2267
        %v2320 = vunpack.c.h.b16 %v2267
        %v2321 = vunpack.c.l.b16 %v2268
        %v2322 = vunpack.c.h.b16 %v2268
        %v2323 = vunpack.c.l.b16 %v2269
        %v2324 = vunpack.c.h.b16 %v2269
        %v2325 = vunpack.c.l.b16 %v2270
        %v2326 = vunpack.c.h.b16 %v2270
        %v2327 = vunpack.c.l.b16 %v2271
        %v2328 = vunpack.c.h.b16 %v2271
        %v2329 = vunpack.c.l.b16 %v2272
        %v2330 = vunpack.c.h.b16 %v2272
        %v2331 = vunpack.c.l.b16 %v2273
        %v2332 = vunpack.c.h.b16 %v2273
        %v2333 = vunpack.c.l.b16 %v2274
        %v2334 = vunpack.c.h.b16 %v2274
        %v2335 = vunpack.c.l.b16 %v2275
        %v2336 = vunpack.c.h.b16 %v2275
        %v2337 = vunpack.c.l.b16 %v2276
        %v2338 = vunpack.c.h.b16 %v2276
        %v2339 = vunpack.c.l.b16 %v2277
        %v2340 = vunpack.c.h.b16 %v2277
        %v2341 = vunpack.c.l.b16 %v2278
        %v2342 = vunpack.c.h.b16 %v2278
        %v2343 = vunpack.c.l.b16 %v2279
        %v2344 = vunpack.c.h.b16 %v2279
        %v2345 = vunpack.c.l.b16 %v2280
        %v2346 = vunpack.c.h.b16 %v2280
        %v2347 = vunpack.c.l.b16 %v2281
        %v2348 = vunpack.c.h.b16 %v2281
        %v2349 = vunpack.c.l.b16 %v2282
        %v2350 = vunpack.c.h.b16 %v2282
        %v2351 = vunpack.c.l.b16 %v2283
        %v2352 = vunpack.c.h.b16 %v2283
        %v2353 = vunpack.c.l.b16 %v2284
        %v2354 = vunpack.c.h.b16 %v2284
        %v2355 = vunpack.c.l.b16 %v2285
        %v2356 = vunpack.c.h.b16 %v2285
        %v2357 = vunpack.c.l.b16 %v2286
        %v2358 = vunpack.c.h.b16 %v2286
        %v2359 = vpack.c.b16 %v2313, %v2311
        %v2360 = vpack.c.b16 %v2314, %v2312
        %v2361 = vpack.c.b16 %v2317, %v2315
        %v2362 = vpack.c.b16 %v2318, %v2316
        %v2363 = vpack.c.b16 %v2321, %v2319
        %v2364 = vpack.c.b16 %v2322, %v2320
        %v2365 = vpack.c.b16 %v2325, %v2323
        %v2366 = vpack.c.b16 %v2326, %v2324
        %v2367 = vpack.c.b16 %v2329, %v2327
        %v2368 = vpack.c.b16 %v2330, %v2328
        %v2369 = vpack.c.b16 %v2333, %v2331
        %v2370 = vpack.c.b16 %v2334, %v2332
        %v2371 = vpack.c.b16 %v2337, %v2335
        %v2372 = vpack.c.b16 %v2338, %v2336
        %v2373 = vpack.c.b16 %v2341, %v2339
        %v2374 = vpack.c.b16 %v2342, %v2340
        %v2375 = vpack.c.b16 %v2345, %v2343
        %v2376 = vpack.c.b16 %v2346, %v2344
        %v2377 = vpack.c.b16 %v2349, %v2347
        %v2378 = vpack.c.b16 %v2350, %v2348
        %v2379 = vpack.c.b16 %v2353, %v2351
        %v2380 = vpack.c.b16 %v2354, %v2352
        %v2381 = vpack.c.b16 %v2357, %v2355
        %v2382 = vpack.c.b16 %v2358, %v2356
        %v2408 = vsel %vm1635, %v2259, 0
        %v2411 = vsel %vm1635, %v2261, 0
        %2413 = vmatprep.subr.bf16.mxu0 %v2360
        %2414 = vmatpush1.bf16.msra.mxu0 %v2359
        %2415 = vmatprep.subr.bf16.mxu0 %v2362
        %2416 = vmatpush1.bf16.msra.mxu0 %v2361
        %2417 = vmatprep.subr.bf16.mxu0 %v2364
        %2418 = vmatpush1.bf16.msra.mxu0 %v2363
        %2419 = vmatprep.subr.bf16.mxu0 %v2366
        %2420 = vmatpush1.bf16.msra.mxu0 %v2365
        %2421 = vmatprep.subr.bf16.mxu0 %v2368
        %2422 = vmatpush1.bf16.msra.mxu0 %v2367
        %2423 = vmatprep.subr.bf16.mxu0 %v2370
        %2424 = vmatpush1.bf16.msra.mxu0 %v2369
        %2425 = vmatprep.subr.bf16.mxu0 %v2372
        %2426 = vmatpush1.bf16.msra.mxu0 %v2371
        %2427 = vmatprep.subr.bf16.mxu0 %v2374
        %2428 = vmatpush1.bf16.msra.mxu0 %v2373
        %2429 = vmatprep.subr.bf16.mxu0 %v2376
        %2430 = vmatpush1.bf16.msra.mxu0 %v2375
        %2431 = vmatprep.subr.bf16.mxu0 %v2378
        %2432 = vmatpush1.bf16.msra.mxu0 %v2377
        %2433 = vmatprep.subr.bf16.mxu0 %v2380
        %2434 = vmatpush1.bf16.msra.mxu0 %v2379
        %2435 = vmatprep.subr.bf16.mxu0 %v2382
        %2436 = vmatpush1.bf16.msra.mxu0 %v2381
        %2437 = vmatprep.subr.bf16.mxu0 0
        %2438 = vmatpush1.bf16.msra.mxu0 0
        %2439 = vmatprep.subr.bf16.mxu0 0
        %2440 = vmatpush1.bf16.msra.mxu0 0
        %2441 = vmatprep.subr.bf16.mxu0 0
        %2442 = vmatpush1.bf16.msra.mxu0 0
        %2443 = vmatprep.subr.bf16.mxu0 0
        %2444 = vmatpush1.bf16.msra.mxu0 0
        %2445 = vmatprep.mubr.bf16.mxu0 %v2408
        %2446 = vmatmul.mubr.bf16.gmra.mrb[0].mxu0 %v2258
        %v2447 = vpop.f32.mrb[0].mxu0
        %v2448 = vadd.f32 0.0, %v2447
        %v2449 = vpop.f32.mrb[0].mxu0
        %v2450 = vadd.f32 0.0, %v2449
        %v2451 = vpop.f32.mrb[0].mxu0
        %v2452 = vadd.f32 0.0, %v2451
        %v2453 = vpop.f32.mrb[0].mxu0
        %v2454 = vadd.f32 0.0, %v2453
        %2455 = vmatprep.mubr.bf16.mxu0 %v2411
        %2456 = vmatmul.mubr.bf16.gmra.mrb[0].mxu0 %v2260
        %v2457 = vpop.f32.mrb[0].mxu0
        %v2458 = vadd.f32 0.0, %v2457
        %v2459 = vpop.f32.mrb[0].mxu0
        %v2460 = vadd.f32 0.0, %v2459
        %v2461 = vpop.f32.mrb[0].mxu0
        %v2462 = vadd.f32 0.0, %v2461
        %v2463 = vpop.f32.mrb[0].mxu0
        %v2464 = vadd.f32 0.0, %v2463
        %2465 = vdwg.mxu0
        %v2466 = vadd.f32 %v2166, %v2448
        %v2467 = vadd.f32 %v2168, %v2450
        %v2468 = vadd.f32 %v2170, %v2452
        %v2469 = vadd.f32 %v2172, %v2454
        %v2470 = vadd.f32 %v2176, %v2458
        %v2471 = vadd.f32 %v2178, %v2460
        %v2472 = vadd.f32 %v2180, %v2462
        %v2473 = vadd.f32 %v2182, %v2464
        %s2474 = scalar_lea.vmem %s3, 48
        %v2475 = vld [vmem:[%s2474] sm:$0xf]
        %v2476 = vld [vmem:[%s2474 + $0x4] sm:$0xf]
        %v2477 = vld [vmem:[%s2474 + $0x8] sm:$0xf]
        %v2478 = vld [vmem:[%s2474 + $0xc] sm:$0xf]
        %v2483 = vunpack.c.l.b16 %v2475
        %v2484 = vunpack.c.l.b16 %v2476
        %v2485 = vunpack.c.l.b16 %v2477
        %v2486 = vunpack.c.l.b16 %v2478
        %v2487 = vpack.c.b16 %v2484, %v2483
        %v2488 = vpack.c.b16 %v2486, %v2485
        %v2490 = vsel %vm1635, %v2487, 0
        %v2493 = vsel %vm1635, %v2488, 0
        %2495 = vmatprep.subr.bf16.mxu0 %v1620
        %2496 = vmatpush1.bf16.msra.mxu0 %v1619
        %2497 = vmatprep.subr.bf16.mxu0 %v1622
        %2498 = vmatpush1.bf16.msra.mxu0 %v1621
        %2499 = vmatprep.subr.bf16.mxu0 %v1624
        %2500 = vmatpush1.bf16.msra.mxu0 %v1623
        %2501 = vmatprep.subr.bf16.mxu0 %v1626
        %2502 = vmatpush1.bf16.msra.mxu0 %v1625
        %2503 = vmatprep.subr.bf16.mxu0 0
        %2504 = vmatpush1.bf16.msra.mxu0 0
        %2505 = vmatprep.subr.bf16.mxu0 0
        %2506 = vmatpush1.bf16.msra.mxu0 0
        %2507 = vmatprep.subr.bf16.mxu0 0
        %2508 = vmatpush1.bf16.msra.mxu0 0
        %2509 = vmatprep.subr.bf16.mxu0 0
        %2510 = vmatpush1.bf16.msra.mxu0 0
        %2511 = vmatprep.subr.bf16.mxu0 0
        %2512 = vmatpush1.bf16.msra.mxu0 0
        %2513 = vmatprep.subr.bf16.mxu0 0
        %2514 = vmatpush1.bf16.msra.mxu0 0
        %2515 = vmatprep.subr.bf16.mxu0 0
        %2516 = vmatpush1.bf16.msra.mxu0 0
        %2517 = vmatprep.subr.bf16.mxu0 0
        %2518 = vmatpush1.bf16.msra.mxu0 0
        %2519 = vmatprep.subr.bf16.mxu0 0
        %2520 = vmatpush1.bf16.msra.mxu0 0
        %2521 = vmatprep.subr.bf16.mxu0 0
        %2522 = vmatpush1.bf16.msra.mxu0 0
        %2523 = vmatprep.subr.bf16.mxu0 0
        %2524 = vmatpush1.bf16.msra.mxu0 0
        %2525 = vmatprep.subr.bf16.mxu0 0
        %2526 = vmatpush1.bf16.msra.mxu0 0
        %2527 = vmatprep.mubr.bf16.mxu0 0
        %2528 = vmatmul.mubr.bf16.gmra.mrb[0].mxu0 %v2490
        %v2529 = vpop.f32.mrb[0].mxu0
        %v2530 = vadd.f32 0.0, %v2529
        %v2531 = vpop.f32.mrb[0].mxu0
        %v2532 = vadd.f32 0.0, %v2531
        %v2533 = vpop.f32.mrb[0].mxu0
        %v2534 = vadd.f32 0.0, %v2533
        %v2535 = vpop.f32.mrb[0].mxu0
        %v2536 = vadd.f32 0.0, %v2535
        %2537 = vmatprep.mubr.bf16.mxu0 0
        %2538 = vmatmul.mubr.bf16.gmra.mrb[0].mxu0 %v2493
        %v2539 = vpop.f32.mrb[0].mxu0
        %v2540 = vadd.f32 0.0, %v2539
        %v2541 = vpop.f32.mrb[0].mxu0
        %v2542 = vadd.f32 0.0, %v2541
        %v2543 = vpop.f32.mrb[0].mxu0
        %v2544 = vadd.f32 0.0, %v2543
        %v2545 = vpop.f32.mrb[0].mxu0
        %v2546 = vadd.f32 0.0, %v2545
        %2547 = vdwg.mxu0
        %v2548 = vpack.c.bf16 %v2534, %v2530
        %v2549 = vpack.c.bf16 %v2536, %v2532
        %v2550 = vpack.c.bf16 %v2544, %v2540
        %v2551 = vpack.c.bf16 %v2546, %v2542
        %s2552 = scalar_lea.vmem %s5, 576
        %v2553 = vld [vmem:[%s2552] sm:$0xff]
        %v2554 = vld [vmem:[%s2552 + $0x8] sm:$0xff]
        %v2555 = vld [vmem:[%s2552 + $0x10] sm:$0xff]
        %v2556 = vld [vmem:[%s2552 + $0x18] sm:$0xff]
        %v2557 = vld [vmem:[%s2552 + $0x20] sm:$0xff]
        %v2558 = vld [vmem:[%s2552 + $0x28] sm:$0xff]
        %v2559 = vld [vmem:[%s2552 + $0x30] sm:$0xff]
        %v2560 = vld [vmem:[%s2552 + $0x38] sm:$0xff]
        %v2561 = vld [vmem:[%s2552 + $0x40] sm:$0xff]
        %v2562 = vld [vmem:[%s2552 + $0x48] sm:$0xff]
        %v2563 = vld [vmem:[%s2552 + $0x50] sm:$0xff]
        %v2564 = vld [vmem:[%s2552 + $0x58] sm:$0xff]
        %v2565 = vld [vmem:[%s2552 + $0x60] sm:$0xff]
        %v2566 = vld [vmem:[%s2552 + $0x68] sm:$0xff]
        %v2567 = vld [vmem:[%s2552 + $0x70] sm:$0xff]
        %v2568 = vld [vmem:[%s2552 + $0x78] sm:$0xff]
        %v2569 = vld [vmem:[%s2552 + $0x80] sm:$0xff]
        %v2570 = vld [vmem:[%s2552 + $0x88] sm:$0xff]
        %v2571 = vld [vmem:[%s2552 + $0x90] sm:$0xff]
        %v2572 = vld [vmem:[%s2552 + $0x98] sm:$0xff]
        %v2573 = vld [vmem:[%s2552 + $0xa0] sm:$0xff]
        %v2574 = vld [vmem:[%s2552 + $0xa8] sm:$0xff]
        %v2575 = vld [vmem:[%s2552 + $0xb0] sm:$0xff]
        %v2576 = vld [vmem:[%s2552 + $0xb8] sm:$0xff]
        %v2601 = vunpack.c.l.b16 %v2553
        %v2602 = vunpack.c.h.b16 %v2553
        %v2603 = vunpack.c.l.b16 %v2554
        %v2604 = vunpack.c.h.b16 %v2554
        %v2605 = vunpack.c.l.b16 %v2555
        %v2606 = vunpack.c.h.b16 %v2555
        %v2607 = vunpack.c.l.b16 %v2556
        %v2608 = vunpack.c.h.b16 %v2556
        %v2609 = vunpack.c.l.b16 %v2557
        %v2610 = vunpack.c.h.b16 %v2557
        %v2611 = vunpack.c.l.b16 %v2558
        %v2612 = vunpack.c.h.b16 %v2558
        %v2613 = vunpack.c.l.b16 %v2559
        %v2614 = vunpack.c.h.b16 %v2559
        %v2615 = vunpack.c.l.b16 %v2560
        %v2616 = vunpack.c.h.b16 %v2560
        %v2617 = vunpack.c.l.b16 %v2561
        %v2618 = vunpack.c.h.b16 %v2561
        %v2619 = vunpack.c.l.b16 %v2562
        %v2620 = vunpack.c.h.b16 %v2562
        %v2621 = vunpack.c.l.b16 %v2563
        %v2622 = vunpack.c.h.b16 %v2563
        %v2623 = vunpack.c.l.b16 %v2564
        %v2624 = vunpack.c.h.b16 %v2564
        %v2625 = vunpack.c.l.b16 %v2565
        %v2626 = vunpack.c.h.b16 %v2565
        %v2627 = vunpack.c.l.b16 %v2566
        %v2628 = vunpack.c.h.b16 %v2566
        %v2629 = vunpack.c.l.b16 %v2567
        %v2630 = vunpack.c.h.b16 %v2567
        %v2631 = vunpack.c.l.b16 %v2568
        %v2632 = vunpack.c.h.b16 %v2568
        %v2633 = vunpack.c.l.b16 %v2569
        %v2634 = vunpack.c.h.b16 %v2569
        %v2635 = vunpack.c.l.b16 %v2570
        %v2636 = vunpack.c.h.b16 %v2570
        %v2637 = vunpack.c.l.b16 %v2571
        %v2638 = vunpack.c.h.b16 %v2571
        %v2639 = vunpack.c.l.b16 %v2572
        %v2640 = vunpack.c.h.b16 %v2572
        %v2641 = vunpack.c.l.b16 %v2573
        %v2642 = vunpack.c.h.b16 %v2573
        %v2643 = vunpack.c.l.b16 %v2574
        %v2644 = vunpack.c.h.b16 %v2574
        %v2645 = vunpack.c.l.b16 %v2575
        %v2646 = vunpack.c.h.b16 %v2575
        %v2647 = vunpack.c.l.b16 %v2576
        %v2648 = vunpack.c.h.b16 %v2576
        %v2649 = vpack.c.b16 %v2603, %v2601
        %v2650 = vpack.c.b16 %v2604, %v2602
        %v2651 = vpack.c.b16 %v2607, %v2605
        %v2652 = vpack.c.b16 %v2608, %v2606
        %v2653 = vpack.c.b16 %v2611, %v2609
        %v2654 = vpack.c.b16 %v2612, %v2610
        %v2655 = vpack.c.b16 %v2615, %v2613
        %v2656 = vpack.c.b16 %v2616, %v2614
        %v2657 = vpack.c.b16 %v2619, %v2617
        %v2658 = vpack.c.b16 %v2620, %v2618
        %v2659 = vpack.c.b16 %v2623, %v2621
        %v2660 = vpack.c.b16 %v2624, %v2622
        %v2661 = vpack.c.b16 %v2627, %v2625
        %v2662 = vpack.c.b16 %v2628, %v2626
        %v2663 = vpack.c.b16 %v2631, %v2629
        %v2664 = vpack.c.b16 %v2632, %v2630
        %v2665 = vpack.c.b16 %v2635, %v2633
        %v2666 = vpack.c.b16 %v2636, %v2634
        %v2667 = vpack.c.b16 %v2639, %v2637
        %v2668 = vpack.c.b16 %v2640, %v2638
        %v2669 = vpack.c.b16 %v2643, %v2641
        %v2670 = vpack.c.b16 %v2644, %v2642
        %v2671 = vpack.c.b16 %v2647, %v2645
        %v2672 = vpack.c.b16 %v2648, %v2646
        %v2698 = vsel %vm1635, %v2549, 0
        %v2701 = vsel %vm1635, %v2551, 0
        %2703 = vmatprep.subr.bf16.mxu0 %v2650
        %2704 = vmatpush1.bf16.msra.mxu0 %v2649
        %2705 = vmatprep.subr.bf16.mxu0 %v2652
        %2706 = vmatpush1.bf16.msra.mxu0 %v2651
        %2707 = vmatprep.subr.bf16.mxu0 %v2654
        %2708 = vmatpush1.bf16.msra.mxu0 %v2653
        %2709 = vmatprep.subr.bf16.mxu0 %v2656
        %2710 = vmatpush1.bf16.msra.mxu0 %v2655
        %2711 = vmatprep.subr.bf16.mxu0 %v2658
        %2712 = vmatpush1.bf16.msra.mxu0 %v2657
        %2713 = vmatprep.subr.bf16.mxu0 %v2660
        %2714 = vmatpush1.bf16.msra.mxu0 %v2659
        %2715 = vmatprep.subr.bf16.mxu0 %v2662
        %2716 = vmatpush1.bf16.msra.mxu0 %v2661
        %2717 = vmatprep.subr.bf16.mxu0 %v2664
        %2718 = vmatpush1.bf16.msra.mxu0 %v2663
        %2719 = vmatprep.subr.bf16.mxu0 %v2666
        %2720 = vmatpush1.bf16.msra.mxu0 %v2665
        %2721 = vmatprep.subr.bf16.mxu0 %v2668
        %2722 = vmatpush1.bf16.msra.mxu0 %v2667
        %2723 = vmatprep.subr.bf16.mxu0 %v2670
        %2724 = vmatpush1.bf16.msra.mxu0 %v2669
        %2725 = vmatprep.subr.bf16.mxu0 %v2672
        %2726 = vmatpush1.bf16.msra.mxu0 %v2671
        %2727 = vmatprep.subr.bf16.mxu0 0
        %2728 = vmatpush1.bf16.msra.mxu0 0
        %2729 = vmatprep.subr.bf16.mxu0 0
        %2730 = vmatpush1.bf16.msra.mxu0 0
        %2731 = vmatprep.subr.bf16.mxu0 0
        %2732 = vmatpush1.bf16.msra.mxu0 0
        %2733 = vmatprep.subr.bf16.mxu0 0
        %2734 = vmatpush1.bf16.msra.mxu0 0
        %2735 = vmatprep.mubr.bf16.mxu0 %v2698
        %2736 = vmatmul.mubr.bf16.gmra.mrb[0].mxu0 %v2548
        %v2737 = vpop.f32.mrb[0].mxu0
        %v2738 = vadd.f32 0.0, %v2737
        %v2739 = vpop.f32.mrb[0].mxu0
        %v2740 = vadd.f32 0.0, %v2739
        %v2741 = vpop.f32.mrb[0].mxu0
        %v2742 = vadd.f32 0.0, %v2741
        %v2743 = vpop.f32.mrb[0].mxu0
        %v2744 = vadd.f32 0.0, %v2743
        %2745 = vmatprep.mubr.bf16.mxu0 %v2701
        %2746 = vmatmul.mubr.bf16.gmra.mrb[0].mxu0 %v2550
        %v2747 = vpop.f32.mrb[0].mxu0
        %v2748 = vadd.f32 0.0, %v2747
        %v2749 = vpop.f32.mrb[0].mxu0
        %v2750 = vadd.f32 0.0, %v2749
        %v2751 = vpop.f32.mrb[0].mxu0
        %v2752 = vadd.f32 0.0, %v2751
        %v2753 = vpop.f32.mrb[0].mxu0
        %v2754 = vadd.f32 0.0, %v2753
        %2755 = vdwg.mxu0
        %v2756 = vadd.f32 %v2466, %v2738
        %v2757 = vadd.f32 %v2467, %v2740
        %v2758 = vadd.f32 %v2468, %v2742
        %v2759 = vadd.f32 %v2469, %v2744
        %v2760 = vadd.f32 %v2470, %v2748
        %v2761 = vadd.f32 %v2471, %v2750
        %v2762 = vadd.f32 %v2472, %v2752
        %v2763 = vadd.f32 %v2473, %v2754
        %s2764 = scalar_lea.vmem %s3, 64
        %v2765 = vld [vmem:[%s2764] sm:$0xf]
        %v2766 = vld [vmem:[%s2764 + $0x4] sm:$0xf]
        %v2767 = vld [vmem:[%s2764 + $0x8] sm:$0xf]
        %v2768 = vld [vmem:[%s2764 + $0xc] sm:$0xf]
        %v2773 = vunpack.c.l.b16 %v2765
        %v2774 = vunpack.c.l.b16 %v2766
        %v2775 = vunpack.c.l.b16 %v2767
        %v2776 = vunpack.c.l.b16 %v2768
        %v2777 = vpack.c.b16 %v2774, %v2773
        %v2778 = vpack.c.b16 %v2776, %v2775
        %v2780 = vsel %vm1635, %v2777, 0
        %v2783 = vsel %vm1635, %v2778, 0
        %2785 = vmatprep.subr.bf16.mxu0 %v1620
        %2786 = vmatpush1.bf16.msra.mxu0 %v1619
        %2787 = vmatprep.subr.bf16.mxu0 %v1622
        %2788 = vmatpush1.bf16.msra.mxu0 %v1621
        %2789 = vmatprep.subr.bf16.mxu0 %v1624
        %2790 = vmatpush1.bf16.msra.mxu0 %v1623
        %2791 = vmatprep.subr.bf16.mxu0 %v1626
        %2792 = vmatpush1.bf16.msra.mxu0 %v1625
        %2793 = vmatprep.subr.bf16.mxu0 0
        %2794 = vmatpush1.bf16.msra.mxu0 0
        %2795 = vmatprep.subr.bf16.mxu0 0
        %2796 = vmatpush1.bf16.msra.mxu0 0
        %2797 = vmatprep.subr.bf16.mxu0 0
        %2798 = vmatpush1.bf16.msra.mxu0 0
        %2799 = vmatprep.subr.bf16.mxu0 0
        %2800 = vmatpush1.bf16.msra.mxu0 0
        %2801 = vmatprep.subr.bf16.mxu0 0
        %2802 = vmatpush1.bf16.msra.mxu0 0
        %2803 = vmatprep.subr.bf16.mxu0 0
        %2804 = vmatpush1.bf16.msra.mxu0 0
        %2805 = vmatprep.subr.bf16.mxu0 0
        %2806 = vmatpush1.bf16.msra.mxu0 0
        %2807 = vmatprep.subr.bf16.mxu0 0
        %2808 = vmatpush1.bf16.msra.mxu0 0
        %2809 = vmatprep.subr.bf16.mxu0 0
        %2810 = vmatpush1.bf16.msra.mxu0 0
        %2811 = vmatprep.subr.bf16.mxu0 0
        %2812 = vmatpush1.bf16.msra.mxu0 0
        %2813 = vmatprep.subr.bf16.mxu0 0
        %2814 = vmatpush1.bf16.msra.mxu0 0
        %2815 = vmatprep.subr.bf16.mxu0 0
        %2816 = vmatpush1.bf16.msra.mxu0 0
        %2817 = vmatprep.mubr.bf16.mxu0 0
        %2818 = vmatmul.mubr.bf16.gmra.mrb[0].mxu0 %v2780
        %v2819 = vpop.f32.mrb[0].mxu0
        %v2820 = vadd.f32 0.0, %v2819
        %v2821 = vpop.f32.mrb[0].mxu0
        %v2822 = vadd.f32 0.0, %v2821
        %v2823 = vpop.f32.mrb[0].mxu0
        %v2824 = vadd.f32 0.0, %v2823
        %v2825 = vpop.f32.mrb[0].mxu0
        %v2826 = vadd.f32 0.0, %v2825
        %2827 = vmatprep.mubr.bf16.mxu0 0
        %2828 = vmatmul.mubr.bf16.gmra.mrb[0].mxu0 %v2783
        %v2829 = vpop.f32.mrb[0].mxu0
        %v2830 = vadd.f32 0.0, %v2829
        %v2831 = vpop.f32.mrb[0].mxu0
        %v2832 = vadd.f32 0.0, %v2831
        %v2833 = vpop.f32.mrb[0].mxu0
        %v2834 = vadd.f32 0.0, %v2833
        %v2835 = vpop.f32.mrb[0].mxu0
        %v2836 = vadd.f32 0.0, %v2835
        %2837 = vdwg.mxu0
        %v2838 = vpack.c.bf16 %v2824, %v2820
        %v2839 = vpack.c.bf16 %v2826, %v2822
        %v2840 = vpack.c.bf16 %v2834, %v2830
        %v2841 = vpack.c.bf16 %v2836, %v2832
        %s2842 = scalar_lea.vmem %s5, 768
        %v2843 = vld [vmem:[%s2842] sm:$0xff]
        %v2844 = vld [vmem:[%s2842 + $0x8] sm:$0xff]
        %v2845 = vld [vmem:[%s2842 + $0x10] sm:$0xff]
        %v2846 = vld [vmem:[%s2842 + $0x18] sm:$0xff]
        %v2847 = vld [vmem:[%s2842 + $0x20] sm:$0xff]
        %v2848 = vld [vmem:[%s2842 + $0x28] sm:$0xff]
        %v2849 = vld [vmem:[%s2842 + $0x30] sm:$0xff]
        %v2850 = vld [vmem:[%s2842 + $0x38] sm:$0xff]
        %v2851 = vld [vmem:[%s2842 + $0x40] sm:$0xff]
        %v2852 = vld [vmem:[%s2842 + $0x48] sm:$0xff]
        %v2853 = vld [vmem:[%s2842 + $0x50] sm:$0xff]
        %v2854 = vld [vmem:[%s2842 + $0x58] sm:$0xff]
        %v2855 = vld [vmem:[%s2842 + $0x60] sm:$0xff]
        %v2856 = vld [vmem:[%s2842 + $0x68] sm:$0xff]
        %v2857 = vld [vmem:[%s2842 + $0x70] sm:$0xff]
        %v2858 = vld [vmem:[%s2842 + $0x78] sm:$0xff]
        %v2859 = vld [vmem:[%s2842 + $0x80] sm:$0xff]
        %v2860 = vld [vmem:[%s2842 + $0x88] sm:$0xff]
        %v2861 = vld [vmem:[%s2842 + $0x90] sm:$0xff]
        %v2862 = vld [vmem:[%s2842 + $0x98] sm:$0xff]
        %v2863 = vld [vmem:[%s2842 + $0xa0] sm:$0xff]
        %v2864 = vld [vmem:[%s2842 + $0xa8] sm:$0xff]
        %v2865 = vld [vmem:[%s2842 + $0xb0] sm:$0xff]
        %v2866 = vld [vmem:[%s2842 + $0xb8] sm:$0xff]
        %v2891 = vunpack.c.l.b16 %v2843
        %v2892 = vunpack.c.h.b16 %v2843
        %v2893 = vunpack.c.l.b16 %v2844
        %v2894 = vunpack.c.h.b16 %v2844
        %v2895 = vunpack.c.l.b16 %v2845
        %v2896 = vunpack.c.h.b16 %v2845
        %v2897 = vunpack.c.l.b16 %v2846
        %v2898 = vunpack.c.h.b16 %v2846
        %v2899 = vunpack.c.l.b16 %v2847
        %v2900 = vunpack.c.h.b16 %v2847
        %v2901 = vunpack.c.l.b16 %v2848
        %v2902 = vunpack.c.h.b16 %v2848
        %v2903 = vunpack.c.l.b16 %v2849
        %v2904 = vunpack.c.h.b16 %v2849
        %v2905 = vunpack.c.l.b16 %v2850
        %v2906 = vunpack.c.h.b16 %v2850
        %v2907 = vunpack.c.l.b16 %v2851
        %v2908 = vunpack.c.h.b16 %v2851
        %v2909 = vunpack.c.l.b16 %v2852
        %v2910 = vunpack.c.h.b16 %v2852
        %v2911 = vunpack.c.l.b16 %v2853
        %v2912 = vunpack.c.h.b16 %v2853
        %v2913 = vunpack.c.l.b16 %v2854
        %v2914 = vunpack.c.h.b16 %v2854
        %v2915 = vunpack.c.l.b16 %v2855
        %v2916 = vunpack.c.h.b16 %v2855
        %v2917 = vunpack.c.l.b16 %v2856
        %v2918 = vunpack.c.h.b16 %v2856
        %v2919 = vunpack.c.l.b16 %v2857
        %v2920 = vunpack.c.h.b16 %v2857
        %v2921 = vunpack.c.l.b16 %v2858
        %v2922 = vunpack.c.h.b16 %v2858
        %v2923 = vunpack.c.l.b16 %v2859
        %v2924 = vunpack.c.h.b16 %v2859
        %v2925 = vunpack.c.l.b16 %v2860
        %v2926 = vunpack.c.h.b16 %v2860
        %v2927 = vunpack.c.l.b16 %v2861
        %v2928 = vunpack.c.h.b16 %v2861
        %v2929 = vunpack.c.l.b16 %v2862
        %v2930 = vunpack.c.h.b16 %v2862
        %v2931 = vunpack.c.l.b16 %v2863
        %v2932 = vunpack.c.h.b16 %v2863
        %v2933 = vunpack.c.l.b16 %v2864
        %v2934 = vunpack.c.h.b16 %v2864
        %v2935 = vunpack.c.l.b16 %v2865
        %v2936 = vunpack.c.h.b16 %v2865
        %v2937 = vunpack.c.l.b16 %v2866
        %v2938 = vunpack.c.h.b16 %v2866
        %v2939 = vpack.c.b16 %v2893, %v2891
        %v2940 = vpack.c.b16 %v2894, %v2892
        %v2941 = vpack.c.b16 %v2897, %v2895
        %v2942 = vpack.c.b16 %v2898, %v2896
        %v2943 = vpack.c.b16 %v2901, %v2899
        %v2944 = vpack.c.b16 %v2902, %v2900
        %v2945 = vpack.c.b16 %v2905, %v2903
        %v2946 = vpack.c.b16 %v2906, %v2904
        %v2947 = vpack.c.b16 %v2909, %v2907
        %v2948 = vpack.c.b16 %v2910, %v2908
        %v2949 = vpack.c.b16 %v2913, %v2911
        %v2950 = vpack.c.b16 %v2914, %v2912
        %v2951 = vpack.c.b16 %v2917, %v2915
        %v2952 = vpack.c.b16 %v2918, %v2916
        %v2953 = vpack.c.b16 %v2921, %v2919
        %v2954 = vpack.c.b16 %v2922, %v2920
        %v2955 = vpack.c.b16 %v2925, %v2923
        %v2956 = vpack.c.b16 %v2926, %v2924
        %v2957 = vpack.c.b16 %v2929, %v2927
        %v2958 = vpack.c.b16 %v2930, %v2928
        %v2959 = vpack.c.b16 %v2933, %v2931
        %v2960 = vpack.c.b16 %v2934, %v2932
        %v2961 = vpack.c.b16 %v2937, %v2935
        %v2962 = vpack.c.b16 %v2938, %v2936
        %v2988 = vsel %vm1635, %v2839, 0
        %v2991 = vsel %vm1635, %v2841, 0
        %2993 = vmatprep.subr.bf16.mxu0 %v2940
        %2994 = vmatpush1.bf16.msra.mxu0 %v2939
        %2995 = vmatprep.subr.bf16.mxu0 %v2942
        %2996 = vmatpush1.bf16.msra.mxu0 %v2941
        %2997 = vmatprep.subr.bf16.mxu0 %v2944
        %2998 = vmatpush1.bf16.msra.mxu0 %v2943
        %2999 = vmatprep.subr.bf16.mxu0 %v2946
        %3000 = vmatpush1.bf16.msra.mxu0 %v2945
        %3001 = vmatprep.subr.bf16.mxu0 %v2948
        %3002 = vmatpush1.bf16.msra.mxu0 %v2947
        %3003 = vmatprep.subr.bf16.mxu0 %v2950
        %3004 = vmatpush1.bf16.msra.mxu0 %v2949
        %3005 = vmatprep.subr.bf16.mxu0 %v2952
        %3006 = vmatpush1.bf16.msra.mxu0 %v2951
        %3007 = vmatprep.subr.bf16.mxu0 %v2954
        %3008 = vmatpush1.bf16.msra.mxu0 %v2953
        %3009 = vmatprep.subr.bf16.mxu0 %v2956
        %3010 = vmatpush1.bf16.msra.mxu0 %v2955
        %3011 = vmatprep.subr.bf16.mxu0 %v2958
        %3012 = vmatpush1.bf16.msra.mxu0 %v2957
        %3013 = vmatprep.subr.bf16.mxu0 %v2960
        %3014 = vmatpush1.bf16.msra.mxu0 %v2959
        %3015 = vmatprep.subr.bf16.mxu0 %v2962
        %3016 = vmatpush1.bf16.msra.mxu0 %v2961
        %3017 = vmatprep.subr.bf16.mxu0 0
        %3018 = vmatpush1.bf16.msra.mxu0 0
        %3019 = vmatprep.subr.bf16.mxu0 0
        %3020 = vmatpush1.bf16.msra.mxu0 0
        %3021 = vmatprep.subr.bf16.mxu0 0
        %3022 = vmatpush1.bf16.msra.mxu0 0
        %3023 = vmatprep.subr.bf16.mxu0 0
        %3024 = vmatpush1.bf16.msra.mxu0 0
        %3025 = vmatprep.mubr.bf16.mxu0 %v2988
        %3026 = vmatmul.mubr.bf16.gmra.mrb[0].mxu0 %v2838
        %v3027 = vpop.f32.mrb[0].mxu0
        %v3028 = vadd.f32 0.0, %v3027
        %v3029 = vpop.f32.mrb[0].mxu0
        %v3030 = vadd.f32 0.0, %v3029
        %v3031 = vpop.f32.mrb[0].mxu0
        %v3032 = vadd.f32 0.0, %v3031
        %v3033 = vpop.f32.mrb[0].mxu0
        %v3034 = vadd.f32 0.0, %v3033
        %3035 = vmatprep.mubr.bf16.mxu0 %v2991
        %3036 = vmatmul.mubr.bf16.gmra.mrb[0].mxu0 %v2840
        %v3037 = vpop.f32.mrb[0].mxu0
        %v3038 = vadd.f32 0.0, %v3037
        %v3039 = vpop.f32.mrb[0].mxu0
        %v3040 = vadd.f32 0.0, %v3039
        %v3041 = vpop.f32.mrb[0].mxu0
        %v3042 = vadd.f32 0.0, %v3041
        %v3043 = vpop.f32.mrb[0].mxu0
        %v3044 = vadd.f32 0.0, %v3043
        %3045 = vdwg.mxu0
        %v3046 = vadd.f32 %v2756, %v3028
        %v3047 = vadd.f32 %v2757, %v3030
        %v3048 = vadd.f32 %v2758, %v3032
        %v3049 = vadd.f32 %v2759, %v3034
        %v3050 = vadd.f32 %v2760, %v3038
        %v3051 = vadd.f32 %v2761, %v3040
        %v3052 = vadd.f32 %v2762, %v3042
        %v3053 = vadd.f32 %v2763, %v3044
        %s3054 = scalar_lea.vmem %s3, 80
        %v3055 = vld [vmem:[%s3054] sm:$0xf]
        %v3056 = vld [vmem:[%s3054 + $0x4] sm:$0xf]
        %v3057 = vld [vmem:[%s3054 + $0x8] sm:$0xf]
        %v3058 = vld [vmem:[%s3054 + $0xc] sm:$0xf]
        %v3063 = vunpack.c.l.b16 %v3055
        %v3064 = vunpack.c.l.b16 %v3056
        %v3065 = vunpack.c.l.b16 %v3057
        %v3066 = vunpack.c.l.b16 %v3058
        %v3067 = vpack.c.b16 %v3064, %v3063
        %v3068 = vpack.c.b16 %v3066, %v3065
        %v3070 = vsel %vm1635, %v3067, 0
        %v3073 = vsel %vm1635, %v3068, 0
        %3075 = vmatprep.subr.bf16.mxu0 %v1620
        %3076 = vmatpush1.bf16.msra.mxu0 %v1619
        %3077 = vmatprep.subr.bf16.mxu0 %v1622
        %3078 = vmatpush1.bf16.msra.mxu0 %v1621
        %3079 = vmatprep.subr.bf16.mxu0 %v1624
        %3080 = vmatpush1.bf16.msra.mxu0 %v1623
        %3081 = vmatprep.subr.bf16.mxu0 %v1626
        %3082 = vmatpush1.bf16.msra.mxu0 %v1625
        %3083 = vmatprep.subr.bf16.mxu0 0
        %3084 = vmatpush1.bf16.msra.mxu0 0
        %3085 = vmatprep.subr.bf16.mxu0 0
        %3086 = vmatpush1.bf16.msra.mxu0 0
        %3087 = vmatprep.subr.bf16.mxu0 0
        %3088 = vmatpush1.bf16.msra.mxu0 0
        %3089 = vmatprep.subr.bf16.mxu0 0
        %3090 = vmatpush1.bf16.msra.mxu0 0
        %3091 = vmatprep.subr.bf16.mxu0 0
        %3092 = vmatpush1.bf16.msra.mxu0 0
        %3093 = vmatprep.subr.bf16.mxu0 0
        %3094 = vmatpush1.bf16.msra.mxu0 0
        %3095 = vmatprep.subr.bf16.mxu0 0
        %3096 = vmatpush1.bf16.msra.mxu0 0
        %3097 = vmatprep.subr.bf16.mxu0 0
        %3098 = vmatpush1.bf16.msra.mxu0 0
        %3099 = vmatprep.subr.bf16.mxu0 0
        %3100 = vmatpush1.bf16.msra.mxu0 0
        %3101 = vmatprep.subr.bf16.mxu0 0
        %3102 = vmatpush1.bf16.msra.mxu0 0
        %3103 = vmatprep.subr.bf16.mxu0 0
        %3104 = vmatpush1.bf16.msra.mxu0 0
        %3105 = vmatprep.subr.bf16.mxu0 0
        %3106 = vmatpush1.bf16.msra.mxu0 0
        %3107 = vmatprep.mubr.bf16.mxu0 0
        %3108 = vmatmul.mubr.bf16.gmra.mrb[0].mxu0 %v3070
        %v3109 = vpop.f32.mrb[0].mxu0
        %v3110 = vadd.f32 0.0, %v3109
        %v3111 = vpop.f32.mrb[0].mxu0
        %v3112 = vadd.f32 0.0, %v3111
        %v3113 = vpop.f32.mrb[0].mxu0
        %v3114 = vadd.f32 0.0, %v3113
        %v3115 = vpop.f32.mrb[0].mxu0
        %v3116 = vadd.f32 0.0, %v3115
        %3117 = vmatprep.mubr.bf16.mxu0 0
        %3118 = vmatmul.mubr.bf16.gmra.mrb[0].mxu0 %v3073
        %v3119 = vpop.f32.mrb[0].mxu0
        %v3120 = vadd.f32 0.0, %v3119
        %v3121 = vpop.f32.mrb[0].mxu0
        %v3122 = vadd.f32 0.0, %v3121
        %v3123 = vpop.f32.mrb[0].mxu0
        %v3124 = vadd.f32 0.0, %v3123
        %v3125 = vpop.f32.mrb[0].mxu0
        %v3126 = vadd.f32 0.0, %v3125
        %3127 = vdwg.mxu0
        %v3128 = vpack.c.bf16 %v3114, %v3110
        %v3129 = vpack.c.bf16 %v3116, %v3112
        %v3130 = vpack.c.bf16 %v3124, %v3120
        %v3131 = vpack.c.bf16 %v3126, %v3122
        %s3132 = scalar_lea.vmem %s5, 960
        %v3133 = vld [vmem:[%s3132] sm:$0xff]
        %v3134 = vld [vmem:[%s3132 + $0x8] sm:$0xff]
        %v3135 = vld [vmem:[%s3132 + $0x10] sm:$0xff]
        %v3136 = vld [vmem:[%s3132 + $0x18] sm:$0xff]
        %v3137 = vld [vmem:[%s3132 + $0x20] sm:$0xff]
        %v3138 = vld [vmem:[%s3132 + $0x28] sm:$0xff]
        %v3139 = vld [vmem:[%s3132 + $0x30] sm:$0xff]
        %v3140 = vld [vmem:[%s3132 + $0x38] sm:$0xff]
        %v3141 = vld [vmem:[%s3132 + $0x40] sm:$0xff]
        %v3142 = vld [vmem:[%s3132 + $0x48] sm:$0xff]
        %v3143 = vld [vmem:[%s3132 + $0x50] sm:$0xff]
        %v3144 = vld [vmem:[%s3132 + $0x58] sm:$0xff]
        %v3145 = vld [vmem:[%s3132 + $0x60] sm:$0xff]
        %v3146 = vld [vmem:[%s3132 + $0x68] sm:$0xff]
        %v3147 = vld [vmem:[%s3132 + $0x70] sm:$0xff]
        %v3148 = vld [vmem:[%s3132 + $0x78] sm:$0xff]
        %v3149 = vld [vmem:[%s3132 + $0x80] sm:$0xff]
        %v3150 = vld [vmem:[%s3132 + $0x88] sm:$0xff]
        %v3151 = vld [vmem:[%s3132 + $0x90] sm:$0xff]
        %v3152 = vld [vmem:[%s3132 + $0x98] sm:$0xff]
        %v3153 = vld [vmem:[%s3132 + $0xa0] sm:$0xff]
        %v3154 = vld [vmem:[%s3132 + $0xa8] sm:$0xff]
        %v3155 = vld [vmem:[%s3132 + $0xb0] sm:$0xff]
        %v3156 = vld [vmem:[%s3132 + $0xb8] sm:$0xff]
        %v3181 = vunpack.c.l.b16 %v3133
        %v3182 = vunpack.c.h.b16 %v3133
        %v3183 = vunpack.c.l.b16 %v3134
        %v3184 = vunpack.c.h.b16 %v3134
        %v3185 = vunpack.c.l.b16 %v3135
        %v3186 = vunpack.c.h.b16 %v3135
        %v3187 = vunpack.c.l.b16 %v3136
        %v3188 = vunpack.c.h.b16 %v3136
        %v3189 = vunpack.c.l.b16 %v3137
        %v3190 = vunpack.c.h.b16 %v3137
        %v3191 = vunpack.c.l.b16 %v3138
        %v3192 = vunpack.c.h.b16 %v3138
        %v3193 = vunpack.c.l.b16 %v3139
        %v3194 = vunpack.c.h.b16 %v3139
        %v3195 = vunpack.c.l.b16 %v3140
        %v3196 = vunpack.c.h.b16 %v3140
        %v3197 = vunpack.c.l.b16 %v3141
        %v3198 = vunpack.c.h.b16 %v3141
        %v3199 = vunpack.c.l.b16 %v3142
        %v3200 = vunpack.c.h.b16 %v3142
        %v3201 = vunpack.c.l.b16 %v3143
        %v3202 = vunpack.c.h.b16 %v3143
        %v3203 = vunpack.c.l.b16 %v3144
        %v3204 = vunpack.c.h.b16 %v3144
        %v3205 = vunpack.c.l.b16 %v3145
        %v3206 = vunpack.c.h.b16 %v3145
        %v3207 = vunpack.c.l.b16 %v3146
        %v3208 = vunpack.c.h.b16 %v3146
        %v3209 = vunpack.c.l.b16 %v3147
        %v3210 = vunpack.c.h.b16 %v3147
        %v3211 = vunpack.c.l.b16 %v3148
        %v3212 = vunpack.c.h.b16 %v3148
        %v3213 = vunpack.c.l.b16 %v3149
        %v3214 = vunpack.c.h.b16 %v3149
        %v3215 = vunpack.c.l.b16 %v3150
        %v3216 = vunpack.c.h.b16 %v3150
        %v3217 = vunpack.c.l.b16 %v3151
        %v3218 = vunpack.c.h.b16 %v3151
        %v3219 = vunpack.c.l.b16 %v3152
        %v3220 = vunpack.c.h.b16 %v3152
        %v3221 = vunpack.c.l.b16 %v3153
        %v3222 = vunpack.c.h.b16 %v3153
        %v3223 = vunpack.c.l.b16 %v3154
        %v3224 = vunpack.c.h.b16 %v3154
        %v3225 = vunpack.c.l.b16 %v3155
        %v3226 = vunpack.c.h.b16 %v3155
        %v3227 = vunpack.c.l.b16 %v3156
        %v3228 = vunpack.c.h.b16 %v3156
        %v3229 = vpack.c.b16 %v3183, %v3181
        %v3230 = vpack.c.b16 %v3184, %v3182
        %v3231 = vpack.c.b16 %v3187, %v3185
        %v3232 = vpack.c.b16 %v3188, %v3186
        %v3233 = vpack.c.b16 %v3191, %v3189
        %v3234 = vpack.c.b16 %v3192, %v3190
        %v3235 = vpack.c.b16 %v3195, %v3193
        %v3236 = vpack.c.b16 %v3196, %v3194
        %v3237 = vpack.c.b16 %v3199, %v3197
        %v3238 = vpack.c.b16 %v3200, %v3198
        %v3239 = vpack.c.b16 %v3203, %v3201
        %v3240 = vpack.c.b16 %v3204, %v3202
        %v3241 = vpack.c.b16 %v3207, %v3205
        %v3242 = vpack.c.b16 %v3208, %v3206
        %v3243 = vpack.c.b16 %v3211, %v3209
        %v3244 = vpack.c.b16 %v3212, %v3210
        %v3245 = vpack.c.b16 %v3215, %v3213
        %v3246 = vpack.c.b16 %v3216, %v3214
        %v3247 = vpack.c.b16 %v3219, %v3217
        %v3248 = vpack.c.b16 %v3220, %v3218
        %v3249 = vpack.c.b16 %v3223, %v3221
        %v3250 = vpack.c.b16 %v3224, %v3222
        %v3251 = vpack.c.b16 %v3227, %v3225
        %v3252 = vpack.c.b16 %v3228, %v3226
        %v3278 = vsel %vm1635, %v3129, 0
        %v3281 = vsel %vm1635, %v3131, 0
        %3283 = vmatprep.subr.bf16.mxu0 %v3230
        %3284 = vmatpush1.bf16.msra.mxu0 %v3229
        %3285 = vmatprep.subr.bf16.mxu0 %v3232
        %3286 = vmatpush1.bf16.msra.mxu0 %v3231
        %3287 = vmatprep.subr.bf16.mxu0 %v3234
        %3288 = vmatpush1.bf16.msra.mxu0 %v3233
        %3289 = vmatprep.subr.bf16.mxu0 %v3236
        %3290 = vmatpush1.bf16.msra.mxu0 %v3235
        %3291 = vmatprep.subr.bf16.mxu0 %v3238
        %3292 = vmatpush1.bf16.msra.mxu0 %v3237
        %3293 = vmatprep.subr.bf16.mxu0 %v3240
        %3294 = vmatpush1.bf16.msra.mxu0 %v3239
        %3295 = vmatprep.subr.bf16.mxu0 %v3242
        %3296 = vmatpush1.bf16.msra.mxu0 %v3241
        %3297 = vmatprep.subr.bf16.mxu0 %v3244
        %3298 = vmatpush1.bf16.msra.mxu0 %v3243
        %3299 = vmatprep.subr.bf16.mxu0 %v3246
        %3300 = vmatpush1.bf16.msra.mxu0 %v3245
        %3301 = vmatprep.subr.bf16.mxu0 %v3248
        %3302 = vmatpush1.bf16.msra.mxu0 %v3247
        %3303 = vmatprep.subr.bf16.mxu0 %v3250
        %3304 = vmatpush1.bf16.msra.mxu0 %v3249
        %3305 = vmatprep.subr.bf16.mxu0 %v3252
        %3306 = vmatpush1.bf16.msra.mxu0 %v3251
        %3307 = vmatprep.subr.bf16.mxu0 0
        %3308 = vmatpush1.bf16.msra.mxu0 0
        %3309 = vmatprep.subr.bf16.mxu0 0
        %3310 = vmatpush1.bf16.msra.mxu0 0
        %3311 = vmatprep.subr.bf16.mxu0 0
        %3312 = vmatpush1.bf16.msra.mxu0 0
        %3313 = vmatprep.subr.bf16.mxu0 0
        %3314 = vmatpush1.bf16.msra.mxu0 0
        %3315 = vmatprep.mubr.bf16.mxu0 %v3278
        %3316 = vmatmul.mubr.bf16.gmra.mrb[0].mxu0 %v3128
        %v3317 = vpop.f32.mrb[0].mxu0
        %v3318 = vadd.f32 0.0, %v3317
        %v3319 = vpop.f32.mrb[0].mxu0
        %v3320 = vadd.f32 0.0, %v3319
        %v3321 = vpop.f32.mrb[0].mxu0
        %v3322 = vadd.f32 0.0, %v3321
        %v3323 = vpop.f32.mrb[0].mxu0
        %v3324 = vadd.f32 0.0, %v3323
        %3325 = vmatprep.mubr.bf16.mxu0 %v3281
        %3326 = vmatmul.mubr.bf16.gmra.mrb[0].mxu0 %v3130
        %v3327 = vpop.f32.mrb[0].mxu0
        %v3328 = vadd.f32 0.0, %v3327
        %v3329 = vpop.f32.mrb[0].mxu0
        %v3330 = vadd.f32 0.0, %v3329
        %v3331 = vpop.f32.mrb[0].mxu0
        %v3332 = vadd.f32 0.0, %v3331
        %v3333 = vpop.f32.mrb[0].mxu0
        %v3334 = vadd.f32 0.0, %v3333
        %3335 = vdwg.mxu0
        %v3336 = vadd.f32 %v3046, %v3318
        %v3337 = vadd.f32 %v3047, %v3320
        %v3338 = vadd.f32 %v3048, %v3322
        %v3339 = vadd.f32 %v3049, %v3324
        %v3340 = vadd.f32 %v3050, %v3328
        %v3341 = vadd.f32 %v3051, %v3330
        %v3342 = vadd.f32 %v3052, %v3332
        %v3343 = vadd.f32 %v3053, %v3334
        %s3344 = scalar_lea.vmem %s3, 96
        %v3345 = vld [vmem:[%s3344] sm:$0xf]
        %v3346 = vld [vmem:[%s3344 + $0x4] sm:$0xf]
        %v3347 = vld [vmem:[%s3344 + $0x8] sm:$0xf]
        %v3348 = vld [vmem:[%s3344 + $0xc] sm:$0xf]
        %v3353 = vunpack.c.l.b16 %v3345
        %v3354 = vunpack.c.l.b16 %v3346
        %v3355 = vunpack.c.l.b16 %v3347
        %v3356 = vunpack.c.l.b16 %v3348
        %v3357 = vpack.c.b16 %v3354, %v3353
        %v3358 = vpack.c.b16 %v3356, %v3355
        %v3360 = vsel %vm1635, %v3357, 0
        %v3363 = vsel %vm1635, %v3358, 0
        %3365 = vmatprep.subr.bf16.mxu0 %v1620
        %3366 = vmatpush1.bf16.msra.mxu0 %v1619
        %3367 = vmatprep.subr.bf16.mxu0 %v1622
        %3368 = vmatpush1.bf16.msra.mxu0 %v1621
        %3369 = vmatprep.subr.bf16.mxu0 %v1624
        %3370 = vmatpush1.bf16.msra.mxu0 %v1623
        %3371 = vmatprep.subr.bf16.mxu0 %v1626
        %3372 = vmatpush1.bf16.msra.mxu0 %v1625
        %3373 = vmatprep.subr.bf16.mxu0 0
        %3374 = vmatpush1.bf16.msra.mxu0 0
        %3375 = vmatprep.subr.bf16.mxu0 0
        %3376 = vmatpush1.bf16.msra.mxu0 0
        %3377 = vmatprep.subr.bf16.mxu0 0
        %3378 = vmatpush1.bf16.msra.mxu0 0
        %3379 = vmatprep.subr.bf16.mxu0 0
        %3380 = vmatpush1.bf16.msra.mxu0 0
        %3381 = vmatprep.subr.bf16.mxu0 0
        %3382 = vmatpush1.bf16.msra.mxu0 0
        %3383 = vmatprep.subr.bf16.mxu0 0
        %3384 = vmatpush1.bf16.msra.mxu0 0
        %3385 = vmatprep.subr.bf16.mxu0 0
        %3386 = vmatpush1.bf16.msra.mxu0 0
        %3387 = vmatprep.subr.bf16.mxu0 0
        %3388 = vmatpush1.bf16.msra.mxu0 0
        %3389 = vmatprep.subr.bf16.mxu0 0
        %3390 = vmatpush1.bf16.msra.mxu0 0
        %3391 = vmatprep.subr.bf16.mxu0 0
        %3392 = vmatpush1.bf16.msra.mxu0 0
        %3393 = vmatprep.subr.bf16.mxu0 0
        %3394 = vmatpush1.bf16.msra.mxu0 0
        %3395 = vmatprep.subr.bf16.mxu0 0
        %3396 = vmatpush1.bf16.msra.mxu0 0
        %3397 = vmatprep.mubr.bf16.mxu0 0
        %3398 = vmatmul.mubr.bf16.gmra.mrb[0].mxu0 %v3360
        %v3399 = vpop.f32.mrb[0].mxu0
        %v3400 = vadd.f32 0.0, %v3399
        %v3401 = vpop.f32.mrb[0].mxu0
        %v3402 = vadd.f32 0.0, %v3401
        %v3403 = vpop.f32.mrb[0].mxu0
        %v3404 = vadd.f32 0.0, %v3403
        %v3405 = vpop.f32.mrb[0].mxu0
        %v3406 = vadd.f32 0.0, %v3405
        %3407 = vmatprep.mubr.bf16.mxu0 0
        %3408 = vmatmul.mubr.bf16.gmra.mrb[0].mxu0 %v3363
        %v3409 = vpop.f32.mrb[0].mxu0
        %v3410 = vadd.f32 0.0, %v3409
        %v3411 = vpop.f32.mrb[0].mxu0
        %v3412 = vadd.f32 0.0, %v3411
        %v3413 = vpop.f32.mrb[0].mxu0
        %v3414 = vadd.f32 0.0, %v3413
        %v3415 = vpop.f32.mrb[0].mxu0
        %v3416 = vadd.f32 0.0, %v3415
        %3417 = vdwg.mxu0
        %v3418 = vpack.c.bf16 %v3404, %v3400
        %v3419 = vpack.c.bf16 %v3406, %v3402
        %v3420 = vpack.c.bf16 %v3414, %v3410
        %v3421 = vpack.c.bf16 %v3416, %v3412
        %s3422 = scalar_lea.vmem %s5, 1152
        %v3423 = vld [vmem:[%s3422] sm:$0xff]
        %v3424 = vld [vmem:[%s3422 + $0x8] sm:$0xff]
        %v3425 = vld [vmem:[%s3422 + $0x10] sm:$0xff]
        %v3426 = vld [vmem:[%s3422 + $0x18] sm:$0xff]
        %v3427 = vld [vmem:[%s3422 + $0x20] sm:$0xff]
        %v3428 = vld [vmem:[%s3422 + $0x28] sm:$0xff]
        %v3429 = vld [vmem:[%s3422 + $0x30] sm:$0xff]
        %v3430 = vld [vmem:[%s3422 + $0x38] sm:$0xff]
        %v3431 = vld [vmem:[%s3422 + $0x40] sm:$0xff]
        %v3432 = vld [vmem:[%s3422 + $0x48] sm:$0xff]
        %v3433 = vld [vmem:[%s3422 + $0x50] sm:$0xff]
        %v3434 = vld [vmem:[%s3422 + $0x58] sm:$0xff]
        %v3435 = vld [vmem:[%s3422 + $0x60] sm:$0xff]
        %v3436 = vld [vmem:[%s3422 + $0x68] sm:$0xff]
        %v3437 = vld [vmem:[%s3422 + $0x70] sm:$0xff]
        %v3438 = vld [vmem:[%s3422 + $0x78] sm:$0xff]
        %v3439 = vld [vmem:[%s3422 + $0x80] sm:$0xff]
        %v3440 = vld [vmem:[%s3422 + $0x88] sm:$0xff]
        %v3441 = vld [vmem:[%s3422 + $0x90] sm:$0xff]
        %v3442 = vld [vmem:[%s3422 + $0x98] sm:$0xff]
        %v3443 = vld [vmem:[%s3422 + $0xa0] sm:$0xff]
        %v3444 = vld [vmem:[%s3422 + $0xa8] sm:$0xff]
        %v3445 = vld [vmem:[%s3422 + $0xb0] sm:$0xff]
        %v3446 = vld [vmem:[%s3422 + $0xb8] sm:$0xff]
        %v3471 = vunpack.c.l.b16 %v3423
        %v3472 = vunpack.c.h.b16 %v3423
        %v3473 = vunpack.c.l.b16 %v3424
        %v3474 = vunpack.c.h.b16 %v3424
        %v3475 = vunpack.c.l.b16 %v3425
        %v3476 = vunpack.c.h.b16 %v3425
        %v3477 = vunpack.c.l.b16 %v3426
        %v3478 = vunpack.c.h.b16 %v3426
        %v3479 = vunpack.c.l.b16 %v3427
        %v3480 = vunpack.c.h.b16 %v3427
        %v3481 = vunpack.c.l.b16 %v3428
        %v3482 = vunpack.c.h.b16 %v3428
        %v3483 = vunpack.c.l.b16 %v3429
        %v3484 = vunpack.c.h.b16 %v3429
        %v3485 = vunpack.c.l.b16 %v3430
        %v3486 = vunpack.c.h.b16 %v3430
        %v3487 = vunpack.c.l.b16 %v3431
        %v3488 = vunpack.c.h.b16 %v3431
        %v3489 = vunpack.c.l.b16 %v3432
        %v3490 = vunpack.c.h.b16 %v3432
        %v3491 = vunpack.c.l.b16 %v3433
        %v3492 = vunpack.c.h.b16 %v3433
        %v3493 = vunpack.c.l.b16 %v3434
        %v3494 = vunpack.c.h.b16 %v3434
        %v3495 = vunpack.c.l.b16 %v3435
        %v3496 = vunpack.c.h.b16 %v3435
        %v3497 = vunpack.c.l.b16 %v3436
        %v3498 = vunpack.c.h.b16 %v3436
        %v3499 = vunpack.c.l.b16 %v3437
        %v3500 = vunpack.c.h.b16 %v3437
        %v3501 = vunpack.c.l.b16 %v3438
        %v3502 = vunpack.c.h.b16 %v3438
        %v3503 = vunpack.c.l.b16 %v3439
        %v3504 = vunpack.c.h.b16 %v3439
        %v3505 = vunpack.c.l.b16 %v3440
        %v3506 = vunpack.c.h.b16 %v3440
        %v3507 = vunpack.c.l.b16 %v3441
        %v3508 = vunpack.c.h.b16 %v3441
        %v3509 = vunpack.c.l.b16 %v3442
        %v3510 = vunpack.c.h.b16 %v3442
        %v3511 = vunpack.c.l.b16 %v3443
        %v3512 = vunpack.c.h.b16 %v3443
        %v3513 = vunpack.c.l.b16 %v3444
        %v3514 = vunpack.c.h.b16 %v3444
        %v3515 = vunpack.c.l.b16 %v3445
        %v3516 = vunpack.c.h.b16 %v3445
        %v3517 = vunpack.c.l.b16 %v3446
        %v3518 = vunpack.c.h.b16 %v3446
        %v3519 = vpack.c.b16 %v3473, %v3471
        %v3520 = vpack.c.b16 %v3474, %v3472
        %v3521 = vpack.c.b16 %v3477, %v3475
        %v3522 = vpack.c.b16 %v3478, %v3476
        %v3523 = vpack.c.b16 %v3481, %v3479
        %v3524 = vpack.c.b16 %v3482, %v3480
        %v3525 = vpack.c.b16 %v3485, %v3483
        %v3526 = vpack.c.b16 %v3486, %v3484
        %v3527 = vpack.c.b16 %v3489, %v3487
        %v3528 = vpack.c.b16 %v3490, %v3488
        %v3529 = vpack.c.b16 %v3493, %v3491
        %v3530 = vpack.c.b16 %v3494, %v3492
        %v3531 = vpack.c.b16 %v3497, %v3495
        %v3532 = vpack.c.b16 %v3498, %v3496
        %v3533 = vpack.c.b16 %v3501, %v3499
        %v3534 = vpack.c.b16 %v3502, %v3500
        %v3535 = vpack.c.b16 %v3505, %v3503
        %v3536 = vpack.c.b16 %v3506, %v3504
        %v3537 = vpack.c.b16 %v3509, %v3507
        %v3538 = vpack.c.b16 %v3510, %v3508
        %v3539 = vpack.c.b16 %v3513, %v3511
        %v3540 = vpack.c.b16 %v3514, %v3512
        %v3541 = vpack.c.b16 %v3517, %v3515
        %v3542 = vpack.c.b16 %v3518, %v3516
        %v3568 = vsel %vm1635, %v3419, 0
        %v3571 = vsel %vm1635, %v3421, 0
        %3573 = vmatprep.subr.bf16.mxu0 %v3520
        %3574 = vmatpush1.bf16.msra.mxu0 %v3519
        %3575 = vmatprep.subr.bf16.mxu0 %v3522
        %3576 = vmatpush1.bf16.msra.mxu0 %v3521
        %3577 = vmatprep.subr.bf16.mxu0 %v3524
        %3578 = vmatpush1.bf16.msra.mxu0 %v3523
        %3579 = vmatprep.subr.bf16.mxu0 %v3526
        %3580 = vmatpush1.bf16.msra.mxu0 %v3525
        %3581 = vmatprep.subr.bf16.mxu0 %v3528
        %3582 = vmatpush1.bf16.msra.mxu0 %v3527
        %3583 = vmatprep.subr.bf16.mxu0 %v3530
        %3584 = vmatpush1.bf16.msra.mxu0 %v3529
        %3585 = vmatprep.subr.bf16.mxu0 %v3532
        %3586 = vmatpush1.bf16.msra.mxu0 %v3531
        %3587 = vmatprep.subr.bf16.mxu0 %v3534
        %3588 = vmatpush1.bf16.msra.mxu0 %v3533
        %3589 = vmatprep.subr.bf16.mxu0 %v3536
        %3590 = vmatpush1.bf16.msra.mxu0 %v3535
        %3591 = vmatprep.subr.bf16.mxu0 %v3538
        %3592 = vmatpush1.bf16.msra.mxu0 %v3537
        %3593 = vmatprep.subr.bf16.mxu0 %v3540
        %3594 = vmatpush1.bf16.msra.mxu0 %v3539
        %3595 = vmatprep.subr.bf16.mxu0 %v3542
        %3596 = vmatpush1.bf16.msra.mxu0 %v3541
        %3597 = vmatprep.subr.bf16.mxu0 0
        %3598 = vmatpush1.bf16.msra.mxu0 0
        %3599 = vmatprep.subr.bf16.mxu0 0
        %3600 = vmatpush1.bf16.msra.mxu0 0
        %3601 = vmatprep.subr.bf16.mxu0 0
        %3602 = vmatpush1.bf16.msra.mxu0 0
        %3603 = vmatprep.subr.bf16.mxu0 0
        %3604 = vmatpush1.bf16.msra.mxu0 0
        %3605 = vmatprep.mubr.bf16.mxu0 %v3568
        %3606 = vmatmul.mubr.bf16.gmra.mrb[0].mxu0 %v3418
        %v3607 = vpop.f32.mrb[0].mxu0
        %v3608 = vadd.f32 0.0, %v3607
        %v3609 = vpop.f32.mrb[0].mxu0
        %v3610 = vadd.f32 0.0, %v3609
        %v3611 = vpop.f32.mrb[0].mxu0
        %v3612 = vadd.f32 0.0, %v3611
        %v3613 = vpop.f32.mrb[0].mxu0
        %v3614 = vadd.f32 0.0, %v3613
        %3615 = vmatprep.mubr.bf16.mxu0 %v3571
        %3616 = vmatmul.mubr.bf16.gmra.mrb[0].mxu0 %v3420
        %v3617 = vpop.f32.mrb[0].mxu0
        %v3618 = vadd.f32 0.0, %v3617
        %v3619 = vpop.f32.mrb[0].mxu0
        %v3620 = vadd.f32 0.0, %v3619
        %v3621 = vpop.f32.mrb[0].mxu0
        %v3622 = vadd.f32 0.0, %v3621
        %v3623 = vpop.f32.mrb[0].mxu0
        %v3624 = vadd.f32 0.0, %v3623
        %3625 = vdwg.mxu0
        %v3626 = vadd.f32 %v3336, %v3608
        %v3627 = vadd.f32 %v3337, %v3610
        %v3628 = vadd.f32 %v3338, %v3612
        %v3629 = vadd.f32 %v3339, %v3614
        %v3630 = vadd.f32 %v3340, %v3618
        %v3631 = vadd.f32 %v3341, %v3620
        %v3632 = vadd.f32 %v3342, %v3622
        %v3633 = vadd.f32 %v3343, %v3624
        %v3634 = vld [vmem:[%s7] sm:$0x3]
        %v3636 = vlaneseq
        %v3637 = vshrl.u32 %v3636, 7
        %v3638 = vsub.s32 0, %v3637
        %v3639 = vrot.slane %v3634, %v3638
        %v3640 = vlaneseq
        %v3641 = vshrl.u32 %v3640, 7
        %v3642 = vsub.s32 1, %v3641
        %v3643 = vrot.slane %v3634, %v3642
        %v3646 = vmul.f32 %v3626, %v3639
        %v3647 = vmul.f32 %v3627, %v3643
        %v3648 = vmul.f32 %v3628, %v3639
        %v3649 = vmul.f32 %v3629, %v3643
        %v3650 = vmul.f32 %v3630, %v3639
        %v3651 = vmul.f32 %v3631, %v3643
        %v3652 = vmul.f32 %v3632, %v3639
        %v3653 = vmul.f32 %v3633, %v3643
        %v3654 = vld [vmem:[%s9] sm:$0x3]
        %v3656 = vlaneseq
        %v3657 = vshrl.u32 %v3656, 7
        %v3658 = vsub.s32 0, %v3657
        %v3659 = vrot.slane %v3654, %v3658
        %v3660 = vlaneseq
        %v3661 = vshrl.u32 %v3660, 7
        %v3662 = vsub.s32 1, %v3661
        %v3663 = vrot.slane %v3654, %v3662
        %v3666 = vadd.f32 %v3646, %v3659
        %v3667 = vadd.f32 %v3647, %v3663
        %v3668 = vadd.f32 %v3648, %v3659
        %v3669 = vadd.f32 %v3649, %v3663
        %v3670 = vadd.f32 %v3650, %v3659
        %v3671 = vadd.f32 %v3651, %v3663
        %v3672 = vadd.f32 %v3652, %v3659
        %v3673 = vadd.f32 %v3653, %v3663
        %v3674 = vmax.f32 %v3666, 0.0
        %v3675 = vmax.f32 %v3667, 0.0
        %v3676 = vmax.f32 %v3668, 0.0
        %v3677 = vmax.f32 %v3669, 0.0
        %v3678 = vmax.f32 %v3670, 0.0
        %v3679 = vmax.f32 %v3671, 0.0
        %v3680 = vmax.f32 %v3672, 0.0
        %v3681 = vmax.f32 %v3673, 0.0
        %v3682 = vpack.c.bf16 %v3676, %v3674
        %v3683 = vpack.c.bf16 %v3677, %v3675
        %v3684 = vpack.c.bf16 %v3680, %v3678
        %v3685 = vpack.c.bf16 %v3681, %v3679
        %v3686 = vld [vmem:[%s11] sm:$0xf]
        %v3687 = vld [vmem:[%s11 + $0x4] sm:$0xf]
        %v3690 = vunpack.c.l.b16 %v3686
        %v3691 = vunpack.c.l.b16 %v3687
        %v3692 = vpack.c.b16 %v3691, %v3690
        %vm3693 = vcmask 261120
        %v3695 = vsel %vm3693, %v3692, 0
        %3697 = vmatprep.subr.bf16.mxu0 %v3683
        %3698 = vmatpush1.bf16.msra.mxu0 %v3682
        %3699 = vmatprep.subr.bf16.mxu0 %v3685
        %3700 = vmatpush1.bf16.msra.mxu0 %v3684
        %3701 = vmatprep.subr.bf16.mxu0 0
        %3702 = vmatpush1.bf16.msra.mxu0 0
        %3703 = vmatprep.subr.bf16.mxu0 0
        %3704 = vmatpush1.bf16.msra.mxu0 0
        %3705 = vmatprep.subr.bf16.mxu0 0
        %3706 = vmatpush1.bf16.msra.mxu0 0
        %3707 = vmatprep.subr.bf16.mxu0 0
        %3708 = vmatpush1.bf16.msra.mxu0 0
        %3709 = vmatprep.subr.bf16.mxu0 0
        %3710 = vmatpush1.bf16.msra.mxu0 0
        %3711 = vmatprep.subr.bf16.mxu0 0
        %3712 = vmatpush1.bf16.msra.mxu0 0
        %3713 = vmatprep.subr.bf16.mxu0 0
        %3714 = vmatpush1.bf16.msra.mxu0 0
        %3715 = vmatprep.subr.bf16.mxu0 0
        %3716 = vmatpush1.bf16.msra.mxu0 0
        %3717 = vmatprep.subr.bf16.mxu0 0
        %3718 = vmatpush1.bf16.msra.mxu0 0
        %3719 = vmatprep.subr.bf16.mxu0 0
        %3720 = vmatpush1.bf16.msra.mxu0 0
        %3721 = vmatprep.subr.bf16.mxu0 0
        %3722 = vmatpush1.bf16.msra.mxu0 0
        %3723 = vmatprep.subr.bf16.mxu0 0
        %3724 = vmatpush1.bf16.msra.mxu0 0
        %3725 = vmatprep.subr.bf16.mxu0 0
        %3726 = vmatpush1.bf16.msra.mxu0 0
        %3727 = vmatprep.subr.bf16.mxu0 0
        %3728 = vmatpush1.bf16.msra.mxu0 0
        %3729 = vmatprep.mubr.bf16.mxu0 0
        %3730 = vmatmul.mubr.bf16.gmra.mrb[0].mxu0 %v3695
        %v3731 = vpop.f32.mrb[0].mxu0
        %v3732 = vadd.f32 0.0, %v3731
        %v3733 = vpop.f32.mrb[0].mxu0
        %v3734 = vadd.f32 0.0, %v3733
        %v3735 = vpop.f32.mrb[0].mxu0
        %v3736 = vadd.f32 0.0, %v3735
        %v3737 = vpop.f32.mrb[0].mxu0
        %v3738 = vadd.f32 0.0, %v3737
        %3739 = vdwg.mxu0
        %s3740 = scalar_lea.vmem %s11, 8
        %v3741 = vld [vmem:[%s3740] sm:$0xf]
        %v3742 = vld [vmem:[%s3740 + $0x4] sm:$0xf]
        %v3745 = vunpack.c.l.b16 %v3741
        %v3746 = vunpack.c.l.b16 %v3742
        %v3747 = vpack.c.b16 %v3746, %v3745
        %v3749 = vsel %vm3693, %v3747, 0
        %3751 = vmatprep.subr.bf16.mxu0 %v3683
        %3752 = vmatpush1.bf16.msra.mxu0 %v3682
        %3753 = vmatprep.subr.bf16.mxu0 %v3685
        %3754 = vmatpush1.bf16.msra.mxu0 %v3684
        %3755 = vmatprep.subr.bf16.mxu0 0
        %3756 = vmatpush1.bf16.msra.mxu0 0
        %3757 = vmatprep.subr.bf16.mxu0 0
        %3758 = vmatpush1.bf16.msra.mxu0 0
        %3759 = vmatprep.subr.bf16.mxu0 0
        %3760 = vmatpush1.bf16.msra.mxu0 0
        %3761 = vmatprep.subr.bf16.mxu0 0
        %3762 = vmatpush1.bf16.msra.mxu0 0
        %3763 = vmatprep.subr.bf16.mxu0 0
        %3764 = vmatpush1.bf16.msra.mxu0 0
        %3765 = vmatprep.subr.bf16.mxu0 0
        %3766 = vmatpush1.bf16.msra.mxu0 0
        %3767 = vmatprep.subr.bf16.mxu0 0
        %3768 = vmatpush1.bf16.msra.mxu0 0
        %3769 = vmatprep.subr.bf16.mxu0 0
        %3770 = vmatpush1.bf16.msra.mxu0 0
        %3771 = vmatprep.subr.bf16.mxu0 0
        %3772 = vmatpush1.bf16.msra.mxu0 0
        %3773 = vmatprep.subr.bf16.mxu0 0
        %3774 = vmatpush1.bf16.msra.mxu0 0
        %3775 = vmatprep.subr.bf16.mxu0 0
        %3776 = vmatpush1.bf16.msra.mxu0 0
        %3777 = vmatprep.subr.bf16.mxu0 0
        %3778 = vmatpush1.bf16.msra.mxu0 0
        %3779 = vmatprep.subr.bf16.mxu0 0
        %3780 = vmatpush1.bf16.msra.mxu0 0
        %3781 = vmatprep.subr.bf16.mxu0 0
        %3782 = vmatpush1.bf16.msra.mxu0 0
        %3783 = vmatprep.mubr.bf16.mxu0 0
        %3784 = vmatmul.mubr.bf16.gmra.mrb[0].mxu0 %v3749
        %v3785 = vpop.f32.mrb[0].mxu0
        %v3786 = vadd.f32 0.0, %v3785
        %v3787 = vpop.f32.mrb[0].mxu0
        %v3788 = vadd.f32 0.0, %v3787
        %v3789 = vpop.f32.mrb[0].mxu0
        %v3790 = vadd.f32 0.0, %v3789
        %v3791 = vpop.f32.mrb[0].mxu0
        %v3792 = vadd.f32 0.0, %v3791
        %3793 = vdwg.mxu0
        %v3794 = vmax.f32 %v3732, %v3786
        %v3795 = vmax.f32 %v3734, %v3788
        %v3796 = vmax.f32 %v3736, %v3790
        %v3797 = vmax.f32 %v3738, %v3792
        %s3798 = scalar_lea.vmem %s11, 16
        %v3799 = vld [vmem:[%s3798] sm:$0xf]
        %v3800 = vld [vmem:[%s3798 + $0x4] sm:$0xf]
        %v3803 = vunpack.c.l.b16 %v3799
        %v3804 = vunpack.c.l.b16 %v3800
        %v3805 = vpack.c.b16 %v3804, %v3803
        %v3807 = vsel %vm3693, %v3805, 0
        %3809 = vmatprep.subr.bf16.mxu0 %v3683
        %3810 = vmatpush1.bf16.msra.mxu0 %v3682
        %3811 = vmatprep.subr.bf16.mxu0 %v3685
        %3812 = vmatpush1.bf16.msra.mxu0 %v3684
        %3813 = vmatprep.subr.bf16.mxu0 0
        %3814 = vmatpush1.bf16.msra.mxu0 0
        %3815 = vmatprep.subr.bf16.mxu0 0
        %3816 = vmatpush1.bf16.msra.mxu0 0
        %3817 = vmatprep.subr.bf16.mxu0 0
        %3818 = vmatpush1.bf16.msra.mxu0 0
        %3819 = vmatprep.subr.bf16.mxu0 0
        %3820 = vmatpush1.bf16.msra.mxu0 0
        %3821 = vmatprep.subr.bf16.mxu0 0
        %3822 = vmatpush1.bf16.msra.mxu0 0
        %3823 = vmatprep.subr.bf16.mxu0 0
        %3824 = vmatpush1.bf16.msra.mxu0 0
        %3825 = vmatprep.subr.bf16.mxu0 0
        %3826 = vmatpush1.bf16.msra.mxu0 0
        %3827 = vmatprep.subr.bf16.mxu0 0
        %3828 = vmatpush1.bf16.msra.mxu0 0
        %3829 = vmatprep.subr.bf16.mxu0 0
        %3830 = vmatpush1.bf16.msra.mxu0 0
        %3831 = vmatprep.subr.bf16.mxu0 0
        %3832 = vmatpush1.bf16.msra.mxu0 0
        %3833 = vmatprep.subr.bf16.mxu0 0
        %3834 = vmatpush1.bf16.msra.mxu0 0
        %3835 = vmatprep.subr.bf16.mxu0 0
        %3836 = vmatpush1.bf16.msra.mxu0 0
        %3837 = vmatprep.subr.bf16.mxu0 0
        %3838 = vmatpush1.bf16.msra.mxu0 0
        %3839 = vmatprep.subr.bf16.mxu0 0
        %3840 = vmatpush1.bf16.msra.mxu0 0
        %3841 = vmatprep.mubr.bf16.mxu0 0
        %3842 = vmatmul.mubr.bf16.gmra.mrb[0].mxu0 %v3807
        %v3843 = vpop.f32.mrb[0].mxu0
        %v3844 = vadd.f32 0.0, %v3843
        %v3845 = vpop.f32.mrb[0].mxu0
        %v3846 = vadd.f32 0.0, %v3845
        %v3847 = vpop.f32.mrb[0].mxu0
        %v3848 = vadd.f32 0.0, %v3847
        %v3849 = vpop.f32.mrb[0].mxu0
        %v3850 = vadd.f32 0.0, %v3849
        %3851 = vdwg.mxu0
        %v3852 = vmax.f32 %v3794, %v3844
        %v3853 = vmax.f32 %v3795, %v3846
        %v3854 = vmax.f32 %v3796, %v3848
        %v3855 = vmax.f32 %v3797, %v3850
        %v3856 = vpack.c.bf16 %v3854, %v3852
        %v3857 = vpack.c.bf16 %v3855, %v3853
        %v3858 = vld [vmem:[%s13] sm:$0xf]
        %v3859 = vld [vmem:[%s13 + $0x4] sm:$0xf]
        %v3860 = vld [vmem:[%s13 + $0x8] sm:$0xf]
        %v3861 = vld [vmem:[%s13 + $0xc] sm:$0xf]
        %v3862 = vld [vmem:[%s13 + $0x10] sm:$0xf]
        %v3863 = vld [vmem:[%s13 + $0x14] sm:$0xf]
        %v3864 = vld [vmem:[%s13 + $0x18] sm:$0xf]
        %v3865 = vld [vmem:[%s13 + $0x1c] sm:$0xf]
        %v3866 = vld [vmem:[%s13 + $0x20] sm:$0xf]
        %v3867 = vld [vmem:[%s13 + $0x24] sm:$0xf]
        %v3868 = vld [vmem:[%s13 + $0x28] sm:$0xf]
        %v3869 = vld [vmem:[%s13 + $0x2c] sm:$0xf]
        %v3870 = vld [vmem:[%s13 + $0x30] sm:$0xf]
        %v3871 = vld [vmem:[%s13 + $0x34] sm:$0xf]
        %v3872 = vld [vmem:[%s13 + $0x38] sm:$0xf]
        %v3873 = vld [vmem:[%s13 + $0x3c] sm:$0xf]
        %v3874 = vld [vmem:[%s13 + $0x40] sm:$0xf]
        %v3875 = vld [vmem:[%s13 + $0x44] sm:$0xf]
        %v3876 = vld [vmem:[%s13 + $0x48] sm:$0xf]
        %v3877 = vld [vmem:[%s13 + $0x4c] sm:$0xf]
        %v3878 = vld [vmem:[%s13 + $0x50] sm:$0xf]
        %v3879 = vld [vmem:[%s13 + $0x54] sm:$0xf]
        %v3880 = vld [vmem:[%s13 + $0x58] sm:$0xf]
        %v3881 = vld [vmem:[%s13 + $0x5c] sm:$0xf]
        %v3882 = vld [vmem:[%s13 + $0x60] sm:$0xf]
        %v3883 = vld [vmem:[%s13 + $0x64] sm:$0xf]
        %v3884 = vld [vmem:[%s13 + $0x68] sm:$0xf]
        %v3885 = vld [vmem:[%s13 + $0x6c] sm:$0xf]
        %v3886 = vld [vmem:[%s13 + $0x70] sm:$0xf]
        %v3887 = vld [vmem:[%s13 + $0x74] sm:$0xf]
        %v3888 = vld [vmem:[%s13 + $0x78] sm:$0xf]
        %v3889 = vld [vmem:[%s13 + $0x7c] sm:$0xf]
        %v3922 = vunpack.c.l.b16 %v3858
        %v3923 = vunpack.c.l.b16 %v3859
        %v3924 = vunpack.c.l.b16 %v3860
        %v3925 = vunpack.c.l.b16 %v3861
        %v3926 = vunpack.c.l.b16 %v3862
        %v3927 = vunpack.c.l.b16 %v3863
        %v3928 = vunpack.c.l.b16 %v3864
        %v3929 = vunpack.c.l.b16 %v3865
        %v3930 = vunpack.c.l.b16 %v3866
        %v3931 = vunpack.c.l.b16 %v3867
        %v3932 = vunpack.c.l.b16 %v3868
        %v3933 = vunpack.c.l.b16 %v3869
        %v3934 = vunpack.c.l.b16 %v3870
        %v3935 = vunpack.c.l.b16 %v3871
        %v3936 = vunpack.c.l.b16 %v3872
        %v3937 = vunpack.c.l.b16 %v3873
        %v3938 = vunpack.c.l.b16 %v3874
        %v3939 = vunpack.c.l.b16 %v3875
        %v3940 = vunpack.c.l.b16 %v3876
        %v3941 = vunpack.c.l.b16 %v3877
        %v3942 = vunpack.c.l.b16 %v3878
        %v3943 = vunpack.c.l.b16 %v3879
        %v3944 = vunpack.c.l.b16 %v3880
        %v3945 = vunpack.c.l.b16 %v3881
        %v3946 = vunpack.c.l.b16 %v3882
        %v3947 = vunpack.c.l.b16 %v3883
        %v3948 = vunpack.c.l.b16 %v3884
        %v3949 = vunpack.c.l.b16 %v3885
        %v3950 = vunpack.c.l.b16 %v3886
        %v3951 = vunpack.c.l.b16 %v3887
        %v3952 = vunpack.c.l.b16 %v3888
        %v3953 = vunpack.c.l.b16 %v3889
        %v3954 = vpack.c.b16 %v3923, %v3922
        %v3955 = vpack.c.b16 %v3925, %v3924
        %v3956 = vpack.c.b16 %v3927, %v3926
        %v3957 = vpack.c.b16 %v3929, %v3928
        %v3958 = vpack.c.b16 %v3931, %v3930
        %v3959 = vpack.c.b16 %v3933, %v3932
        %v3960 = vpack.c.b16 %v3935, %v3934
        %v3961 = vpack.c.b16 %v3937, %v3936
        %v3962 = vpack.c.b16 %v3939, %v3938
        %v3963 = vpack.c.b16 %v3941, %v3940
        %v3964 = vpack.c.b16 %v3943, %v3942
        %v3965 = vpack.c.b16 %v3945, %v3944
        %v3966 = vpack.c.b16 %v3947, %v3946
        %v3967 = vpack.c.b16 %v3949, %v3948
        %v3968 = vpack.c.b16 %v3951, %v3950
        %v3969 = vpack.c.b16 %v3953, %v3952
        %3986 = vmatprep.subr.bf16.mxu0 0
        %3987 = vmatpush1.bf16.msra.mxu0 %v3954
        %3988 = vmatprep.subr.bf16.mxu0 0
        %3989 = vmatpush1.bf16.msra.mxu0 %v3955
        %3990 = vmatprep.subr.bf16.mxu0 0
        %3991 = vmatpush1.bf16.msra.mxu0 %v3956
        %3992 = vmatprep.subr.bf16.mxu0 0
        %3993 = vmatpush1.bf16.msra.mxu0 %v3957
        %3994 = vmatprep.subr.bf16.mxu0 0
        %3995 = vmatpush1.bf16.msra.mxu0 %v3958
        %3996 = vmatprep.subr.bf16.mxu0 0
        %3997 = vmatpush1.bf16.msra.mxu0 %v3959
        %3998 = vmatprep.subr.bf16.mxu0 0
        %3999 = vmatpush1.bf16.msra.mxu0 %v3960
        %4000 = vmatprep.subr.bf16.mxu0 0
        %4001 = vmatpush1.bf16.msra.mxu0 %v3961
        %4002 = vmatprep.subr.bf16.mxu0 0
        %4003 = vmatpush1.bf16.msra.mxu0 %v3962
        %4004 = vmatprep.subr.bf16.mxu0 0
        %4005 = vmatpush1.bf16.msra.mxu0 %v3963
        %4006 = vmatprep.subr.bf16.mxu0 0
        %4007 = vmatpush1.bf16.msra.mxu0 %v3964
        %4008 = vmatprep.subr.bf16.mxu0 0
        %4009 = vmatpush1.bf16.msra.mxu0 %v3965
        %4010 = vmatprep.subr.bf16.mxu0 0
        %4011 = vmatpush1.bf16.msra.mxu0 %v3966
        %4012 = vmatprep.subr.bf16.mxu0 0
        %4013 = vmatpush1.bf16.msra.mxu0 %v3967
        %4014 = vmatprep.subr.bf16.mxu0 0
        %4015 = vmatpush1.bf16.msra.mxu0 %v3968
        %4016 = vmatprep.subr.bf16.mxu0 0
        %4017 = vmatpush1.bf16.msra.mxu0 %v3969
        %4018 = vmatprep.mubr.bf16.mxu0 %v3857
        %4019 = vmatmul.mubr.bf16.gmra.mrb[0].mxu0 %v3856
        %v4020 = vpop.f32.mrb[0].mxu0
        %v4021 = vadd.f32 0.0, %v4020
        %v4022 = vpop.f32.mrb[0].mxu0
        %v4023 = vpop.f32.mrb[0].mxu0
        %v4024 = vadd.f32 0.0, %v4023
        %v4025 = vpop.f32.mrb[0].mxu0
        %4026 = vdwg.mxu0
        %s4027 = scalar_lea.vmem %s13, 128
        %v4028 = vld [vmem:[%s4027] sm:$0xf]
        %v4029 = vld [vmem:[%s4027 + $0x4] sm:$0xf]
        %v4030 = vld [vmem:[%s4027 + $0x8] sm:$0xf]
        %v4031 = vld [vmem:[%s4027 + $0xc] sm:$0xf]
        %v4032 = vld [vmem:[%s4027 + $0x10] sm:$0xf]
        %v4033 = vld [vmem:[%s4027 + $0x14] sm:$0xf]
        %v4034 = vld [vmem:[%s4027 + $0x18] sm:$0xf]
        %v4035 = vld [vmem:[%s4027 + $0x1c] sm:$0xf]
        %v4036 = vld [vmem:[%s4027 + $0x20] sm:$0xf]
        %v4037 = vld [vmem:[%s4027 + $0x24] sm:$0xf]
        %v4038 = vld [vmem:[%s4027 + $0x28] sm:$0xf]
        %v4039 = vld [vmem:[%s4027 + $0x2c] sm:$0xf]
        %v4040 = vld [vmem:[%s4027 + $0x30] sm:$0xf]
        %v4041 = vld [vmem:[%s4027 + $0x34] sm:$0xf]
        %v4042 = vld [vmem:[%s4027 + $0x38] sm:$0xf]
        %v4043 = vld [vmem:[%s4027 + $0x3c] sm:$0xf]
        %v4044 = vld [vmem:[%s4027 + $0x40] sm:$0xf]
        %v4045 = vld [vmem:[%s4027 + $0x44] sm:$0xf]
        %v4046 = vld [vmem:[%s4027 + $0x48] sm:$0xf]
        %v4047 = vld [vmem:[%s4027 + $0x4c] sm:$0xf]
        %v4048 = vld [vmem:[%s4027 + $0x50] sm:$0xf]
        %v4049 = vld [vmem:[%s4027 + $0x54] sm:$0xf]
        %v4050 = vld [vmem:[%s4027 + $0x58] sm:$0xf]
        %v4051 = vld [vmem:[%s4027 + $0x5c] sm:$0xf]
        %v4052 = vld [vmem:[%s4027 + $0x60] sm:$0xf]
        %v4053 = vld [vmem:[%s4027 + $0x64] sm:$0xf]
        %v4054 = vld [vmem:[%s4027 + $0x68] sm:$0xf]
        %v4055 = vld [vmem:[%s4027 + $0x6c] sm:$0xf]
        %v4056 = vld [vmem:[%s4027 + $0x70] sm:$0xf]
        %v4057 = vld [vmem:[%s4027 + $0x74] sm:$0xf]
        %v4058 = vld [vmem:[%s4027 + $0x78] sm:$0xf]
        %v4059 = vld [vmem:[%s4027 + $0x7c] sm:$0xf]
        %v4092 = vunpack.c.l.b16 %v4028
        %v4093 = vunpack.c.l.b16 %v4029
        %v4094 = vunpack.c.l.b16 %v4030
        %v4095 = vunpack.c.l.b16 %v4031
        %v4096 = vunpack.c.l.b16 %v4032
        %v4097 = vunpack.c.l.b16 %v4033
        %v4098 = vunpack.c.l.b16 %v4034
        %v4099 = vunpack.c.l.b16 %v4035
        %v4100 = vunpack.c.l.b16 %v4036
        %v4101 = vunpack.c.l.b16 %v4037
        %v4102 = vunpack.c.l.b16 %v4038
        %v4103 = vunpack.c.l.b16 %v4039
        %v4104 = vunpack.c.l.b16 %v4040
        %v4105 = vunpack.c.l.b16 %v4041
        %v4106 = vunpack.c.l.b16 %v4042
        %v4107 = vunpack.c.l.b16 %v4043
        %v4108 = vunpack.c.l.b16 %v4044
        %v4109 = vunpack.c.l.b16 %v4045
        %v4110 = vunpack.c.l.b16 %v4046
        %v4111 = vunpack.c.l.b16 %v4047
        %v4112 = vunpack.c.l.b16 %v4048
        %v4113 = vunpack.c.l.b16 %v4049
        %v4114 = vunpack.c.l.b16 %v4050
        %v4115 = vunpack.c.l.b16 %v4051
        %v4116 = vunpack.c.l.b16 %v4052
        %v4117 = vunpack.c.l.b16 %v4053
        %v4118 = vunpack.c.l.b16 %v4054
        %v4119 = vunpack.c.l.b16 %v4055
        %v4120 = vunpack.c.l.b16 %v4056
        %v4121 = vunpack.c.l.b16 %v4057
        %v4122 = vunpack.c.l.b16 %v4058
        %v4123 = vunpack.c.l.b16 %v4059
        %v4124 = vpack.c.b16 %v4093, %v4092
        %v4125 = vpack.c.b16 %v4095, %v4094
        %v4126 = vpack.c.b16 %v4097, %v4096
        %v4127 = vpack.c.b16 %v4099, %v4098
        %v4128 = vpack.c.b16 %v4101, %v4100
        %v4129 = vpack.c.b16 %v4103, %v4102
        %v4130 = vpack.c.b16 %v4105, %v4104
        %v4131 = vpack.c.b16 %v4107, %v4106
        %v4132 = vpack.c.b16 %v4109, %v4108
        %v4133 = vpack.c.b16 %v4111, %v4110
        %v4134 = vpack.c.b16 %v4113, %v4112
        %v4135 = vpack.c.b16 %v4115, %v4114
        %v4136 = vpack.c.b16 %v4117, %v4116
        %v4137 = vpack.c.b16 %v4119, %v4118
        %v4138 = vpack.c.b16 %v4121, %v4120
        %v4139 = vpack.c.b16 %v4123, %v4122
        %4156 = vmatprep.subr.bf16.mxu0 0
        %4157 = vmatpush1.bf16.msra.mxu0 %v4124
        %4158 = vmatprep.subr.bf16.mxu0 0
        %4159 = vmatpush1.bf16.msra.mxu0 %v4125
        %4160 = vmatprep.subr.bf16.mxu0 0
        %4161 = vmatpush1.bf16.msra.mxu0 %v4126
        %4162 = vmatprep.subr.bf16.mxu0 0
        %4163 = vmatpush1.bf16.msra.mxu0 %v4127
        %4164 = vmatprep.subr.bf16.mxu0 0
        %4165 = vmatpush1.bf16.msra.mxu0 %v4128
        %4166 = vmatprep.subr.bf16.mxu0 0
        %4167 = vmatpush1.bf16.msra.mxu0 %v4129
        %4168 = vmatprep.subr.bf16.mxu0 0
        %4169 = vmatpush1.bf16.msra.mxu0 %v4130
        %4170 = vmatprep.subr.bf16.mxu0 0
        %4171 = vmatpush1.bf16.msra.mxu0 %v4131
        %4172 = vmatprep.subr.bf16.mxu0 0
        %4173 = vmatpush1.bf16.msra.mxu0 %v4132
        %4174 = vmatprep.subr.bf16.mxu0 0
        %4175 = vmatpush1.bf16.msra.mxu0 %v4133
        %4176 = vmatprep.subr.bf16.mxu0 0
        %4177 = vmatpush1.bf16.msra.mxu0 %v4134
        %4178 = vmatprep.subr.bf16.mxu0 0
        %4179 = vmatpush1.bf16.msra.mxu0 %v4135
        %4180 = vmatprep.subr.bf16.mxu0 0
        %4181 = vmatpush1.bf16.msra.mxu0 %v4136
        %4182 = vmatprep.subr.bf16.mxu0 0
        %4183 = vmatpush1.bf16.msra.mxu0 %v4137
        %4184 = vmatprep.subr.bf16.mxu0 0
        %4185 = vmatpush1.bf16.msra.mxu0 %v4138
        %4186 = vmatprep.subr.bf16.mxu0 0
        %4187 = vmatpush1.bf16.msra.mxu0 %v4139
        %4188 = vmatprep.mubr.bf16.mxu0 %v3857
        %4189 = vmatmul.mubr.bf16.gmra.mrb[0].mxu0 %v3856
        %v4190 = vpop.f32.mrb[0].mxu0
        %v4191 = vadd.f32 0.0, %v4190
        %v4192 = vpop.f32.mrb[0].mxu0
        %v4193 = vpop.f32.mrb[0].mxu0
        %v4194 = vadd.f32 0.0, %v4193
        %v4195 = vpop.f32.mrb[0].mxu0
        %4196 = vdwg.mxu0
        %v4197 = vmax.f32 %v4021, %v4191
        %v4198 = vmax.f32 %v4024, %v4194
        %s4199 = scalar_lea.vmem %s13, 256
        %v4200 = vld [vmem:[%s4199] sm:$0xf]
        %v4201 = vld [vmem:[%s4199 + $0x4] sm:$0xf]
        %v4202 = vld [vmem:[%s4199 + $0x8] sm:$0xf]
        %v4203 = vld [vmem:[%s4199 + $0xc] sm:$0xf]
        %v4204 = vld [vmem:[%s4199 + $0x10] sm:$0xf]
        %v4205 = vld [vmem:[%s4199 + $0x14] sm:$0xf]
        %v4206 = vld [vmem:[%s4199 + $0x18] sm:$0xf]
        %v4207 = vld [vmem:[%s4199 + $0x1c] sm:$0xf]
        %v4208 = vld [vmem:[%s4199 + $0x20] sm:$0xf]
        %v4209 = vld [vmem:[%s4199 + $0x24] sm:$0xf]
        %v4210 = vld [vmem:[%s4199 + $0x28] sm:$0xf]
        %v4211 = vld [vmem:[%s4199 + $0x2c] sm:$0xf]
        %v4212 = vld [vmem:[%s4199 + $0x30] sm:$0xf]
        %v4213 = vld [vmem:[%s4199 + $0x34] sm:$0xf]
        %v4214 = vld [vmem:[%s4199 + $0x38] sm:$0xf]
        %v4215 = vld [vmem:[%s4199 + $0x3c] sm:$0xf]
        %v4216 = vld [vmem:[%s4199 + $0x40] sm:$0xf]
        %v4217 = vld [vmem:[%s4199 + $0x44] sm:$0xf]
        %v4218 = vld [vmem:[%s4199 + $0x48] sm:$0xf]
        %v4219 = vld [vmem:[%s4199 + $0x4c] sm:$0xf]
        %v4220 = vld [vmem:[%s4199 + $0x50] sm:$0xf]
        %v4221 = vld [vmem:[%s4199 + $0x54] sm:$0xf]
        %v4222 = vld [vmem:[%s4199 + $0x58] sm:$0xf]
        %v4223 = vld [vmem:[%s4199 + $0x5c] sm:$0xf]
        %v4224 = vld [vmem:[%s4199 + $0x60] sm:$0xf]
        %v4225 = vld [vmem:[%s4199 + $0x64] sm:$0xf]
        %v4226 = vld [vmem:[%s4199 + $0x68] sm:$0xf]
        %v4227 = vld [vmem:[%s4199 + $0x6c] sm:$0xf]
        %v4228 = vld [vmem:[%s4199 + $0x70] sm:$0xf]
        %v4229 = vld [vmem:[%s4199 + $0x74] sm:$0xf]
        %v4230 = vld [vmem:[%s4199 + $0x78] sm:$0xf]
        %v4231 = vld [vmem:[%s4199 + $0x7c] sm:$0xf]
        %v4264 = vunpack.c.l.b16 %v4200
        %v4265 = vunpack.c.l.b16 %v4201
        %v4266 = vunpack.c.l.b16 %v4202
        %v4267 = vunpack.c.l.b16 %v4203
        %v4268 = vunpack.c.l.b16 %v4204
        %v4269 = vunpack.c.l.b16 %v4205
        %v4270 = vunpack.c.l.b16 %v4206
        %v4271 = vunpack.c.l.b16 %v4207
        %v4272 = vunpack.c.l.b16 %v4208
        %v4273 = vunpack.c.l.b16 %v4209
        %v4274 = vunpack.c.l.b16 %v4210
        %v4275 = vunpack.c.l.b16 %v4211
        %v4276 = vunpack.c.l.b16 %v4212
        %v4277 = vunpack.c.l.b16 %v4213
        %v4278 = vunpack.c.l.b16 %v4214
        %v4279 = vunpack.c.l.b16 %v4215
        %v4280 = vunpack.c.l.b16 %v4216
        %v4281 = vunpack.c.l.b16 %v4217
        %v4282 = vunpack.c.l.b16 %v4218
        %v4283 = vunpack.c.l.b16 %v4219
        %v4284 = vunpack.c.l.b16 %v4220
        %v4285 = vunpack.c.l.b16 %v4221
        %v4286 = vunpack.c.l.b16 %v4222
        %v4287 = vunpack.c.l.b16 %v4223
        %v4288 = vunpack.c.l.b16 %v4224
        %v4289 = vunpack.c.l.b16 %v4225
        %v4290 = vunpack.c.l.b16 %v4226
        %v4291 = vunpack.c.l.b16 %v4227
        %v4292 = vunpack.c.l.b16 %v4228
        %v4293 = vunpack.c.l.b16 %v4229
        %v4294 = vunpack.c.l.b16 %v4230
        %v4295 = vunpack.c.l.b16 %v4231
        %v4296 = vpack.c.b16 %v4265, %v4264
        %v4297 = vpack.c.b16 %v4267, %v4266
        %v4298 = vpack.c.b16 %v4269, %v4268
        %v4299 = vpack.c.b16 %v4271, %v4270
        %v4300 = vpack.c.b16 %v4273, %v4272
        %v4301 = vpack.c.b16 %v4275, %v4274
        %v4302 = vpack.c.b16 %v4277, %v4276
        %v4303 = vpack.c.b16 %v4279, %v4278
        %v4304 = vpack.c.b16 %v4281, %v4280
        %v4305 = vpack.c.b16 %v4283, %v4282
        %v4306 = vpack.c.b16 %v4285, %v4284
        %v4307 = vpack.c.b16 %v4287, %v4286
        %v4308 = vpack.c.b16 %v4289, %v4288
        %v4309 = vpack.c.b16 %v4291, %v4290
        %v4310 = vpack.c.b16 %v4293, %v4292
        %v4311 = vpack.c.b16 %v4295, %v4294
        %4328 = vmatprep.subr.bf16.mxu0 0
        %4329 = vmatpush1.bf16.msra.mxu0 %v4296
        %4330 = vmatprep.subr.bf16.mxu0 0
        %4331 = vmatpush1.bf16.msra.mxu0 %v4297
        %4332 = vmatprep.subr.bf16.mxu0 0
        %4333 = vmatpush1.bf16.msra.mxu0 %v4298
        %4334 = vmatprep.subr.bf16.mxu0 0
        %4335 = vmatpush1.bf16.msra.mxu0 %v4299
        %4336 = vmatprep.subr.bf16.mxu0 0
        %4337 = vmatpush1.bf16.msra.mxu0 %v4300
        %4338 = vmatprep.subr.bf16.mxu0 0
        %4339 = vmatpush1.bf16.msra.mxu0 %v4301
        %4340 = vmatprep.subr.bf16.mxu0 0
        %4341 = vmatpush1.bf16.msra.mxu0 %v4302
        %4342 = vmatprep.subr.bf16.mxu0 0
        %4343 = vmatpush1.bf16.msra.mxu0 %v4303
        %4344 = vmatprep.subr.bf16.mxu0 0
        %4345 = vmatpush1.bf16.msra.mxu0 %v4304
        %4346 = vmatprep.subr.bf16.mxu0 0
        %4347 = vmatpush1.bf16.msra.mxu0 %v4305
        %4348 = vmatprep.subr.bf16.mxu0 0
        %4349 = vmatpush1.bf16.msra.mxu0 %v4306
        %4350 = vmatprep.subr.bf16.mxu0 0
        %4351 = vmatpush1.bf16.msra.mxu0 %v4307
        %4352 = vmatprep.subr.bf16.mxu0 0
        %4353 = vmatpush1.bf16.msra.mxu0 %v4308
        %4354 = vmatprep.subr.bf16.mxu0 0
        %4355 = vmatpush1.bf16.msra.mxu0 %v4309
        %4356 = vmatprep.subr.bf16.mxu0 0
        %4357 = vmatpush1.bf16.msra.mxu0 %v4310
        %4358 = vmatprep.subr.bf16.mxu0 0
        %4359 = vmatpush1.bf16.msra.mxu0 %v4311
        %4360 = vmatprep.mubr.bf16.mxu0 %v3857
        %4361 = vmatmul.mubr.bf16.gmra.mrb[0].mxu0 %v3856
        %v4362 = vpop.f32.mrb[0].mxu0
        %v4363 = vadd.f32 0.0, %v4362
        %v4364 = vpop.f32.mrb[0].mxu0
        %v4365 = vpop.f32.mrb[0].mxu0
        %v4366 = vadd.f32 0.0, %v4365
        %v4367 = vpop.f32.mrb[0].mxu0
        %4368 = vdwg.mxu0
        %v4369 = vmax.f32 %v4197, %v4363
        %v4370 = vmax.f32 %v4198, %v4366
        %v4371 = vpack.c.bf16 %v4370, %v4369
        %v4372 = vld [vmem:[%s15] sm:$0xf]
        %v4373 = vld [vmem:[%s15 + $0x4] sm:$0xf]
        %v4376 = vunpack.c.l.b16 %v4372
        %v4377 = vunpack.c.l.b16 %v4373
        %v4378 = vpack.c.b16 %v4377, %v4376
        %vm4379 = vcmask 130048
        %v4381 = vsel %vm4379, %v4378, 0
        %4383 = vmatprep.subr.bf16.mxu0 0
        %4384 = vmatpush1.bf16.msra.mxu0 %v4371
        %4385 = vmatprep.subr.bf16.mxu0 0
        %4386 = vmatpush1.bf16.msra.mxu0 0
        %4387 = vmatprep.subr.bf16.mxu0 0
        %4388 = vmatpush1.bf16.msra.mxu0 0
        %4389 = vmatprep.subr.bf16.mxu0 0
        %4390 = vmatpush1.bf16.msra.mxu0 0
        %4391 = vmatprep.subr.bf16.mxu0 0
        %4392 = vmatpush1.bf16.msra.mxu0 0
        %4393 = vmatprep.subr.bf16.mxu0 0
        %4394 = vmatpush1.bf16.msra.mxu0 0
        %4395 = vmatprep.subr.bf16.mxu0 0
        %4396 = vmatpush1.bf16.msra.mxu0 0
        %4397 = vmatprep.subr.bf16.mxu0 0
        %4398 = vmatpush1.bf16.msra.mxu0 0
        %4399 = vmatprep.subr.bf16.mxu0 0
        %4400 = vmatpush1.bf16.msra.mxu0 0
        %4401 = vmatprep.subr.bf16.mxu0 0
        %4402 = vmatpush1.bf16.msra.mxu0 0
        %4403 = vmatprep.subr.bf16.mxu0 0
        %4404 = vmatpush1.bf16.msra.mxu0 0
        %4405 = vmatprep.subr.bf16.mxu0 0
        %4406 = vmatpush1.bf16.msra.mxu0 0
        %4407 = vmatprep.subr.bf16.mxu0 0
        %4408 = vmatpush1.bf16.msra.mxu0 0
        %4409 = vmatprep.subr.bf16.mxu0 0
        %4410 = vmatpush1.bf16.msra.mxu0 0
        %4411 = vmatprep.subr.bf16.mxu0 0
        %4412 = vmatpush1.bf16.msra.mxu0 0
        %4413 = vmatprep.subr.bf16.mxu0 0
        %4414 = vmatpush1.bf16.msra.mxu0 0
        %4415 = vmatprep.mubr.bf16.mxu0 0
        %4416 = vmatmul.mubr.bf16.gmra.mrb[0].mxu0 %v4381
        %v4417 = vpop.f32.mrb[0].mxu0
        %v4418 = vadd.f32 0.0, %v4417
        %v4419 = vpop.f32.mrb[0].mxu0
        %v4420 = vpop.f32.mrb[0].mxu0
        %v4421 = vadd.f32 0.0, %v4420
        %v4422 = vpop.f32.mrb[0].mxu0
        %4423 = vdwg.mxu0
        %v4424 = vpack.c.bf16 %v4421, %v4418
        %v4425 = vld [vmem:[%s17] sm:$0xf]
        %v4426 = vld [vmem:[%s17 + $0x4] sm:$0xf]
        %v4427 = vld [vmem:[%s17 + $0x8] sm:$0xf]
        %v4428 = vld [vmem:[%s17 + $0xc] sm:$0xf]
        %v4429 = vld [vmem:[%s17 + $0x10] sm:$0xf]
        %v4430 = vld [vmem:[%s17 + $0x14] sm:$0xf]
        %v4431 = vld [vmem:[%s17 + $0x18] sm:$0xf]
        %v4432 = vld [vmem:[%s17 + $0x1c] sm:$0xf]
        %v4433 = vld [vmem:[%s17 + $0x20] sm:$0xf]
        %v4434 = vld [vmem:[%s17 + $0x24] sm:$0xf]
        %v4435 = vld [vmem:[%s17 + $0x28] sm:$0xf]
        %v4436 = vld [vmem:[%s17 + $0x2c] sm:$0xf]
        %v4437 = vld [vmem:[%s17 + $0x30] sm:$0xf]
        %v4438 = vld [vmem:[%s17 + $0x34] sm:$0xf]
        %v4439 = vld [vmem:[%s17 + $0x38] sm:$0xf]
        %v4440 = vld [vmem:[%s17 + $0x3c] sm:$0xf]
        %s4441 = scalar_lea.vmem %s15, 8
        %v4442 = vld [vmem:[%s4441] sm:$0xf]
        %v4443 = vld [vmem:[%s4441 + $0x4] sm:$0xf]
        %v4446 = vunpack.c.l.b16 %v4442
        %v4447 = vunpack.c.l.b16 %v4443
        %v4448 = vpack.c.b16 %v4447, %v4446
        %v4450 = vsel %vm4379, %v4448, 0
        %4452 = vmatprep.subr.bf16.mxu0 0
        %4453 = vmatpush1.bf16.msra.mxu0 %v4371
        %4454 = vmatprep.subr.bf16.mxu0 0
        %4455 = vmatpush1.bf16.msra.mxu0 0
        %4456 = vmatprep.subr.bf16.mxu0 0
        %4457 = vmatpush1.bf16.msra.mxu0 0
        %4458 = vmatprep.subr.bf16.mxu0 0
        %4459 = vmatpush1.bf16.msra.mxu0 0
        %4460 = vmatprep.subr.bf16.mxu0 0
        %4461 = vmatpush1.bf16.msra.mxu0 0
        %4462 = vmatprep.subr.bf16.mxu0 0
        %4463 = vmatpush1.bf16.msra.mxu0 0
        %4464 = vmatprep.subr.bf16.mxu0 0
        %4465 = vmatpush1.bf16.msra.mxu0 0
        %4466 = vmatprep.subr.bf16.mxu0 0
        %4467 = vmatpush1.bf16.msra.mxu0 0
        %4468 = vmatprep.subr.bf16.mxu0 0
        %4469 = vmatpush1.bf16.msra.mxu0 0
        %4470 = vmatprep.subr.bf16.mxu0 0
        %4471 = vmatpush1.bf16.msra.mxu0 0
        %4472 = vmatprep.subr.bf16.mxu0 0
        %4473 = vmatpush1.bf16.msra.mxu0 0
        %4474 = vmatprep.subr.bf16.mxu0 0
        %4475 = vmatpush1.bf16.msra.mxu0 0
        %4476 = vmatprep.subr.bf16.mxu0 0
        %4477 = vmatpush1.bf16.msra.mxu0 0
        %4478 = vmatprep.subr.bf16.mxu0 0
        %4479 = vmatpush1.bf16.msra.mxu0 0
        %4480 = vmatprep.subr.bf16.mxu0 0
        %4481 = vmatpush1.bf16.msra.mxu0 0
        %4482 = vmatprep.subr.bf16.mxu0 0
        %4483 = vmatpush1.bf16.msra.mxu0 0
        %4484 = vmatprep.mubr.bf16.mxu0 0
        %4485 = vmatmul.mubr.bf16.gmra.mrb[0].mxu0 %v4450
        %v4486 = vpop.f32.mrb[0].mxu0
        %v4487 = vadd.f32 0.0, %v4486
        %v4488 = vpop.f32.mrb[0].mxu0
        %v4489 = vpop.f32.mrb[0].mxu0
        %v4490 = vadd.f32 0.0, %v4489
        %v4491 = vpop.f32.mrb[0].mxu0
        %4492 = vdwg.mxu0
        %v4493 = vpack.c.bf16 %v4490, %v4487
        %s4494 = scalar_lea.vmem %s17, 64
        %v4495 = vld [vmem:[%s4494] sm:$0xf]
        %v4496 = vld [vmem:[%s4494 + $0x4] sm:$0xf]
        %v4497 = vld [vmem:[%s4494 + $0x8] sm:$0xf]
        %v4498 = vld [vmem:[%s4494 + $0xc] sm:$0xf]
        %v4499 = vld [vmem:[%s4494 + $0x10] sm:$0xf]
        %v4500 = vld [vmem:[%s4494 + $0x14] sm:$0xf]
        %v4501 = vld [vmem:[%s4494 + $0x18] sm:$0xf]
        %v4502 = vld [vmem:[%s4494 + $0x1c] sm:$0xf]
        %v4503 = vld [vmem:[%s4494 + $0x20] sm:$0xf]
        %v4504 = vld [vmem:[%s4494 + $0x24] sm:$0xf]
        %v4505 = vld [vmem:[%s4494 + $0x28] sm:$0xf]
        %v4506 = vld [vmem:[%s4494 + $0x2c] sm:$0xf]
        %v4507 = vld [vmem:[%s4494 + $0x30] sm:$0xf]
        %v4508 = vld [vmem:[%s4494 + $0x34] sm:$0xf]
        %v4509 = vld [vmem:[%s4494 + $0x38] sm:$0xf]
        %v4510 = vld [vmem:[%s4494 + $0x3c] sm:$0xf]
        %v4527 = vunpack.c.l.b16 %v4495
        %v4528 = vunpack.c.l.b16 %v4496
        %v4529 = vunpack.c.l.b16 %v4497
        %v4530 = vunpack.c.l.b16 %v4498
        %v4531 = vunpack.c.l.b16 %v4499
        %v4532 = vunpack.c.l.b16 %v4500
        %v4533 = vunpack.c.l.b16 %v4501
        %v4534 = vunpack.c.l.b16 %v4502
        %v4535 = vunpack.c.l.b16 %v4503
        %v4536 = vunpack.c.l.b16 %v4504
        %v4537 = vunpack.c.l.b16 %v4505
        %v4538 = vunpack.c.l.b16 %v4506
        %v4539 = vunpack.c.l.b16 %v4507
        %v4540 = vunpack.c.l.b16 %v4508
        %v4541 = vunpack.c.l.b16 %v4509
        %v4542 = vunpack.c.l.b16 %v4510
        %v4543 = vpack.c.b16 %v4528, %v4527
        %v4544 = vpack.c.b16 %v4530, %v4529
        %v4545 = vpack.c.b16 %v4532, %v4531
        %v4546 = vpack.c.b16 %v4534, %v4533
        %v4547 = vpack.c.b16 %v4536, %v4535
        %v4548 = vpack.c.b16 %v4538, %v4537
        %v4549 = vpack.c.b16 %v4540, %v4539
        %v4550 = vpack.c.b16 %v4542, %v4541
        %4559 = vmatprep.subr.bf16.mxu0 0
        %4560 = vmatpush1.bf16.msra.mxu0 %v4543
        %4561 = vmatprep.subr.bf16.mxu0 0
        %4562 = vmatpush1.bf16.msra.mxu0 %v4544
        %4563 = vmatprep.subr.bf16.mxu0 0
        %4564 = vmatpush1.bf16.msra.mxu0 %v4545
        %4565 = vmatprep.subr.bf16.mxu0 0
        %4566 = vmatpush1.bf16.msra.mxu0 %v4546
        %4567 = vmatprep.subr.bf16.mxu0 0
        %4568 = vmatpush1.bf16.msra.mxu0 %v4547
        %4569 = vmatprep.subr.bf16.mxu0 0
        %4570 = vmatpush1.bf16.msra.mxu0 %v4548
        %4571 = vmatprep.subr.bf16.mxu0 0
        %4572 = vmatpush1.bf16.msra.mxu0 %v4549
        %4573 = vmatprep.subr.bf16.mxu0 0
        %4574 = vmatpush1.bf16.msra.mxu0 %v4550
        %4575 = vmatprep.subr.bf16.mxu0 0
        %4576 = vmatpush1.bf16.msra.mxu0 0
        %4577 = vmatprep.subr.bf16.mxu0 0
        %4578 = vmatpush1.bf16.msra.mxu0 0
        %4579 = vmatprep.subr.bf16.mxu0 0
        %4580 = vmatpush1.bf16.msra.mxu0 0
        %4581 = vmatprep.subr.bf16.mxu0 0
        %4582 = vmatpush1.bf16.msra.mxu0 0
        %4583 = vmatprep.subr.bf16.mxu0 0
        %4584 = vmatpush1.bf16.msra.mxu0 0
        %4585 = vmatprep.subr.bf16.mxu0 0
        %4586 = vmatpush1.bf16.msra.mxu0 0
        %4587 = vmatprep.subr.bf16.mxu0 0
        %4588 = vmatpush1.bf16.msra.mxu0 0
        %4589 = vmatprep.subr.bf16.mxu0 0
        %4590 = vmatpush1.bf16.msra.mxu0 0
        %4591 = vmatprep.mubr.bf16.mxu0 0
        %4592 = vmatmul.mubr.bf16.gmra.mrb[0].mxu0 %v4493
        %v4593 = vpop.f32.mrb[0].mxu0
        %v4594 = vadd.f32 0.0, %v4593
        %v4595 = vpop.f32.mrb[0].mxu0
        %v4596 = vpop.f32.mrb[0].mxu0
        %v4597 = vadd.f32 0.0, %v4596
        %v4598 = vpop.f32.mrb[0].mxu0
        %4599 = vdwg.mxu0
        %v4616 = vunpack.c.l.b16 %v4425
        %v4617 = vunpack.c.l.b16 %v4426
        %v4618 = vunpack.c.l.b16 %v4427
        %v4619 = vunpack.c.l.b16 %v4428
        %v4620 = vunpack.c.l.b16 %v4429
        %v4621 = vunpack.c.l.b16 %v4430
        %v4622 = vunpack.c.l.b16 %v4431
        %v4623 = vunpack.c.l.b16 %v4432
        %v4624 = vunpack.c.l.b16 %v4433
        %v4625 = vunpack.c.l.b16 %v4434
        %v4626 = vunpack.c.l.b16 %v4435
        %v4627 = vunpack.c.l.b16 %v4436
        %v4628 = vunpack.c.l.b16 %v4437
        %v4629 = vunpack.c.l.b16 %v4438
        %v4630 = vunpack.c.l.b16 %v4439
        %v4631 = vunpack.c.l.b16 %v4440
        %v4632 = vpack.c.b16 %v4617, %v4616
        %v4633 = vpack.c.b16 %v4619, %v4618
        %v4634 = vpack.c.b16 %v4621, %v4620
        %v4635 = vpack.c.b16 %v4623, %v4622
        %v4636 = vpack.c.b16 %v4625, %v4624
        %v4637 = vpack.c.b16 %v4627, %v4626
        %v4638 = vpack.c.b16 %v4629, %v4628
        %v4639 = vpack.c.b16 %v4631, %v4630
        %4648 = vmatprep.subr.bf16.mxu0 0
        %4649 = vmatpush1.bf16.msra.mxu0 %v4632
        %4650 = vmatprep.subr.bf16.mxu0 0
        %4651 = vmatpush1.bf16.msra.mxu0 %v4633
        %4652 = vmatprep.subr.bf16.mxu0 0
        %4653 = vmatpush1.bf16.msra.mxu0 %v4634
        %4654 = vmatprep.subr.bf16.mxu0 0
        %4655 = vmatpush1.bf16.msra.mxu0 %v4635
        %4656 = vmatprep.subr.bf16.mxu0 0
        %4657 = vmatpush1.bf16.msra.mxu0 %v4636
        %4658 = vmatprep.subr.bf16.mxu0 0
        %4659 = vmatpush1.bf16.msra.mxu0 %v4637
        %4660 = vmatprep.subr.bf16.mxu0 0
        %4661 = vmatpush1.bf16.msra.mxu0 %v4638
        %4662 = vmatprep.subr.bf16.mxu0 0
        %4663 = vmatpush1.bf16.msra.mxu0 %v4639
        %4664 = vmatprep.subr.bf16.mxu0 0
        %4665 = vmatpush1.bf16.msra.mxu0 0
        %4666 = vmatprep.subr.bf16.mxu0 0
        %4667 = vmatpush1.bf16.msra.mxu0 0
        %4668 = vmatprep.subr.bf16.mxu0 0
        %4669 = vmatpush1.bf16.msra.mxu0 0
        %4670 = vmatprep.subr.bf16.mxu0 0
        %4671 = vmatpush1.bf16.msra.mxu0 0
        %4672 = vmatprep.subr.bf16.mxu0 0
        %4673 = vmatpush1.bf16.msra.mxu0 0
        %4674 = vmatprep.subr.bf16.mxu0 0
        %4675 = vmatpush1.bf16.msra.mxu0 0
        %4676 = vmatprep.subr.bf16.mxu0 0
        %4677 = vmatpush1.bf16.msra.mxu0 0
        %4678 = vmatprep.subr.bf16.mxu0 0
        %4679 = vmatpush1.bf16.msra.mxu0 0
        %4680 = vmatprep.mubr.bf16.mxu0 0
        %4681 = vmatmul.mubr.bf16.gmra.mrb[0].mxu0 %v4424
        %v4682 = vpop.f32.mrb[0].mxu0
        %v4683 = vadd.f32 %v4594, %v4682
        %v4684 = vpop.f32.mrb[0].mxu0
        %v4685 = vpop.f32.mrb[0].mxu0
        %v4686 = vadd.f32 %v4597, %v4685
        %v4687 = vpop.f32.mrb[0].mxu0
        %4688 = vdwg.mxu0
        %s4689 = scalar_lea.vmem %s15, 16
        %v4690 = vld [vmem:[%s4689] sm:$0xf]
        %v4691 = vld [vmem:[%s4689 + $0x4] sm:$0xf]
        %v4694 = vunpack.c.l.b16 %v4690
        %v4695 = vunpack.c.l.b16 %v4691
        %v4696 = vpack.c.b16 %v4695, %v4694
        %v4698 = vsel %vm4379, %v4696, 0
        %4700 = vmatprep.subr.bf16.mxu0 0
        %4701 = vmatpush1.bf16.msra.mxu0 %v4371
        %4702 = vmatprep.subr.bf16.mxu0 0
        %4703 = vmatpush1.bf16.msra.mxu0 0
        %4704 = vmatprep.subr.bf16.mxu0 0
        %4705 = vmatpush1.bf16.msra.mxu0 0
        %4706 = vmatprep.subr.bf16.mxu0 0
        %4707 = vmatpush1.bf16.msra.mxu0 0
        %4708 = vmatprep.subr.bf16.mxu0 0
        %4709 = vmatpush1.bf16.msra.mxu0 0
        %4710 = vmatprep.subr.bf16.mxu0 0
        %4711 = vmatpush1.bf16.msra.mxu0 0
        %4712 = vmatprep.subr.bf16.mxu0 0
        %4713 = vmatpush1.bf16.msra.mxu0 0
        %4714 = vmatprep.subr.bf16.mxu0 0
        %4715 = vmatpush1.bf16.msra.mxu0 0
        %4716 = vmatprep.subr.bf16.mxu0 0
        %4717 = vmatpush1.bf16.msra.mxu0 0
        %4718 = vmatprep.subr.bf16.mxu0 0
        %4719 = vmatpush1.bf16.msra.mxu0 0
        %4720 = vmatprep.subr.bf16.mxu0 0
        %4721 = vmatpush1.bf16.msra.mxu0 0
        %4722 = vmatprep.subr.bf16.mxu0 0
        %4723 = vmatpush1.bf16.msra.mxu0 0
        %4724 = vmatprep.subr.bf16.mxu0 0
        %4725 = vmatpush1.bf16.msra.mxu0 0
        %4726 = vmatprep.subr.bf16.mxu0 0
        %4727 = vmatpush1.bf16.msra.mxu0 0
        %4728 = vmatprep.subr.bf16.mxu0 0
        %4729 = vmatpush1.bf16.msra.mxu0 0
        %4730 = vmatprep.subr.bf16.mxu0 0
        %4731 = vmatpush1.bf16.msra.mxu0 0
        %4732 = vmatprep.mubr.bf16.mxu0 0
        %4733 = vmatmul.mubr.bf16.gmra.mrb[0].mxu0 %v4698
        %v4734 = vpop.f32.mrb[0].mxu0
        %v4735 = vadd.f32 0.0, %v4734
        %v4736 = vpop.f32.mrb[0].mxu0
        %v4737 = vpop.f32.mrb[0].mxu0
        %v4738 = vadd.f32 0.0, %v4737
        %v4739 = vpop.f32.mrb[0].mxu0
        %4740 = vdwg.mxu0
        %v4741 = vpack.c.bf16 %v4738, %v4735
        %s4742 = scalar_lea.vmem %s17, 128
        %v4743 = vld [vmem:[%s4742] sm:$0xf]
        %v4744 = vld [vmem:[%s4742 + $0x4] sm:$0xf]
        %v4745 = vld [vmem:[%s4742 + $0x8] sm:$0xf]
        %v4746 = vld [vmem:[%s4742 + $0xc] sm:$0xf]
        %v4747 = vld [vmem:[%s4742 + $0x10] sm:$0xf]
        %v4748 = vld [vmem:[%s4742 + $0x14] sm:$0xf]
        %v4749 = vld [vmem:[%s4742 + $0x18] sm:$0xf]
        %v4750 = vld [vmem:[%s4742 + $0x1c] sm:$0xf]
        %v4751 = vld [vmem:[%s4742 + $0x20] sm:$0xf]
        %v4752 = vld [vmem:[%s4742 + $0x24] sm:$0xf]
        %v4753 = vld [vmem:[%s4742 + $0x28] sm:$0xf]
        %v4754 = vld [vmem:[%s4742 + $0x2c] sm:$0xf]
        %v4755 = vld [vmem:[%s4742 + $0x30] sm:$0xf]
        %v4756 = vld [vmem:[%s4742 + $0x34] sm:$0xf]
        %v4757 = vld [vmem:[%s4742 + $0x38] sm:$0xf]
        %v4758 = vld [vmem:[%s4742 + $0x3c] sm:$0xf]
        %v4775 = vunpack.c.l.b16 %v4743
        %v4776 = vunpack.c.l.b16 %v4744
        %v4777 = vunpack.c.l.b16 %v4745
        %v4778 = vunpack.c.l.b16 %v4746
        %v4779 = vunpack.c.l.b16 %v4747
        %v4780 = vunpack.c.l.b16 %v4748
        %v4781 = vunpack.c.l.b16 %v4749
        %v4782 = vunpack.c.l.b16 %v4750
        %v4783 = vunpack.c.l.b16 %v4751
        %v4784 = vunpack.c.l.b16 %v4752
        %v4785 = vunpack.c.l.b16 %v4753
        %v4786 = vunpack.c.l.b16 %v4754
        %v4787 = vunpack.c.l.b16 %v4755
        %v4788 = vunpack.c.l.b16 %v4756
        %v4789 = vunpack.c.l.b16 %v4757
        %v4790 = vunpack.c.l.b16 %v4758
        %v4791 = vpack.c.b16 %v4776, %v4775
        %v4792 = vpack.c.b16 %v4778, %v4777
        %v4793 = vpack.c.b16 %v4780, %v4779
        %v4794 = vpack.c.b16 %v4782, %v4781
        %v4795 = vpack.c.b16 %v4784, %v4783
        %v4796 = vpack.c.b16 %v4786, %v4785
        %v4797 = vpack.c.b16 %v4788, %v4787
        %v4798 = vpack.c.b16 %v4790, %v4789
        %4807 = vmatprep.subr.bf16.mxu0 0
        %4808 = vmatpush1.bf16.msra.mxu0 %v4791
        %4809 = vmatprep.subr.bf16.mxu0 0
        %4810 = vmatpush1.bf16.msra.mxu0 %v4792
        %4811 = vmatprep.subr.bf16.mxu0 0
        %4812 = vmatpush1.bf16.msra.mxu0 %v4793
        %4813 = vmatprep.subr.bf16.mxu0 0
        %4814 = vmatpush1.bf16.msra.mxu0 %v4794
        %4815 = vmatprep.subr.bf16.mxu0 0
        %4816 = vmatpush1.bf16.msra.mxu0 %v4795
        %4817 = vmatprep.subr.bf16.mxu0 0
        %4818 = vmatpush1.bf16.msra.mxu0 %v4796
        %4819 = vmatprep.subr.bf16.mxu0 0
        %4820 = vmatpush1.bf16.msra.mxu0 %v4797
        %4821 = vmatprep.subr.bf16.mxu0 0
        %4822 = vmatpush1.bf16.msra.mxu0 %v4798
        %4823 = vmatprep.subr.bf16.mxu0 0
        %4824 = vmatpush1.bf16.msra.mxu0 0
        %4825 = vmatprep.subr.bf16.mxu0 0
        %4826 = vmatpush1.bf16.msra.mxu0 0
        %4827 = vmatprep.subr.bf16.mxu0 0
        %4828 = vmatpush1.bf16.msra.mxu0 0
        %4829 = vmatprep.subr.bf16.mxu0 0
        %4830 = vmatpush1.bf16.msra.mxu0 0
        %4831 = vmatprep.subr.bf16.mxu0 0
        %4832 = vmatpush1.bf16.msra.mxu0 0
        %4833 = vmatprep.subr.bf16.mxu0 0
        %4834 = vmatpush1.bf16.msra.mxu0 0
        %4835 = vmatprep.subr.bf16.mxu0 0
        %4836 = vmatpush1.bf16.msra.mxu0 0
        %4837 = vmatprep.subr.bf16.mxu0 0
        %4838 = vmatpush1.bf16.msra.mxu0 0
        %4839 = vmatprep.mubr.bf16.mxu0 0
        %4840 = vmatmul.mubr.bf16.gmra.mrb[0].mxu0 %v4741
        %v4841 = vpop.f32.mrb[0].mxu0
        %v4842 = vadd.f32 0.0, %v4841
        %v4843 = vpop.f32.mrb[0].mxu0
        %v4844 = vpop.f32.mrb[0].mxu0
        %v4845 = vadd.f32 0.0, %v4844
        %v4846 = vpop.f32.mrb[0].mxu0
        %4847 = vdwg.mxu0
        %v4848 = vadd.f32 %v4683, %v4842
        %v4849 = vadd.f32 %v4686, %v4845
        %v4850 = vld [vmem:[%s19] sm:$0x1]
        %v4852 = vlaneseq
        %v4853 = vshrl.u32 %v4852, 7
        %v4854 = vsub.s32 0, %v4853
        %v4855 = vrot.slane %v4850, %v4854
        %v4857 = vmul.f32 %v4848, %v4855
        %v4858 = vmul.f32 %v4849, %v4855
        %v4859 = vld [vmem:[%s21] sm:$0x1]
        %v4861 = vlaneseq
        %v4862 = vshrl.u32 %v4861, 7
        %v4863 = vsub.s32 0, %v4862
        %v4864 = vrot.slane %v4859, %v4863
        %v4866 = vadd.f32 %v4857, %v4864
        %v4867 = vadd.f32 %v4858, %v4864
        %v4868 = vmax.f32 %v4866, 0.0
        %v4869 = vmax.f32 %v4867, 0.0
        %v4870 = vpack.c.bf16 %v4869, %v4868
        %v4871 = vld [vmem:[%s23] sm:$0xf]
        %v4872 = vld [vmem:[%s23 + $0x4] sm:$0xf]
        %v4875 = vunpack.c.l.b16 %v4871
        %v4876 = vunpack.c.l.b16 %v4872
        %v4877 = vpack.c.b16 %v4876, %v4875
        %v4879 = vsel %vm4379, %v4877, 0
        %4881 = vmatprep.subr.bf16.mxu0 0
        %4882 = vmatpush1.bf16.msra.mxu0 %v4870
        %4883 = vmatprep.subr.bf16.mxu0 0
        %4884 = vmatpush1.bf16.msra.mxu0 0
        %4885 = vmatprep.subr.bf16.mxu0 0
        %4886 = vmatpush1.bf16.msra.mxu0 0
        %4887 = vmatprep.subr.bf16.mxu0 0
        %4888 = vmatpush1.bf16.msra.mxu0 0
        %4889 = vmatprep.subr.bf16.mxu0 0
        %4890 = vmatpush1.bf16.msra.mxu0 0
        %4891 = vmatprep.subr.bf16.mxu0 0
        %4892 = vmatpush1.bf16.msra.mxu0 0
        %4893 = vmatprep.subr.bf16.mxu0 0
        %4894 = vmatpush1.bf16.msra.mxu0 0
        %4895 = vmatprep.subr.bf16.mxu0 0
        %4896 = vmatpush1.bf16.msra.mxu0 0
        %4897 = vmatprep.subr.bf16.mxu0 0
        %4898 = vmatpush1.bf16.msra.mxu0 0
        %4899 = vmatprep.subr.bf16.mxu0 0
        %4900 = vmatpush1.bf16.msra.mxu0 0
        %4901 = vmatprep.subr.bf16.mxu0 0
        %4902 = vmatpush1.bf16.msra.mxu0 0
        %4903 = vmatprep.subr.bf16.mxu0 0
        %4904 = vmatpush1.bf16.msra.mxu0 0
        %4905 = vmatprep.subr.bf16.mxu0 0
        %4906 = vmatpush1.bf16.msra.mxu0 0
        %4907 = vmatprep.subr.bf16.mxu0 0
        %4908 = vmatpush1.bf16.msra.mxu0 0
        %4909 = vmatprep.subr.bf16.mxu0 0
        %4910 = vmatpush1.bf16.msra.mxu0 0
        %4911 = vmatprep.subr.bf16.mxu0 0
        %4912 = vmatpush1.bf16.msra.mxu0 0
        %4913 = vmatprep.mubr.bf16.mxu0 0
        %4914 = vmatmul.mubr.bf16.gmra.mrb[0].mxu0 %v4879
        %v4915 = vpop.f32.mrb[0].mxu0
        %v4916 = vadd.f32 0.0, %v4915
        %v4917 = vpop.f32.mrb[0].mxu0
        %v4918 = vpop.f32.mrb[0].mxu0
        %v4919 = vadd.f32 0.0, %v4918
        %v4920 = vpop.f32.mrb[0].mxu0
        %4921 = vdwg.mxu0
        %v4922 = vpack.c.bf16 %v4919, %v4916
        %v4923 = vld [vmem:[%s25] sm:$0xf]
        %v4924 = vld [vmem:[%s25 + $0x4] sm:$0xf]
        %v4925 = vld [vmem:[%s25 + $0x8] sm:$0xf]
        %v4926 = vld [vmem:[%s25 + $0xc] sm:$0xf]
        %v4927 = vld [vmem:[%s25 + $0x10] sm:$0xf]
        %v4928 = vld [vmem:[%s25 + $0x14] sm:$0xf]
        %v4929 = vld [vmem:[%s25 + $0x18] sm:$0xf]
        %v4930 = vld [vmem:[%s25 + $0x1c] sm:$0xf]
        %v4931 = vld [vmem:[%s25 + $0x20] sm:$0xf]
        %v4932 = vld [vmem:[%s25 + $0x24] sm:$0xf]
        %v4933 = vld [vmem:[%s25 + $0x28] sm:$0xf]
        %v4934 = vld [vmem:[%s25 + $0x2c] sm:$0xf]
        %v4935 = vld [vmem:[%s25 + $0x30] sm:$0xf]
        %v4936 = vld [vmem:[%s25 + $0x34] sm:$0xf]
        %v4937 = vld [vmem:[%s25 + $0x38] sm:$0xf]
        %v4938 = vld [vmem:[%s25 + $0x3c] sm:$0xf]
        %s4939 = scalar_lea.vmem %s23, 8
        %v4940 = vld [vmem:[%s4939] sm:$0xf]
        %v4941 = vld [vmem:[%s4939 + $0x4] sm:$0xf]
        %v4944 = vunpack.c.l.b16 %v4940
        %v4945 = vunpack.c.l.b16 %v4941
        %v4946 = vpack.c.b16 %v4945, %v4944
        %v4948 = vsel %vm4379, %v4946, 0
        %4950 = vmatprep.subr.bf16.mxu0 0
        %4951 = vmatpush1.bf16.msra.mxu0 %v4870
        %4952 = vmatprep.subr.bf16.mxu0 0
        %4953 = vmatpush1.bf16.msra.mxu0 0
        %4954 = vmatprep.subr.bf16.mxu0 0
        %4955 = vmatpush1.bf16.msra.mxu0 0
        %4956 = vmatprep.subr.bf16.mxu0 0
        %4957 = vmatpush1.bf16.msra.mxu0 0
        %4958 = vmatprep.subr.bf16.mxu0 0
        %4959 = vmatpush1.bf16.msra.mxu0 0
        %4960 = vmatprep.subr.bf16.mxu0 0
        %4961 = vmatpush1.bf16.msra.mxu0 0
        %4962 = vmatprep.subr.bf16.mxu0 0
        %4963 = vmatpush1.bf16.msra.mxu0 0
        %4964 = vmatprep.subr.bf16.mxu0 0
        %4965 = vmatpush1.bf16.msra.mxu0 0
        %4966 = vmatprep.subr.bf16.mxu0 0
        %4967 = vmatpush1.bf16.msra.mxu0 0
        %4968 = vmatprep.subr.bf16.mxu0 0
        %4969 = vmatpush1.bf16.msra.mxu0 0
        %4970 = vmatprep.subr.bf16.mxu0 0
        %4971 = vmatpush1.bf16.msra.mxu0 0
        %4972 = vmatprep.subr.bf16.mxu0 0
        %4973 = vmatpush1.bf16.msra.mxu0 0
        %4974 = vmatprep.subr.bf16.mxu0 0
        %4975 = vmatpush1.bf16.msra.mxu0 0
        %4976 = vmatprep.subr.bf16.mxu0 0
        %4977 = vmatpush1.bf16.msra.mxu0 0
        %4978 = vmatprep.subr.bf16.mxu0 0
        %4979 = vmatpush1.bf16.msra.mxu0 0
        %4980 = vmatprep.subr.bf16.mxu0 0
        %4981 = vmatpush1.bf16.msra.mxu0 0
        %4982 = vmatprep.mubr.bf16.mxu0 0
        %4983 = vmatmul.mubr.bf16.gmra.mrb[0].mxu0 %v4948
        %v4984 = vpop.f32.mrb[0].mxu0
        %v4985 = vadd.f32 0.0, %v4984
        %v4986 = vpop.f32.mrb[0].mxu0
        %v4987 = vpop.f32.mrb[0].mxu0
        %v4988 = vadd.f32 0.0, %v4987
        %v4989 = vpop.f32.mrb[0].mxu0
        %4990 = vdwg.mxu0
        %v4991 = vpack.c.bf16 %v4988, %v4985
        %s4992 = scalar_lea.vmem %s25, 64
        %v4993 = vld [vmem:[%s4992] sm:$0xf]
        %v4994 = vld [vmem:[%s4992 + $0x4] sm:$0xf]
        %v4995 = vld [vmem:[%s4992 + $0x8] sm:$0xf]
        %v4996 = vld [vmem:[%s4992 + $0xc] sm:$0xf]
        %v4997 = vld [vmem:[%s4992 + $0x10] sm:$0xf]
        %v4998 = vld [vmem:[%s4992 + $0x14] sm:$0xf]
        %v4999 = vld [vmem:[%s4992 + $0x18] sm:$0xf]
        %v5000 = vld [vmem:[%s4992 + $0x1c] sm:$0xf]
        %v5001 = vld [vmem:[%s4992 + $0x20] sm:$0xf]
        %v5002 = vld [vmem:[%s4992 + $0x24] sm:$0xf]
        %v5003 = vld [vmem:[%s4992 + $0x28] sm:$0xf]
        %v5004 = vld [vmem:[%s4992 + $0x2c] sm:$0xf]
        %v5005 = vld [vmem:[%s4992 + $0x30] sm:$0xf]
        %v5006 = vld [vmem:[%s4992 + $0x34] sm:$0xf]
        %v5007 = vld [vmem:[%s4992 + $0x38] sm:$0xf]
        %v5008 = vld [vmem:[%s4992 + $0x3c] sm:$0xf]
        %v5025 = vunpack.c.l.b16 %v4993
        %v5026 = vunpack.c.l.b16 %v4994
        %v5027 = vunpack.c.l.b16 %v4995
        %v5028 = vunpack.c.l.b16 %v4996
        %v5029 = vunpack.c.l.b16 %v4997
        %v5030 = vunpack.c.l.b16 %v4998
        %v5031 = vunpack.c.l.b16 %v4999
        %v5032 = vunpack.c.l.b16 %v5000
        %v5033 = vunpack.c.l.b16 %v5001
        %v5034 = vunpack.c.l.b16 %v5002
        %v5035 = vunpack.c.l.b16 %v5003
        %v5036 = vunpack.c.l.b16 %v5004
        %v5037 = vunpack.c.l.b16 %v5005
        %v5038 = vunpack.c.l.b16 %v5006
        %v5039 = vunpack.c.l.b16 %v5007
        %v5040 = vunpack.c.l.b16 %v5008
        %v5041 = vpack.c.b16 %v5026, %v5025
        %v5042 = vpack.c.b16 %v5028, %v5027
        %v5043 = vpack.c.b16 %v5030, %v5029
        %v5044 = vpack.c.b16 %v5032, %v5031
        %v5045 = vpack.c.b16 %v5034, %v5033
        %v5046 = vpack.c.b16 %v5036, %v5035
        %v5047 = vpack.c.b16 %v5038, %v5037
        %v5048 = vpack.c.b16 %v5040, %v5039
        %5057 = vmatprep.subr.bf16.mxu0 0
        %5058 = vmatpush1.bf16.msra.mxu0 %v5041
        %5059 = vmatprep.subr.bf16.mxu0 0
        %5060 = vmatpush1.bf16.msra.mxu0 %v5042
        %5061 = vmatprep.subr.bf16.mxu0 0
        %5062 = vmatpush1.bf16.msra.mxu0 %v5043
        %5063 = vmatprep.subr.bf16.mxu0 0
        %5064 = vmatpush1.bf16.msra.mxu0 %v5044
        %5065 = vmatprep.subr.bf16.mxu0 0
        %5066 = vmatpush1.bf16.msra.mxu0 %v5045
        %5067 = vmatprep.subr.bf16.mxu0 0
        %5068 = vmatpush1.bf16.msra.mxu0 %v5046
        %5069 = vmatprep.subr.bf16.mxu0 0
        %5070 = vmatpush1.bf16.msra.mxu0 %v5047
        %5071 = vmatprep.subr.bf16.mxu0 0
        %5072 = vmatpush1.bf16.msra.mxu0 %v5048
        %5073 = vmatprep.subr.bf16.mxu0 0
        %5074 = vmatpush1.bf16.msra.mxu0 0
        %5075 = vmatprep.subr.bf16.mxu0 0
        %5076 = vmatpush1.bf16.msra.mxu0 0
        %5077 = vmatprep.subr.bf16.mxu0 0
        %5078 = vmatpush1.bf16.msra.mxu0 0
        %5079 = vmatprep.subr.bf16.mxu0 0
        %5080 = vmatpush1.bf16.msra.mxu0 0
        %5081 = vmatprep.subr.bf16.mxu0 0
        %5082 = vmatpush1.bf16.msra.mxu0 0
        %5083 = vmatprep.subr.bf16.mxu0 0
        %5084 = vmatpush1.bf16.msra.mxu0 0
        %5085 = vmatprep.subr.bf16.mxu0 0
        %5086 = vmatpush1.bf16.msra.mxu0 0
        %5087 = vmatprep.subr.bf16.mxu0 0
        %5088 = vmatpush1.bf16.msra.mxu0 0
        %5089 = vmatprep.mubr.bf16.mxu0 0
        %5090 = vmatmul.mubr.bf16.gmra.mrb[0].mxu0 %v4991
        %v5091 = vpop.f32.mrb[0].mxu0
        %v5092 = vadd.f32 0.0, %v5091
        %v5093 = vpop.f32.mrb[0].mxu0
        %v5094 = vpop.f32.mrb[0].mxu0
        %v5095 = vadd.f32 0.0, %v5094
        %v5096 = vpop.f32.mrb[0].mxu0
        %5097 = vdwg.mxu0
        %v5114 = vunpack.c.l.b16 %v4923
        %v5115 = vunpack.c.l.b16 %v4924
        %v5116 = vunpack.c.l.b16 %v4925
        %v5117 = vunpack.c.l.b16 %v4926
        %v5118 = vunpack.c.l.b16 %v4927
        %v5119 = vunpack.c.l.b16 %v4928
        %v5120 = vunpack.c.l.b16 %v4929
        %v5121 = vunpack.c.l.b16 %v4930
        %v5122 = vunpack.c.l.b16 %v4931
        %v5123 = vunpack.c.l.b16 %v4932
        %v5124 = vunpack.c.l.b16 %v4933
        %v5125 = vunpack.c.l.b16 %v4934
        %v5126 = vunpack.c.l.b16 %v4935
        %v5127 = vunpack.c.l.b16 %v4936
        %v5128 = vunpack.c.l.b16 %v4937
        %v5129 = vunpack.c.l.b16 %v4938
        %v5130 = vpack.c.b16 %v5115, %v5114
        %v5131 = vpack.c.b16 %v5117, %v5116
        %v5132 = vpack.c.b16 %v5119, %v5118
        %v5133 = vpack.c.b16 %v5121, %v5120
        %v5134 = vpack.c.b16 %v5123, %v5122
        %v5135 = vpack.c.b16 %v5125, %v5124
        %v5136 = vpack.c.b16 %v5127, %v5126
        %v5137 = vpack.c.b16 %v5129, %v5128
        %5146 = vmatprep.subr.bf16.mxu0 0
        %5147 = vmatpush1.bf16.msra.mxu0 %v5130
        %5148 = vmatprep.subr.bf16.mxu0 0
        %5149 = vmatpush1.bf16.msra.mxu0 %v5131
        %5150 = vmatprep.subr.bf16.mxu0 0
        %5151 = vmatpush1.bf16.msra.mxu0 %v5132
        %5152 = vmatprep.subr.bf16.mxu0 0
        %5153 = vmatpush1.bf16.msra.mxu0 %v5133
        %5154 = vmatprep.subr.bf16.mxu0 0
        %5155 = vmatpush1.bf16.msra.mxu0 %v5134
        %5156 = vmatprep.subr.bf16.mxu0 0
        %5157 = vmatpush1.bf16.msra.mxu0 %v5135
        %5158 = vmatprep.subr.bf16.mxu0 0
        %5159 = vmatpush1.bf16.msra.mxu0 %v5136
        %5160 = vmatprep.subr.bf16.mxu0 0
        %5161 = vmatpush1.bf16.msra.mxu0 %v5137
        %5162 = vmatprep.subr.bf16.mxu0 0
        %5163 = vmatpush1.bf16.msra.mxu0 0
        %5164 = vmatprep.subr.bf16.mxu0 0
        %5165 = vmatpush1.bf16.msra.mxu0 0
        %5166 = vmatprep.subr.bf16.mxu0 0
        %5167 = vmatpush1.bf16.msra.mxu0 0
        %5168 = vmatprep.subr.bf16.mxu0 0
        %5169 = vmatpush1.bf16.msra.mxu0 0
        %5170 = vmatprep.subr.bf16.mxu0 0
        %5171 = vmatpush1.bf16.msra.mxu0 0
        %5172 = vmatprep.subr.bf16.mxu0 0
        %5173 = vmatpush1.bf16.msra.mxu0 0
        %5174 = vmatprep.subr.bf16.mxu0 0
        %5175 = vmatpush1.bf16.msra.mxu0 0
        %5176 = vmatprep.subr.bf16.mxu0 0
        %5177 = vmatpush1.bf16.msra.mxu0 0
        %5178 = vmatprep.mubr.bf16.mxu0 0
        %5179 = vmatmul.mubr.bf16.gmra.mrb[0].mxu0 %v4922
        %v5180 = vpop.f32.mrb[0].mxu0
        %v5181 = vadd.f32 %v5092, %v5180
        %v5182 = vpop.f32.mrb[0].mxu0
        %v5183 = vpop.f32.mrb[0].mxu0
        %v5184 = vadd.f32 %v5095, %v5183
        %v5185 = vpop.f32.mrb[0].mxu0
        %5186 = vdwg.mxu0
        %s5187 = scalar_lea.vmem %s23, 16
        %v5188 = vld [vmem:[%s5187] sm:$0xf]
        %v5189 = vld [vmem:[%s5187 + $0x4] sm:$0xf]
        %v5192 = vunpack.c.l.b16 %v5188
        %v5193 = vunpack.c.l.b16 %v5189
        %v5194 = vpack.c.b16 %v5193, %v5192
        %v5196 = vsel %vm4379, %v5194, 0
        %5198 = vmatprep.subr.bf16.mxu0 0
        %5199 = vmatpush1.bf16.msra.mxu0 %v4870
        %5200 = vmatprep.subr.bf16.mxu0 0
        %5201 = vmatpush1.bf16.msra.mxu0 0
        %5202 = vmatprep.subr.bf16.mxu0 0
        %5203 = vmatpush1.bf16.msra.mxu0 0
        %5204 = vmatprep.subr.bf16.mxu0 0
        %5205 = vmatpush1.bf16.msra.mxu0 0
        %5206 = vmatprep.subr.bf16.mxu0 0
        %5207 = vmatpush1.bf16.msra.mxu0 0
        %5208 = vmatprep.subr.bf16.mxu0 0
        %5209 = vmatpush1.bf16.msra.mxu0 0
        %5210 = vmatprep.subr.bf16.mxu0 0
        %5211 = vmatpush1.bf16.msra.mxu0 0
        %5212 = vmatprep.subr.bf16.mxu0 0
        %5213 = vmatpush1.bf16.msra.mxu0 0
        %5214 = vmatprep.subr.bf16.mxu0 0
        %5215 = vmatpush1.bf16.msra.mxu0 0
        %5216 = vmatprep.subr.bf16.mxu0 0
        %5217 = vmatpush1.bf16.msra.mxu0 0
        %5218 = vmatprep.subr.bf16.mxu0 0
        %5219 = vmatpush1.bf16.msra.mxu0 0
        %5220 = vmatprep.subr.bf16.mxu0 0
        %5221 = vmatpush1.bf16.msra.mxu0 0
        %5222 = vmatprep.subr.bf16.mxu0 0
        %5223 = vmatpush1.bf16.msra.mxu0 0
        %5224 = vmatprep.subr.bf16.mxu0 0
        %5225 = vmatpush1.bf16.msra.mxu0 0
        %5226 = vmatprep.subr.bf16.mxu0 0
        %5227 = vmatpush1.bf16.msra.mxu0 0
        %5228 = vmatprep.subr.bf16.mxu0 0
        %5229 = vmatpush1.bf16.msra.mxu0 0
        %5230 = vmatprep.mubr.bf16.mxu0 0
        %5231 = vmatmul.mubr.bf16.gmra.mrb[0].mxu0 %v5196
        %v5232 = vpop.f32.mrb[0].mxu0
        %v5233 = vadd.f32 0.0, %v5232
        %v5234 = vpop.f32.mrb[0].mxu0
        %v5235 = vpop.f32.mrb[0].mxu0
        %v5236 = vadd.f32 0.0, %v5235
        %v5237 = vpop.f32.mrb[0].mxu0
        %5238 = vdwg.mxu0
        %v5239 = vpack.c.bf16 %v5236, %v5233
        %s5240 = scalar_lea.vmem %s25, 128
        %v5241 = vld [vmem:[%s5240] sm:$0xf]
        %v5242 = vld [vmem:[%s5240 + $0x4] sm:$0xf]
        %v5243 = vld [vmem:[%s5240 + $0x8] sm:$0xf]
        %v5244 = vld [vmem:[%s5240 + $0xc] sm:$0xf]
        %v5245 = vld [vmem:[%s5240 + $0x10] sm:$0xf]
        %v5246 = vld [vmem:[%s5240 + $0x14] sm:$0xf]
        %v5247 = vld [vmem:[%s5240 + $0x18] sm:$0xf]
        %v5248 = vld [vmem:[%s5240 + $0x1c] sm:$0xf]
        %v5249 = vld [vmem:[%s5240 + $0x20] sm:$0xf]
        %v5250 = vld [vmem:[%s5240 + $0x24] sm:$0xf]
        %v5251 = vld [vmem:[%s5240 + $0x28] sm:$0xf]
        %v5252 = vld [vmem:[%s5240 + $0x2c] sm:$0xf]
        %v5253 = vld [vmem:[%s5240 + $0x30] sm:$0xf]
        %v5254 = vld [vmem:[%s5240 + $0x34] sm:$0xf]
        %v5255 = vld [vmem:[%s5240 + $0x38] sm:$0xf]
        %v5256 = vld [vmem:[%s5240 + $0x3c] sm:$0xf]
        %v5273 = vunpack.c.l.b16 %v5241
        %v5274 = vunpack.c.l.b16 %v5242
        %v5275 = vunpack.c.l.b16 %v5243
        %v5276 = vunpack.c.l.b16 %v5244
        %v5277 = vunpack.c.l.b16 %v5245
        %v5278 = vunpack.c.l.b16 %v5246
        %v5279 = vunpack.c.l.b16 %v5247
        %v5280 = vunpack.c.l.b16 %v5248
        %v5281 = vunpack.c.l.b16 %v5249
        %v5282 = vunpack.c.l.b16 %v5250
        %v5283 = vunpack.c.l.b16 %v5251
        %v5284 = vunpack.c.l.b16 %v5252
        %v5285 = vunpack.c.l.b16 %v5253
        %v5286 = vunpack.c.l.b16 %v5254
        %v5287 = vunpack.c.l.b16 %v5255
        %v5288 = vunpack.c.l.b16 %v5256
        %v5289 = vpack.c.b16 %v5274, %v5273
        %v5290 = vpack.c.b16 %v5276, %v5275
        %v5291 = vpack.c.b16 %v5278, %v5277
        %v5292 = vpack.c.b16 %v5280, %v5279
        %v5293 = vpack.c.b16 %v5282, %v5281
        %v5294 = vpack.c.b16 %v5284, %v5283
        %v5295 = vpack.c.b16 %v5286, %v5285
        %v5296 = vpack.c.b16 %v5288, %v5287
        %5305 = vmatprep.subr.bf16.mxu0 0
        %5306 = vmatpush1.bf16.msra.mxu0 %v5289
        %5307 = vmatprep.subr.bf16.mxu0 0
        %5308 = vmatpush1.bf16.msra.mxu0 %v5290
        %5309 = vmatprep.subr.bf16.mxu0 0
        %5310 = vmatpush1.bf16.msra.mxu0 %v5291
        %5311 = vmatprep.subr.bf16.mxu0 0
        %5312 = vmatpush1.bf16.msra.mxu0 %v5292
        %5313 = vmatprep.subr.bf16.mxu0 0
        %5314 = vmatpush1.bf16.msra.mxu0 %v5293
        %5315 = vmatprep.subr.bf16.mxu0 0
        %5316 = vmatpush1.bf16.msra.mxu0 %v5294
        %5317 = vmatprep.subr.bf16.mxu0 0
        %5318 = vmatpush1.bf16.msra.mxu0 %v5295
        %5319 = vmatprep.subr.bf16.mxu0 0
        %5320 = vmatpush1.bf16.msra.mxu0 %v5296
        %5321 = vmatprep.subr.bf16.mxu0 0
        %5322 = vmatpush1.bf16.msra.mxu0 0
        %5323 = vmatprep.subr.bf16.mxu0 0
        %5324 = vmatpush1.bf16.msra.mxu0 0
        %5325 = vmatprep.subr.bf16.mxu0 0
        %5326 = vmatpush1.bf16.msra.mxu0 0
        %5327 = vmatprep.subr.bf16.mxu0 0
        %5328 = vmatpush1.bf16.msra.mxu0 0
        %5329 = vmatprep.subr.bf16.mxu0 0
        %5330 = vmatpush1.bf16.msra.mxu0 0
        %5331 = vmatprep.subr.bf16.mxu0 0
        %5332 = vmatpush1.bf16.msra.mxu0 0
        %5333 = vmatprep.subr.bf16.mxu0 0
        %5334 = vmatpush1.bf16.msra.mxu0 0
        %5335 = vmatprep.subr.bf16.mxu0 0
        %5336 = vmatpush1.bf16.msra.mxu0 0
        %5337 = vmatprep.mubr.bf16.mxu0 0
        %5338 = vmatmul.mubr.bf16.gmra.mrb[0].mxu0 %v5239
        %v5339 = vpop.f32.mrb[0].mxu0
        %v5340 = vadd.f32 0.0, %v5339
        %v5341 = vpop.f32.mrb[0].mxu0
        %v5342 = vpop.f32.mrb[0].mxu0
        %v5343 = vadd.f32 0.0, %v5342
        %v5344 = vpop.f32.mrb[0].mxu0
        %5345 = vdwg.mxu0
        %v5346 = vadd.f32 %v5181, %v5340
        %v5347 = vadd.f32 %v5184, %v5343
        %v5348 = vld [vmem:[%s27] sm:$0x1]
        %v5350 = vlaneseq
        %v5351 = vshrl.u32 %v5350, 7
        %v5352 = vsub.s32 0, %v5351
        %v5353 = vrot.slane %v5348, %v5352
        %v5355 = vmul.f32 %v5346, %v5353
        %v5356 = vmul.f32 %v5347, %v5353
        %v5357 = vld [vmem:[%s29] sm:$0x1]
        %v5359 = vlaneseq
        %v5360 = vshrl.u32 %v5359, 7
        %v5361 = vsub.s32 0, %v5360
        %v5362 = vrot.slane %v5357, %v5361
        %v5364 = vadd.f32 %v5355, %v5362
        %v5365 = vadd.f32 %v5356, %v5362
        %v5366 = vunpack.c.l.bf16 %v4371
        %v5367 = vunpack.c.h.bf16 %v4371
        %v5368 = vadd.f32 %v5364, %v5366
        %v5369 = vadd.f32 %v5365, %v5367
        %v5370 = vmax.f32 %v5368, 0.0
        %v5371 = vmax.f32 %v5369, 0.0
        %v5372 = vpack.c.bf16 %v5371, %v5370
        %v5373 = vld [vmem:[%s31] sm:$0xf]
        %v5375 = vsel %vm4379, %v5373, 0
        %5377 = vmatprep.subr.bf16.mxu0 0
        %5378 = vmatpush1.bf16.msra.mxu0 %v5372
        %5379 = vmatprep.subr.bf16.mxu0 0
        %5380 = vmatpush1.bf16.msra.mxu0 0
        %5381 = vmatprep.subr.bf16.mxu0 0
        %5382 = vmatpush1.bf16.msra.mxu0 0
        %5383 = vmatprep.subr.bf16.mxu0 0
        %5384 = vmatpush1.bf16.msra.mxu0 0
        %5385 = vmatprep.subr.bf16.mxu0 0
        %5386 = vmatpush1.bf16.msra.mxu0 0
        %5387 = vmatprep.subr.bf16.mxu0 0
        %5388 = vmatpush1.bf16.msra.mxu0 0
        %5389 = vmatprep.subr.bf16.mxu0 0
        %5390 = vmatpush1.bf16.msra.mxu0 0
        %5391 = vmatprep.subr.bf16.mxu0 0
        %5392 = vmatpush1.bf16.msra.mxu0 0
        %5393 = vmatprep.subr.bf16.mxu0 0
        %5394 = vmatpush1.bf16.msra.mxu0 0
        %5395 = vmatprep.subr.bf16.mxu0 0
        %5396 = vmatpush1.bf16.msra.mxu0 0
        %5397 = vmatprep.subr.bf16.mxu0 0
        %5398 = vmatpush1.bf16.msra.mxu0 0
        %5399 = vmatprep.subr.bf16.mxu0 0
        %5400 = vmatpush1.bf16.msra.mxu0 0
        %5401 = vmatprep.subr.bf16.mxu0 0
        %5402 = vmatpush1.bf16.msra.mxu0 0
        %5403 = vmatprep.subr.bf16.mxu0 0
        %5404 = vmatpush1.bf16.msra.mxu0 0
        %5405 = vmatprep.subr.bf16.mxu0 0
        %5406 = vmatpush1.bf16.msra.mxu0 0
        %5407 = vmatprep.subr.bf16.mxu0 0
        %5408 = vmatpush1.bf16.msra.mxu0 0
        %5409 = vmatprep.mubr.bf16.mxu0 0
        %5410 = vmatmul.mubr.bf16.gmra.mrb[0].mxu0 %v5375
        %v5411 = vpop.f32.mrb[0].mxu0
        %v5412 = vadd.f32 0.0, %v5411
        %v5413 = vpop.f32.mrb[0].mxu0
        %v5414 = vpop.f32.mrb[0].mxu0
        %v5415 = vpop.f32.mrb[0].mxu0
        %5416 = vdwg.mxu0
        %v5417 = vpack.c.bf16 %v5412, %v5412
        %v5418 = vld [vmem:[%s33] sm:$0xf]
        %v5419 = vld [vmem:[%s33 + $0x4] sm:$0xf]
        %v5420 = vld [vmem:[%s33 + $0x8] sm:$0xf]
        %v5421 = vld [vmem:[%s33 + $0xc] sm:$0xf]
        %v5422 = vld [vmem:[%s33 + $0x10] sm:$0xf]
        %v5423 = vld [vmem:[%s33 + $0x14] sm:$0xf]
        %v5424 = vld [vmem:[%s33 + $0x18] sm:$0xf]
        %v5425 = vld [vmem:[%s33 + $0x1c] sm:$0xf]
        %v5426 = vld [vmem:[%s33 + $0x20] sm:$0xf]
        %v5427 = vld [vmem:[%s33 + $0x24] sm:$0xf]
        %v5428 = vld [vmem:[%s33 + $0x28] sm:$0xf]
        %v5429 = vld [vmem:[%s33 + $0x2c] sm:$0xf]
        %v5430 = vld [vmem:[%s33 + $0x30] sm:$0xf]
        %v5431 = vld [vmem:[%s33 + $0x34] sm:$0xf]
        %v5432 = vld [vmem:[%s33 + $0x38] sm:$0xf]
        %v5433 = vld [vmem:[%s33 + $0x3c] sm:$0xf]
        %s5434 = scalar_lea.vmem %s31, 4
        %v5435 = vld [vmem:[%s5434] sm:$0xf]
        %v5437 = vsel %vm4379, %v5435, 0
        %5439 = vmatprep.subr.bf16.mxu0 0
        %5440 = vmatpush1.bf16.msra.mxu0 %v5372
        %5441 = vmatprep.subr.bf16.mxu0 0
        %5442 = vmatpush1.bf16.msra.mxu0 0
        %5443 = vmatprep.subr.bf16.mxu0 0
        %5444 = vmatpush1.bf16.msra.mxu0 0
        %5445 = vmatprep.subr.bf16.mxu0 0
        %5446 = vmatpush1.bf16.msra.mxu0 0
        %5447 = vmatprep.subr.bf16.mxu0 0
        %5448 = vmatpush1.bf16.msra.mxu0 0
        %5449 = vmatprep.subr.bf16.mxu0 0
        %5450 = vmatpush1.bf16.msra.mxu0 0
        %5451 = vmatprep.subr.bf16.mxu0 0
        %5452 = vmatpush1.bf16.msra.mxu0 0
        %5453 = vmatprep.subr.bf16.mxu0 0
        %5454 = vmatpush1.bf16.msra.mxu0 0
        %5455 = vmatprep.subr.bf16.mxu0 0
        %5456 = vmatpush1.bf16.msra.mxu0 0
        %5457 = vmatprep.subr.bf16.mxu0 0
        %5458 = vmatpush1.bf16.msra.mxu0 0
        %5459 = vmatprep.subr.bf16.mxu0 0
        %5460 = vmatpush1.bf16.msra.mxu0 0
        %5461 = vmatprep.subr.bf16.mxu0 0
        %5462 = vmatpush1.bf16.msra.mxu0 0
        %5463 = vmatprep.subr.bf16.mxu0 0
        %5464 = vmatpush1.bf16.msra.mxu0 0
        %5465 = vmatprep.subr.bf16.mxu0 0
        %5466 = vmatpush1.bf16.msra.mxu0 0
        %5467 = vmatprep.subr.bf16.mxu0 0
        %5468 = vmatpush1.bf16.msra.mxu0 0
        %5469 = vmatprep.subr.bf16.mxu0 0
        %5470 = vmatpush1.bf16.msra.mxu0 0
        %5471 = vmatprep.mubr.bf16.mxu0 0
        %5472 = vmatmul.mubr.bf16.gmra.mrb[0].mxu0 %v5437
        %v5473 = vpop.f32.mrb[0].mxu0
        %v5474 = vadd.f32 0.0, %v5473
        %v5475 = vpop.f32.mrb[0].mxu0
        %v5476 = vpop.f32.mrb[0].mxu0
        %v5477 = vpop.f32.mrb[0].mxu0
        %5478 = vdwg.mxu0
        %v5479 = vpack.c.bf16 %v5474, %v5474
        %s5480 = scalar_lea.vmem %s33, 64
        %v5481 = vld [vmem:[%s5480] sm:$0xf]
        %v5482 = vld [vmem:[%s5480 + $0x4] sm:$0xf]
        %v5483 = vld [vmem:[%s5480 + $0x8] sm:$0xf]
        %v5484 = vld [vmem:[%s5480 + $0xc] sm:$0xf]
        %v5485 = vld [vmem:[%s5480 + $0x10] sm:$0xf]
        %v5486 = vld [vmem:[%s5480 + $0x14] sm:$0xf]
        %v5487 = vld [vmem:[%s5480 + $0x18] sm:$0xf]
        %v5488 = vld [vmem:[%s5480 + $0x1c] sm:$0xf]
        %v5489 = vld [vmem:[%s5480 + $0x20] sm:$0xf]
        %v5490 = vld [vmem:[%s5480 + $0x24] sm:$0xf]
        %v5491 = vld [vmem:[%s5480 + $0x28] sm:$0xf]
        %v5492 = vld [vmem:[%s5480 + $0x2c] sm:$0xf]
        %v5493 = vld [vmem:[%s5480 + $0x30] sm:$0xf]
        %v5494 = vld [vmem:[%s5480 + $0x34] sm:$0xf]
        %v5495 = vld [vmem:[%s5480 + $0x38] sm:$0xf]
        %v5496 = vld [vmem:[%s5480 + $0x3c] sm:$0xf]
        %v5513 = vunpack.c.l.b16 %v5481
        %v5514 = vunpack.c.l.b16 %v5482
        %v5515 = vunpack.c.l.b16 %v5483
        %v5516 = vunpack.c.l.b16 %v5484
        %v5517 = vunpack.c.l.b16 %v5485
        %v5518 = vunpack.c.l.b16 %v5486
        %v5519 = vunpack.c.l.b16 %v5487
        %v5520 = vunpack.c.l.b16 %v5488
        %v5521 = vunpack.c.l.b16 %v5489
        %v5522 = vunpack.c.l.b16 %v5490
        %v5523 = vunpack.c.l.b16 %v5491
        %v5524 = vunpack.c.l.b16 %v5492
        %v5525 = vunpack.c.l.b16 %v5493
        %v5526 = vunpack.c.l.b16 %v5494
        %v5527 = vunpack.c.l.b16 %v5495
        %v5528 = vunpack.c.l.b16 %v5496
        %v5529 = vpack.c.b16 %v5514, %v5513
        %v5530 = vpack.c.b16 %v5516, %v5515
        %v5531 = vpack.c.b16 %v5518, %v5517
        %v5532 = vpack.c.b16 %v5520, %v5519
        %v5533 = vpack.c.b16 %v5522, %v5521
        %v5534 = vpack.c.b16 %v5524, %v5523
        %v5535 = vpack.c.b16 %v5526, %v5525
        %v5536 = vpack.c.b16 %v5528, %v5527
        %5545 = vmatprep.subr.bf16.mxu0 0
        %5546 = vmatpush1.bf16.msra.mxu0 %v5529
        %5547 = vmatprep.subr.bf16.mxu0 0
        %5548 = vmatpush1.bf16.msra.mxu0 %v5530
        %5549 = vmatprep.subr.bf16.mxu0 0
        %5550 = vmatpush1.bf16.msra.mxu0 %v5531
        %5551 = vmatprep.subr.bf16.mxu0 0
        %5552 = vmatpush1.bf16.msra.mxu0 %v5532
        %5553 = vmatprep.subr.bf16.mxu0 0
        %5554 = vmatpush1.bf16.msra.mxu0 %v5533
        %5555 = vmatprep.subr.bf16.mxu0 0
        %5556 = vmatpush1.bf16.msra.mxu0 %v5534
        %5557 = vmatprep.subr.bf16.mxu0 0
        %5558 = vmatpush1.bf16.msra.mxu0 %v5535
        %5559 = vmatprep.subr.bf16.mxu0 0
        %5560 = vmatpush1.bf16.msra.mxu0 %v5536
        %5561 = vmatprep.subr.bf16.mxu0 0
        %5562 = vmatpush1.bf16.msra.mxu0 0
        %5563 = vmatprep.subr.bf16.mxu0 0
        %5564 = vmatpush1.bf16.msra.mxu0 0
        %5565 = vmatprep.subr.bf16.mxu0 0
        %5566 = vmatpush1.bf16.msra.mxu0 0
        %5567 = vmatprep.subr.bf16.mxu0 0
        %5568 = vmatpush1.bf16.msra.mxu0 0
        %5569 = vmatprep.subr.bf16.mxu0 0
        %5570 = vmatpush1.bf16.msra.mxu0 0
        %5571 = vmatprep.subr.bf16.mxu0 0
        %5572 = vmatpush1.bf16.msra.mxu0 0
        %5573 = vmatprep.subr.bf16.mxu0 0
        %5574 = vmatpush1.bf16.msra.mxu0 0
        %5575 = vmatprep.subr.bf16.mxu0 0
        %5576 = vmatpush1.bf16.msra.mxu0 0
        %5577 = vmatprep.mubr.bf16.mxu0 0
        %5578 = vmatmul.mubr.bf16.gmra.mrb[0].mxu0 %v5479
        %v5579 = vpop.f32.mrb[0].mxu0
        %v5580 = vadd.f32 0.0, %v5579
        %v5581 = vpop.f32.mrb[0].mxu0
        %v5582 = vpop.f32.mrb[0].mxu0
        %v5583 = vpop.f32.mrb[0].mxu0
        %5584 = vdwg.mxu0
        %v5601 = vunpack.c.l.b16 %v5418
        %v5602 = vunpack.c.l.b16 %v5419
        %v5603 = vunpack.c.l.b16 %v5420
        %v5604 = vunpack.c.l.b16 %v5421
        %v5605 = vunpack.c.l.b16 %v5422
        %v5606 = vunpack.c.l.b16 %v5423
        %v5607 = vunpack.c.l.b16 %v5424
        %v5608 = vunpack.c.l.b16 %v5425
        %v5609 = vunpack.c.l.b16 %v5426
        %v5610 = vunpack.c.l.b16 %v5427
        %v5611 = vunpack.c.l.b16 %v5428
        %v5612 = vunpack.c.l.b16 %v5429
        %v5613 = vunpack.c.l.b16 %v5430
        %v5614 = vunpack.c.l.b16 %v5431
        %v5615 = vunpack.c.l.b16 %v5432
        %v5616 = vunpack.c.l.b16 %v5433
        %v5617 = vpack.c.b16 %v5602, %v5601
        %v5618 = vpack.c.b16 %v5604, %v5603
        %v5619 = vpack.c.b16 %v5606, %v5605
        %v5620 = vpack.c.b16 %v5608, %v5607
        %v5621 = vpack.c.b16 %v5610, %v5609
        %v5622 = vpack.c.b16 %v5612, %v5611
        %v5623 = vpack.c.b16 %v5614, %v5613
        %v5624 = vpack.c.b16 %v5616, %v5615
        %5633 = vmatprep.subr.bf16.mxu0 0
        %5634 = vmatpush1.bf16.msra.mxu0 %v5617
        %5635 = vmatprep.subr.bf16.mxu0 0
        %5636 = vmatpush1.bf16.msra.mxu0 %v5618
        %5637 = vmatprep.subr.bf16.mxu0 0
        %5638 = vmatpush1.bf16.msra.mxu0 %v5619
        %5639 = vmatprep.subr.bf16.mxu0 0
        %5640 = vmatpush1.bf16.msra.mxu0 %v5620
        %5641 = vmatprep.subr.bf16.mxu0 0
        %5642 = vmatpush1.bf16.msra.mxu0 %v5621
        %5643 = vmatprep.subr.bf16.mxu0 0
        %5644 = vmatpush1.bf16.msra.mxu0 %v5622
        %5645 = vmatprep.subr.bf16.mxu0 0
        %5646 = vmatpush1.bf16.msra.mxu0 %v5623
        %5647 = vmatprep.subr.bf16.mxu0 0
        %5648 = vmatpush1.bf16.msra.mxu0 %v5624
        %5649 = vmatprep.subr.bf16.mxu0 0
        %5650 = vmatpush1.bf16.msra.mxu0 0
        %5651 = vmatprep.subr.bf16.mxu0 0
        %5652 = vmatpush1.bf16.msra.mxu0 0
        %5653 = vmatprep.subr.bf16.mxu0 0
        %5654 = vmatpush1.bf16.msra.mxu0 0
        %5655 = vmatprep.subr.bf16.mxu0 0
        %5656 = vmatpush1.bf16.msra.mxu0 0
        %5657 = vmatprep.subr.bf16.mxu0 0
        %5658 = vmatpush1.bf16.msra.mxu0 0
        %5659 = vmatprep.subr.bf16.mxu0 0
        %5660 = vmatpush1.bf16.msra.mxu0 0
        %5661 = vmatprep.subr.bf16.mxu0 0
        %5662 = vmatpush1.bf16.msra.mxu0 0
        %5663 = vmatprep.subr.bf16.mxu0 0
        %5664 = vmatpush1.bf16.msra.mxu0 0
        %5665 = vmatprep.mubr.bf16.mxu0 0
        %5666 = vmatmul.mubr.bf16.gmra.mrb[0].mxu0 %v5417
        %v5667 = vpop.f32.mrb[0].mxu0
        %v5668 = vadd.f32 %v5580, %v5667
        %v5669 = vpop.f32.mrb[0].mxu0
        %v5670 = vpop.f32.mrb[0].mxu0
        %v5671 = vpop.f32.mrb[0].mxu0
        %5672 = vdwg.mxu0
        %s5673 = scalar_lea.vmem %s31, 8
        %v5674 = vld [vmem:[%s5673] sm:$0xf]
        %v5676 = vsel %vm4379, %v5674, 0
        %5678 = vmatprep.subr.bf16.mxu0 0
        %5679 = vmatpush1.bf16.msra.mxu0 %v5372
        %5680 = vmatprep.subr.bf16.mxu0 0
        %5681 = vmatpush1.bf16.msra.mxu0 0
        %5682 = vmatprep.subr.bf16.mxu0 0
        %5683 = vmatpush1.bf16.msra.mxu0 0
        %5684 = vmatprep.subr.bf16.mxu0 0
        %5685 = vmatpush1.bf16.msra.mxu0 0
        %5686 = vmatprep.subr.bf16.mxu0 0
        %5687 = vmatpush1.bf16.msra.mxu0 0
        %5688 = vmatprep.subr.bf16.mxu0 0
        %5689 = vmatpush1.bf16.msra.mxu0 0
        %5690 = vmatprep.subr.bf16.mxu0 0
        %5691 = vmatpush1.bf16.msra.mxu0 0
        %5692 = vmatprep.subr.bf16.mxu0 0
        %5693 = vmatpush1.bf16.msra.mxu0 0
        %5694 = vmatprep.subr.bf16.mxu0 0
        %5695 = vmatpush1.bf16.msra.mxu0 0
        %5696 = vmatprep.subr.bf16.mxu0 0
        %5697 = vmatpush1.bf16.msra.mxu0 0
        %5698 = vmatprep.subr.bf16.mxu0 0
        %5699 = vmatpush1.bf16.msra.mxu0 0
        %5700 = vmatprep.subr.bf16.mxu0 0
        %5701 = vmatpush1.bf16.msra.mxu0 0
        %5702 = vmatprep.subr.bf16.mxu0 0
        %5703 = vmatpush1.bf16.msra.mxu0 0
        %5704 = vmatprep.subr.bf16.mxu0 0
        %5705 = vmatpush1.bf16.msra.mxu0 0
        %5706 = vmatprep.subr.bf16.mxu0 0
        %5707 = vmatpush1.bf16.msra.mxu0 0
        %5708 = vmatprep.subr.bf16.mxu0 0
        %5709 = vmatpush1.bf16.msra.mxu0 0
        %5710 = vmatprep.mubr.bf16.mxu0 0
        %5711 = vmatmul.mubr.bf16.gmra.mrb[0].mxu0 %v5676
        %v5712 = vpop.f32.mrb[0].mxu0
        %v5713 = vadd.f32 0.0, %v5712
        %v5714 = vpop.f32.mrb[0].mxu0
        %v5715 = vpop.f32.mrb[0].mxu0
        %v5716 = vpop.f32.mrb[0].mxu0
        %5717 = vdwg.mxu0
        %v5718 = vpack.c.bf16 %v5713, %v5713
        %s5719 = scalar_lea.vmem %s33, 128
        %v5720 = vld [vmem:[%s5719] sm:$0xf]
        %v5721 = vld [vmem:[%s5719 + $0x4] sm:$0xf]
        %v5722 = vld [vmem:[%s5719 + $0x8] sm:$0xf]
        %v5723 = vld [vmem:[%s5719 + $0xc] sm:$0xf]
        %v5724 = vld [vmem:[%s5719 + $0x10] sm:$0xf]
        %v5725 = vld [vmem:[%s5719 + $0x14] sm:$0xf]
        %v5726 = vld [vmem:[%s5719 + $0x18] sm:$0xf]
        %v5727 = vld [vmem:[%s5719 + $0x1c] sm:$0xf]
        %v5728 = vld [vmem:[%s5719 + $0x20] sm:$0xf]
        %v5729 = vld [vmem:[%s5719 + $0x24] sm:$0xf]
        %v5730 = vld [vmem:[%s5719 + $0x28] sm:$0xf]
        %v5731 = vld [vmem:[%s5719 + $0x2c] sm:$0xf]
        %v5732 = vld [vmem:[%s5719 + $0x30] sm:$0xf]
        %v5733 = vld [vmem:[%s5719 + $0x34] sm:$0xf]
        %v5734 = vld [vmem:[%s5719 + $0x38] sm:$0xf]
        %v5735 = vld [vmem:[%s5719 + $0x3c] sm:$0xf]
        %v5752 = vunpack.c.l.b16 %v5720
        %v5753 = vunpack.c.l.b16 %v5721
        %v5754 = vunpack.c.l.b16 %v5722
        %v5755 = vunpack.c.l.b16 %v5723
        %v5756 = vunpack.c.l.b16 %v5724
        %v5757 = vunpack.c.l.b16 %v5725
        %v5758 = vunpack.c.l.b16 %v5726
        %v5759 = vunpack.c.l.b16 %v5727
        %v5760 = vunpack.c.l.b16 %v5728
        %v5761 = vunpack.c.l.b16 %v5729
        %v5762 = vunpack.c.l.b16 %v5730
        %v5763 = vunpack.c.l.b16 %v5731
        %v5764 = vunpack.c.l.b16 %v5732
        %v5765 = vunpack.c.l.b16 %v5733
        %v5766 = vunpack.c.l.b16 %v5734
        %v5767 = vunpack.c.l.b16 %v5735
        %v5768 = vpack.c.b16 %v5753, %v5752
        %v5769 = vpack.c.b16 %v5755, %v5754
        %v5770 = vpack.c.b16 %v5757, %v5756
        %v5771 = vpack.c.b16 %v5759, %v5758
        %v5772 = vpack.c.b16 %v5761, %v5760
        %v5773 = vpack.c.b16 %v5763, %v5762
        %v5774 = vpack.c.b16 %v5765, %v5764
        %v5775 = vpack.c.b16 %v5767, %v5766
        %5784 = vmatprep.subr.bf16.mxu0 0
        %5785 = vmatpush1.bf16.msra.mxu0 %v5768
        %5786 = vmatprep.subr.bf16.mxu0 0
        %5787 = vmatpush1.bf16.msra.mxu0 %v5769
        %5788 = vmatprep.subr.bf16.mxu0 0
        %5789 = vmatpush1.bf16.msra.mxu0 %v5770
        %5790 = vmatprep.subr.bf16.mxu0 0
        %5791 = vmatpush1.bf16.msra.mxu0 %v5771
        %5792 = vmatprep.subr.bf16.mxu0 0
        %5793 = vmatpush1.bf16.msra.mxu0 %v5772
        %5794 = vmatprep.subr.bf16.mxu0 0
        %5795 = vmatpush1.bf16.msra.mxu0 %v5773
        %5796 = vmatprep.subr.bf16.mxu0 0
        %5797 = vmatpush1.bf16.msra.mxu0 %v5774
        %5798 = vmatprep.subr.bf16.mxu0 0
        %5799 = vmatpush1.bf16.msra.mxu0 %v5775
        %5800 = vmatprep.subr.bf16.mxu0 0
        %5801 = vmatpush1.bf16.msra.mxu0 0
        %5802 = vmatprep.subr.bf16.mxu0 0
        %5803 = vmatpush1.bf16.msra.mxu0 0
        %5804 = vmatprep.subr.bf16.mxu0 0
        %5805 = vmatpush1.bf16.msra.mxu0 0
        %5806 = vmatprep.subr.bf16.mxu0 0
        %5807 = vmatpush1.bf16.msra.mxu0 0
        %5808 = vmatprep.subr.bf16.mxu0 0
        %5809 = vmatpush1.bf16.msra.mxu0 0
        %5810 = vmatprep.subr.bf16.mxu0 0
        %5811 = vmatpush1.bf16.msra.mxu0 0
        %5812 = vmatprep.subr.bf16.mxu0 0
        %5813 = vmatpush1.bf16.msra.mxu0 0
        %5814 = vmatprep.subr.bf16.mxu0 0
        %5815 = vmatpush1.bf16.msra.mxu0 0
        %5816 = vmatprep.mubr.bf16.mxu0 0
        %5817 = vmatmul.mubr.bf16.gmra.mrb[0].mxu0 %v5718
        %v5818 = vpop.f32.mrb[0].mxu0
        %v5819 = vadd.f32 0.0, %v5818
        %v5820 = vpop.f32.mrb[0].mxu0
        %v5821 = vpop.f32.mrb[0].mxu0
        %v5822 = vpop.f32.mrb[0].mxu0
        %5823 = vdwg.mxu0
        %v5824 = vadd.f32 %v5668, %v5819
        %v5825 = vld [vmem:[%s35] sm:$0x1]
        %v5827 = vlaneseq
        %v5828 = vshrl.u32 %v5827, 7
        %v5829 = vsub.s32 0, %v5828
        %v5830 = vrot.slane %v5825, %v5829
        %v5832 = vmul.f32 %v5824, %v5830
        %v5833 = vld [vmem:[%s37] sm:$0x1]
        %v5835 = vlaneseq
        %v5836 = vshrl.u32 %v5835, 7
        %v5837 = vsub.s32 0, %v5836
        %v5838 = vrot.slane %v5833, %v5837
        %v5840 = vadd.f32 %v5832, %v5838
        %v5841 = vmax.f32 %v5840, 0.0
        %v5842 = vpack.c.bf16 %v5841, %v5841
        %v5843 = vld [vmem:[%s39] sm:$0xf]
        %vm5844 = vcmask 64512
        %v5846 = vsel %vm5844, %v5843, 0
        %vm5848 = vcmask 1043456
        %v5850 = vsel %vm5848, %v5842, 0
        %5852 = vmatprep.subr.bf16.mxu0 0
        %5853 = vmatpush1.bf16.msra.mxu0 %v5850
        %5854 = vmatprep.subr.bf16.mxu0 0
        %5855 = vmatpush1.bf16.msra.mxu0 0
        %5856 = vmatprep.subr.bf16.mxu0 0
        %5857 = vmatpush1.bf16.msra.mxu0 0
        %5858 = vmatprep.subr.bf16.mxu0 0
        %5859 = vmatpush1.bf16.msra.mxu0 0
        %5860 = vmatprep.subr.bf16.mxu0 0
        %5861 = vmatpush1.bf16.msra.mxu0 0
        %5862 = vmatprep.subr.bf16.mxu0 0
        %5863 = vmatpush1.bf16.msra.mxu0 0
        %5864 = vmatprep.subr.bf16.mxu0 0
        %5865 = vmatpush1.bf16.msra.mxu0 0
        %5866 = vmatprep.subr.bf16.mxu0 0
        %5867 = vmatpush1.bf16.msra.mxu0 0
        %5868 = vmatprep.subr.bf16.mxu0 0
        %5869 = vmatpush1.bf16.msra.mxu0 0
        %5870 = vmatprep.subr.bf16.mxu0 0
        %5871 = vmatpush1.bf16.msra.mxu0 0
        %5872 = vmatprep.subr.bf16.mxu0 0
        %5873 = vmatpush1.bf16.msra.mxu0 0
        %5874 = vmatprep.subr.bf16.mxu0 0
        %5875 = vmatpush1.bf16.msra.mxu0 0
        %5876 = vmatprep.subr.bf16.mxu0 0
        %5877 = vmatpush1.bf16.msra.mxu0 0
        %5878 = vmatprep.subr.bf16.mxu0 0
        %5879 = vmatpush1.bf16.msra.mxu0 0
        %5880 = vmatprep.subr.bf16.mxu0 0
        %5881 = vmatpush1.bf16.msra.mxu0 0
        %5882 = vmatprep.subr.bf16.mxu0 0
        %5883 = vmatpush1.bf16.msra.mxu0 0
        %5884 = vmatprep.mubr.bf16.mxu0 0
        %5885 = vmatmul.mubr.bf16.gmra.mrb[0].mxu0 %v5846
        %v5886 = vpop.f32.mrb[0].mxu0
        %v5887 = vadd.f32 0.0, %v5886
        %v5888 = vpop.f32.mrb[0].mxu0
        %v5889 = vpop.f32.mrb[0].mxu0
        %v5890 = vpop.f32.mrb[0].mxu0
        %5891 = vdwg.mxu0
        %v5892 = vpack.c.bf16 %v5887, %v5887
        %v5893 = vld [vmem:[%s41] sm:$0xf]
        %v5894 = vld [vmem:[%s41 + $0x4] sm:$0xf]
        %v5895 = vld [vmem:[%s41 + $0x8] sm:$0xf]
        %v5896 = vld [vmem:[%s41 + $0xc] sm:$0xf]
        %v5897 = vld [vmem:[%s41 + $0x10] sm:$0xf]
        %v5898 = vld [vmem:[%s41 + $0x14] sm:$0xf]
        %v5899 = vld [vmem:[%s41 + $0x18] sm:$0xf]
        %v5900 = vld [vmem:[%s41 + $0x1c] sm:$0xf]
        %v5901 = vld [vmem:[%s41 + $0x20] sm:$0xf]
        %v5902 = vld [vmem:[%s41 + $0x24] sm:$0xf]
        %v5903 = vld [vmem:[%s41 + $0x28] sm:$0xf]
        %v5904 = vld [vmem:[%s41 + $0x2c] sm:$0xf]
        %v5905 = vld [vmem:[%s41 + $0x30] sm:$0xf]
        %v5906 = vld [vmem:[%s41 + $0x34] sm:$0xf]
        %v5907 = vld [vmem:[%s41 + $0x38] sm:$0xf]
        %v5908 = vld [vmem:[%s41 + $0x3c] sm:$0xf]
        %s5909 = scalar_lea.vmem %s39, 4
        %v5910 = vld [vmem:[%s5909] sm:$0xf]
        %v5912 = vsel %vm5844, %v5910, 0
        %5914 = vmatprep.subr.bf16.mxu0 0
        %5915 = vmatpush1.bf16.msra.mxu0 %v5850
        %5916 = vmatprep.subr.bf16.mxu0 0
        %5917 = vmatpush1.bf16.msra.mxu0 0
        %5918 = vmatprep.subr.bf16.mxu0 0
        %5919 = vmatpush1.bf16.msra.mxu0 0
        %5920 = vmatprep.subr.bf16.mxu0 0
        %5921 = vmatpush1.bf16.msra.mxu0 0
        %5922 = vmatprep.subr.bf16.mxu0 0
        %5923 = vmatpush1.bf16.msra.mxu0 0
        %5924 = vmatprep.subr.bf16.mxu0 0
        %5925 = vmatpush1.bf16.msra.mxu0 0
        %5926 = vmatprep.subr.bf16.mxu0 0
        %5927 = vmatpush1.bf16.msra.mxu0 0
        %5928 = vmatprep.subr.bf16.mxu0 0
        %5929 = vmatpush1.bf16.msra.mxu0 0
        %5930 = vmatprep.subr.bf16.mxu0 0
        %5931 = vmatpush1.bf16.msra.mxu0 0
        %5932 = vmatprep.subr.bf16.mxu0 0
        %5933 = vmatpush1.bf16.msra.mxu0 0
        %5934 = vmatprep.subr.bf16.mxu0 0
        %5935 = vmatpush1.bf16.msra.mxu0 0
        %5936 = vmatprep.subr.bf16.mxu0 0
        %5937 = vmatpush1.bf16.msra.mxu0 0
        %5938 = vmatprep.subr.bf16.mxu0 0
        %5939 = vmatpush1.bf16.msra.mxu0 0
        %5940 = vmatprep.subr.bf16.mxu0 0
        %5941 = vmatpush1.bf16.msra.mxu0 0
        %5942 = vmatprep.subr.bf16.mxu0 0
        %5943 = vmatpush1.bf16.msra.mxu0 0
        %5944 = vmatprep.subr.bf16.mxu0 0
        %5945 = vmatpush1.bf16.msra.mxu0 0
        %5946 = vmatprep.mubr.bf16.mxu0 0
        %5947 = vmatmul.mubr.bf16.gmra.mrb[0].mxu0 %v5912
        %v5948 = vpop.f32.mrb[0].mxu0
        %v5949 = vadd.f32 0.0, %v5948
        %v5950 = vpop.f32.mrb[0].mxu0
        %v5951 = vpop.f32.mrb[0].mxu0
        %v5952 = vpop.f32.mrb[0].mxu0
        %5953 = vdwg.mxu0
        %v5954 = vpack.c.bf16 %v5949, %v5949
        %s5955 = scalar_lea.vmem %s41, 64
        %v5956 = vld [vmem:[%s5955] sm:$0xf]
        %v5957 = vld [vmem:[%s5955 + $0x4] sm:$0xf]
        %v5958 = vld [vmem:[%s5955 + $0x8] sm:$0xf]
        %v5959 = vld [vmem:[%s5955 + $0xc] sm:$0xf]
        %v5960 = vld [vmem:[%s5955 + $0x10] sm:$0xf]
        %v5961 = vld [vmem:[%s5955 + $0x14] sm:$0xf]
        %v5962 = vld [vmem:[%s5955 + $0x18] sm:$0xf]
        %v5963 = vld [vmem:[%s5955 + $0x1c] sm:$0xf]
        %v5964 = vld [vmem:[%s5955 + $0x20] sm:$0xf]
        %v5965 = vld [vmem:[%s5955 + $0x24] sm:$0xf]
        %v5966 = vld [vmem:[%s5955 + $0x28] sm:$0xf]
        %v5967 = vld [vmem:[%s5955 + $0x2c] sm:$0xf]
        %v5968 = vld [vmem:[%s5955 + $0x30] sm:$0xf]
        %v5969 = vld [vmem:[%s5955 + $0x34] sm:$0xf]
        %v5970 = vld [vmem:[%s5955 + $0x38] sm:$0xf]
        %v5971 = vld [vmem:[%s5955 + $0x3c] sm:$0xf]
        %v5988 = vunpack.c.l.b16 %v5956
        %v5989 = vunpack.c.l.b16 %v5957
        %v5990 = vunpack.c.l.b16 %v5958
        %v5991 = vunpack.c.l.b16 %v5959
        %v5992 = vunpack.c.l.b16 %v5960
        %v5993 = vunpack.c.l.b16 %v5961
        %v5994 = vunpack.c.l.b16 %v5962
        %v5995 = vunpack.c.l.b16 %v5963
        %v5996 = vunpack.c.l.b16 %v5964
        %v5997 = vunpack.c.l.b16 %v5965
        %v5998 = vunpack.c.l.b16 %v5966
        %v5999 = vunpack.c.l.b16 %v5967
        %v6000 = vunpack.c.l.b16 %v5968
        %v6001 = vunpack.c.l.b16 %v5969
        %v6002 = vunpack.c.l.b16 %v5970
        %v6003 = vunpack.c.l.b16 %v5971
        %v6004 = vpack.c.b16 %v5989, %v5988
        %v6005 = vpack.c.b16 %v5991, %v5990
        %v6006 = vpack.c.b16 %v5993, %v5992
        %v6007 = vpack.c.b16 %v5995, %v5994
        %v6008 = vpack.c.b16 %v5997, %v5996
        %v6009 = vpack.c.b16 %v5999, %v5998
        %v6010 = vpack.c.b16 %v6001, %v6000
        %v6011 = vpack.c.b16 %v6003, %v6002
        %6020 = vmatprep.subr.bf16.mxu0 0
        %6021 = vmatpush1.bf16.msra.mxu0 %v6004
        %6022 = vmatprep.subr.bf16.mxu0 0
        %6023 = vmatpush1.bf16.msra.mxu0 %v6005
        %6024 = vmatprep.subr.bf16.mxu0 0
        %6025 = vmatpush1.bf16.msra.mxu0 %v6006
        %6026 = vmatprep.subr.bf16.mxu0 0
        %6027 = vmatpush1.bf16.msra.mxu0 %v6007
        %6028 = vmatprep.subr.bf16.mxu0 0
        %6029 = vmatpush1.bf16.msra.mxu0 %v6008
        %6030 = vmatprep.subr.bf16.mxu0 0
        %6031 = vmatpush1.bf16.msra.mxu0 %v6009
        %6032 = vmatprep.subr.bf16.mxu0 0
        %6033 = vmatpush1.bf16.msra.mxu0 %v6010
        %6034 = vmatprep.subr.bf16.mxu0 0
        %6035 = vmatpush1.bf16.msra.mxu0 %v6011
        %6036 = vmatprep.subr.bf16.mxu0 0
        %6037 = vmatpush1.bf16.msra.mxu0 0
        %6038 = vmatprep.subr.bf16.mxu0 0
        %6039 = vmatpush1.bf16.msra.mxu0 0
        %6040 = vmatprep.subr.bf16.mxu0 0
        %6041 = vmatpush1.bf16.msra.mxu0 0
        %6042 = vmatprep.subr.bf16.mxu0 0
        %6043 = vmatpush1.bf16.msra.mxu0 0
        %6044 = vmatprep.subr.bf16.mxu0 0
        %6045 = vmatpush1.bf16.msra.mxu0 0
        %6046 = vmatprep.subr.bf16.mxu0 0
        %6047 = vmatpush1.bf16.msra.mxu0 0
        %6048 = vmatprep.subr.bf16.mxu0 0
        %6049 = vmatpush1.bf16.msra.mxu0 0
        %6050 = vmatprep.subr.bf16.mxu0 0
        %6051 = vmatpush1.bf16.msra.mxu0 0
        %6052 = vmatprep.mubr.bf16.mxu0 0
        %6053 = vmatmul.mubr.bf16.gmra.mrb[0].mxu0 %v5954
        %v6054 = vpop.f32.mrb[0].mxu0
        %v6055 = vadd.f32 0.0, %v6054
        %v6056 = vpop.f32.mrb[0].mxu0
        %v6057 = vpop.f32.mrb[0].mxu0
        %v6058 = vpop.f32.mrb[0].mxu0
        %6059 = vdwg.mxu0
        %v6076 = vunpack.c.l.b16 %v5893
        %v6077 = vunpack.c.l.b16 %v5894
        %v6078 = vunpack.c.l.b16 %v5895
        %v6079 = vunpack.c.l.b16 %v5896
        %v6080 = vunpack.c.l.b16 %v5897
        %v6081 = vunpack.c.l.b16 %v5898
        %v6082 = vunpack.c.l.b16 %v5899
        %v6083 = vunpack.c.l.b16 %v5900
        %v6084 = vunpack.c.l.b16 %v5901
        %v6085 = vunpack.c.l.b16 %v5902
        %v6086 = vunpack.c.l.b16 %v5903
        %v6087 = vunpack.c.l.b16 %v5904
        %v6088 = vunpack.c.l.b16 %v5905
        %v6089 = vunpack.c.l.b16 %v5906
        %v6090 = vunpack.c.l.b16 %v5907
        %v6091 = vunpack.c.l.b16 %v5908
        %v6092 = vpack.c.b16 %v6077, %v6076
        %v6093 = vpack.c.b16 %v6079, %v6078
        %v6094 = vpack.c.b16 %v6081, %v6080
        %v6095 = vpack.c.b16 %v6083, %v6082
        %v6096 = vpack.c.b16 %v6085, %v6084
        %v6097 = vpack.c.b16 %v6087, %v6086
        %v6098 = vpack.c.b16 %v6089, %v6088
        %v6099 = vpack.c.b16 %v6091, %v6090
        %6108 = vmatprep.subr.bf16.mxu0 0
        %6109 = vmatpush1.bf16.msra.mxu0 %v6092
        %6110 = vmatprep.subr.bf16.mxu0 0
        %6111 = vmatpush1.bf16.msra.mxu0 %v6093
        %6112 = vmatprep.subr.bf16.mxu0 0
        %6113 = vmatpush1.bf16.msra.mxu0 %v6094
        %6114 = vmatprep.subr.bf16.mxu0 0
        %6115 = vmatpush1.bf16.msra.mxu0 %v6095
        %6116 = vmatprep.subr.bf16.mxu0 0
        %6117 = vmatpush1.bf16.msra.mxu0 %v6096
        %6118 = vmatprep.subr.bf16.mxu0 0
        %6119 = vmatpush1.bf16.msra.mxu0 %v6097
        %6120 = vmatprep.subr.bf16.mxu0 0
        %6121 = vmatpush1.bf16.msra.mxu0 %v6098
        %6122 = vmatprep.subr.bf16.mxu0 0
        %6123 = vmatpush1.bf16.msra.mxu0 %v6099
        %6124 = vmatprep.subr.bf16.mxu0 0
        %6125 = vmatpush1.bf16.msra.mxu0 0
        %6126 = vmatprep.subr.bf16.mxu0 0
        %6127 = vmatpush1.bf16.msra.mxu0 0
        %6128 = vmatprep.subr.bf16.mxu0 0
        %6129 = vmatpush1.bf16.msra.mxu0 0
        %6130 = vmatprep.subr.bf16.mxu0 0
        %6131 = vmatpush1.bf16.msra.mxu0 0
        %6132 = vmatprep.subr.bf16.mxu0 0
        %6133 = vmatpush1.bf16.msra.mxu0 0
        %6134 = vmatprep.subr.bf16.mxu0 0
        %6135 = vmatpush1.bf16.msra.mxu0 0
        %6136 = vmatprep.subr.bf16.mxu0 0
        %6137 = vmatpush1.bf16.msra.mxu0 0
        %6138 = vmatprep.subr.bf16.mxu0 0
        %6139 = vmatpush1.bf16.msra.mxu0 0
        %6140 = vmatprep.mubr.bf16.mxu0 0
        %6141 = vmatmul.mubr.bf16.gmra.mrb[0].mxu0 %v5892
        %v6142 = vpop.f32.mrb[0].mxu0
        %v6143 = vadd.f32 %v6055, %v6142
        %v6144 = vpop.f32.mrb[0].mxu0
        %v6145 = vpop.f32.mrb[0].mxu0
        %v6146 = vpop.f32.mrb[0].mxu0
        %6147 = vdwg.mxu0
        %s6148 = scalar_lea.vmem %s39, 8
        %v6149 = vld [vmem:[%s6148] sm:$0xf]
        %v6151 = vsel %vm5844, %v6149, 0
        %6153 = vmatprep.subr.bf16.mxu0 0
        %6154 = vmatpush1.bf16.msra.mxu0 %v5850
        %6155 = vmatprep.subr.bf16.mxu0 0
        %6156 = vmatpush1.bf16.msra.mxu0 0
        %6157 = vmatprep.subr.bf16.mxu0 0
        %6158 = vmatpush1.bf16.msra.mxu0 0
        %6159 = vmatprep.subr.bf16.mxu0 0
        %6160 = vmatpush1.bf16.msra.mxu0 0
        %6161 = vmatprep.subr.bf16.mxu0 0
        %6162 = vmatpush1.bf16.msra.mxu0 0
        %6163 = vmatprep.subr.bf16.mxu0 0
        %6164 = vmatpush1.bf16.msra.mxu0 0
        %6165 = vmatprep.subr.bf16.mxu0 0
        %6166 = vmatpush1.bf16.msra.mxu0 0
        %6167 = vmatprep.subr.bf16.mxu0 0
        %6168 = vmatpush1.bf16.msra.mxu0 0
        %6169 = vmatprep.subr.bf16.mxu0 0
        %6170 = vmatpush1.bf16.msra.mxu0 0
        %6171 = vmatprep.subr.bf16.mxu0 0
        %6172 = vmatpush1.bf16.msra.mxu0 0
        %6173 = vmatprep.subr.bf16.mxu0 0
        %6174 = vmatpush1.bf16.msra.mxu0 0
        %6175 = vmatprep.subr.bf16.mxu0 0
        %6176 = vmatpush1.bf16.msra.mxu0 0
        %6177 = vmatprep.subr.bf16.mxu0 0
        %6178 = vmatpush1.bf16.msra.mxu0 0
        %6179 = vmatprep.subr.bf16.mxu0 0
        %6180 = vmatpush1.bf16.msra.mxu0 0
        %6181 = vmatprep.subr.bf16.mxu0 0
        %6182 = vmatpush1.bf16.msra.mxu0 0
        %6183 = vmatprep.subr.bf16.mxu0 0
        %6184 = vmatpush1.bf16.msra.mxu0 0
        %6185 = vmatprep.mubr.bf16.mxu0 0
        %6186 = vmatmul.mubr.bf16.gmra.mrb[0].mxu0 %v6151
        %v6187 = vpop.f32.mrb[0].mxu0
        %v6188 = vadd.f32 0.0, %v6187
        %v6189 = vpop.f32.mrb[0].mxu0
        %v6190 = vpop.f32.mrb[0].mxu0
        %v6191 = vpop.f32.mrb[0].mxu0
        %6192 = vdwg.mxu0
        %v6193 = vpack.c.bf16 %v6188, %v6188
        %s6194 = scalar_lea.vmem %s41, 128
        %v6195 = vld [vmem:[%s6194] sm:$0xf]
        %v6196 = vld [vmem:[%s6194 + $0x4] sm:$0xf]
        %v6197 = vld [vmem:[%s6194 + $0x8] sm:$0xf]
        %v6198 = vld [vmem:[%s6194 + $0xc] sm:$0xf]
        %v6199 = vld [vmem:[%s6194 + $0x10] sm:$0xf]
        %v6200 = vld [vmem:[%s6194 + $0x14] sm:$0xf]
        %v6201 = vld [vmem:[%s6194 + $0x18] sm:$0xf]
        %v6202 = vld [vmem:[%s6194 + $0x1c] sm:$0xf]
        %v6203 = vld [vmem:[%s6194 + $0x20] sm:$0xf]
        %v6204 = vld [vmem:[%s6194 + $0x24] sm:$0xf]
        %v6205 = vld [vmem:[%s6194 + $0x28] sm:$0xf]
        %v6206 = vld [vmem:[%s6194 + $0x2c] sm:$0xf]
        %v6207 = vld [vmem:[%s6194 + $0x30] sm:$0xf]
        %v6208 = vld [vmem:[%s6194 + $0x34] sm:$0xf]
        %v6209 = vld [vmem:[%s6194 + $0x38] sm:$0xf]
        %v6210 = vld [vmem:[%s6194 + $0x3c] sm:$0xf]
        %v6227 = vunpack.c.l.b16 %v6195
        %v6228 = vunpack.c.l.b16 %v6196
        %v6229 = vunpack.c.l.b16 %v6197
        %v6230 = vunpack.c.l.b16 %v6198
        %v6231 = vunpack.c.l.b16 %v6199
        %v6232 = vunpack.c.l.b16 %v6200
        %v6233 = vunpack.c.l.b16 %v6201
        %v6234 = vunpack.c.l.b16 %v6202
        %v6235 = vunpack.c.l.b16 %v6203
        %v6236 = vunpack.c.l.b16 %v6204
        %v6237 = vunpack.c.l.b16 %v6205
        %v6238 = vunpack.c.l.b16 %v6206
        %v6239 = vunpack.c.l.b16 %v6207
        %v6240 = vunpack.c.l.b16 %v6208
        %v6241 = vunpack.c.l.b16 %v6209
        %v6242 = vunpack.c.l.b16 %v6210
        %v6243 = vpack.c.b16 %v6228, %v6227
        %v6244 = vpack.c.b16 %v6230, %v6229
        %v6245 = vpack.c.b16 %v6232, %v6231
        %v6246 = vpack.c.b16 %v6234, %v6233
        %v6247 = vpack.c.b16 %v6236, %v6235
        %v6248 = vpack.c.b16 %v6238, %v6237
        %v6249 = vpack.c.b16 %v6240, %v6239
        %v6250 = vpack.c.b16 %v6242, %v6241
        %6259 = vmatprep.subr.bf16.mxu0 0
        %6260 = vmatpush1.bf16.msra.mxu0 %v6243
        %6261 = vmatprep.subr.bf16.mxu0 0
        %6262 = vmatpush1.bf16.msra.mxu0 %v6244
        %6263 = vmatprep.subr.bf16.mxu0 0
        %6264 = vmatpush1.bf16.msra.mxu0 %v6245
        %6265 = vmatprep.subr.bf16.mxu0 0
        %6266 = vmatpush1.bf16.msra.mxu0 %v6246
        %6267 = vmatprep.subr.bf16.mxu0 0
        %6268 = vmatpush1.bf16.msra.mxu0 %v6247
        %6269 = vmatprep.subr.bf16.mxu0 0
        %6270 = vmatpush1.bf16.msra.mxu0 %v6248
        %6271 = vmatprep.subr.bf16.mxu0 0
        %6272 = vmatpush1.bf16.msra.mxu0 %v6249
        %6273 = vmatprep.subr.bf16.mxu0 0
        %6274 = vmatpush1.bf16.msra.mxu0 %v6250
        %6275 = vmatprep.subr.bf16.mxu0 0
        %6276 = vmatpush1.bf16.msra.mxu0 0
        %6277 = vmatprep.subr.bf16.mxu0 0
        %6278 = vmatpush1.bf16.msra.mxu0 0
        %6279 = vmatprep.subr.bf16.mxu0 0
        %6280 = vmatpush1.bf16.msra.mxu0 0
        %6281 = vmatprep.subr.bf16.mxu0 0
        %6282 = vmatpush1.bf16.msra.mxu0 0
        %6283 = vmatprep.subr.bf16.mxu0 0
        %6284 = vmatpush1.bf16.msra.mxu0 0
        %6285 = vmatprep.subr.bf16.mxu0 0
        %6286 = vmatpush1.bf16.msra.mxu0 0
        %6287 = vmatprep.subr.bf16.mxu0 0
        %6288 = vmatpush1.bf16.msra.mxu0 0
        %6289 = vmatprep.subr.bf16.mxu0 0
        %6290 = vmatpush1.bf16.msra.mxu0 0
        %6291 = vmatprep.mubr.bf16.mxu0 0
        %6292 = vmatmul.mubr.bf16.gmra.mrb[0].mxu0 %v6193
        %v6293 = vpop.f32.mrb[0].mxu0
        %v6294 = vadd.f32 0.0, %v6293
        %v6295 = vpop.f32.mrb[0].mxu0
        %v6296 = vpop.f32.mrb[0].mxu0
        %v6297 = vpop.f32.mrb[0].mxu0
        %6298 = vdwg.mxu0
        %v6299 = vadd.f32 %v6143, %v6294
        %v6300 = vld [vmem:[%s43] sm:$0x1]
        %v6302 = vlaneseq
        %v6303 = vshrl.u32 %v6302, 7
        %v6304 = vsub.s32 0, %v6303
        %v6305 = vrot.slane %v6300, %v6304
        %v6307 = vmul.f32 %v6299, %v6305
        %v6308 = vld [vmem:[%s45] sm:$0x1]
        %v6310 = vlaneseq
        %v6311 = vshrl.u32 %v6310, 7
        %v6312 = vsub.s32 0, %v6311
        %v6313 = vrot.slane %v6308, %v6312
        %v6315 = vadd.f32 %v6307, %v6313
        %v6316 = vld [vmem:[%s47] sm:$0xf]
        %v6318 = vsel %vm4379, %v6316, 0
        %6320 = vmatprep.subr.bf16.mxu0 0
        %6321 = vmatpush1.bf16.msra.mxu0 %v5372
        %6322 = vmatprep.subr.bf16.mxu0 0
        %6323 = vmatpush1.bf16.msra.mxu0 0
        %6324 = vmatprep.subr.bf16.mxu0 0
        %6325 = vmatpush1.bf16.msra.mxu0 0
        %6326 = vmatprep.subr.bf16.mxu0 0
        %6327 = vmatpush1.bf16.msra.mxu0 0
        %6328 = vmatprep.subr.bf16.mxu0 0
        %6329 = vmatpush1.bf16.msra.mxu0 0
        %6330 = vmatprep.subr.bf16.mxu0 0
        %6331 = vmatpush1.bf16.msra.mxu0 0
        %6332 = vmatprep.subr.bf16.mxu0 0
        %6333 = vmatpush1.bf16.msra.mxu0 0
        %6334 = vmatprep.subr.bf16.mxu0 0
        %6335 = vmatpush1.bf16.msra.mxu0 0
        %6336 = vmatprep.subr.bf16.mxu0 0
        %6337 = vmatpush1.bf16.msra.mxu0 0
        %6338 = vmatprep.subr.bf16.mxu0 0
        %6339 = vmatpush1.bf16.msra.mxu0 0
        %6340 = vmatprep.subr.bf16.mxu0 0
        %6341 = vmatpush1.bf16.msra.mxu0 0
        %6342 = vmatprep.subr.bf16.mxu0 0
        %6343 = vmatpush1.bf16.msra.mxu0 0
        %6344 = vmatprep.subr.bf16.mxu0 0
        %6345 = vmatpush1.bf16.msra.mxu0 0
        %6346 = vmatprep.subr.bf16.mxu0 0
        %6347 = vmatpush1.bf16.msra.mxu0 0
        %6348 = vmatprep.subr.bf16.mxu0 0
        %6349 = vmatpush1.bf16.msra.mxu0 0
        %6350 = vmatprep.subr.bf16.mxu0 0
        %6351 = vmatpush1.bf16.msra.mxu0 0
        %6352 = vmatprep.mubr.bf16.mxu0 0
        %6353 = vmatmul.mubr.bf16.gmra.mrb[0].mxu0 %v6318
        %v6354 = vpop.f32.mrb[0].mxu0
        %v6355 = vadd.f32 0.0, %v6354
        %v6356 = vpop.f32.mrb[0].mxu0
        %v6357 = vpop.f32.mrb[0].mxu0
        %v6358 = vpop.f32.mrb[0].mxu0
        %6359 = vdwg.mxu0
        %v6360 = vpack.c.bf16 %v6355, %v6355
        %v6361 = vld [vmem:[%s49] sm:$0xf]
        %v6362 = vld [vmem:[%s49 + $0x4] sm:$0xf]
        %v6363 = vld [vmem:[%s49 + $0x8] sm:$0xf]
        %v6364 = vld [vmem:[%s49 + $0xc] sm:$0xf]
        %v6365 = vld [vmem:[%s49 + $0x10] sm:$0xf]
        %v6366 = vld [vmem:[%s49 + $0x14] sm:$0xf]
        %v6367 = vld [vmem:[%s49 + $0x18] sm:$0xf]
        %v6368 = vld [vmem:[%s49 + $0x1c] sm:$0xf]
        %v6369 = vld [vmem:[%s49 + $0x20] sm:$0xf]
        %v6370 = vld [vmem:[%s49 + $0x24] sm:$0xf]
        %v6371 = vld [vmem:[%s49 + $0x28] sm:$0xf]
        %v6372 = vld [vmem:[%s49 + $0x2c] sm:$0xf]
        %v6373 = vld [vmem:[%s49 + $0x30] sm:$0xf]
        %v6374 = vld [vmem:[%s49 + $0x34] sm:$0xf]
        %v6375 = vld [vmem:[%s49 + $0x38] sm:$0xf]
        %v6376 = vld [vmem:[%s49 + $0x3c] sm:$0xf]
        %v6393 = vunpack.c.l.b16 %v6361
        %v6394 = vunpack.c.l.b16 %v6362
        %v6395 = vunpack.c.l.b16 %v6363
        %v6396 = vunpack.c.l.b16 %v6364
        %v6397 = vunpack.c.l.b16 %v6365
        %v6398 = vunpack.c.l.b16 %v6366
        %v6399 = vunpack.c.l.b16 %v6367
        %v6400 = vunpack.c.l.b16 %v6368
        %v6401 = vunpack.c.l.b16 %v6369
        %v6402 = vunpack.c.l.b16 %v6370
        %v6403 = vunpack.c.l.b16 %v6371
        %v6404 = vunpack.c.l.b16 %v6372
        %v6405 = vunpack.c.l.b16 %v6373
        %v6406 = vunpack.c.l.b16 %v6374
        %v6407 = vunpack.c.l.b16 %v6375
        %v6408 = vunpack.c.l.b16 %v6376
        %v6409 = vpack.c.b16 %v6394, %v6393
        %v6410 = vpack.c.b16 %v6396, %v6395
        %v6411 = vpack.c.b16 %v6398, %v6397
        %v6412 = vpack.c.b16 %v6400, %v6399
        %v6413 = vpack.c.b16 %v6402, %v6401
        %v6414 = vpack.c.b16 %v6404, %v6403
        %v6415 = vpack.c.b16 %v6406, %v6405
        %v6416 = vpack.c.b16 %v6408, %v6407
        %6425 = vmatprep.subr.bf16.mxu0 0
        %6426 = vmatpush1.bf16.msra.mxu0 %v6409
        %6427 = vmatprep.subr.bf16.mxu0 0
        %6428 = vmatpush1.bf16.msra.mxu0 %v6410
        %6429 = vmatprep.subr.bf16.mxu0 0
        %6430 = vmatpush1.bf16.msra.mxu0 %v6411
        %6431 = vmatprep.subr.bf16.mxu0 0
        %6432 = vmatpush1.bf16.msra.mxu0 %v6412
        %6433 = vmatprep.subr.bf16.mxu0 0
        %6434 = vmatpush1.bf16.msra.mxu0 %v6413
        %6435 = vmatprep.subr.bf16.mxu0 0
        %6436 = vmatpush1.bf16.msra.mxu0 %v6414
        %6437 = vmatprep.subr.bf16.mxu0 0
        %6438 = vmatpush1.bf16.msra.mxu0 %v6415
        %6439 = vmatprep.subr.bf16.mxu0 0
        %6440 = vmatpush1.bf16.msra.mxu0 %v6416
        %6441 = vmatprep.subr.bf16.mxu0 0
        %6442 = vmatpush1.bf16.msra.mxu0 0
        %6443 = vmatprep.subr.bf16.mxu0 0
        %6444 = vmatpush1.bf16.msra.mxu0 0
        %6445 = vmatprep.subr.bf16.mxu0 0
        %6446 = vmatpush1.bf16.msra.mxu0 0
        %6447 = vmatprep.subr.bf16.mxu0 0
        %6448 = vmatpush1.bf16.msra.mxu0 0
        %6449 = vmatprep.subr.bf16.mxu0 0
        %6450 = vmatpush1.bf16.msra.mxu0 0
        %6451 = vmatprep.subr.bf16.mxu0 0
        %6452 = vmatpush1.bf16.msra.mxu0 0
        %6453 = vmatprep.subr.bf16.mxu0 0
        %6454 = vmatpush1.bf16.msra.mxu0 0
        %6455 = vmatprep.subr.bf16.mxu0 0
        %6456 = vmatpush1.bf16.msra.mxu0 0
        %6457 = vmatprep.mubr.bf16.mxu0 0
        %6458 = vmatmul.mubr.bf16.gmra.mrb[0].mxu0 %v6360
        %v6459 = vpop.f32.mrb[0].mxu0
        %v6460 = vadd.f32 0.0, %v6459
        %v6461 = vpop.f32.mrb[0].mxu0
        %v6462 = vpop.f32.mrb[0].mxu0
        %v6463 = vpop.f32.mrb[0].mxu0
        %6464 = vdwg.mxu0
        %v6465 = vld [vmem:[%s51] sm:$0x1]
        %v6467 = vlaneseq
        %v6468 = vshrl.u32 %v6467, 7
        %v6469 = vsub.s32 0, %v6468
        %v6470 = vrot.slane %v6465, %v6469
        %v6472 = vmul.f32 %v6460, %v6470
        %v6473 = vld [vmem:[%s53] sm:$0x1]
        %v6475 = vlaneseq
        %v6476 = vshrl.u32 %v6475, 7
        %v6477 = vsub.s32 0, %v6476
        %v6478 = vrot.slane %v6473, %v6477
        %v6480 = vadd.f32 %v6472, %v6478
        %v6481 = vadd.f32 %v6315, %v6480
        %v6482 = vmax.f32 %v6481, 0.0
        %v6483 = vpack.c.bf16 %v6482, %v6482
        %v6484 = vld [vmem:[%s55] sm:$0x3]
        %v6486 = vsel %vm5844, %v6484, 0
        %v6489 = vsel %vm5848, %v6483, 0
        %6491 = vmatprep.subr.bf16.mxu0 0
        %6492 = vmatpush1.bf16.msra.mxu0 %v6489
        %6493 = vmatprep.subr.bf16.mxu0 0
        %6494 = vmatpush1.bf16.msra.mxu0 0
        %6495 = vmatprep.subr.bf16.mxu0 0
        %6496 = vmatpush1.bf16.msra.mxu0 0
        %6497 = vmatprep.subr.bf16.mxu0 0
        %6498 = vmatpush1.bf16.msra.mxu0 0
        %6499 = vmatprep.subr.bf16.mxu0 0
        %6500 = vmatpush1.bf16.msra.mxu0 0
        %6501 = vmatprep.subr.bf16.mxu0 0
        %6502 = vmatpush1.bf16.msra.mxu0 0
        %6503 = vmatprep.subr.bf16.mxu0 0
        %6504 = vmatpush1.bf16.msra.mxu0 0
        %6505 = vmatprep.subr.bf16.mxu0 0
        %6506 = vmatpush1.bf16.msra.mxu0 0
        %6507 = vmatprep.subr.bf16.mxu0 0
        %6508 = vmatpush1.bf16.msra.mxu0 0
        %6509 = vmatprep.subr.bf16.mxu0 0
        %6510 = vmatpush1.bf16.msra.mxu0 0
        %6511 = vmatprep.subr.bf16.mxu0 0
        %6512 = vmatpush1.bf16.msra.mxu0 0
        %6513 = vmatprep.subr.bf16.mxu0 0
        %6514 = vmatpush1.bf16.msra.mxu0 0
        %6515 = vmatprep.subr.bf16.mxu0 0
        %6516 = vmatpush1.bf16.msra.mxu0 0
        %6517 = vmatprep.subr.bf16.mxu0 0
        %6518 = vmatpush1.bf16.msra.mxu0 0
        %6519 = vmatprep.subr.bf16.mxu0 0
        %6520 = vmatpush1.bf16.msra.mxu0 0
        %6521 = vmatprep.subr.bf16.mxu0 0
        %6522 = vmatpush1.bf16.msra.mxu0 0
        %6523 = vmatprep.mubr.bf16.mxu0 0
        %6524 = vmatmul.mubr.bf16.gmra.mrb[0].mxu0 %v6486
        %v6525 = vpop.f32.mrb[0].mxu0
        %v6526 = vadd.f32 0.0, %v6525
        %v6527 = vpop.f32.mrb[0].mxu0
        %v6528 = vpop.f32.mrb[0].mxu0
        %v6529 = vpop.f32.mrb[0].mxu0
        %6530 = vdwg.mxu0
        %v6531 = vpack.c.bf16 %v6526, %v6526
        %v6532 = vld [vmem:[%s57] sm:$0xf]
        %v6533 = vld [vmem:[%s57 + $0x4] sm:$0xf]
        %v6534 = vld [vmem:[%s57 + $0x8] sm:$0xf]
        %v6535 = vld [vmem:[%s57 + $0xc] sm:$0xf]
        %v6536 = vld [vmem:[%s57 + $0x10] sm:$0xf]
        %v6537 = vld [vmem:[%s57 + $0x14] sm:$0xf]
        %v6538 = vld [vmem:[%s57 + $0x18] sm:$0xf]
        %v6539 = vld [vmem:[%s57 + $0x1c] sm:$0xf]
        %v6540 = vld [vmem:[%s57 + $0x20] sm:$0xf]
        %v6541 = vld [vmem:[%s57 + $0x24] sm:$0xf]
        %v6542 = vld [vmem:[%s57 + $0x28] sm:$0xf]
        %v6543 = vld [vmem:[%s57 + $0x2c] sm:$0xf]
        %v6544 = vld [vmem:[%s57 + $0x30] sm:$0xf]
        %v6545 = vld [vmem:[%s57 + $0x34] sm:$0xf]
        %v6546 = vld [vmem:[%s57 + $0x38] sm:$0xf]
        %v6547 = vld [vmem:[%s57 + $0x3c] sm:$0xf]
        %s6548 = scalar_lea.vmem %s55, 2
        %v6549 = vld [vmem:[%s6548] sm:$0x3]
        %v6551 = vsel %vm5844, %v6549, 0
        %6553 = vmatprep.subr.bf16.mxu0 0
        %6554 = vmatpush1.bf16.msra.mxu0 %v6489
        %6555 = vmatprep.subr.bf16.mxu0 0
        %6556 = vmatpush1.bf16.msra.mxu0 0
        %6557 = vmatprep.subr.bf16.mxu0 0
        %6558 = vmatpush1.bf16.msra.mxu0 0
        %6559 = vmatprep.subr.bf16.mxu0 0
        %6560 = vmatpush1.bf16.msra.mxu0 0
        %6561 = vmatprep.subr.bf16.mxu0 0
        %6562 = vmatpush1.bf16.msra.mxu0 0
        %6563 = vmatprep.subr.bf16.mxu0 0
        %6564 = vmatpush1.bf16.msra.mxu0 0
        %6565 = vmatprep.subr.bf16.mxu0 0
        %6566 = vmatpush1.bf16.msra.mxu0 0
        %6567 = vmatprep.subr.bf16.mxu0 0
        %6568 = vmatpush1.bf16.msra.mxu0 0
        %6569 = vmatprep.subr.bf16.mxu0 0
        %6570 = vmatpush1.bf16.msra.mxu0 0
        %6571 = vmatprep.subr.bf16.mxu0 0
        %6572 = vmatpush1.bf16.msra.mxu0 0
        %6573 = vmatprep.subr.bf16.mxu0 0
        %6574 = vmatpush1.bf16.msra.mxu0 0
        %6575 = vmatprep.subr.bf16.mxu0 0
        %6576 = vmatpush1.bf16.msra.mxu0 0
        %6577 = vmatprep.subr.bf16.mxu0 0
        %6578 = vmatpush1.bf16.msra.mxu0 0
        %6579 = vmatprep.subr.bf16.mxu0 0
        %6580 = vmatpush1.bf16.msra.mxu0 0
        %6581 = vmatprep.subr.bf16.mxu0 0
        %6582 = vmatpush1.bf16.msra.mxu0 0
        %6583 = vmatprep.subr.bf16.mxu0 0
        %6584 = vmatpush1.bf16.msra.mxu0 0
        %6585 = vmatprep.mubr.bf16.mxu0 0
        %6586 = vmatmul.mubr.bf16.gmra.mrb[0].mxu0 %v6551
        %v6587 = vpop.f32.mrb[0].mxu0
        %v6588 = vadd.f32 0.0, %v6587
        %v6589 = vpop.f32.mrb[0].mxu0
        %v6590 = vpop.f32.mrb[0].mxu0
        %v6591 = vpop.f32.mrb[0].mxu0
        %6592 = vdwg.mxu0
        %v6593 = vpack.c.bf16 %v6588, %v6588
        %s6594 = scalar_lea.vmem %s57, 64
        %v6595 = vld [vmem:[%s6594] sm:$0xf]
        %v6596 = vld [vmem:[%s6594 + $0x4] sm:$0xf]
        %v6597 = vld [vmem:[%s6594 + $0x8] sm:$0xf]
        %v6598 = vld [vmem:[%s6594 + $0xc] sm:$0xf]
        %v6599 = vld [vmem:[%s6594 + $0x10] sm:$0xf]
        %v6600 = vld [vmem:[%s6594 + $0x14] sm:$0xf]
        %v6601 = vld [vmem:[%s6594 + $0x18] sm:$0xf]
        %v6602 = vld [vmem:[%s6594 + $0x1c] sm:$0xf]
        %v6603 = vld [vmem:[%s6594 + $0x20] sm:$0xf]
        %v6604 = vld [vmem:[%s6594 + $0x24] sm:$0xf]
        %v6605 = vld [vmem:[%s6594 + $0x28] sm:$0xf]
        %v6606 = vld [vmem:[%s6594 + $0x2c] sm:$0xf]
        %v6607 = vld [vmem:[%s6594 + $0x30] sm:$0xf]
        %v6608 = vld [vmem:[%s6594 + $0x34] sm:$0xf]
        %v6609 = vld [vmem:[%s6594 + $0x38] sm:$0xf]
        %v6610 = vld [vmem:[%s6594 + $0x3c] sm:$0xf]
        %v6627 = vunpack.c.l.b16 %v6595
        %v6628 = vunpack.c.l.b16 %v6596
        %v6629 = vunpack.c.l.b16 %v6597
        %v6630 = vunpack.c.l.b16 %v6598
        %v6631 = vunpack.c.l.b16 %v6599
        %v6632 = vunpack.c.l.b16 %v6600
        %v6633 = vunpack.c.l.b16 %v6601
        %v6634 = vunpack.c.l.b16 %v6602
        %v6635 = vunpack.c.l.b16 %v6603
        %v6636 = vunpack.c.l.b16 %v6604
        %v6637 = vunpack.c.l.b16 %v6605
        %v6638 = vunpack.c.l.b16 %v6606
        %v6639 = vunpack.c.l.b16 %v6607
        %v6640 = vunpack.c.l.b16 %v6608
        %v6641 = vunpack.c.l.b16 %v6609
        %v6642 = vunpack.c.l.b16 %v6610
        %v6643 = vpack.c.b16 %v6628, %v6627
        %v6644 = vpack.c.b16 %v6630, %v6629
        %v6645 = vpack.c.b16 %v6632, %v6631
        %v6646 = vpack.c.b16 %v6634, %v6633
        %v6647 = vpack.c.b16 %v6636, %v6635
        %v6648 = vpack.c.b16 %v6638, %v6637
        %v6649 = vpack.c.b16 %v6640, %v6639
        %v6650 = vpack.c.b16 %v6642, %v6641
        %6659 = vmatprep.subr.bf16.mxu0 0
        %6660 = vmatpush1.bf16.msra.mxu0 %v6643
        %6661 = vmatprep.subr.bf16.mxu0 0
        %6662 = vmatpush1.bf16.msra.mxu0 %v6644
        %6663 = vmatprep.subr.bf16.mxu0 0
        %6664 = vmatpush1.bf16.msra.mxu0 %v6645
        %6665 = vmatprep.subr.bf16.mxu0 0
        %6666 = vmatpush1.bf16.msra.mxu0 %v6646
        %6667 = vmatprep.subr.bf16.mxu0 0
        %6668 = vmatpush1.bf16.msra.mxu0 %v6647
        %6669 = vmatprep.subr.bf16.mxu0 0
        %6670 = vmatpush1.bf16.msra.mxu0 %v6648
        %6671 = vmatprep.subr.bf16.mxu0 0
        %6672 = vmatpush1.bf16.msra.mxu0 %v6649
        %6673 = vmatprep.subr.bf16.mxu0 0
        %6674 = vmatpush1.bf16.msra.mxu0 %v6650
        %6675 = vmatprep.subr.bf16.mxu0 0
        %6676 = vmatpush1.bf16.msra.mxu0 0
        %6677 = vmatprep.subr.bf16.mxu0 0
        %6678 = vmatpush1.bf16.msra.mxu0 0
        %6679 = vmatprep.subr.bf16.mxu0 0
        %6680 = vmatpush1.bf16.msra.mxu0 0
        %6681 = vmatprep.subr.bf16.mxu0 0
        %6682 = vmatpush1.bf16.msra.mxu0 0
        %6683 = vmatprep.subr.bf16.mxu0 0
        %6684 = vmatpush1.bf16.msra.mxu0 0
        %6685 = vmatprep.subr.bf16.mxu0 0
        %6686 = vmatpush1.bf16.msra.mxu0 0
        %6687 = vmatprep.subr.bf16.mxu0 0
        %6688 = vmatpush1.bf16.msra.mxu0 0
        %6689 = vmatprep.subr.bf16.mxu0 0
        %6690 = vmatpush1.bf16.msra.mxu0 0
        %6691 = vmatprep.mubr.bf16.mxu0 0
        %6692 = vmatmul.mubr.bf16.gmra.mrb[0].mxu0 %v6593
        %v6693 = vpop.f32.mrb[0].mxu0
        %v6694 = vadd.f32 0.0, %v6693
        %v6695 = vpop.f32.mrb[0].mxu0
        %v6696 = vpop.f32.mrb[0].mxu0
        %v6697 = vpop.f32.mrb[0].mxu0
        %6698 = vdwg.mxu0
        %v6715 = vunpack.c.l.b16 %v6532
        %v6716 = vunpack.c.l.b16 %v6533
        %v6717 = vunpack.c.l.b16 %v6534
        %v6718 = vunpack.c.l.b16 %v6535
        %v6719 = vunpack.c.l.b16 %v6536
        %v6720 = vunpack.c.l.b16 %v6537
        %v6721 = vunpack.c.l.b16 %v6538
        %v6722 = vunpack.c.l.b16 %v6539
        %v6723 = vunpack.c.l.b16 %v6540
        %v6724 = vunpack.c.l.b16 %v6541
        %v6725 = vunpack.c.l.b16 %v6542
        %v6726 = vunpack.c.l.b16 %v6543
        %v6727 = vunpack.c.l.b16 %v6544
        %v6728 = vunpack.c.l.b16 %v6545
        %v6729 = vunpack.c.l.b16 %v6546
        %v6730 = vunpack.c.l.b16 %v6547
        %v6731 = vpack.c.b16 %v6716, %v6715
        %v6732 = vpack.c.b16 %v6718, %v6717
        %v6733 = vpack.c.b16 %v6720, %v6719
        %v6734 = vpack.c.b16 %v6722, %v6721
        %v6735 = vpack.c.b16 %v6724, %v6723
        %v6736 = vpack.c.b16 %v6726, %v6725
        %v6737 = vpack.c.b16 %v6728, %v6727
        %v6738 = vpack.c.b16 %v6730, %v6729
        %6747 = vmatprep.subr.bf16.mxu0 0
        %6748 = vmatpush1.bf16.msra.mxu0 %v6731
        %6749 = vmatprep.subr.bf16.mxu0 0
        %6750 = vmatpush1.bf16.msra.mxu0 %v6732
        %6751 = vmatprep.subr.bf16.mxu0 0
        %6752 = vmatpush1.bf16.msra.mxu0 %v6733
        %6753 = vmatprep.subr.bf16.mxu0 0
        %6754 = vmatpush1.bf16.msra.mxu0 %v6734
        %6755 = vmatprep.subr.bf16.mxu0 0
        %6756 = vmatpush1.bf16.msra.mxu0 %v6735
        %6757 = vmatprep.subr.bf16.mxu0 0
        %6758 = vmatpush1.bf16.msra.mxu0 %v6736
        %6759 = vmatprep.subr.bf16.mxu0 0
        %6760 = vmatpush1.bf16.msra.mxu0 %v6737
        %6761 = vmatprep.subr.bf16.mxu0 0
        %6762 = vmatpush1.bf16.msra.mxu0 %v6738
        %6763 = vmatprep.subr.bf16.mxu0 0
        %6764 = vmatpush1.bf16.msra.mxu0 0
        %6765 = vmatprep.subr.bf16.mxu0 0
        %6766 = vmatpush1.bf16.msra.mxu0 0
        %6767 = vmatprep.subr.bf16.mxu0 0
        %6768 = vmatpush1.bf16.msra.mxu0 0
        %6769 = vmatprep.subr.bf16.mxu0 0
        %6770 = vmatpush1.bf16.msra.mxu0 0
        %6771 = vmatprep.subr.bf16.mxu0 0
        %6772 = vmatpush1.bf16.msra.mxu0 0
        %6773 = vmatprep.subr.bf16.mxu0 0
        %6774 = vmatpush1.bf16.msra.mxu0 0
        %6775 = vmatprep.subr.bf16.mxu0 0
        %6776 = vmatpush1.bf16.msra.mxu0 0
        %6777 = vmatprep.subr.bf16.mxu0 0
        %6778 = vmatpush1.bf16.msra.mxu0 0
        %6779 = vmatprep.mubr.bf16.mxu0 0
        %6780 = vmatmul.mubr.bf16.gmra.mrb[0].mxu0 %v6531
        %v6781 = vpop.f32.mrb[0].mxu0
        %v6782 = vadd.f32 %v6694, %v6781
        %v6783 = vpop.f32.mrb[0].mxu0
        %v6784 = vpop.f32.mrb[0].mxu0
        %v6785 = vpop.f32.mrb[0].mxu0
        %6786 = vdwg.mxu0
        %s6787 = scalar_lea.vmem %s55, 4
        %v6788 = vld [vmem:[%s6787] sm:$0x3]
        %v6790 = vsel %vm5844, %v6788, 0
        %6792 = vmatprep.subr.bf16.mxu0 0
        %6793 = vmatpush1.bf16.msra.mxu0 %v6489
        %6794 = vmatprep.subr.bf16.mxu0 0
        %6795 = vmatpush1.bf16.msra.mxu0 0
        %6796 = vmatprep.subr.bf16.mxu0 0
        %6797 = vmatpush1.bf16.msra.mxu0 0
        %6798 = vmatprep.subr.bf16.mxu0 0
        %6799 = vmatpush1.bf16.msra.mxu0 0
        %6800 = vmatprep.subr.bf16.mxu0 0
        %6801 = vmatpush1.bf16.msra.mxu0 0
        %6802 = vmatprep.subr.bf16.mxu0 0
        %6803 = vmatpush1.bf16.msra.mxu0 0
        %6804 = vmatprep.subr.bf16.mxu0 0
        %6805 = vmatpush1.bf16.msra.mxu0 0
        %6806 = vmatprep.subr.bf16.mxu0 0
        %6807 = vmatpush1.bf16.msra.mxu0 0
        %6808 = vmatprep.subr.bf16.mxu0 0
        %6809 = vmatpush1.bf16.msra.mxu0 0
        %6810 = vmatprep.subr.bf16.mxu0 0
        %6811 = vmatpush1.bf16.msra.mxu0 0
        %6812 = vmatprep.subr.bf16.mxu0 0
        %6813 = vmatpush1.bf16.msra.mxu0 0
        %6814 = vmatprep.subr.bf16.mxu0 0
        %6815 = vmatpush1.bf16.msra.mxu0 0
        %6816 = vmatprep.subr.bf16.mxu0 0
        %6817 = vmatpush1.bf16.msra.mxu0 0
        %6818 = vmatprep.subr.bf16.mxu0 0
        %6819 = vmatpush1.bf16.msra.mxu0 0
        %6820 = vmatprep.subr.bf16.mxu0 0
        %6821 = vmatpush1.bf16.msra.mxu0 0
        %6822 = vmatprep.subr.bf16.mxu0 0
        %6823 = vmatpush1.bf16.msra.mxu0 0
        %6824 = vmatprep.mubr.bf16.mxu0 0
        %6825 = vmatmul.mubr.bf16.gmra.mrb[0].mxu0 %v6790
        %v6826 = vpop.f32.mrb[0].mxu0
        %v6827 = vadd.f32 0.0, %v6826
        %v6828 = vpop.f32.mrb[0].mxu0
        %v6829 = vpop.f32.mrb[0].mxu0
        %v6830 = vpop.f32.mrb[0].mxu0
        %6831 = vdwg.mxu0
        %v6832 = vpack.c.bf16 %v6827, %v6827
        %s6833 = scalar_lea.vmem %s57, 128
        %v6834 = vld [vmem:[%s6833] sm:$0xf]
        %v6835 = vld [vmem:[%s6833 + $0x4] sm:$0xf]
        %v6836 = vld [vmem:[%s6833 + $0x8] sm:$0xf]
        %v6837 = vld [vmem:[%s6833 + $0xc] sm:$0xf]
        %v6838 = vld [vmem:[%s6833 + $0x10] sm:$0xf]
        %v6839 = vld [vmem:[%s6833 + $0x14] sm:$0xf]
        %v6840 = vld [vmem:[%s6833 + $0x18] sm:$0xf]
        %v6841 = vld [vmem:[%s6833 + $0x1c] sm:$0xf]
        %v6842 = vld [vmem:[%s6833 + $0x20] sm:$0xf]
        %v6843 = vld [vmem:[%s6833 + $0x24] sm:$0xf]
        %v6844 = vld [vmem:[%s6833 + $0x28] sm:$0xf]
        %v6845 = vld [vmem:[%s6833 + $0x2c] sm:$0xf]
        %v6846 = vld [vmem:[%s6833 + $0x30] sm:$0xf]
        %v6847 = vld [vmem:[%s6833 + $0x34] sm:$0xf]
        %v6848 = vld [vmem:[%s6833 + $0x38] sm:$0xf]
        %v6849 = vld [vmem:[%s6833 + $0x3c] sm:$0xf]
        %v6866 = vunpack.c.l.b16 %v6834
        %v6867 = vunpack.c.l.b16 %v6835
        %v6868 = vunpack.c.l.b16 %v6836
        %v6869 = vunpack.c.l.b16 %v6837
        %v6870 = vunpack.c.l.b16 %v6838
        %v6871 = vunpack.c.l.b16 %v6839
        %v6872 = vunpack.c.l.b16 %v6840
        %v6873 = vunpack.c.l.b16 %v6841
        %v6874 = vunpack.c.l.b16 %v6842
        %v6875 = vunpack.c.l.b16 %v6843
        %v6876 = vunpack.c.l.b16 %v6844
        %v6877 = vunpack.c.l.b16 %v6845
        %v6878 = vunpack.c.l.b16 %v6846
        %v6879 = vunpack.c.l.b16 %v6847
        %v6880 = vunpack.c.l.b16 %v6848
        %v6881 = vunpack.c.l.b16 %v6849
        %v6882 = vpack.c.b16 %v6867, %v6866
        %v6883 = vpack.c.b16 %v6869, %v6868
        %v6884 = vpack.c.b16 %v6871, %v6870
        %v6885 = vpack.c.b16 %v6873, %v6872
        %v6886 = vpack.c.b16 %v6875, %v6874
        %v6887 = vpack.c.b16 %v6877, %v6876
        %v6888 = vpack.c.b16 %v6879, %v6878
        %v6889 = vpack.c.b16 %v6881, %v6880
        %6898 = vmatprep.subr.bf16.mxu0 0
        %6899 = vmatpush1.bf16.msra.mxu0 %v6882
        %6900 = vmatprep.subr.bf16.mxu0 0
        %6901 = vmatpush1.bf16.msra.mxu0 %v6883
        %6902 = vmatprep.subr.bf16.mxu0 0
        %6903 = vmatpush1.bf16.msra.mxu0 %v6884
        %6904 = vmatprep.subr.bf16.mxu0 0
        %6905 = vmatpush1.bf16.msra.mxu0 %v6885
        %6906 = vmatprep.subr.bf16.mxu0 0
        %6907 = vmatpush1.bf16.msra.mxu0 %v6886
        %6908 = vmatprep.subr.bf16.mxu0 0
        %6909 = vmatpush1.bf16.msra.mxu0 %v6887
        %6910 = vmatprep.subr.bf16.mxu0 0
        %6911 = vmatpush1.bf16.msra.mxu0 %v6888
        %6912 = vmatprep.subr.bf16.mxu0 0
        %6913 = vmatpush1.bf16.msra.mxu0 %v6889
        %6914 = vmatprep.subr.bf16.mxu0 0
        %6915 = vmatpush1.bf16.msra.mxu0 0
        %6916 = vmatprep.subr.bf16.mxu0 0
        %6917 = vmatpush1.bf16.msra.mxu0 0
        %6918 = vmatprep.subr.bf16.mxu0 0
        %6919 = vmatpush1.bf16.msra.mxu0 0
        %6920 = vmatprep.subr.bf16.mxu0 0
        %6921 = vmatpush1.bf16.msra.mxu0 0
        %6922 = vmatprep.subr.bf16.mxu0 0
        %6923 = vmatpush1.bf16.msra.mxu0 0
        %6924 = vmatprep.subr.bf16.mxu0 0
        %6925 = vmatpush1.bf16.msra.mxu0 0
        %6926 = vmatprep.subr.bf16.mxu0 0
        %6927 = vmatpush1.bf16.msra.mxu0 0
        %6928 = vmatprep.subr.bf16.mxu0 0
        %6929 = vmatpush1.bf16.msra.mxu0 0
        %6930 = vmatprep.mubr.bf16.mxu0 0
        %6931 = vmatmul.mubr.bf16.gmra.mrb[0].mxu0 %v6832
        %v6932 = vpop.f32.mrb[0].mxu0
        %v6933 = vadd.f32 0.0, %v6932
        %v6934 = vpop.f32.mrb[0].mxu0
        %v6935 = vpop.f32.mrb[0].mxu0
        %v6936 = vpop.f32.mrb[0].mxu0
        %6937 = vdwg.mxu0
        %v6938 = vadd.f32 %v6782, %v6933
        %v6939 = vld [vmem:[%s59] sm:$0x1]
        %v6941 = vlaneseq
        %v6942 = vshrl.u32 %v6941, 7
        %v6943 = vsub.s32 0, %v6942
        %v6944 = vrot.slane %v6939, %v6943
        %v6946 = vmul.f32 %v6938, %v6944
        %v6947 = vld [vmem:[%s61] sm:$0x1]
        %v6949 = vlaneseq
        %v6950 = vshrl.u32 %v6949, 7
        %v6951 = vsub.s32 0, %v6950
        %v6952 = vrot.slane %v6947, %v6951
        %v6954 = vadd.f32 %v6946, %v6952
        %v6955 = vmax.f32 %v6954, 0.0
        %v6956 = vpack.c.bf16 %v6955, %v6955
        %v6957 = vld [vmem:[%s63] sm:$0x3]
        %vm6958 = vcmask 31744
        %v6960 = vsel %vm6958, %v6957, 0
        %vm6962 = vcmask 1041408
        %v6964 = vsel %vm6962, %v6956, 0
        %6966 = vmatprep.subr.bf16.mxu0 0
        %6967 = vmatpush1.bf16.msra.mxu0 %v6964
        %6968 = vmatprep.subr.bf16.mxu0 0
        %6969 = vmatpush1.bf16.msra.mxu0 0
        %6970 = vmatprep.subr.bf16.mxu0 0
        %6971 = vmatpush1.bf16.msra.mxu0 0
        %6972 = vmatprep.subr.bf16.mxu0 0
        %6973 = vmatpush1.bf16.msra.mxu0 0
        %6974 = vmatprep.subr.bf16.mxu0 0
        %6975 = vmatpush1.bf16.msra.mxu0 0
        %6976 = vmatprep.subr.bf16.mxu0 0
        %6977 = vmatpush1.bf16.msra.mxu0 0
        %6978 = vmatprep.subr.bf16.mxu0 0
        %6979 = vmatpush1.bf16.msra.mxu0 0
        %6980 = vmatprep.subr.bf16.mxu0 0
        %6981 = vmatpush1.bf16.msra.mxu0 0
        %6982 = vmatprep.subr.bf16.mxu0 0
        %6983 = vmatpush1.bf16.msra.mxu0 0
        %6984 = vmatprep.subr.bf16.mxu0 0
        %6985 = vmatpush1.bf16.msra.mxu0 0
        %6986 = vmatprep.subr.bf16.mxu0 0
        %6987 = vmatpush1.bf16.msra.mxu0 0
        %6988 = vmatprep.subr.bf16.mxu0 0
        %6989 = vmatpush1.bf16.msra.mxu0 0
        %6990 = vmatprep.subr.bf16.mxu0 0
        %6991 = vmatpush1.bf16.msra.mxu0 0
        %6992 = vmatprep.subr.bf16.mxu0 0
        %6993 = vmatpush1.bf16.msra.mxu0 0
        %6994 = vmatprep.subr.bf16.mxu0 0
        %6995 = vmatpush1.bf16.msra.mxu0 0
        %6996 = vmatprep.subr.bf16.mxu0 0
        %6997 = vmatpush1.bf16.msra.mxu0 0
        %6998 = vmatprep.mubr.bf16.mxu0 0
        %6999 = vmatmul.mubr.bf16.gmra.mrb[0].mxu0 %v6960
        %v7000 = vpop.f32.mrb[0].mxu0
        %v7001 = vadd.f32 0.0, %v7000
        %v7002 = vpop.f32.mrb[0].mxu0
        %v7003 = vpop.f32.mrb[0].mxu0
        %v7004 = vpop.f32.mrb[0].mxu0
        %7005 = vdwg.mxu0
        %v7006 = vpack.c.bf16 %v7001, %v7001
        %v7007 = vld [vmem:[%s65] sm:$0xf]
        %v7008 = vld [vmem:[%s65 + $0x4] sm:$0xf]
        %v7009 = vld [vmem:[%s65 + $0x8] sm:$0xf]
        %v7010 = vld [vmem:[%s65 + $0xc] sm:$0xf]
        %v7011 = vld [vmem:[%s65 + $0x10] sm:$0xf]
        %v7012 = vld [vmem:[%s65 + $0x14] sm:$0xf]
        %v7013 = vld [vmem:[%s65 + $0x18] sm:$0xf]
        %v7014 = vld [vmem:[%s65 + $0x1c] sm:$0xf]
        %v7015 = vld [vmem:[%s65 + $0x20] sm:$0xf]
        %v7016 = vld [vmem:[%s65 + $0x24] sm:$0xf]
        %v7017 = vld [vmem:[%s65 + $0x28] sm:$0xf]
        %v7018 = vld [vmem:[%s65 + $0x2c] sm:$0xf]
        %v7019 = vld [vmem:[%s65 + $0x30] sm:$0xf]
        %v7020 = vld [vmem:[%s65 + $0x34] sm:$0xf]
        %v7021 = vld [vmem:[%s65 + $0x38] sm:$0xf]
        %v7022 = vld [vmem:[%s65 + $0x3c] sm:$0xf]
        %s7023 = scalar_lea.vmem %s63, 2
        %v7024 = vld [vmem:[%s7023] sm:$0x3]
        %v7026 = vsel %vm6958, %v7024, 0
        %7028 = vmatprep.subr.bf16.mxu0 0
        %7029 = vmatpush1.bf16.msra.mxu0 %v6964
        %7030 = vmatprep.subr.bf16.mxu0 0
        %7031 = vmatpush1.bf16.msra.mxu0 0
        %7032 = vmatprep.subr.bf16.mxu0 0
        %7033 = vmatpush1.bf16.msra.mxu0 0
        %7034 = vmatprep.subr.bf16.mxu0 0
        %7035 = vmatpush1.bf16.msra.mxu0 0
        %7036 = vmatprep.subr.bf16.mxu0 0
        %7037 = vmatpush1.bf16.msra.mxu0 0
        %7038 = vmatprep.subr.bf16.mxu0 0
        %7039 = vmatpush1.bf16.msra.mxu0 0
        %7040 = vmatprep.subr.bf16.mxu0 0
        %7041 = vmatpush1.bf16.msra.mxu0 0
        %7042 = vmatprep.subr.bf16.mxu0 0
        %7043 = vmatpush1.bf16.msra.mxu0 0
        %7044 = vmatprep.subr.bf16.mxu0 0
        %7045 = vmatpush1.bf16.msra.mxu0 0
        %7046 = vmatprep.subr.bf16.mxu0 0
        %7047 = vmatpush1.bf16.msra.mxu0 0
        %7048 = vmatprep.subr.bf16.mxu0 0
        %7049 = vmatpush1.bf16.msra.mxu0 0
        %7050 = vmatprep.subr.bf16.mxu0 0
        %7051 = vmatpush1.bf16.msra.mxu0 0
        %7052 = vmatprep.subr.bf16.mxu0 0
        %7053 = vmatpush1.bf16.msra.mxu0 0
        %7054 = vmatprep.subr.bf16.mxu0 0
        %7055 = vmatpush1.bf16.msra.mxu0 0
        %7056 = vmatprep.subr.bf16.mxu0 0
        %7057 = vmatpush1.bf16.msra.mxu0 0
        %7058 = vmatprep.subr.bf16.mxu0 0
        %7059 = vmatpush1.bf16.msra.mxu0 0
        %7060 = vmatprep.mubr.bf16.mxu0 0
        %7061 = vmatmul.mubr.bf16.gmra.mrb[0].mxu0 %v7026
        %v7062 = vpop.f32.mrb[0].mxu0
        %v7063 = vadd.f32 0.0, %v7062
        %v7064 = vpop.f32.mrb[0].mxu0
        %v7065 = vpop.f32.mrb[0].mxu0
        %v7066 = vpop.f32.mrb[0].mxu0
        %7067 = vdwg.mxu0
        %v7068 = vpack.c.bf16 %v7063, %v7063
        %s7069 = scalar_lea.vmem %s65, 64
        %v7070 = vld [vmem:[%s7069] sm:$0xf]
        %v7071 = vld [vmem:[%s7069 + $0x4] sm:$0xf]
        %v7072 = vld [vmem:[%s7069 + $0x8] sm:$0xf]
        %v7073 = vld [vmem:[%s7069 + $0xc] sm:$0xf]
        %v7074 = vld [vmem:[%s7069 + $0x10] sm:$0xf]
        %v7075 = vld [vmem:[%s7069 + $0x14] sm:$0xf]
        %v7076 = vld [vmem:[%s7069 + $0x18] sm:$0xf]
        %v7077 = vld [vmem:[%s7069 + $0x1c] sm:$0xf]
        %v7078 = vld [vmem:[%s7069 + $0x20] sm:$0xf]
        %v7079 = vld [vmem:[%s7069 + $0x24] sm:$0xf]
        %v7080 = vld [vmem:[%s7069 + $0x28] sm:$0xf]
        %v7081 = vld [vmem:[%s7069 + $0x2c] sm:$0xf]
        %v7082 = vld [vmem:[%s7069 + $0x30] sm:$0xf]
        %v7083 = vld [vmem:[%s7069 + $0x34] sm:$0xf]
        %v7084 = vld [vmem:[%s7069 + $0x38] sm:$0xf]
        %v7085 = vld [vmem:[%s7069 + $0x3c] sm:$0xf]
        %v7102 = vunpack.c.l.b16 %v7070
        %v7103 = vunpack.c.l.b16 %v7071
        %v7104 = vunpack.c.l.b16 %v7072
        %v7105 = vunpack.c.l.b16 %v7073
        %v7106 = vunpack.c.l.b16 %v7074
        %v7107 = vunpack.c.l.b16 %v7075
        %v7108 = vunpack.c.l.b16 %v7076
        %v7109 = vunpack.c.l.b16 %v7077
        %v7110 = vunpack.c.l.b16 %v7078
        %v7111 = vunpack.c.l.b16 %v7079
        %v7112 = vunpack.c.l.b16 %v7080
        %v7113 = vunpack.c.l.b16 %v7081
        %v7114 = vunpack.c.l.b16 %v7082
        %v7115 = vunpack.c.l.b16 %v7083
        %v7116 = vunpack.c.l.b16 %v7084
        %v7117 = vunpack.c.l.b16 %v7085
        %v7118 = vpack.c.b16 %v7103, %v7102
        %v7119 = vpack.c.b16 %v7105, %v7104
        %v7120 = vpack.c.b16 %v7107, %v7106
        %v7121 = vpack.c.b16 %v7109, %v7108
        %v7122 = vpack.c.b16 %v7111, %v7110
        %v7123 = vpack.c.b16 %v7113, %v7112
        %v7124 = vpack.c.b16 %v7115, %v7114
        %v7125 = vpack.c.b16 %v7117, %v7116
        %7134 = vmatprep.subr.bf16.mxu0 0
        %7135 = vmatpush1.bf16.msra.mxu0 %v7118
        %7136 = vmatprep.subr.bf16.mxu0 0
        %7137 = vmatpush1.bf16.msra.mxu0 %v7119
        %7138 = vmatprep.subr.bf16.mxu0 0
        %7139 = vmatpush1.bf16.msra.mxu0 %v7120
        %7140 = vmatprep.subr.bf16.mxu0 0
        %7141 = vmatpush1.bf16.msra.mxu0 %v7121
        %7142 = vmatprep.subr.bf16.mxu0 0
        %7143 = vmatpush1.bf16.msra.mxu0 %v7122
        %7144 = vmatprep.subr.bf16.mxu0 0
        %7145 = vmatpush1.bf16.msra.mxu0 %v7123
        %7146 = vmatprep.subr.bf16.mxu0 0
        %7147 = vmatpush1.bf16.msra.mxu0 %v7124
        %7148 = vmatprep.subr.bf16.mxu0 0
        %7149 = vmatpush1.bf16.msra.mxu0 %v7125
        %7150 = vmatprep.subr.bf16.mxu0 0
        %7151 = vmatpush1.bf16.msra.mxu0 0
        %7152 = vmatprep.subr.bf16.mxu0 0
        %7153 = vmatpush1.bf16.msra.mxu0 0
        %7154 = vmatprep.subr.bf16.mxu0 0
        %7155 = vmatpush1.bf16.msra.mxu0 0
        %7156 = vmatprep.subr.bf16.mxu0 0
        %7157 = vmatpush1.bf16.msra.mxu0 0
        %7158 = vmatprep.subr.bf16.mxu0 0
        %7159 = vmatpush1.bf16.msra.mxu0 0
        %7160 = vmatprep.subr.bf16.mxu0 0
        %7161 = vmatpush1.bf16.msra.mxu0 0
        %7162 = vmatprep.subr.bf16.mxu0 0
        %7163 = vmatpush1.bf16.msra.mxu0 0
        %7164 = vmatprep.subr.bf16.mxu0 0
        %7165 = vmatpush1.bf16.msra.mxu0 0
        %7166 = vmatprep.mubr.bf16.mxu0 0
        %7167 = vmatmul.mubr.bf16.gmra.mrb[0].mxu0 %v7068
        %v7168 = vpop.f32.mrb[0].mxu0
        %v7169 = vadd.f32 0.0, %v7168
        %v7170 = vpop.f32.mrb[0].mxu0
        %v7171 = vpop.f32.mrb[0].mxu0
        %v7172 = vpop.f32.mrb[0].mxu0
        %7173 = vdwg.mxu0
        %v7190 = vunpack.c.l.b16 %v7007
        %v7191 = vunpack.c.l.b16 %v7008
        %v7192 = vunpack.c.l.b16 %v7009
        %v7193 = vunpack.c.l.b16 %v7010
        %v7194 = vunpack.c.l.b16 %v7011
        %v7195 = vunpack.c.l.b16 %v7012
        %v7196 = vunpack.c.l.b16 %v7013
        %v7197 = vunpack.c.l.b16 %v7014
        %v7198 = vunpack.c.l.b16 %v7015
        %v7199 = vunpack.c.l.b16 %v7016
        %v7200 = vunpack.c.l.b16 %v7017
        %v7201 = vunpack.c.l.b16 %v7018
        %v7202 = vunpack.c.l.b16 %v7019
        %v7203 = vunpack.c.l.b16 %v7020
        %v7204 = vunpack.c.l.b16 %v7021
        %v7205 = vunpack.c.l.b16 %v7022
        %v7206 = vpack.c.b16 %v7191, %v7190
        %v7207 = vpack.c.b16 %v7193, %v7192
        %v7208 = vpack.c.b16 %v7195, %v7194
        %v7209 = vpack.c.b16 %v7197, %v7196
        %v7210 = vpack.c.b16 %v7199, %v7198
        %v7211 = vpack.c.b16 %v7201, %v7200
        %v7212 = vpack.c.b16 %v7203, %v7202
        %v7213 = vpack.c.b16 %v7205, %v7204
        %7222 = vmatprep.subr.bf16.mxu0 0
        %7223 = vmatpush1.bf16.msra.mxu0 %v7206
        %7224 = vmatprep.subr.bf16.mxu0 0
        %7225 = vmatpush1.bf16.msra.mxu0 %v7207
        %7226 = vmatprep.subr.bf16.mxu0 0
        %7227 = vmatpush1.bf16.msra.mxu0 %v7208
        %7228 = vmatprep.subr.bf16.mxu0 0
        %7229 = vmatpush1.bf16.msra.mxu0 %v7209
        %7230 = vmatprep.subr.bf16.mxu0 0
        %7231 = vmatpush1.bf16.msra.mxu0 %v7210
        %7232 = vmatprep.subr.bf16.mxu0 0
        %7233 = vmatpush1.bf16.msra.mxu0 %v7211
        %7234 = vmatprep.subr.bf16.mxu0 0
        %7235 = vmatpush1.bf16.msra.mxu0 %v7212
        %7236 = vmatprep.subr.bf16.mxu0 0
        %7237 = vmatpush1.bf16.msra.mxu0 %v7213
        %7238 = vmatprep.subr.bf16.mxu0 0
        %7239 = vmatpush1.bf16.msra.mxu0 0
        %7240 = vmatprep.subr.bf16.mxu0 0
        %7241 = vmatpush1.bf16.msra.mxu0 0
        %7242 = vmatprep.subr.bf16.mxu0 0
        %7243 = vmatpush1.bf16.msra.mxu0 0
        %7244 = vmatprep.subr.bf16.mxu0 0
        %7245 = vmatpush1.bf16.msra.mxu0 0
        %7246 = vmatprep.subr.bf16.mxu0 0
        %7247 = vmatpush1.bf16.msra.mxu0 0
        %7248 = vmatprep.subr.bf16.mxu0 0
        %7249 = vmatpush1.bf16.msra.mxu0 0
        %7250 = vmatprep.subr.bf16.mxu0 0
        %7251 = vmatpush1.bf16.msra.mxu0 0
        %7252 = vmatprep.subr.bf16.mxu0 0
        %7253 = vmatpush1.bf16.msra.mxu0 0
        %7254 = vmatprep.mubr.bf16.mxu0 0
        %7255 = vmatmul.mubr.bf16.gmra.mrb[0].mxu0 %v7006
        %v7256 = vpop.f32.mrb[0].mxu0
        %v7257 = vadd.f32 %v7169, %v7256
        %v7258 = vpop.f32.mrb[0].mxu0
        %v7259 = vpop.f32.mrb[0].mxu0
        %v7260 = vpop.f32.mrb[0].mxu0
        %7261 = vdwg.mxu0
        %s7262 = scalar_lea.vmem %s63, 4
        %v7263 = vld [vmem:[%s7262] sm:$0x3]
        %v7265 = vsel %vm6958, %v7263, 0
        %7267 = vmatprep.subr.bf16.mxu0 0
        %7268 = vmatpush1.bf16.msra.mxu0 %v6964
        %7269 = vmatprep.subr.bf16.mxu0 0
        %7270 = vmatpush1.bf16.msra.mxu0 0
        %7271 = vmatprep.subr.bf16.mxu0 0
        %7272 = vmatpush1.bf16.msra.mxu0 0
        %7273 = vmatprep.subr.bf16.mxu0 0
        %7274 = vmatpush1.bf16.msra.mxu0 0
        %7275 = vmatprep.subr.bf16.mxu0 0
        %7276 = vmatpush1.bf16.msra.mxu0 0
        %7277 = vmatprep.subr.bf16.mxu0 0
        %7278 = vmatpush1.bf16.msra.mxu0 0
        %7279 = vmatprep.subr.bf16.mxu0 0
        %7280 = vmatpush1.bf16.msra.mxu0 0
        %7281 = vmatprep.subr.bf16.mxu0 0
        %7282 = vmatpush1.bf16.msra.mxu0 0
        %7283 = vmatprep.subr.bf16.mxu0 0
        %7284 = vmatpush1.bf16.msra.mxu0 0
        %7285 = vmatprep.subr.bf16.mxu0 0
        %7286 = vmatpush1.bf16.msra.mxu0 0
        %7287 = vmatprep.subr.bf16.mxu0 0
        %7288 = vmatpush1.bf16.msra.mxu0 0
        %7289 = vmatprep.subr.bf16.mxu0 0
        %7290 = vmatpush1.bf16.msra.mxu0 0
        %7291 = vmatprep.subr.bf16.mxu0 0
        %7292 = vmatpush1.bf16.msra.mxu0 0
        %7293 = vmatprep.subr.bf16.mxu0 0
        %7294 = vmatpush1.bf16.msra.mxu0 0
        %7295 = vmatprep.subr.bf16.mxu0 0
        %7296 = vmatpush1.bf16.msra.mxu0 0
        %7297 = vmatprep.subr.bf16.mxu0 0
        %7298 = vmatpush1.bf16.msra.mxu0 0
        %7299 = vmatprep.mubr.bf16.mxu0 0
        %7300 = vmatmul.mubr.bf16.gmra.mrb[0].mxu0 %v7265
        %v7301 = vpop.f32.mrb[0].mxu0
        %v7302 = vadd.f32 0.0, %v7301
        %v7303 = vpop.f32.mrb[0].mxu0
        %v7304 = vpop.f32.mrb[0].mxu0
        %v7305 = vpop.f32.mrb[0].mxu0
        %7306 = vdwg.mxu0
        %v7307 = vpack.c.bf16 %v7302, %v7302
        %s7308 = scalar_lea.vmem %s65, 128
        %v7309 = vld [vmem:[%s7308] sm:$0xf]
        %v7310 = vld [vmem:[%s7308 + $0x4] sm:$0xf]
        %v7311 = vld [vmem:[%s7308 + $0x8] sm:$0xf]
        %v7312 = vld [vmem:[%s7308 + $0xc] sm:$0xf]
        %v7313 = vld [vmem:[%s7308 + $0x10] sm:$0xf]
        %v7314 = vld [vmem:[%s7308 + $0x14] sm:$0xf]
        %v7315 = vld [vmem:[%s7308 + $0x18] sm:$0xf]
        %v7316 = vld [vmem:[%s7308 + $0x1c] sm:$0xf]
        %v7317 = vld [vmem:[%s7308 + $0x20] sm:$0xf]
        %v7318 = vld [vmem:[%s7308 + $0x24] sm:$0xf]
        %v7319 = vld [vmem:[%s7308 + $0x28] sm:$0xf]
        %v7320 = vld [vmem:[%s7308 + $0x2c] sm:$0xf]
        %v7321 = vld [vmem:[%s7308 + $0x30] sm:$0xf]
        %v7322 = vld [vmem:[%s7308 + $0x34] sm:$0xf]
        %v7323 = vld [vmem:[%s7308 + $0x38] sm:$0xf]
        %v7324 = vld [vmem:[%s7308 + $0x3c] sm:$0xf]
        %v7341 = vunpack.c.l.b16 %v7309
        %v7342 = vunpack.c.l.b16 %v7310
        %v7343 = vunpack.c.l.b16 %v7311
        %v7344 = vunpack.c.l.b16 %v7312
        %v7345 = vunpack.c.l.b16 %v7313
        %v7346 = vunpack.c.l.b16 %v7314
        %v7347 = vunpack.c.l.b16 %v7315
        %v7348 = vunpack.c.l.b16 %v7316
        %v7349 = vunpack.c.l.b16 %v7317
        %v7350 = vunpack.c.l.b16 %v7318
        %v7351 = vunpack.c.l.b16 %v7319
        %v7352 = vunpack.c.l.b16 %v7320
        %v7353 = vunpack.c.l.b16 %v7321
        %v7354 = vunpack.c.l.b16 %v7322
        %v7355 = vunpack.c.l.b16 %v7323
        %v7356 = vunpack.c.l.b16 %v7324
        %v7357 = vpack.c.b16 %v7342, %v7341
        %v7358 = vpack.c.b16 %v7344, %v7343
        %v7359 = vpack.c.b16 %v7346, %v7345
        %v7360 = vpack.c.b16 %v7348, %v7347
        %v7361 = vpack.c.b16 %v7350, %v7349
        %v7362 = vpack.c.b16 %v7352, %v7351
        %v7363 = vpack.c.b16 %v7354, %v7353
        %v7364 = vpack.c.b16 %v7356, %v7355
        %7373 = vmatprep.subr.bf16.mxu0 0
        %7374 = vmatpush1.bf16.msra.mxu0 %v7357
        %7375 = vmatprep.subr.bf16.mxu0 0
        %7376 = vmatpush1.bf16.msra.mxu0 %v7358
        %7377 = vmatprep.subr.bf16.mxu0 0
        %7378 = vmatpush1.bf16.msra.mxu0 %v7359
        %7379 = vmatprep.subr.bf16.mxu0 0
        %7380 = vmatpush1.bf16.msra.mxu0 %v7360
        %7381 = vmatprep.subr.bf16.mxu0 0
        %7382 = vmatpush1.bf16.msra.mxu0 %v7361
        %7383 = vmatprep.subr.bf16.mxu0 0
        %7384 = vmatpush1.bf16.msra.mxu0 %v7362
        %7385 = vmatprep.subr.bf16.mxu0 0
        %7386 = vmatpush1.bf16.msra.mxu0 %v7363
        %7387 = vmatprep.subr.bf16.mxu0 0
        %7388 = vmatpush1.bf16.msra.mxu0 %v7364
        %7389 = vmatprep.subr.bf16.mxu0 0
        %7390 = vmatpush1.bf16.msra.mxu0 0
        %7391 = vmatprep.subr.bf16.mxu0 0
        %7392 = vmatpush1.bf16.msra.mxu0 0
        %7393 = vmatprep.subr.bf16.mxu0 0
        %7394 = vmatpush1.bf16.msra.mxu0 0
        %7395 = vmatprep.subr.bf16.mxu0 0
        %7396 = vmatpush1.bf16.msra.mxu0 0
        %7397 = vmatprep.subr.bf16.mxu0 0
        %7398 = vmatpush1.bf16.msra.mxu0 0
        %7399 = vmatprep.subr.bf16.mxu0 0
        %7400 = vmatpush1.bf16.msra.mxu0 0
        %7401 = vmatprep.subr.bf16.mxu0 0
        %7402 = vmatpush1.bf16.msra.mxu0 0
        %7403 = vmatprep.subr.bf16.mxu0 0
        %7404 = vmatpush1.bf16.msra.mxu0 0
        %7405 = vmatprep.mubr.bf16.mxu0 0
        %7406 = vmatmul.mubr.bf16.gmra.mrb[0].mxu0 %v7307
        %v7407 = vpop.f32.mrb[0].mxu0
        %v7408 = vadd.f32 0.0, %v7407
        %v7409 = vpop.f32.mrb[0].mxu0
        %v7410 = vpop.f32.mrb[0].mxu0
        %v7411 = vpop.f32.mrb[0].mxu0
        %7412 = vdwg.mxu0
        %v7413 = vadd.f32 %v7257, %v7408
        %v7414 = vld [vmem:[%s67] sm:$0x1]
        %v7416 = vlaneseq
        %v7417 = vshrl.u32 %v7416, 7
        %v7418 = vsub.s32 0, %v7417
        %v7419 = vrot.slane %v7414, %v7418
        %v7421 = vmul.f32 %v7413, %v7419
        %v7422 = vld [vmem:[%s69] sm:$0x1]
        %v7424 = vlaneseq
        %v7425 = vshrl.u32 %v7424, 7
        %v7426 = vsub.s32 0, %v7425
        %v7427 = vrot.slane %v7422, %v7426
        %v7429 = vadd.f32 %v7421, %v7427
        %v7430 = vld [vmem:[%s71] sm:$0x3]
        %v7432 = vsel %vm5844, %v7430, 0
        %7434 = vmatprep.subr.bf16.mxu0 0
        %7435 = vmatpush1.bf16.msra.mxu0 %v6489
        %7436 = vmatprep.subr.bf16.mxu0 0
        %7437 = vmatpush1.bf16.msra.mxu0 0
        %7438 = vmatprep.subr.bf16.mxu0 0
        %7439 = vmatpush1.bf16.msra.mxu0 0
        %7440 = vmatprep.subr.bf16.mxu0 0
        %7441 = vmatpush1.bf16.msra.mxu0 0
        %7442 = vmatprep.subr.bf16.mxu0 0
        %7443 = vmatpush1.bf16.msra.mxu0 0
        %7444 = vmatprep.subr.bf16.mxu0 0
        %7445 = vmatpush1.bf16.msra.mxu0 0
        %7446 = vmatprep.subr.bf16.mxu0 0
        %7447 = vmatpush1.bf16.msra.mxu0 0
        %7448 = vmatprep.subr.bf16.mxu0 0
        %7449 = vmatpush1.bf16.msra.mxu0 0
        %7450 = vmatprep.subr.bf16.mxu0 0
        %7451 = vmatpush1.bf16.msra.mxu0 0
        %7452 = vmatprep.subr.bf16.mxu0 0
        %7453 = vmatpush1.bf16.msra.mxu0 0
        %7454 = vmatprep.subr.bf16.mxu0 0
        %7455 = vmatpush1.bf16.msra.mxu0 0
        %7456 = vmatprep.subr.bf16.mxu0 0
        %7457 = vmatpush1.bf16.msra.mxu0 0
        %7458 = vmatprep.subr.bf16.mxu0 0
        %7459 = vmatpush1.bf16.msra.mxu0 0
        %7460 = vmatprep.subr.bf16.mxu0 0
        %7461 = vmatpush1.bf16.msra.mxu0 0
        %7462 = vmatprep.subr.bf16.mxu0 0
        %7463 = vmatpush1.bf16.msra.mxu0 0
        %7464 = vmatprep.subr.bf16.mxu0 0
        %7465 = vmatpush1.bf16.msra.mxu0 0
        %7466 = vmatprep.mubr.bf16.mxu0 0
        %7467 = vmatmul.mubr.bf16.gmra.mrb[0].mxu0 %v7432
        %v7468 = vpop.f32.mrb[0].mxu0
        %v7469 = vadd.f32 0.0, %v7468
        %v7470 = vpop.f32.mrb[0].mxu0
        %v7471 = vpop.f32.mrb[0].mxu0
        %v7472 = vpop.f32.mrb[0].mxu0
        %7473 = vdwg.mxu0
        %v7474 = vpack.c.bf16 %v7469, %v7469
        %v7475 = vld [vmem:[%s73] sm:$0xf]
        %v7476 = vld [vmem:[%s73 + $0x4] sm:$0xf]
        %v7477 = vld [vmem:[%s73 + $0x8] sm:$0xf]
        %v7478 = vld [vmem:[%s73 + $0xc] sm:$0xf]
        %v7479 = vld [vmem:[%s73 + $0x10] sm:$0xf]
        %v7480 = vld [vmem:[%s73 + $0x14] sm:$0xf]
        %v7481 = vld [vmem:[%s73 + $0x18] sm:$0xf]
        %v7482 = vld [vmem:[%s73 + $0x1c] sm:$0xf]
        %v7483 = vld [vmem:[%s73 + $0x20] sm:$0xf]
        %v7484 = vld [vmem:[%s73 + $0x24] sm:$0xf]
        %v7485 = vld [vmem:[%s73 + $0x28] sm:$0xf]
        %v7486 = vld [vmem:[%s73 + $0x2c] sm:$0xf]
        %v7487 = vld [vmem:[%s73 + $0x30] sm:$0xf]
        %v7488 = vld [vmem:[%s73 + $0x34] sm:$0xf]
        %v7489 = vld [vmem:[%s73 + $0x38] sm:$0xf]
        %v7490 = vld [vmem:[%s73 + $0x3c] sm:$0xf]
        %v7507 = vunpack.c.l.b16 %v7475
        %v7508 = vunpack.c.l.b16 %v7476
        %v7509 = vunpack.c.l.b16 %v7477
        %v7510 = vunpack.c.l.b16 %v7478
        %v7511 = vunpack.c.l.b16 %v7479
        %v7512 = vunpack.c.l.b16 %v7480
        %v7513 = vunpack.c.l.b16 %v7481
        %v7514 = vunpack.c.l.b16 %v7482
        %v7515 = vunpack.c.l.b16 %v7483
        %v7516 = vunpack.c.l.b16 %v7484
        %v7517 = vunpack.c.l.b16 %v7485
        %v7518 = vunpack.c.l.b16 %v7486
        %v7519 = vunpack.c.l.b16 %v7487
        %v7520 = vunpack.c.l.b16 %v7488
        %v7521 = vunpack.c.l.b16 %v7489
        %v7522 = vunpack.c.l.b16 %v7490
        %v7523 = vpack.c.b16 %v7508, %v7507
        %v7524 = vpack.c.b16 %v7510, %v7509
        %v7525 = vpack.c.b16 %v7512, %v7511
        %v7526 = vpack.c.b16 %v7514, %v7513
        %v7527 = vpack.c.b16 %v7516, %v7515
        %v7528 = vpack.c.b16 %v7518, %v7517
        %v7529 = vpack.c.b16 %v7520, %v7519
        %v7530 = vpack.c.b16 %v7522, %v7521
        %7539 = vmatprep.subr.bf16.mxu0 0
        %7540 = vmatpush1.bf16.msra.mxu0 %v7523
        %7541 = vmatprep.subr.bf16.mxu0 0
        %7542 = vmatpush1.bf16.msra.mxu0 %v7524
        %7543 = vmatprep.subr.bf16.mxu0 0
        %7544 = vmatpush1.bf16.msra.mxu0 %v7525
        %7545 = vmatprep.subr.bf16.mxu0 0
        %7546 = vmatpush1.bf16.msra.mxu0 %v7526
        %7547 = vmatprep.subr.bf16.mxu0 0
        %7548 = vmatpush1.bf16.msra.mxu0 %v7527
        %7549 = vmatprep.subr.bf16.mxu0 0
        %7550 = vmatpush1.bf16.msra.mxu0 %v7528
        %7551 = vmatprep.subr.bf16.mxu0 0
        %7552 = vmatpush1.bf16.msra.mxu0 %v7529
        %7553 = vmatprep.subr.bf16.mxu0 0
        %7554 = vmatpush1.bf16.msra.mxu0 %v7530
        %7555 = vmatprep.subr.bf16.mxu0 0
        %7556 = vmatpush1.bf16.msra.mxu0 0
        %7557 = vmatprep.subr.bf16.mxu0 0
        %7558 = vmatpush1.bf16.msra.mxu0 0
        %7559 = vmatprep.subr.bf16.mxu0 0
        %7560 = vmatpush1.bf16.msra.mxu0 0
        %7561 = vmatprep.subr.bf16.mxu0 0
        %7562 = vmatpush1.bf16.msra.mxu0 0
        %7563 = vmatprep.subr.bf16.mxu0 0
        %7564 = vmatpush1.bf16.msra.mxu0 0
        %7565 = vmatprep.subr.bf16.mxu0 0
        %7566 = vmatpush1.bf16.msra.mxu0 0
        %7567 = vmatprep.subr.bf16.mxu0 0
        %7568 = vmatpush1.bf16.msra.mxu0 0
        %7569 = vmatprep.subr.bf16.mxu0 0
        %7570 = vmatpush1.bf16.msra.mxu0 0
        %7571 = vmatprep.mubr.bf16.mxu0 0
        %7572 = vmatmul.mubr.bf16.gmra.mrb[0].mxu0 %v7474
        %v7573 = vpop.f32.mrb[0].mxu0
        %v7574 = vadd.f32 0.0, %v7573
        %v7575 = vpop.f32.mrb[0].mxu0
        %v7576 = vpop.f32.mrb[0].mxu0
        %v7577 = vpop.f32.mrb[0].mxu0
        %7578 = vdwg.mxu0
        %v7579 = vld [vmem:[%s75] sm:$0x1]
        %v7581 = vlaneseq
        %v7582 = vshrl.u32 %v7581, 7
        %v7583 = vsub.s32 0, %v7582
        %v7584 = vrot.slane %v7579, %v7583
        %v7586 = vmul.f32 %v7574, %v7584
        %v7587 = vld [vmem:[%s77] sm:$0x1]
        %v7589 = vlaneseq
        %v7590 = vshrl.u32 %v7589, 7
        %v7591 = vsub.s32 0, %v7590
        %v7592 = vrot.slane %v7587, %v7591
        %v7594 = vadd.f32 %v7586, %v7592
        %v7595 = vadd.f32 %v7429, %v7594
        %v7596 = vmax.f32 %v7595, 0.0
        %v7597 = vpack.c.bf16 %v7596, %v7596
        %v7598 = vld [vmem:[%s79] sm:$0x1]
        %v7600 = vsel %vm6958, %v7598, 0
        %v7603 = vsel %vm6962, %v7597, 0
        %7605 = vmatprep.subr.bf16.mxu0 0
        %7606 = vmatpush1.bf16.msra.mxu0 %v7603
        %7607 = vmatprep.subr.bf16.mxu0 0
        %7608 = vmatpush1.bf16.msra.mxu0 0
        %7609 = vmatprep.subr.bf16.mxu0 0
        %7610 = vmatpush1.bf16.msra.mxu0 0
        %7611 = vmatprep.subr.bf16.mxu0 0
        %7612 = vmatpush1.bf16.msra.mxu0 0
        %7613 = vmatprep.subr.bf16.mxu0 0
        %7614 = vmatpush1.bf16.msra.mxu0 0
        %7615 = vmatprep.subr.bf16.mxu0 0
        %7616 = vmatpush1.bf16.msra.mxu0 0
        %7617 = vmatprep.subr.bf16.mxu0 0
        %7618 = vmatpush1.bf16.msra.mxu0 0
        %7619 = vmatprep.subr.bf16.mxu0 0
        %7620 = vmatpush1.bf16.msra.mxu0 0
        %7621 = vmatprep.subr.bf16.mxu0 0
        %7622 = vmatpush1.bf16.msra.mxu0 0
        %7623 = vmatprep.subr.bf16.mxu0 0
        %7624 = vmatpush1.bf16.msra.mxu0 0
        %7625 = vmatprep.subr.bf16.mxu0 0
        %7626 = vmatpush1.bf16.msra.mxu0 0
        %7627 = vmatprep.subr.bf16.mxu0 0
        %7628 = vmatpush1.bf16.msra.mxu0 0
        %7629 = vmatprep.subr.bf16.mxu0 0
        %7630 = vmatpush1.bf16.msra.mxu0 0
        %7631 = vmatprep.subr.bf16.mxu0 0
        %7632 = vmatpush1.bf16.msra.mxu0 0
        %7633 = vmatprep.subr.bf16.mxu0 0
        %7634 = vmatpush1.bf16.msra.mxu0 0
        %7635 = vmatprep.subr.bf16.mxu0 0
        %7636 = vmatpush1.bf16.msra.mxu0 0
        %7637 = vmatprep.mubr.bf16.mxu0 0
        %7638 = vmatmul.mubr.bf16.gmra.mrb[0].mxu0 %v7600
        %v7639 = vpop.f32.mrb[0].mxu0
        %v7640 = vadd.f32 0.0, %v7639
        %v7641 = vpop.f32.mrb[0].mxu0
        %v7642 = vpop.f32.mrb[0].mxu0
        %v7643 = vpop.f32.mrb[0].mxu0
        %7644 = vdwg.mxu0
        %v7645 = vpack.c.bf16 %v7640, %v7640
        %v7646 = vld [vmem:[%s81] sm:$0xf]
        %v7647 = vld [vmem:[%s81 + $0x4] sm:$0xf]
        %v7648 = vld [vmem:[%s81 + $0x8] sm:$0xf]
        %v7649 = vld [vmem:[%s81 + $0xc] sm:$0xf]
        %v7650 = vld [vmem:[%s81 + $0x10] sm:$0xf]
        %v7651 = vld [vmem:[%s81 + $0x14] sm:$0xf]
        %v7652 = vld [vmem:[%s81 + $0x18] sm:$0xf]
        %v7653 = vld [vmem:[%s81 + $0x1c] sm:$0xf]
        %v7654 = vld [vmem:[%s81 + $0x20] sm:$0xf]
        %v7655 = vld [vmem:[%s81 + $0x24] sm:$0xf]
        %v7656 = vld [vmem:[%s81 + $0x28] sm:$0xf]
        %v7657 = vld [vmem:[%s81 + $0x2c] sm:$0xf]
        %v7658 = vld [vmem:[%s81 + $0x30] sm:$0xf]
        %v7659 = vld [vmem:[%s81 + $0x34] sm:$0xf]
        %v7660 = vld [vmem:[%s81 + $0x38] sm:$0xf]
        %v7661 = vld [vmem:[%s81 + $0x3c] sm:$0xf]
        %s7662 = scalar_lea.vmem %s79, 1
        %v7663 = vld [vmem:[%s7662] sm:$0x1]
        %v7665 = vsel %vm6958, %v7663, 0
        %7667 = vmatprep.subr.bf16.mxu0 0
        %7668 = vmatpush1.bf16.msra.mxu0 %v7603
        %7669 = vmatprep.subr.bf16.mxu0 0
        %7670 = vmatpush1.bf16.msra.mxu0 0
        %7671 = vmatprep.subr.bf16.mxu0 0
        %7672 = vmatpush1.bf16.msra.mxu0 0
        %7673 = vmatprep.subr.bf16.mxu0 0
        %7674 = vmatpush1.bf16.msra.mxu0 0
        %7675 = vmatprep.subr.bf16.mxu0 0
        %7676 = vmatpush1.bf16.msra.mxu0 0
        %7677 = vmatprep.subr.bf16.mxu0 0
        %7678 = vmatpush1.bf16.msra.mxu0 0
        %7679 = vmatprep.subr.bf16.mxu0 0
        %7680 = vmatpush1.bf16.msra.mxu0 0
        %7681 = vmatprep.subr.bf16.mxu0 0
        %7682 = vmatpush1.bf16.msra.mxu0 0
        %7683 = vmatprep.subr.bf16.mxu0 0
        %7684 = vmatpush1.bf16.msra.mxu0 0
        %7685 = vmatprep.subr.bf16.mxu0 0
        %7686 = vmatpush1.bf16.msra.mxu0 0
        %7687 = vmatprep.subr.bf16.mxu0 0
        %7688 = vmatpush1.bf16.msra.mxu0 0
        %7689 = vmatprep.subr.bf16.mxu0 0
        %7690 = vmatpush1.bf16.msra.mxu0 0
        %7691 = vmatprep.subr.bf16.mxu0 0
        %7692 = vmatpush1.bf16.msra.mxu0 0
        %7693 = vmatprep.subr.bf16.mxu0 0
        %7694 = vmatpush1.bf16.msra.mxu0 0
        %7695 = vmatprep.subr.bf16.mxu0 0
        %7696 = vmatpush1.bf16.msra.mxu0 0
        %7697 = vmatprep.subr.bf16.mxu0 0
        %7698 = vmatpush1.bf16.msra.mxu0 0
        %7699 = vmatprep.mubr.bf16.mxu0 0
        %7700 = vmatmul.mubr.bf16.gmra.mrb[0].mxu0 %v7665
        %v7701 = vpop.f32.mrb[0].mxu0
        %v7702 = vadd.f32 0.0, %v7701
        %v7703 = vpop.f32.mrb[0].mxu0
        %v7704 = vpop.f32.mrb[0].mxu0
        %v7705 = vpop.f32.mrb[0].mxu0
        %7706 = vdwg.mxu0
        %v7707 = vpack.c.bf16 %v7702, %v7702
        %s7708 = scalar_lea.vmem %s81, 64
        %v7709 = vld [vmem:[%s7708] sm:$0xf]
        %v7710 = vld [vmem:[%s7708 + $0x4] sm:$0xf]
        %v7711 = vld [vmem:[%s7708 + $0x8] sm:$0xf]
        %v7712 = vld [vmem:[%s7708 + $0xc] sm:$0xf]
        %v7713 = vld [vmem:[%s7708 + $0x10] sm:$0xf]
        %v7714 = vld [vmem:[%s7708 + $0x14] sm:$0xf]
        %v7715 = vld [vmem:[%s7708 + $0x18] sm:$0xf]
        %v7716 = vld [vmem:[%s7708 + $0x1c] sm:$0xf]
        %v7717 = vld [vmem:[%s7708 + $0x20] sm:$0xf]
        %v7718 = vld [vmem:[%s7708 + $0x24] sm:$0xf]
        %v7719 = vld [vmem:[%s7708 + $0x28] sm:$0xf]
        %v7720 = vld [vmem:[%s7708 + $0x2c] sm:$0xf]
        %v7721 = vld [vmem:[%s7708 + $0x30] sm:$0xf]
        %v7722 = vld [vmem:[%s7708 + $0x34] sm:$0xf]
        %v7723 = vld [vmem:[%s7708 + $0x38] sm:$0xf]
        %v7724 = vld [vmem:[%s7708 + $0x3c] sm:$0xf]
        %v7741 = vunpack.c.l.b16 %v7709
        %v7742 = vunpack.c.l.b16 %v7710
        %v7743 = vunpack.c.l.b16 %v7711
        %v7744 = vunpack.c.l.b16 %v7712
        %v7745 = vunpack.c.l.b16 %v7713
        %v7746 = vunpack.c.l.b16 %v7714
        %v7747 = vunpack.c.l.b16 %v7715
        %v7748 = vunpack.c.l.b16 %v7716
        %v7749 = vunpack.c.l.b16 %v7717
        %v7750 = vunpack.c.l.b16 %v7718
        %v7751 = vunpack.c.l.b16 %v7719
        %v7752 = vunpack.c.l.b16 %v7720
        %v7753 = vunpack.c.l.b16 %v7721
        %v7754 = vunpack.c.l.b16 %v7722
        %v7755 = vunpack.c.l.b16 %v7723
        %v7756 = vunpack.c.l.b16 %v7724
        %v7757 = vpack.c.b16 %v7742, %v7741
        %v7758 = vpack.c.b16 %v7744, %v7743
        %v7759 = vpack.c.b16 %v7746, %v7745
        %v7760 = vpack.c.b16 %v7748, %v7747
        %v7761 = vpack.c.b16 %v7750, %v7749
        %v7762 = vpack.c.b16 %v7752, %v7751
        %v7763 = vpack.c.b16 %v7754, %v7753
        %v7764 = vpack.c.b16 %v7756, %v7755
        %7773 = vmatprep.subr.bf16.mxu0 0
        %7774 = vmatpush1.bf16.msra.mxu0 %v7757
        %7775 = vmatprep.subr.bf16.mxu0 0
        %7776 = vmatpush1.bf16.msra.mxu0 %v7758
        %7777 = vmatprep.subr.bf16.mxu0 0
        %7778 = vmatpush1.bf16.msra.mxu0 %v7759
        %7779 = vmatprep.subr.bf16.mxu0 0
        %7780 = vmatpush1.bf16.msra.mxu0 %v7760
        %7781 = vmatprep.subr.bf16.mxu0 0
        %7782 = vmatpush1.bf16.msra.mxu0 %v7761
        %7783 = vmatprep.subr.bf16.mxu0 0
        %7784 = vmatpush1.bf16.msra.mxu0 %v7762
        %7785 = vmatprep.subr.bf16.mxu0 0
        %7786 = vmatpush1.bf16.msra.mxu0 %v7763
        %7787 = vmatprep.subr.bf16.mxu0 0
        %7788 = vmatpush1.bf16.msra.mxu0 %v7764
        %7789 = vmatprep.subr.bf16.mxu0 0
        %7790 = vmatpush1.bf16.msra.mxu0 0
        %7791 = vmatprep.subr.bf16.mxu0 0
        %7792 = vmatpush1.bf16.msra.mxu0 0
        %7793 = vmatprep.subr.bf16.mxu0 0
        %7794 = vmatpush1.bf16.msra.mxu0 0
        %7795 = vmatprep.subr.bf16.mxu0 0
        %7796 = vmatpush1.bf16.msra.mxu0 0
        %7797 = vmatprep.subr.bf16.mxu0 0
        %7798 = vmatpush1.bf16.msra.mxu0 0
        %7799 = vmatprep.subr.bf16.mxu0 0
        %7800 = vmatpush1.bf16.msra.mxu0 0
        %7801 = vmatprep.subr.bf16.mxu0 0
        %7802 = vmatpush1.bf16.msra.mxu0 0
        %7803 = vmatprep.subr.bf16.mxu0 0
        %7804 = vmatpush1.bf16.msra.mxu0 0
        %7805 = vmatprep.mubr.bf16.mxu0 0
        %7806 = vmatmul.mubr.bf16.gmra.mrb[0].mxu0 %v7707
        %v7807 = vpop.f32.mrb[0].mxu0
        %v7808 = vadd.f32 0.0, %v7807
        %v7809 = vpop.f32.mrb[0].mxu0
        %v7810 = vpop.f32.mrb[0].mxu0
        %v7811 = vpop.f32.mrb[0].mxu0
        %7812 = vdwg.mxu0
        %v7829 = vunpack.c.l.b16 %v7646
        %v7830 = vunpack.c.l.b16 %v7647
        %v7831 = vunpack.c.l.b16 %v7648
        %v7832 = vunpack.c.l.b16 %v7649
        %v7833 = vunpack.c.l.b16 %v7650
        %v7834 = vunpack.c.l.b16 %v7651
        %v7835 = vunpack.c.l.b16 %v7652
        %v7836 = vunpack.c.l.b16 %v7653
        %v7837 = vunpack.c.l.b16 %v7654
        %v7838 = vunpack.c.l.b16 %v7655
        %v7839 = vunpack.c.l.b16 %v7656
        %v7840 = vunpack.c.l.b16 %v7657
        %v7841 = vunpack.c.l.b16 %v7658
        %v7842 = vunpack.c.l.b16 %v7659
        %v7843 = vunpack.c.l.b16 %v7660
        %v7844 = vunpack.c.l.b16 %v7661
        %v7845 = vpack.c.b16 %v7830, %v7829
        %v7846 = vpack.c.b16 %v7832, %v7831
        %v7847 = vpack.c.b16 %v7834, %v7833
        %v7848 = vpack.c.b16 %v7836, %v7835
        %v7849 = vpack.c.b16 %v7838, %v7837
        %v7850 = vpack.c.b16 %v7840, %v7839
        %v7851 = vpack.c.b16 %v7842, %v7841
        %v7852 = vpack.c.b16 %v7844, %v7843
        %7861 = vmatprep.subr.bf16.mxu0 0
        %7862 = vmatpush1.bf16.msra.mxu0 %v7845
        %7863 = vmatprep.subr.bf16.mxu0 0
        %7864 = vmatpush1.bf16.msra.mxu0 %v7846
        %7865 = vmatprep.subr.bf16.mxu0 0
        %7866 = vmatpush1.bf16.msra.mxu0 %v7847
        %7867 = vmatprep.subr.bf16.mxu0 0
        %7868 = vmatpush1.bf16.msra.mxu0 %v7848
        %7869 = vmatprep.subr.bf16.mxu0 0
        %7870 = vmatpush1.bf16.msra.mxu0 %v7849
        %7871 = vmatprep.subr.bf16.mxu0 0
        %7872 = vmatpush1.bf16.msra.mxu0 %v7850
        %7873 = vmatprep.subr.bf16.mxu0 0
        %7874 = vmatpush1.bf16.msra.mxu0 %v7851
        %7875 = vmatprep.subr.bf16.mxu0 0
        %7876 = vmatpush1.bf16.msra.mxu0 %v7852
        %7877 = vmatprep.subr.bf16.mxu0 0
        %7878 = vmatpush1.bf16.msra.mxu0 0
        %7879 = vmatprep.subr.bf16.mxu0 0
        %7880 = vmatpush1.bf16.msra.mxu0 0
        %7881 = vmatprep.subr.bf16.mxu0 0
        %7882 = vmatpush1.bf16.msra.mxu0 0
        %7883 = vmatprep.subr.bf16.mxu0 0
        %7884 = vmatpush1.bf16.msra.mxu0 0
        %7885 = vmatprep.subr.bf16.mxu0 0
        %7886 = vmatpush1.bf16.msra.mxu0 0
        %7887 = vmatprep.subr.bf16.mxu0 0
        %7888 = vmatpush1.bf16.msra.mxu0 0
        %7889 = vmatprep.subr.bf16.mxu0 0
        %7890 = vmatpush1.bf16.msra.mxu0 0
        %7891 = vmatprep.subr.bf16.mxu0 0
        %7892 = vmatpush1.bf16.msra.mxu0 0
        %7893 = vmatprep.mubr.bf16.mxu0 0
        %7894 = vmatmul.mubr.bf16.gmra.mrb[0].mxu0 %v7645
        %v7895 = vpop.f32.mrb[0].mxu0
        %v7896 = vadd.f32 %v7808, %v7895
        %v7897 = vpop.f32.mrb[0].mxu0
        %v7898 = vpop.f32.mrb[0].mxu0
        %v7899 = vpop.f32.mrb[0].mxu0
        %7900 = vdwg.mxu0
        %s7901 = scalar_lea.vmem %s79, 2
        %v7902 = vld [vmem:[%s7901] sm:$0x1]
        %v7904 = vsel %vm6958, %v7902, 0
        %7906 = vmatprep.subr.bf16.mxu0 0
        %7907 = vmatpush1.bf16.msra.mxu0 %v7603
        %7908 = vmatprep.subr.bf16.mxu0 0
        %7909 = vmatpush1.bf16.msra.mxu0 0
        %7910 = vmatprep.subr.bf16.mxu0 0
        %7911 = vmatpush1.bf16.msra.mxu0 0
        %7912 = vmatprep.subr.bf16.mxu0 0
        %7913 = vmatpush1.bf16.msra.mxu0 0
        %7914 = vmatprep.subr.bf16.mxu0 0
        %7915 = vmatpush1.bf16.msra.mxu0 0
        %7916 = vmatprep.subr.bf16.mxu0 0
        %7917 = vmatpush1.bf16.msra.mxu0 0
        %7918 = vmatprep.subr.bf16.mxu0 0
        %7919 = vmatpush1.bf16.msra.mxu0 0
        %7920 = vmatprep.subr.bf16.mxu0 0
        %7921 = vmatpush1.bf16.msra.mxu0 0
        %7922 = vmatprep.subr.bf16.mxu0 0
        %7923 = vmatpush1.bf16.msra.mxu0 0
        %7924 = vmatprep.subr.bf16.mxu0 0
        %7925 = vmatpush1.bf16.msra.mxu0 0
        %7926 = vmatprep.subr.bf16.mxu0 0
        %7927 = vmatpush1.bf16.msra.mxu0 0
        %7928 = vmatprep.subr.bf16.mxu0 0
        %7929 = vmatpush1.bf16.msra.mxu0 0
        %7930 = vmatprep.subr.bf16.mxu0 0
        %7931 = vmatpush1.bf16.msra.mxu0 0
        %7932 = vmatprep.subr.bf16.mxu0 0
        %7933 = vmatpush1.bf16.msra.mxu0 0
        %7934 = vmatprep.subr.bf16.mxu0 0
        %7935 = vmatpush1.bf16.msra.mxu0 0
        %7936 = vmatprep.subr.bf16.mxu0 0
        %7937 = vmatpush1.bf16.msra.mxu0 0
        %7938 = vmatprep.mubr.bf16.mxu0 0
        %7939 = vmatmul.mubr.bf16.gmra.mrb[0].mxu0 %v7904
        %v7940 = vpop.f32.mrb[0].mxu0
        %v7941 = vadd.f32 0.0, %v7940
        %v7942 = vpop.f32.mrb[0].mxu0
        %v7943 = vpop.f32.mrb[0].mxu0
        %v7944 = vpop.f32.mrb[0].mxu0
        %7945 = vdwg.mxu0
        %v7946 = vpack.c.bf16 %v7941, %v7941
        %s7947 = scalar_lea.vmem %s81, 128
        %v7948 = vld [vmem:[%s7947] sm:$0xf]
        %v7949 = vld [vmem:[%s7947 + $0x4] sm:$0xf]
        %v7950 = vld [vmem:[%s7947 + $0x8] sm:$0xf]
        %v7951 = vld [vmem:[%s7947 + $0xc] sm:$0xf]
        %v7952 = vld [vmem:[%s7947 + $0x10] sm:$0xf]
        %v7953 = vld [vmem:[%s7947 + $0x14] sm:$0xf]
        %v7954 = vld [vmem:[%s7947 + $0x18] sm:$0xf]
        %v7955 = vld [vmem:[%s7947 + $0x1c] sm:$0xf]
        %v7956 = vld [vmem:[%s7947 + $0x20] sm:$0xf]
        %v7957 = vld [vmem:[%s7947 + $0x24] sm:$0xf]
        %v7958 = vld [vmem:[%s7947 + $0x28] sm:$0xf]
        %v7959 = vld [vmem:[%s7947 + $0x2c] sm:$0xf]
        %v7960 = vld [vmem:[%s7947 + $0x30] sm:$0xf]
        %v7961 = vld [vmem:[%s7947 + $0x34] sm:$0xf]
        %v7962 = vld [vmem:[%s7947 + $0x38] sm:$0xf]
        %v7963 = vld [vmem:[%s7947 + $0x3c] sm:$0xf]
        %v7980 = vunpack.c.l.b16 %v7948
        %v7981 = vunpack.c.l.b16 %v7949
        %v7982 = vunpack.c.l.b16 %v7950
        %v7983 = vunpack.c.l.b16 %v7951
        %v7984 = vunpack.c.l.b16 %v7952
        %v7985 = vunpack.c.l.b16 %v7953
        %v7986 = vunpack.c.l.b16 %v7954
        %v7987 = vunpack.c.l.b16 %v7955
        %v7988 = vunpack.c.l.b16 %v7956
        %v7989 = vunpack.c.l.b16 %v7957
        %v7990 = vunpack.c.l.b16 %v7958
        %v7991 = vunpack.c.l.b16 %v7959
        %v7992 = vunpack.c.l.b16 %v7960
        %v7993 = vunpack.c.l.b16 %v7961
        %v7994 = vunpack.c.l.b16 %v7962
        %v7995 = vunpack.c.l.b16 %v7963
        %v7996 = vpack.c.b16 %v7981, %v7980
        %v7997 = vpack.c.b16 %v7983, %v7982
        %v7998 = vpack.c.b16 %v7985, %v7984
        %v7999 = vpack.c.b16 %v7987, %v7986
        %v8000 = vpack.c.b16 %v7989, %v7988
        %v8001 = vpack.c.b16 %v7991, %v7990
        %v8002 = vpack.c.b16 %v7993, %v7992
        %v8003 = vpack.c.b16 %v7995, %v7994
        %8012 = vmatprep.subr.bf16.mxu0 0
        %8013 = vmatpush1.bf16.msra.mxu0 %v7996
        %8014 = vmatprep.subr.bf16.mxu0 0
        %8015 = vmatpush1.bf16.msra.mxu0 %v7997
        %8016 = vmatprep.subr.bf16.mxu0 0
        %8017 = vmatpush1.bf16.msra.mxu0 %v7998
        %8018 = vmatprep.subr.bf16.mxu0 0
        %8019 = vmatpush1.bf16.msra.mxu0 %v7999
        %8020 = vmatprep.subr.bf16.mxu0 0
        %8021 = vmatpush1.bf16.msra.mxu0 %v8000
        %8022 = vmatprep.subr.bf16.mxu0 0
        %8023 = vmatpush1.bf16.msra.mxu0 %v8001
        %8024 = vmatprep.subr.bf16.mxu0 0
        %8025 = vmatpush1.bf16.msra.mxu0 %v8002
        %8026 = vmatprep.subr.bf16.mxu0 0
        %8027 = vmatpush1.bf16.msra.mxu0 %v8003
        %8028 = vmatprep.subr.bf16.mxu0 0
        %8029 = vmatpush1.bf16.msra.mxu0 0
        %8030 = vmatprep.subr.bf16.mxu0 0
        %8031 = vmatpush1.bf16.msra.mxu0 0
        %8032 = vmatprep.subr.bf16.mxu0 0
        %8033 = vmatpush1.bf16.msra.mxu0 0
        %8034 = vmatprep.subr.bf16.mxu0 0
        %8035 = vmatpush1.bf16.msra.mxu0 0
        %8036 = vmatprep.subr.bf16.mxu0 0
        %8037 = vmatpush1.bf16.msra.mxu0 0
        %8038 = vmatprep.subr.bf16.mxu0 0
        %8039 = vmatpush1.bf16.msra.mxu0 0
        %8040 = vmatprep.subr.bf16.mxu0 0
        %8041 = vmatpush1.bf16.msra.mxu0 0
        %8042 = vmatprep.subr.bf16.mxu0 0
        %8043 = vmatpush1.bf16.msra.mxu0 0
        %8044 = vmatprep.mubr.bf16.mxu0 0
        %8045 = vmatmul.mubr.bf16.gmra.mrb[0].mxu0 %v7946
        %v8046 = vpop.f32.mrb[0].mxu0
        %v8047 = vadd.f32 0.0, %v8046
        %v8048 = vpop.f32.mrb[0].mxu0
        %v8049 = vpop.f32.mrb[0].mxu0
        %v8050 = vpop.f32.mrb[0].mxu0
        %8051 = vdwg.mxu0
        %v8052 = vadd.f32 %v7896, %v8047
        %v8053 = vld [vmem:[%s83] sm:$0x1]
        %v8055 = vlaneseq
        %v8056 = vshrl.u32 %v8055, 7
        %v8057 = vsub.s32 0, %v8056
        %v8058 = vrot.slane %v8053, %v8057
        %v8060 = vmul.f32 %v8052, %v8058
        %v8061 = vld [vmem:[%s85] sm:$0x1]
        %v8063 = vlaneseq
        %v8064 = vshrl.u32 %v8063, 7
        %v8065 = vsub.s32 0, %v8064
        %v8066 = vrot.slane %v8061, %v8065
        %v8068 = vadd.f32 %v8060, %v8066
        %v8069 = vmax.f32 %v8068, 0.0
        %v8070 = vpack.c.bf16 %v8069, %v8069
        %v8071 = vld [vmem:[%s87] sm:$0x1]
        %vm8072 = vcmask 15360
        %v8074 = vsel %vm8072, %v8071, 0
        %vm8076 = vcmask 1040384
        %v8078 = vsel %vm8076, %v8070, 0
        %8080 = vmatprep.subr.bf16.mxu0 0
        %8081 = vmatpush1.bf16.msra.mxu0 %v8078
        %8082 = vmatprep.subr.bf16.mxu0 0
        %8083 = vmatpush1.bf16.msra.mxu0 0
        %8084 = vmatprep.subr.bf16.mxu0 0
        %8085 = vmatpush1.bf16.msra.mxu0 0
        %8086 = vmatprep.subr.bf16.mxu0 0
        %8087 = vmatpush1.bf16.msra.mxu0 0
        %8088 = vmatprep.subr.bf16.mxu0 0
        %8089 = vmatpush1.bf16.msra.mxu0 0
        %8090 = vmatprep.subr.bf16.mxu0 0
        %8091 = vmatpush1.bf16.msra.mxu0 0
        %8092 = vmatprep.subr.bf16.mxu0 0
        %8093 = vmatpush1.bf16.msra.mxu0 0
        %8094 = vmatprep.subr.bf16.mxu0 0
        %8095 = vmatpush1.bf16.msra.mxu0 0
        %8096 = vmatprep.subr.bf16.mxu0 0
        %8097 = vmatpush1.bf16.msra.mxu0 0
        %8098 = vmatprep.subr.bf16.mxu0 0
        %8099 = vmatpush1.bf16.msra.mxu0 0
        %8100 = vmatprep.subr.bf16.mxu0 0
        %8101 = vmatpush1.bf16.msra.mxu0 0
        %8102 = vmatprep.subr.bf16.mxu0 0
        %8103 = vmatpush1.bf16.msra.mxu0 0
        %8104 = vmatprep.subr.bf16.mxu0 0
        %8105 = vmatpush1.bf16.msra.mxu0 0
        %8106 = vmatprep.subr.bf16.mxu0 0
        %8107 = vmatpush1.bf16.msra.mxu0 0
        %8108 = vmatprep.subr.bf16.mxu0 0
        %8109 = vmatpush1.bf16.msra.mxu0 0
        %8110 = vmatprep.subr.bf16.mxu0 0
        %8111 = vmatpush1.bf16.msra.mxu0 0
        %8112 = vmatprep.mubr.bf16.mxu0 0
        %8113 = vmatmul.mubr.bf16.gmra.mrb[0].mxu0 %v8074
        %v8114 = vpop.f32.mrb[0].mxu0
        %v8115 = vadd.f32 0.0, %v8114
        %v8116 = vpop.f32.mrb[0].mxu0
        %v8117 = vpop.f32.mrb[0].mxu0
        %v8118 = vpop.f32.mrb[0].mxu0
        %8119 = vdwg.mxu0
        %v8120 = vpack.c.bf16 %v8115, %v8115
        %v8121 = vld [vmem:[%s89] sm:$0xf]
        %v8122 = vld [vmem:[%s89 + $0x4] sm:$0xf]
        %v8123 = vld [vmem:[%s89 + $0x8] sm:$0xf]
        %v8124 = vld [vmem:[%s89 + $0xc] sm:$0xf]
        %v8125 = vld [vmem:[%s89 + $0x10] sm:$0xf]
        %v8126 = vld [vmem:[%s89 + $0x14] sm:$0xf]
        %v8127 = vld [vmem:[%s89 + $0x18] sm:$0xf]
        %v8128 = vld [vmem:[%s89 + $0x1c] sm:$0xf]
        %v8129 = vld [vmem:[%s89 + $0x20] sm:$0xf]
        %v8130 = vld [vmem:[%s89 + $0x24] sm:$0xf]
        %v8131 = vld [vmem:[%s89 + $0x28] sm:$0xf]
        %v8132 = vld [vmem:[%s89 + $0x2c] sm:$0xf]
        %v8133 = vld [vmem:[%s89 + $0x30] sm:$0xf]
        %v8134 = vld [vmem:[%s89 + $0x34] sm:$0xf]
        %v8135 = vld [vmem:[%s89 + $0x38] sm:$0xf]
        %v8136 = vld [vmem:[%s89 + $0x3c] sm:$0xf]
        %s8137 = scalar_lea.vmem %s87, 1
        %v8138 = vld [vmem:[%s8137] sm:$0x1]
        %v8140 = vsel %vm8072, %v8138, 0
        %8142 = vmatprep.subr.bf16.mxu0 0
        %8143 = vmatpush1.bf16.msra.mxu0 %v8078
        %8144 = vmatprep.subr.bf16.mxu0 0
        %8145 = vmatpush1.bf16.msra.mxu0 0
        %8146 = vmatprep.subr.bf16.mxu0 0
        %8147 = vmatpush1.bf16.msra.mxu0 0
        %8148 = vmatprep.subr.bf16.mxu0 0
        %8149 = vmatpush1.bf16.msra.mxu0 0
        %8150 = vmatprep.subr.bf16.mxu0 0
        %8151 = vmatpush1.bf16.msra.mxu0 0
        %8152 = vmatprep.subr.bf16.mxu0 0
        %8153 = vmatpush1.bf16.msra.mxu0 0
        %8154 = vmatprep.subr.bf16.mxu0 0
        %8155 = vmatpush1.bf16.msra.mxu0 0
        %8156 = vmatprep.subr.bf16.mxu0 0
        %8157 = vmatpush1.bf16.msra.mxu0 0
        %8158 = vmatprep.subr.bf16.mxu0 0
        %8159 = vmatpush1.bf16.msra.mxu0 0
        %8160 = vmatprep.subr.bf16.mxu0 0
        %8161 = vmatpush1.bf16.msra.mxu0 0
        %8162 = vmatprep.subr.bf16.mxu0 0
        %8163 = vmatpush1.bf16.msra.mxu0 0
        %8164 = vmatprep.subr.bf16.mxu0 0
        %8165 = vmatpush1.bf16.msra.mxu0 0
        %8166 = vmatprep.subr.bf16.mxu0 0
        %8167 = vmatpush1.bf16.msra.mxu0 0
        %8168 = vmatprep.subr.bf16.mxu0 0
        %8169 = vmatpush1.bf16.msra.mxu0 0
        %8170 = vmatprep.subr.bf16.mxu0 0
        %8171 = vmatpush1.bf16.msra.mxu0 0
        %8172 = vmatprep.subr.bf16.mxu0 0
        %8173 = vmatpush1.bf16.msra.mxu0 0
        %8174 = vmatprep.mubr.bf16.mxu0 0
        %8175 = vmatmul.mubr.bf16.gmra.mrb[0].mxu0 %v8140
        %v8176 = vpop.f32.mrb[0].mxu0
        %v8177 = vadd.f32 0.0, %v8176
        %v8178 = vpop.f32.mrb[0].mxu0
        %v8179 = vpop.f32.mrb[0].mxu0
        %v8180 = vpop.f32.mrb[0].mxu0
        %8181 = vdwg.mxu0
        %v8182 = vpack.c.bf16 %v8177, %v8177
        %s8183 = scalar_lea.vmem %s89, 64
        %v8184 = vld [vmem:[%s8183] sm:$0xf]
        %v8185 = vld [vmem:[%s8183 + $0x4] sm:$0xf]
        %v8186 = vld [vmem:[%s8183 + $0x8] sm:$0xf]
        %v8187 = vld [vmem:[%s8183 + $0xc] sm:$0xf]
        %v8188 = vld [vmem:[%s8183 + $0x10] sm:$0xf]
        %v8189 = vld [vmem:[%s8183 + $0x14] sm:$0xf]
        %v8190 = vld [vmem:[%s8183 + $0x18] sm:$0xf]
        %v8191 = vld [vmem:[%s8183 + $0x1c] sm:$0xf]
        %v8192 = vld [vmem:[%s8183 + $0x20] sm:$0xf]
        %v8193 = vld [vmem:[%s8183 + $0x24] sm:$0xf]
        %v8194 = vld [vmem:[%s8183 + $0x28] sm:$0xf]
        %v8195 = vld [vmem:[%s8183 + $0x2c] sm:$0xf]
        %v8196 = vld [vmem:[%s8183 + $0x30] sm:$0xf]
        %v8197 = vld [vmem:[%s8183 + $0x34] sm:$0xf]
        %v8198 = vld [vmem:[%s8183 + $0x38] sm:$0xf]
        %v8199 = vld [vmem:[%s8183 + $0x3c] sm:$0xf]
        %v8216 = vunpack.c.l.b16 %v8184
        %v8217 = vunpack.c.l.b16 %v8185
        %v8218 = vunpack.c.l.b16 %v8186
        %v8219 = vunpack.c.l.b16 %v8187
        %v8220 = vunpack.c.l.b16 %v8188
        %v8221 = vunpack.c.l.b16 %v8189
        %v8222 = vunpack.c.l.b16 %v8190
        %v8223 = vunpack.c.l.b16 %v8191
        %v8224 = vunpack.c.l.b16 %v8192
        %v8225 = vunpack.c.l.b16 %v8193
        %v8226 = vunpack.c.l.b16 %v8194
        %v8227 = vunpack.c.l.b16 %v8195
        %v8228 = vunpack.c.l.b16 %v8196
        %v8229 = vunpack.c.l.b16 %v8197
        %v8230 = vunpack.c.l.b16 %v8198
        %v8231 = vunpack.c.l.b16 %v8199
        %v8232 = vpack.c.b16 %v8217, %v8216
        %v8233 = vpack.c.b16 %v8219, %v8218
        %v8234 = vpack.c.b16 %v8221, %v8220
        %v8235 = vpack.c.b16 %v8223, %v8222
        %v8236 = vpack.c.b16 %v8225, %v8224
        %v8237 = vpack.c.b16 %v8227, %v8226
        %v8238 = vpack.c.b16 %v8229, %v8228
        %v8239 = vpack.c.b16 %v8231, %v8230
        %8248 = vmatprep.subr.bf16.mxu0 0
        %8249 = vmatpush1.bf16.msra.mxu0 %v8232
        %8250 = vmatprep.subr.bf16.mxu0 0
        %8251 = vmatpush1.bf16.msra.mxu0 %v8233
        %8252 = vmatprep.subr.bf16.mxu0 0
        %8253 = vmatpush1.bf16.msra.mxu0 %v8234
        %8254 = vmatprep.subr.bf16.mxu0 0
        %8255 = vmatpush1.bf16.msra.mxu0 %v8235
        %8256 = vmatprep.subr.bf16.mxu0 0
        %8257 = vmatpush1.bf16.msra.mxu0 %v8236
        %8258 = vmatprep.subr.bf16.mxu0 0
        %8259 = vmatpush1.bf16.msra.mxu0 %v8237
        %8260 = vmatprep.subr.bf16.mxu0 0
        %8261 = vmatpush1.bf16.msra.mxu0 %v8238
        %8262 = vmatprep.subr.bf16.mxu0 0
        %8263 = vmatpush1.bf16.msra.mxu0 %v8239
        %8264 = vmatprep.subr.bf16.mxu0 0
        %8265 = vmatpush1.bf16.msra.mxu0 0
        %8266 = vmatprep.subr.bf16.mxu0 0
        %8267 = vmatpush1.bf16.msra.mxu0 0
        %8268 = vmatprep.subr.bf16.mxu0 0
        %8269 = vmatpush1.bf16.msra.mxu0 0
        %8270 = vmatprep.subr.bf16.mxu0 0
        %8271 = vmatpush1.bf16.msra.mxu0 0
        %8272 = vmatprep.subr.bf16.mxu0 0
        %8273 = vmatpush1.bf16.msra.mxu0 0
        %8274 = vmatprep.subr.bf16.mxu0 0
        %8275 = vmatpush1.bf16.msra.mxu0 0
        %8276 = vmatprep.subr.bf16.mxu0 0
        %8277 = vmatpush1.bf16.msra.mxu0 0
        %8278 = vmatprep.subr.bf16.mxu0 0
        %8279 = vmatpush1.bf16.msra.mxu0 0
        %8280 = vmatprep.mubr.bf16.mxu0 0
        %8281 = vmatmul.mubr.bf16.gmra.mrb[0].mxu0 %v8182
        %v8282 = vpop.f32.mrb[0].mxu0
        %v8283 = vadd.f32 0.0, %v8282
        %v8284 = vpop.f32.mrb[0].mxu0
        %v8285 = vpop.f32.mrb[0].mxu0
        %v8286 = vpop.f32.mrb[0].mxu0
        %8287 = vdwg.mxu0
        %v8304 = vunpack.c.l.b16 %v8121
        %v8305 = vunpack.c.l.b16 %v8122
        %v8306 = vunpack.c.l.b16 %v8123
        %v8307 = vunpack.c.l.b16 %v8124
        %v8308 = vunpack.c.l.b16 %v8125
        %v8309 = vunpack.c.l.b16 %v8126
        %v8310 = vunpack.c.l.b16 %v8127
        %v8311 = vunpack.c.l.b16 %v8128
        %v8312 = vunpack.c.l.b16 %v8129
        %v8313 = vunpack.c.l.b16 %v8130
        %v8314 = vunpack.c.l.b16 %v8131
        %v8315 = vunpack.c.l.b16 %v8132
        %v8316 = vunpack.c.l.b16 %v8133
        %v8317 = vunpack.c.l.b16 %v8134
        %v8318 = vunpack.c.l.b16 %v8135
        %v8319 = vunpack.c.l.b16 %v8136
        %v8320 = vpack.c.b16 %v8305, %v8304
        %v8321 = vpack.c.b16 %v8307, %v8306
        %v8322 = vpack.c.b16 %v8309, %v8308
        %v8323 = vpack.c.b16 %v8311, %v8310
        %v8324 = vpack.c.b16 %v8313, %v8312
        %v8325 = vpack.c.b16 %v8315, %v8314
        %v8326 = vpack.c.b16 %v8317, %v8316
        %v8327 = vpack.c.b16 %v8319, %v8318
        %8336 = vmatprep.subr.bf16.mxu0 0
        %8337 = vmatpush1.bf16.msra.mxu0 %v8320
        %8338 = vmatprep.subr.bf16.mxu0 0
        %8339 = vmatpush1.bf16.msra.mxu0 %v8321
        %8340 = vmatprep.subr.bf16.mxu0 0
        %8341 = vmatpush1.bf16.msra.mxu0 %v8322
        %8342 = vmatprep.subr.bf16.mxu0 0
        %8343 = vmatpush1.bf16.msra.mxu0 %v8323
        %8344 = vmatprep.subr.bf16.mxu0 0
        %8345 = vmatpush1.bf16.msra.mxu0 %v8324
        %8346 = vmatprep.subr.bf16.mxu0 0
        %8347 = vmatpush1.bf16.msra.mxu0 %v8325
        %8348 = vmatprep.subr.bf16.mxu0 0
        %8349 = vmatpush1.bf16.msra.mxu0 %v8326
        %8350 = vmatprep.subr.bf16.mxu0 0
        %8351 = vmatpush1.bf16.msra.mxu0 %v8327
        %8352 = vmatprep.subr.bf16.mxu0 0
        %8353 = vmatpush1.bf16.msra.mxu0 0
        %8354 = vmatprep.subr.bf16.mxu0 0
        %8355 = vmatpush1.bf16.msra.mxu0 0
        %8356 = vmatprep.subr.bf16.mxu0 0
        %8357 = vmatpush1.bf16.msra.mxu0 0
        %8358 = vmatprep.subr.bf16.mxu0 0
        %8359 = vmatpush1.bf16.msra.mxu0 0
        %8360 = vmatprep.subr.bf16.mxu0 0
        %8361 = vmatpush1.bf16.msra.mxu0 0
        %8362 = vmatprep.subr.bf16.mxu0 0
        %8363 = vmatpush1.bf16.msra.mxu0 0
        %8364 = vmatprep.subr.bf16.mxu0 0
        %8365 = vmatpush1.bf16.msra.mxu0 0
        %8366 = vmatprep.subr.bf16.mxu0 0
        %8367 = vmatpush1.bf16.msra.mxu0 0
        %8368 = vmatprep.mubr.bf16.mxu0 0
        %8369 = vmatmul.mubr.bf16.gmra.mrb[0].mxu0 %v8120
        %v8370 = vpop.f32.mrb[0].mxu0
        %v8371 = vadd.f32 %v8283, %v8370
        %v8372 = vpop.f32.mrb[0].mxu0
        %v8373 = vpop.f32.mrb[0].mxu0
        %v8374 = vpop.f32.mrb[0].mxu0
        %8375 = vdwg.mxu0
        %s8376 = scalar_lea.vmem %s87, 2
        %v8377 = vld [vmem:[%s8376] sm:$0x1]
        %v8379 = vsel %vm8072, %v8377, 0
        %8381 = vmatprep.subr.bf16.mxu0 0
        %8382 = vmatpush1.bf16.msra.mxu0 %v8078
        %8383 = vmatprep.subr.bf16.mxu0 0
        %8384 = vmatpush1.bf16.msra.mxu0 0
        %8385 = vmatprep.subr.bf16.mxu0 0
        %8386 = vmatpush1.bf16.msra.mxu0 0
        %8387 = vmatprep.subr.bf16.mxu0 0
        %8388 = vmatpush1.bf16.msra.mxu0 0
        %8389 = vmatprep.subr.bf16.mxu0 0
        %8390 = vmatpush1.bf16.msra.mxu0 0
        %8391 = vmatprep.subr.bf16.mxu0 0
        %8392 = vmatpush1.bf16.msra.mxu0 0
        %8393 = vmatprep.subr.bf16.mxu0 0
        %8394 = vmatpush1.bf16.msra.mxu0 0
        %8395 = vmatprep.subr.bf16.mxu0 0
        %8396 = vmatpush1.bf16.msra.mxu0 0
        %8397 = vmatprep.subr.bf16.mxu0 0
        %8398 = vmatpush1.bf16.msra.mxu0 0
        %8399 = vmatprep.subr.bf16.mxu0 0
        %8400 = vmatpush1.bf16.msra.mxu0 0
        %8401 = vmatprep.subr.bf16.mxu0 0
        %8402 = vmatpush1.bf16.msra.mxu0 0
        %8403 = vmatprep.subr.bf16.mxu0 0
        %8404 = vmatpush1.bf16.msra.mxu0 0
        %8405 = vmatprep.subr.bf16.mxu0 0
        %8406 = vmatpush1.bf16.msra.mxu0 0
        %8407 = vmatprep.subr.bf16.mxu0 0
        %8408 = vmatpush1.bf16.msra.mxu0 0
        %8409 = vmatprep.subr.bf16.mxu0 0
        %8410 = vmatpush1.bf16.msra.mxu0 0
        %8411 = vmatprep.subr.bf16.mxu0 0
        %8412 = vmatpush1.bf16.msra.mxu0 0
        %8413 = vmatprep.mubr.bf16.mxu0 0
        %8414 = vmatmul.mubr.bf16.gmra.mrb[0].mxu0 %v8379
        %v8415 = vpop.f32.mrb[0].mxu0
        %v8416 = vadd.f32 0.0, %v8415
        %v8417 = vpop.f32.mrb[0].mxu0
        %v8418 = vpop.f32.mrb[0].mxu0
        %v8419 = vpop.f32.mrb[0].mxu0
        %8420 = vdwg.mxu0
        %v8421 = vpack.c.bf16 %v8416, %v8416
        %s8422 = scalar_lea.vmem %s89, 128
        %v8423 = vld [vmem:[%s8422] sm:$0xf]
        %v8424 = vld [vmem:[%s8422 + $0x4] sm:$0xf]
        %v8425 = vld [vmem:[%s8422 + $0x8] sm:$0xf]
        %v8426 = vld [vmem:[%s8422 + $0xc] sm:$0xf]
        %v8427 = vld [vmem:[%s8422 + $0x10] sm:$0xf]
        %v8428 = vld [vmem:[%s8422 + $0x14] sm:$0xf]
        %v8429 = vld [vmem:[%s8422 + $0x18] sm:$0xf]
        %v8430 = vld [vmem:[%s8422 + $0x1c] sm:$0xf]
        %v8431 = vld [vmem:[%s8422 + $0x20] sm:$0xf]
        %v8432 = vld [vmem:[%s8422 + $0x24] sm:$0xf]
        %v8433 = vld [vmem:[%s8422 + $0x28] sm:$0xf]
        %v8434 = vld [vmem:[%s8422 + $0x2c] sm:$0xf]
        %v8435 = vld [vmem:[%s8422 + $0x30] sm:$0xf]
        %v8436 = vld [vmem:[%s8422 + $0x34] sm:$0xf]
        %v8437 = vld [vmem:[%s8422 + $0x38] sm:$0xf]
        %v8438 = vld [vmem:[%s8422 + $0x3c] sm:$0xf]
        %v8455 = vunpack.c.l.b16 %v8423
        %v8456 = vunpack.c.l.b16 %v8424
        %v8457 = vunpack.c.l.b16 %v8425
        %v8458 = vunpack.c.l.b16 %v8426
        %v8459 = vunpack.c.l.b16 %v8427
        %v8460 = vunpack.c.l.b16 %v8428
        %v8461 = vunpack.c.l.b16 %v8429
        %v8462 = vunpack.c.l.b16 %v8430
        %v8463 = vunpack.c.l.b16 %v8431
        %v8464 = vunpack.c.l.b16 %v8432
        %v8465 = vunpack.c.l.b16 %v8433
        %v8466 = vunpack.c.l.b16 %v8434
        %v8467 = vunpack.c.l.b16 %v8435
        %v8468 = vunpack.c.l.b16 %v8436
        %v8469 = vunpack.c.l.b16 %v8437
        %v8470 = vunpack.c.l.b16 %v8438
        %v8471 = vpack.c.b16 %v8456, %v8455
        %v8472 = vpack.c.b16 %v8458, %v8457
        %v8473 = vpack.c.b16 %v8460, %v8459
        %v8474 = vpack.c.b16 %v8462, %v8461
        %v8475 = vpack.c.b16 %v8464, %v8463
        %v8476 = vpack.c.b16 %v8466, %v8465
        %v8477 = vpack.c.b16 %v8468, %v8467
        %v8478 = vpack.c.b16 %v8470, %v8469
        %8487 = vmatprep.subr.bf16.mxu0 0
        %8488 = vmatpush1.bf16.msra.mxu0 %v8471
        %8489 = vmatprep.subr.bf16.mxu0 0
        %8490 = vmatpush1.bf16.msra.mxu0 %v8472
        %8491 = vmatprep.subr.bf16.mxu0 0
        %8492 = vmatpush1.bf16.msra.mxu0 %v8473
        %8493 = vmatprep.subr.bf16.mxu0 0
        %8494 = vmatpush1.bf16.msra.mxu0 %v8474
        %8495 = vmatprep.subr.bf16.mxu0 0
        %8496 = vmatpush1.bf16.msra.mxu0 %v8475
        %8497 = vmatprep.subr.bf16.mxu0 0
        %8498 = vmatpush1.bf16.msra.mxu0 %v8476
        %8499 = vmatprep.subr.bf16.mxu0 0
        %8500 = vmatpush1.bf16.msra.mxu0 %v8477
        %8501 = vmatprep.subr.bf16.mxu0 0
        %8502 = vmatpush1.bf16.msra.mxu0 %v8478
        %8503 = vmatprep.subr.bf16.mxu0 0
        %8504 = vmatpush1.bf16.msra.mxu0 0
        %8505 = vmatprep.subr.bf16.mxu0 0
        %8506 = vmatpush1.bf16.msra.mxu0 0
        %8507 = vmatprep.subr.bf16.mxu0 0
        %8508 = vmatpush1.bf16.msra.mxu0 0
        %8509 = vmatprep.subr.bf16.mxu0 0
        %8510 = vmatpush1.bf16.msra.mxu0 0
        %8511 = vmatprep.subr.bf16.mxu0 0
        %8512 = vmatpush1.bf16.msra.mxu0 0
        %8513 = vmatprep.subr.bf16.mxu0 0
        %8514 = vmatpush1.bf16.msra.mxu0 0
        %8515 = vmatprep.subr.bf16.mxu0 0
        %8516 = vmatpush1.bf16.msra.mxu0 0
        %8517 = vmatprep.subr.bf16.mxu0 0
        %8518 = vmatpush1.bf16.msra.mxu0 0
        %8519 = vmatprep.mubr.bf16.mxu0 0
        %8520 = vmatmul.mubr.bf16.gmra.mrb[0].mxu0 %v8421
        %v8521 = vpop.f32.mrb[0].mxu0
        %v8522 = vadd.f32 0.0, %v8521
        %v8523 = vpop.f32.mrb[0].mxu0
        %v8524 = vpop.f32.mrb[0].mxu0
        %v8525 = vpop.f32.mrb[0].mxu0
        %8526 = vdwg.mxu0
        %v8527 = vadd.f32 %v8371, %v8522
        %v8528 = vld [vmem:[%s91] sm:$0x1]
        %v8530 = vlaneseq
        %v8531 = vshrl.u32 %v8530, 7
        %v8532 = vsub.s32 0, %v8531
        %v8533 = vrot.slane %v8528, %v8532
        %v8535 = vmul.f32 %v8527, %v8533
        %v8536 = vld [vmem:[%s93] sm:$0x1]
        %v8538 = vlaneseq
        %v8539 = vshrl.u32 %v8538, 7
        %v8540 = vsub.s32 0, %v8539
        %v8541 = vrot.slane %v8536, %v8540
        %v8543 = vadd.f32 %v8535, %v8541
        %v8544 = vld [vmem:[%s95] sm:$0x1]
        %v8546 = vsel %vm6958, %v8544, 0
        %8548 = vmatprep.subr.bf16.mxu0 0
        %8549 = vmatpush1.bf16.msra.mxu0 %v7603
        %8550 = vmatprep.subr.bf16.mxu0 0
        %8551 = vmatpush1.bf16.msra.mxu0 0
        %8552 = vmatprep.subr.bf16.mxu0 0
        %8553 = vmatpush1.bf16.msra.mxu0 0
        %8554 = vmatprep.subr.bf16.mxu0 0
        %8555 = vmatpush1.bf16.msra.mxu0 0
        %8556 = vmatprep.subr.bf16.mxu0 0
        %8557 = vmatpush1.bf16.msra.mxu0 0
        %8558 = vmatprep.subr.bf16.mxu0 0
        %8559 = vmatpush1.bf16.msra.mxu0 0
        %8560 = vmatprep.subr.bf16.mxu0 0
        %8561 = vmatpush1.bf16.msra.mxu0 0
        %8562 = vmatprep.subr.bf16.mxu0 0
        %8563 = vmatpush1.bf16.msra.mxu0 0
        %8564 = vmatprep.subr.bf16.mxu0 0
        %8565 = vmatpush1.bf16.msra.mxu0 0
        %8566 = vmatprep.subr.bf16.mxu0 0
        %8567 = vmatpush1.bf16.msra.mxu0 0
        %8568 = vmatprep.subr.bf16.mxu0 0
        %8569 = vmatpush1.bf16.msra.mxu0 0
        %8570 = vmatprep.subr.bf16.mxu0 0
        %8571 = vmatpush1.bf16.msra.mxu0 0
        %8572 = vmatprep.subr.bf16.mxu0 0
        %8573 = vmatpush1.bf16.msra.mxu0 0
        %8574 = vmatprep.subr.bf16.mxu0 0
        %8575 = vmatpush1.bf16.msra.mxu0 0
        %8576 = vmatprep.subr.bf16.mxu0 0
        %8577 = vmatpush1.bf16.msra.mxu0 0
        %8578 = vmatprep.subr.bf16.mxu0 0
        %8579 = vmatpush1.bf16.msra.mxu0 0
        %8580 = vmatprep.mubr.bf16.mxu0 0
        %8581 = vmatmul.mubr.bf16.gmra.mrb[0].mxu0 %v8546
        %v8582 = vpop.f32.mrb[0].mxu0
        %v8583 = vadd.f32 0.0, %v8582
        %v8584 = vpop.f32.mrb[0].mxu0
        %v8585 = vpop.f32.mrb[0].mxu0
        %v8586 = vpop.f32.mrb[0].mxu0
        %8587 = vdwg.mxu0
        %v8588 = vpack.c.bf16 %v8583, %v8583
        %v8589 = vld [vmem:[%s97] sm:$0xf]
        %v8590 = vld [vmem:[%s97 + $0x4] sm:$0xf]
        %v8591 = vld [vmem:[%s97 + $0x8] sm:$0xf]
        %v8592 = vld [vmem:[%s97 + $0xc] sm:$0xf]
        %v8593 = vld [vmem:[%s97 + $0x10] sm:$0xf]
        %v8594 = vld [vmem:[%s97 + $0x14] sm:$0xf]
        %v8595 = vld [vmem:[%s97 + $0x18] sm:$0xf]
        %v8596 = vld [vmem:[%s97 + $0x1c] sm:$0xf]
        %v8597 = vld [vmem:[%s97 + $0x20] sm:$0xf]
        %v8598 = vld [vmem:[%s97 + $0x24] sm:$0xf]
        %v8599 = vld [vmem:[%s97 + $0x28] sm:$0xf]
        %v8600 = vld [vmem:[%s97 + $0x2c] sm:$0xf]
        %v8601 = vld [vmem:[%s97 + $0x30] sm:$0xf]
        %v8602 = vld [vmem:[%s97 + $0x34] sm:$0xf]
        %v8603 = vld [vmem:[%s97 + $0x38] sm:$0xf]
        %v8604 = vld [vmem:[%s97 + $0x3c] sm:$0xf]
        %v8621 = vunpack.c.l.b16 %v8589
        %v8622 = vunpack.c.l.b16 %v8590
        %v8623 = vunpack.c.l.b16 %v8591
        %v8624 = vunpack.c.l.b16 %v8592
        %v8625 = vunpack.c.l.b16 %v8593
        %v8626 = vunpack.c.l.b16 %v8594
        %v8627 = vunpack.c.l.b16 %v8595
        %v8628 = vunpack.c.l.b16 %v8596
        %v8629 = vunpack.c.l.b16 %v8597
        %v8630 = vunpack.c.l.b16 %v8598
        %v8631 = vunpack.c.l.b16 %v8599
        %v8632 = vunpack.c.l.b16 %v8600
        %v8633 = vunpack.c.l.b16 %v8601
        %v8634 = vunpack.c.l.b16 %v8602
        %v8635 = vunpack.c.l.b16 %v8603
        %v8636 = vunpack.c.l.b16 %v8604
        %v8637 = vpack.c.b16 %v8622, %v8621
        %v8638 = vpack.c.b16 %v8624, %v8623
        %v8639 = vpack.c.b16 %v8626, %v8625
        %v8640 = vpack.c.b16 %v8628, %v8627
        %v8641 = vpack.c.b16 %v8630, %v8629
        %v8642 = vpack.c.b16 %v8632, %v8631
        %v8643 = vpack.c.b16 %v8634, %v8633
        %v8644 = vpack.c.b16 %v8636, %v8635
        %8653 = vmatprep.subr.bf16.mxu0 0
        %8654 = vmatpush1.bf16.msra.mxu0 %v8637
        %8655 = vmatprep.subr.bf16.mxu0 0
        %8656 = vmatpush1.bf16.msra.mxu0 %v8638
        %8657 = vmatprep.subr.bf16.mxu0 0
        %8658 = vmatpush1.bf16.msra.mxu0 %v8639
        %8659 = vmatprep.subr.bf16.mxu0 0
        %8660 = vmatpush1.bf16.msra.mxu0 %v8640
        %8661 = vmatprep.subr.bf16.mxu0 0
        %8662 = vmatpush1.bf16.msra.mxu0 %v8641
        %8663 = vmatprep.subr.bf16.mxu0 0
        %8664 = vmatpush1.bf16.msra.mxu0 %v8642
        %8665 = vmatprep.subr.bf16.mxu0 0
        %8666 = vmatpush1.bf16.msra.mxu0 %v8643
        %8667 = vmatprep.subr.bf16.mxu0 0
        %8668 = vmatpush1.bf16.msra.mxu0 %v8644
        %8669 = vmatprep.subr.bf16.mxu0 0
        %8670 = vmatpush1.bf16.msra.mxu0 0
        %8671 = vmatprep.subr.bf16.mxu0 0
        %8672 = vmatpush1.bf16.msra.mxu0 0
        %8673 = vmatprep.subr.bf16.mxu0 0
        %8674 = vmatpush1.bf16.msra.mxu0 0
        %8675 = vmatprep.subr.bf16.mxu0 0
        %8676 = vmatpush1.bf16.msra.mxu0 0
        %8677 = vmatprep.subr.bf16.mxu0 0
        %8678 = vmatpush1.bf16.msra.mxu0 0
        %8679 = vmatprep.subr.bf16.mxu0 0
        %8680 = vmatpush1.bf16.msra.mxu0 0
        %8681 = vmatprep.subr.bf16.mxu0 0
        %8682 = vmatpush1.bf16.msra.mxu0 0
        %8683 = vmatprep.subr.bf16.mxu0 0
        %8684 = vmatpush1.bf16.msra.mxu0 0
        %8685 = vmatprep.mubr.bf16.mxu0 0
        %8686 = vmatmul.mubr.bf16.gmra.mrb[0].mxu0 %v8588
        %v8687 = vpop.f32.mrb[0].mxu0
        %v8688 = vadd.f32 0.0, %v8687
        %v8689 = vpop.f32.mrb[0].mxu0
        %v8690 = vpop.f32.mrb[0].mxu0
        %v8691 = vpop.f32.mrb[0].mxu0
        %8692 = vdwg.mxu0
        %v8693 = vld [vmem:[%s99] sm:$0x1]
        %v8695 = vlaneseq
        %v8696 = vshrl.u32 %v8695, 7
        %v8697 = vsub.s32 0, %v8696
        %v8698 = vrot.slane %v8693, %v8697
        %v8700 = vmul.f32 %v8688, %v8698
        %v8701 = vld [vmem:[%s101] sm:$0x1]
        %v8703 = vlaneseq
        %v8704 = vshrl.u32 %v8703, 7
        %v8705 = vsub.s32 0, %v8704
        %v8706 = vrot.slane %v8701, %v8705
        %v8708 = vadd.f32 %v8700, %v8706
        %v8709 = vadd.f32 %v8543, %v8708
        %v8710 = vmax.f32 %v8709, 0.0
        %v8711 = vpack.c.bf16 %v8710, %v8710
        %v8712 = vunpack.c.l.bf16 %v8711
        %v8714 = vrot.slane %v8712, 1
        %v8716 = vadd.f32 %v8712, %v8714
        %v8717 = vld [vmem:[%s103] sm:$0xff]
        %v8718 = vld [vmem:[%s103 + $0x8] sm:$0xff]
        %v8719 = vld [vmem:[%s103 + $0x10] sm:$0xff]
        %v8720 = vld [vmem:[%s103 + $0x18] sm:$0xff]
        %v8721 = vld [vmem:[%s103 + $0x20] sm:$0xff]
        %v8722 = vld [vmem:[%s103 + $0x28] sm:$0xff]
        %v8723 = vld [vmem:[%s103 + $0x30] sm:$0xff]
        %v8724 = vld [vmem:[%s103 + $0x38] sm:$0xff]
        %v8725 = vld [vmem:[%s103 + $0x40] sm:$0xff]
        %v8726 = vld [vmem:[%s103 + $0x48] sm:$0xff]
        %v8727 = vld [vmem:[%s103 + $0x50] sm:$0xff]
        %v8728 = vld [vmem:[%s103 + $0x58] sm:$0xff]
        %v8729 = vld [vmem:[%s103 + $0x60] sm:$0xff]
        %v8730 = vld [vmem:[%s103 + $0x68] sm:$0xff]
        %v8731 = vld [vmem:[%s103 + $0x70] sm:$0xff]
        %v8732 = vld [vmem:[%s103 + $0x78] sm:$0xff]
        %v8733 = vld [vmem:[%s105] sm:$0x1]
        %8734 = vmatprep.subr.mxu0 0.0
        %8735 = vmatpush1.msra.mxu0 %v8717
        %8736 = vmatprep.subr.mxu0 0.0
        %8737 = vmatpush1.msra.mxu0 %v8718
        %8738 = vmatprep.subr.mxu0 0.0
        %8739 = vmatpush1.msra.mxu0 %v8719
        %8740 = vmatprep.subr.mxu0 0.0
        %8741 = vmatpush1.msra.mxu0 %v8720
        %8742 = vmatprep.subr.mxu0 0.0
        %8743 = vmatpush1.msra.mxu0 %v8721
        %8744 = vmatprep.subr.mxu0 0.0
        %8745 = vmatpush1.msra.mxu0 %v8722
        %8746 = vmatprep.subr.mxu0 0.0
        %8747 = vmatpush1.msra.mxu0 %v8723
        %8748 = vmatprep.subr.mxu0 0.0
        %8749 = vmatpush1.msra.mxu0 %v8724
        %8750 = vmatprep.subr.mxu0 0.0
        %8751 = vmatpush1.msra.mxu0 %v8725
        %8752 = vmatprep.subr.mxu0 0.0
        %8753 = vmatpush1.msra.mxu0 %v8726
        %8754 = vmatprep.subr.mxu0 0.0
        %8755 = vmatpush1.msra.mxu0 %v8727
        %8756 = vmatprep.subr.mxu0 0.0
        %8757 = vmatpush1.msra.mxu0 %v8728
        %8758 = vmatprep.subr.mxu0 0.0
        %8759 = vmatpush1.msra.mxu0 %v8729
        %8760 = vmatprep.subr.mxu0 0.0
        %8761 = vmatpush1.msra.mxu0 %v8730
        %8762 = vmatprep.subr.mxu0 0.0
        %8763 = vmatpush1.msra.mxu0 %v8731
        %8764 = vmatprep.subr.mxu0 0.0
        %8765 = vmatpush1.msra.mxu0 %v8732
        %8766 = vmatprep.subr.mxu0 0.0
        %8767 = vmatpush1.msra.mxu0 0.0
        %8768 = vmatprep.subr.mxu0 0.0
        %8769 = vmatpush1.msra.mxu0 0.0
        %8770 = vmatprep.subr.mxu0 0.0
        %8771 = vmatpush1.msra.mxu0 0.0
        %8772 = vmatprep.subr.mxu0 0.0
        %8773 = vmatpush1.msra.mxu0 0.0
        %8774 = vmatprep.subr.mxu0 0.0
        %8775 = vmatpush1.msra.mxu0 0.0
        %8776 = vmatprep.subr.mxu0 0.0
        %8777 = vmatpush1.msra.mxu0 0.0
        %8778 = vmatprep.subr.mxu0 0.0
        %8779 = vmatpush1.msra.mxu0 0.0
        %8780 = vmatprep.subr.mxu0 0.0
        %8781 = vmatpush1.msra.mxu0 0.0
        %8782 = vmatprep.subr.mxu0 0.0
        %8783 = vmatpush1.msra.mxu0 0.0
        %8784 = vmatprep.subr.mxu0 0.0
        %8785 = vmatpush1.msra.mxu0 0.0
        %8786 = vmatprep.subr.mxu0 0.0
        %8787 = vmatpush1.msra.mxu0 0.0
        %8788 = vmatprep.subr.mxu0 0.0
        %8789 = vmatpush1.msra.mxu0 0.0
        %8790 = vmatprep.subr.mxu0 0.0
        %8791 = vmatpush1.msra.mxu0 0.0
        %8792 = vmatprep.subr.mxu0 0.0
        %8793 = vmatpush1.msra.mxu0 0.0
        %8794 = vmatprep.subr.mxu0 0.0
        %8795 = vmatpush1.msra.mxu0 0.0
        %8796 = vmatprep.subr.mxu0 0.0
        %8797 = vmatpush1.msra.mxu0 0.0
        %8798 = vmatprep.mubr.f32.mxu0 0.0
        %8799 = vmatmul.mubr.f32.gmra.mrb[0].mxu0 %v8716
        %v8800 = vpop.f32.mrb[0].mxu0
        %v8801 = vadd.f32 %v8733, %v8800
        %v8802 = vpop.f32.mrb[0].mxu0
        %8803 = vdwg.mxu0
        %vm8804 = vcmask 73728
        %8805 = vst.msk [vmem:[%s1566] sm:$0x1] %vm8804, %v8801
        %s8806 = sand.u32 %s1247, 1
        %s8807 = scalar_lea.sflag [#allocation3], %s8806
        %s8808 = sand.u32 %s1247, 1
        %s8809 = scalar_lea.vmem [#allocation2], %s8808
        // Predicated region
        $region233: #{resnet_forward.1} parent=231 // pred_check
          %p8810 = pneg %p1257
        $region234: #{resnet_forward.1} parent=231 // pred_check_branch
          %8812 = sbr.rel (%p8810) target = $region236
        $region235: #{resnet_forward.1} parent=231 // pred_region
          %s8814 = ssub.s32 16, 16
          %8815 = vsyncadd %s8807, %s8814
          %s8816 = smul.addr %s121, 16
          %s8817 = scalar_lea.hbm %s107, %s8816
          %s8819 = sshll.u32 %s8809, 4
          %s8820 = int_to_ptr.vmem [resolvable:$true] %s8819
          %8822 = dma.vmem_to_hbm [thread:$0]  %s8820, 16, %s8817, %s8807
        $region236: #{resnet_forward.1} parent=231 // pred_fallthru
          _
      $region232: #{resnet_forward.1} parent=5 // pred_fallthru
        _
      %p8823 = scmp.le.s32.totalorder 2, %s116
      // Predicated region
      $region237: #{resnet_forward.1} parent=5 // pred_check
        %p8824 = pneg %p8823
      $region238: #{resnet_forward.1} parent=5 // pred_check_branch
        %8826 = sbr.rel (%p8824) target = $region240
      $region239: #{resnet_forward.1} parent=5 // pred_region
        %s8827 = ssub.s32 %s116, 2
        // Predicated region
        $region241: #{resnet_forward.1} parent=239 // pred_check
          %p8828 = pneg %p1263
        $region242: #{resnet_forward.1} parent=239 // pred_check_branch
          %8830 = sbr.rel (%p8828) target = $region244
        $region243: #{resnet_forward.1} parent=239 // pred_region
          %s8831 = sand.u32 %s1248, 1
          %s8832 = scalar_lea.sflag [#allocation3], %s8831
          %s8833 = sand.u32 %s1248, 1
          %s8834 = scalar_lea.vmem [#allocation2], %s8833
          %8835 = dma.done %s8832, 16
        $region244: #{resnet_forward.1} parent=239 // pred_fallthru
          _
      $region240: #{resnet_forward.1} parent=5 // pred_fallthru
        _
    $region6: #{resnet_forward.1} parent=1 // loop_footer
      %s120 = sadd.s32 1, %s116
    $region7: #{resnet_forward.1} parent=1 // loop_footer_branch
      %115 = sbr.rel target = $region3
    $region8: #{resnet_forward.1} parent=1 // loop_exit
      _
    %8836 = vsyncpa [#allocation3], 1
    %s8837 = scalar_lea.sflag [#allocation3], 1
    %8838 = vsyncpa %s8837, 1

</llo_original>
